<compile_context>
chip_gen: v7x
topology: tpu7x:2x2x1
jax: 0.10.0
libtpu: 0.0.40
codegen_flags: <defaults>
</compile_context>

<pallas_src>
import jax
import jax.numpy as jnp
from jax.experimental import pallas as pl
from jax.experimental.pallas import tpu as pltpu


NUM_LAYERS = 8   # 4 encoder linears + 4 decoder linears
LANE = 128
SUBLANE = 8


def _round_up(x, m):
    return ((x + m - 1) // m) * m


def _make_dae_kernel(out_dims_p):
    """Build the fused 8x (matmul + bias + ReLU) kernel for padded widths."""
    n = len(out_dims_p)

    def kernel(x_ref, *refs):
        w_refs = refs[:n]        # bf16 [in_p, out_p] weights (VMEM-resident)
        bias_ref = refs[n]       # f32  [n, max_out_p] packed biases
        o_ref = refs[n + 1]      # f32  [tile_b, out_p] output block

        h = x_ref[...]                                # already bf16 (wrapper cast)
        for i in range(n):
            w = w_refs[i][...]
            b = bias_ref[pl.ds(i, 1), pl.ds(0, out_dims_p[i])]   # [1, out_p]
            y = jnp.dot(h, w, preferred_element_type=jnp.float32) + b
            y = jnp.maximum(y, 0.0)                   # ReLU after every linear
            if i + 1 < n:
                h = y.astype(jnp.bfloat16)
            else:
                o_ref[...] = y.astype(o_ref.dtype)

    return kernel


def make_dae_params(input_dim, embedding_dim, key):
    """Deterministic f32 parameter init (shapes/init match the PyTorch module).

    Weights are stored [in, out] (transposed vs. torch's [out, in]) so the hot
    path is a plain `x @ W + b` on the MXU.
    """
    enc = [input_dim, 500, 500, 2000, embedding_dim]
    dec = [embedding_dim, 2000, 500, 500, input_dim]
    dims = list(zip(enc[:-1], enc[1:])) + list(zip(dec[:-1], dec[1:]))

    params = []
    for (d_in, d_out) in dims:
        key, kw, kb = jax.random.split(key, 3)
        bound = 1.0 / float(d_in) ** 0.5
        w = jax.random.uniform(kw, (d_in, d_out), jnp.float32, -bound, bound)
        b = jax.random.uniform(kb, (d_out,), jnp.float32, -bound, bound)
        params.append((w, b))
    return params


def prepare_params(params):
    """Cast weights to bf16, zero-pad feature dims to 128-lane multiples, and
    pack all biases into a single [num_layers, max_out_p] f32 array.

    Padded lanes are exactly zero (see zero-padding invariant at file top).
    """
    in_dims = [w.shape[0] for (w, _) in params]
    out_dims = [w.shape[1] for (w, _) in params]
    in_p = [_round_up(d, LANE) for d in in_dims]
    out_p = [_round_up(d, LANE) for d in out_dims]
    max_out_p = max(out_p)

    # Chain consistency: layer i+1 input dim == layer i output dim.
    for i in range(len(params) - 1):
        assert in_dims[i + 1] == out_dims[i], (in_dims[i + 1], out_dims[i])

    weights = []
    bias_pack = jnp.zeros((len(params), max_out_p), jnp.float32)
    for i, (w, b) in enumerate(params):
        wp = jnp.zeros((in_p[i], out_p[i]), jnp.bfloat16)
        wp = wp.at[: w.shape[0], : w.shape[1]].set(w.astype(jnp.bfloat16))
        weights.append(wp)
        bias_pack = bias_pack.at[i, : b.shape[0]].set(b)

    return {
        "weights": tuple(weights),
        "bias_pack": bias_pack,
        "out_dims_p": tuple(out_p),
        "in_dim": in_dims[0],
        "in_dim_p": in_p[0],
        "out_dim": out_dims[-1],
        "out_dim_p": out_p[-1],
    }


def _choose_batch_tiling(batch, batch_tile):
    """Pick (tile_b, num_tiles) with minimal padding, tile_b a SUBLANE multiple,
    tile_b <= batch_tile, and >=2 tiles when possible (v7x dual-TC)."""
    batch_su = _round_up(batch, SUBLANE)
    cap = max(SUBLANE, min(batch_tile, batch_su))
    num_tiles = pl.cdiv(batch_su, cap)
    if batch_su >= 2 * SUBLANE:
        num_tiles = max(num_tiles, 2)          # let both v7x TCs get work
    tile_b = _round_up(pl.cdiv(batch_su, num_tiles), SUBLANE)
    num_tiles = pl.cdiv(batch_su, tile_b)
    return tile_b, num_tiles


def dae_forward(x, prepped, *, batch_tile=256):
    """Flatten glue + one pallas_call over the whole padded/bf16 MLP chain."""
    if x.ndim > 2:
        x = x.reshape(x.shape[0], -1)        # nn.Flatten equivalent
    batch, in_dim = x.shape
    assert in_dim == prepped["in_dim"], (in_dim, prepped["in_dim"])

    in_dim_p = prepped["in_dim_p"]
    out_dim_p = prepped["out_dim_p"]
    weights = prepped["weights"]
    bias_pack = prepped["bias_pack"]

    tile_b, num_tiles = _choose_batch_tiling(batch, batch_tile)
    batch_p = tile_b * num_tiles

    # Cast to bf16 in the wrapper: halves the per-tile input DMA / VMEM and
    # removes one in-kernel cast.  Zero padding is unaffected.
    x = x.astype(jnp.bfloat16)
    if (batch_p, in_dim_p) != (batch, in_dim):
        x = jnp.pad(x, ((0, batch_p - batch), (0, in_dim_p - in_dim)))

    kernel = _make_dae_kernel(prepped["out_dims_p"])

    def const_spec(a):
        # Full-array block, constant index_map -> VMEM-resident across all grid
        # steps; Buffered(1) avoids the default 2x buffering of invariants.
        assert a.ndim == 2
        return pl.BlockSpec(a.shape, lambda i: (0, 0),
                            pipeline_mode=pl.Buffered(1))

    out = pl.pallas_call(
        kernel,
        out_shape=jax.ShapeDtypeStruct((batch_p, out_dim_p), jnp.float32),
        grid=(num_tiles,),
        in_specs=[pl.BlockSpec((tile_b, in_dim_p), lambda i: (i, 0))]
        + [const_spec(w) for w in weights]
        + [const_spec(bias_pack)],
        out_specs=pl.BlockSpec((tile_b, out_dim_p), lambda i: (i, 0)),
        compiler_params=pltpu.CompilerParams(
            dimension_semantics=("parallel",),  # batch tiles across TCs (v7x)
            vmem_limit_bytes=32 << 20,          # fits working set, < v7x 64 MiB
        ),
    )(x, *weights, bias_pack)

    return out[:batch, : prepped["out_dim"]]


def dae_reference(x, params):
    """Pure-JAX reference mirroring the kernel numerics (bf16 weights and
    activations, f32 accumulate, f32 bias) on the unpadded logical shapes."""
    if x.ndim > 2:
        x = x.reshape(x.shape[0], -1)
    h = x.astype(jnp.bfloat16)
    y = None
    for (w, b) in params:
        y = jnp.dot(h, w.astype(jnp.bfloat16),
                    preferred_element_type=jnp.float32) + b
        y = jnp.maximum(y, 0.0)
        h = y.astype(jnp.bfloat16)
    return y


if __name__ == "__main__":
    key = jax.random.PRNGKey(0)
    k_x, k_p = jax.random.split(key)

    # DAE(input_shape=(16, 8), embedding_shape=32) -> flattened input dim 128
    batch = 8
    input_shape = (16, 8)
    input_dim = input_shape[0] * input_shape[1]
    embedding_dim = 32

    x = jax.random.normal(k_x, (batch,) + input_shape, dtype=jnp.float32)
    params = make_dae_params(input_dim, embedding_dim, k_p)
    prepped = prepare_params(params)

    out = dae_forward(x, prepped)
    out = jax.block_until_ready(out)

    ref = dae_reference(x, params)
    assert out.shape == (batch, input_dim), out.shape
    max_err = float(jnp.max(jnp.abs(out - ref)))
    assert jnp.allclose(out, ref, atol=5e-3, rtol=5e-3), max_err

    print("KERNEL_OK")
</pallas_src>

<mosaic_0001>
module attributes {stable_mosaic.version = 11 : i64} {
  func.func @kernel(%arg0: i32, %arg1: memref<8x128xbf16, #tpu.memory_space<vmem>>, %arg2: memref<128x512xbf16, #tpu.memory_space<vmem>>, %arg3: memref<512x512xbf16, #tpu.memory_space<vmem>>, %arg4: memref<512x2048xbf16, #tpu.memory_space<vmem>>, %arg5: memref<2048x128xbf16, #tpu.memory_space<vmem>>, %arg6: memref<128x2048xbf16, #tpu.memory_space<vmem>>, %arg7: memref<2048x512xbf16, #tpu.memory_space<vmem>>, %arg8: memref<512x512xbf16, #tpu.memory_space<vmem>>, %arg9: memref<512x128xbf16, #tpu.memory_space<vmem>>, %arg10: memref<8x2048xf32, #tpu.memory_space<vmem>>, %arg11: memref<8x128xf32, #tpu.memory_space<vmem>>) attributes {dimension_semantics = [#tpu.dimension_semantics<parallel>], iteration_bounds = array<i64: 1>, scalar_prefetch = 0 : i64, scratch_operands = 0 : i64, tpu.core_type = #tpu.core_type<tc>, window_params = [{transform_indices = @transform_0, window_bounds = array<i64: 8, 128>}, {pipeline_mode = #tpu.pipeline_mode<synchronous>, transform_indices = @transform_1, window_bounds = array<i64: 128, 512>}, {pipeline_mode = #tpu.pipeline_mode<synchronous>, transform_indices = @transform_2, window_bounds = array<i64: 512, 512>}, {pipeline_mode = #tpu.pipeline_mode<synchronous>, transform_indices = @transform_3, window_bounds = array<i64: 512, 2048>}, {pipeline_mode = #tpu.pipeline_mode<synchronous>, transform_indices = @transform_4, window_bounds = array<i64: 2048, 128>}, {pipeline_mode = #tpu.pipeline_mode<synchronous>, transform_indices = @transform_5, window_bounds = array<i64: 128, 2048>}, {pipeline_mode = #tpu.pipeline_mode<synchronous>, transform_indices = @transform_6, window_bounds = array<i64: 2048, 512>}, {pipeline_mode = #tpu.pipeline_mode<synchronous>, transform_indices = @transform_7, window_bounds = array<i64: 512, 512>}, {pipeline_mode = #tpu.pipeline_mode<synchronous>, transform_indices = @transform_8, window_bounds = array<i64: 512, 128>}, {pipeline_mode = #tpu.pipeline_mode<synchronous>, transform_indices = @transform_9, window_bounds = array<i64: 8, 2048>}, {transform_indices = @transform_10, window_bounds = array<i64: 8, 128>}]} {
    %c0 = arith.constant 0 : index
    %c0_0 = arith.constant 0 : index
    %0 = vector.load %arg1[%c0, %c0_0] : memref<8x128xbf16, #tpu.memory_space<vmem>>, vector<8x128xbf16>
    %c0_1 = arith.constant 0 : index
    %c0_2 = arith.constant 0 : index
    %1 = vector.load %arg2[%c0_1, %c0_2] : memref<128x512xbf16, #tpu.memory_space<vmem>>, vector<128x512xbf16>
    %c0_3 = arith.constant 0 : index
    %c0_4 = arith.constant 0 : index
    %2 = vector.load %arg10[%c0_3, %c0_4] : memref<8x2048xf32, #tpu.memory_space<vmem>>, vector<1x512xf32>
    %cst = arith.constant dense<0.000000e+00> : vector<8x512xf32>
    %3 = tpu.matmul %0, %1, %cst {dimension_numbers = #tpu.dot_dimension_numbers<[1], [0], [0], [1], [0, 0, 1, 1], [], []>} : vector<8x128xbf16>, vector<128x512xbf16>, vector<8x512xf32> -> vector<8x512xf32>
    %4 = vector.broadcast %2 : vector<1x512xf32> to vector<8x512xf32>
    %5 = arith.addf %3, %4 : vector<8x512xf32>
    %cst_5 = arith.constant 0.000000e+00 : f32
    %6 = vector.broadcast %cst_5 : f32 to vector<8x512xf32>
    %7 = arith.maximumf %5, %6 : vector<8x512xf32>
    %8 = arith.truncf %7 : vector<8x512xf32> to vector<8x512xbf16>
    %c0_6 = arith.constant 0 : index
    %c0_7 = arith.constant 0 : index
    %9 = vector.load %arg3[%c0_6, %c0_7] : memref<512x512xbf16, #tpu.memory_space<vmem>>, vector<512x512xbf16>
    %c1 = arith.constant 1 : index
    %c0_8 = arith.constant 0 : index
    %10 = vector.load %arg10[%c1, %c0_8] : memref<8x2048xf32, #tpu.memory_space<vmem>>, vector<1x512xf32>
    %cst_9 = arith.constant dense<0.000000e+00> : vector<8x512xf32>
    %11 = tpu.matmul %8, %9, %cst_9 {dimension_numbers = #tpu.dot_dimension_numbers<[1], [0], [0], [1], [0, 0, 1, 1], [], []>} : vector<8x512xbf16>, vector<512x512xbf16>, vector<8x512xf32> -> vector<8x512xf32>
    %12 = vector.broadcast %10 : vector<1x512xf32> to vector<8x512xf32>
    %13 = arith.addf %11, %12 : vector<8x512xf32>
    %cst_10 = arith.constant 0.000000e+00 : f32
    %14 = vector.broadcast %cst_10 : f32 to vector<8x512xf32>
    %15 = arith.maximumf %13, %14 : vector<8x512xf32>
    %16 = arith.truncf %15 : vector<8x512xf32> to vector<8x512xbf16>
    %c0_11 = arith.constant 0 : index
    %c0_12 = arith.constant 0 : index
    %17 = vector.load %arg4[%c0_11, %c0_12] : memref<512x2048xbf16, #tpu.memory_space<vmem>>, vector<512x2048xbf16>
    %c2 = arith.constant 2 : index
    %c0_13 = arith.constant 0 : index
    %18 = vector.load %arg10[%c2, %c0_13] : memref<8x2048xf32, #tpu.memory_space<vmem>>, vector<1x2048xf32>
    %cst_14 = arith.constant dense<0.000000e+00> : vector<8x2048xf32>
    %19 = tpu.matmul %16, %17, %cst_14 {dimension_numbers = #tpu.dot_dimension_numbers<[1], [0], [0], [1], [0, 0, 1, 1], [], []>} : vector<8x512xbf16>, vector<512x2048xbf16>, vector<8x2048xf32> -> vector<8x2048xf32>
    %20 = vector.broadcast %18 : vector<1x2048xf32> to vector<8x2048xf32>
    %21 = arith.addf %19, %20 : vector<8x2048xf32>
    %cst_15 = arith.constant 0.000000e+00 : f32
    %22 = vector.broadcast %cst_15 : f32 to vector<8x2048xf32>
    %23 = arith.maximumf %21, %22 : vector<8x2048xf32>
    %24 = arith.truncf %23 : vector<8x2048xf32> to vector<8x2048xbf16>
    %c0_16 = arith.constant 0 : index
    %c0_17 = arith.constant 0 : index
    %25 = vector.load %arg5[%c0_16, %c0_17] : memref<2048x128xbf16, #tpu.memory_space<vmem>>, vector<2048x128xbf16>
    %c3 = arith.constant 3 : index
    %c0_18 = arith.constant 0 : index
    %26 = vector.load %arg10[%c3, %c0_18] : memref<8x2048xf32, #tpu.memory_space<vmem>>, vector<1x128xf32>
    %cst_19 = arith.constant dense<0.000000e+00> : vector<8x128xf32>
    %27 = tpu.matmul %24, %25, %cst_19 {dimension_numbers = #tpu.dot_dimension_numbers<[1], [0], [0], [1], [0, 0, 1, 1], [], []>} : vector<8x2048xbf16>, vector<2048x128xbf16>, vector<8x128xf32> -> vector<8x128xf32>
    %28 = vector.broadcast %26 : vector<1x128xf32> to vector<8x128xf32>
    %29 = arith.addf %27, %28 : vector<8x128xf32>
    %cst_20 = arith.constant 0.000000e+00 : f32
    %30 = vector.broadcast %cst_20 : f32 to vector<8x128xf32>
    %31 = arith.maximumf %29, %30 : vector<8x128xf32>
    %32 = arith.truncf %31 : vector<8x128xf32> to vector<8x128xbf16>
    %c0_21 = arith.constant 0 : index
    %c0_22 = arith.constant 0 : index
    %33 = vector.load %arg6[%c0_21, %c0_22] : memref<128x2048xbf16, #tpu.memory_space<vmem>>, vector<128x2048xbf16>
    %c4 = arith.constant 4 : index
    %c0_23 = arith.constant 0 : index
    %34 = vector.load %arg10[%c4, %c0_23] : memref<8x2048xf32, #tpu.memory_space<vmem>>, vector<1x2048xf32>
    %cst_24 = arith.constant dense<0.000000e+00> : vector<8x2048xf32>
    %35 = tpu.matmul %32, %33, %cst_24 {dimension_numbers = #tpu.dot_dimension_numbers<[1], [0], [0], [1], [0, 0, 1, 1], [], []>} : vector<8x128xbf16>, vector<128x2048xbf16>, vector<8x2048xf32> -> vector<8x2048xf32>
    %36 = vector.broadcast %34 : vector<1x2048xf32> to vector<8x2048xf32>
    %37 = arith.addf %35, %36 : vector<8x2048xf32>
    %cst_25 = arith.constant 0.000000e+00 : f32
    %38 = vector.broadcast %cst_25 : f32 to vector<8x2048xf32>
    %39 = arith.maximumf %37, %38 : vector<8x2048xf32>
    %40 = arith.truncf %39 : vector<8x2048xf32> to vector<8x2048xbf16>
    %c0_26 = arith.constant 0 : index
    %c0_27 = arith.constant 0 : index
    %41 = vector.load %arg7[%c0_26, %c0_27] : memref<2048x512xbf16, #tpu.memory_space<vmem>>, vector<2048x512xbf16>
    %c5 = arith.constant 5 : index
    %c0_28 = arith.constant 0 : index
    %42 = vector.load %arg10[%c5, %c0_28] : memref<8x2048xf32, #tpu.memory_space<vmem>>, vector<1x512xf32>
    %cst_29 = arith.constant dense<0.000000e+00> : vector<8x512xf32>
    %43 = tpu.matmul %40, %41, %cst_29 {dimension_numbers = #tpu.dot_dimension_numbers<[1], [0], [0], [1], [0, 0, 1, 1], [], []>} : vector<8x2048xbf16>, vector<2048x512xbf16>, vector<8x512xf32> -> vector<8x512xf32>
    %44 = vector.broadcast %42 : vector<1x512xf32> to vector<8x512xf32>
    %45 = arith.addf %43, %44 : vector<8x512xf32>
    %cst_30 = arith.constant 0.000000e+00 : f32
    %46 = vector.broadcast %cst_30 : f32 to vector<8x512xf32>
    %47 = arith.maximumf %45, %46 : vector<8x512xf32>
    %48 = arith.truncf %47 : vector<8x512xf32> to vector<8x512xbf16>
    %c0_31 = arith.constant 0 : index
    %c0_32 = arith.constant 0 : index
    %49 = vector.load %arg8[%c0_31, %c0_32] : memref<512x512xbf16, #tpu.memory_space<vmem>>, vector<512x512xbf16>
    %c6 = arith.constant 6 : index
    %c0_33 = arith.constant 0 : index
    %50 = vector.load %arg10[%c6, %c0_33] : memref<8x2048xf32, #tpu.memory_space<vmem>>, vector<1x512xf32>
    %cst_34 = arith.constant dense<0.000000e+00> : vector<8x512xf32>
    %51 = tpu.matmul %48, %49, %cst_34 {dimension_numbers = #tpu.dot_dimension_numbers<[1], [0], [0], [1], [0, 0, 1, 1], [], []>} : vector<8x512xbf16>, vector<512x512xbf16>, vector<8x512xf32> -> vector<8x512xf32>
    %52 = vector.broadcast %50 : vector<1x512xf32> to vector<8x512xf32>
    %53 = arith.addf %51, %52 : vector<8x512xf32>
    %cst_35 = arith.constant 0.000000e+00 : f32
    %54 = vector.broadcast %cst_35 : f32 to vector<8x512xf32>
    %55 = arith.maximumf %53, %54 : vector<8x512xf32>
    %56 = arith.truncf %55 : vector<8x512xf32> to vector<8x512xbf16>
    %c0_36 = arith.constant 0 : index
    %c0_37 = arith.constant 0 : index
    %57 = vector.load %arg9[%c0_36, %c0_37] : memref<512x128xbf16, #tpu.memory_space<vmem>>, vector<512x128xbf16>
    %c7 = arith.constant 7 : index
    %c0_38 = arith.constant 0 : index
    %58 = vector.load %arg10[%c7, %c0_38] : memref<8x2048xf32, #tpu.memory_space<vmem>>, vector<1x128xf32>
    %cst_39 = arith.constant dense<0.000000e+00> : vector<8x128xf32>
    %59 = tpu.matmul %56, %57, %cst_39 {dimension_numbers = #tpu.dot_dimension_numbers<[1], [0], [0], [1], [0, 0, 1, 1], [], []>} : vector<8x512xbf16>, vector<512x128xbf16>, vector<8x128xf32> -> vector<8x128xf32>
    %60 = vector.broadcast %58 : vector<1x128xf32> to vector<8x128xf32>
    %61 = arith.addf %59, %60 : vector<8x128xf32>
    %cst_40 = arith.constant 0.000000e+00 : f32
    %62 = vector.broadcast %cst_40 : f32 to vector<8x128xf32>
    %63 = arith.maximumf %61, %62 : vector<8x128xf32>
    %c0_41 = arith.constant 0 : index
    %c0_42 = arith.constant 0 : index
    %64 = vector.load %arg11[%c0_41, %c0_42] : memref<8x128xf32, #tpu.memory_space<vmem>>, vector<8x128xf32>
    tpu.vector_store %arg11[%c0_41, %c0_42], %63 {strides = array<i32>} : memref<8x128xf32, #tpu.memory_space<vmem>>, vector<8x128xf32>,
    return
  }
  func.func @transform_0(%arg0: i32) -> (i32, i32) {
    %c0_i32 = arith.constant 0 : i32
    %c0_i32_0 = arith.constant 0 : i32
    return %arg0, %c0_i32 : i32, i32
  }
  func.func @transform_1(%arg0: i32) -> (i32, i32) {
    %c0_i32 = arith.constant 0 : i32
    %c0_i32_0 = arith.constant 0 : i32
    %c0_i32_1 = arith.constant 0 : i32
    return %c0_i32, %c0_i32_0 : i32, i32
  }
  func.func @transform_2(%arg0: i32) -> (i32, i32) {
    %c0_i32 = arith.constant 0 : i32
    %c0_i32_0 = arith.constant 0 : i32
    %c0_i32_1 = arith.constant 0 : i32
    return %c0_i32, %c0_i32_0 : i32, i32
  }
  func.func @transform_3(%arg0: i32) -> (i32, i32) {
    %c0_i32 = arith.constant 0 : i32
    %c0_i32_0 = arith.constant 0 : i32
    %c0_i32_1 = arith.constant 0 : i32
    return %c0_i32, %c0_i32_0 : i32, i32
  }
  func.func @transform_4(%arg0: i32) -> (i32, i32) {
    %c0_i32 = arith.constant 0 : i32
    %c0_i32_0 = arith.constant 0 : i32
    %c0_i32_1 = arith.constant 0 : i32
    return %c0_i32, %c0_i32_0 : i32, i32
  }
  func.func @transform_5(%arg0: i32) -> (i32, i32) {
    %c0_i32 = arith.constant 0 : i32
    %c0_i32_0 = arith.constant 0 : i32
    %c0_i32_1 = arith.constant 0 : i32
    return %c0_i32, %c0_i32_0 : i32, i32
  }
  func.func @transform_6(%arg0: i32) -> (i32, i32) {
    %c0_i32 = arith.constant 0 : i32
    %c0_i32_0 = arith.constant 0 : i32
    %c0_i32_1 = arith.constant 0 : i32
    return %c0_i32, %c0_i32_0 : i32, i32
  }
  func.func @transform_7(%arg0: i32) -> (i32, i32) {
    %c0_i32 = arith.constant 0 : i32
    %c0_i32_0 = arith.constant 0 : i32
    %c0_i32_1 = arith.constant 0 : i32
    return %c0_i32, %c0_i32_0 : i32, i32
  }
  func.func @transform_8(%arg0: i32) -> (i32, i32) {
    %c0_i32 = arith.constant 0 : i32
    %c0_i32_0 = arith.constant 0 : i32
    %c0_i32_1 = arith.constant 0 : i32
    return %c0_i32, %c0_i32_0 : i32, i32
  }
  func.func @transform_9(%arg0: i32) -> (i32, i32) {
    %c0_i32 = arith.constant 0 : i32
    %c0_i32_0 = arith.constant 0 : i32
    %c0_i32_1 = arith.constant 0 : i32
    return %c0_i32, %c0_i32_0 : i32, i32
  }
  func.func @transform_10(%arg0: i32) -> (i32, i32) {
    %c0_i32 = arith.constant 0 : i32
    %c0_i32_0 = arith.constant 0 : i32
    return %arg0, %c0_i32 : i32, i32
  }
}

</mosaic_0001>

<llo_original>
// kernel: tpu_custom_call.1
$region0: #{tpu_custom_call.1}
  #allocation0 [shape = 'u32[]', space=smem, size = 0x4, offset = 0x4, fixed_abs, tag = 'smem constant byte address 0x4 - core index']
  #allocation1 [shape = 'u32[144,128]{1,0:T(1,128)}', space=vmem, size = 0x12000, scoped, tag = 'internal scratch']
  %s0 = inlined_call_operand.hbm [shape: bf16[8,128], index: 0, kind: input, shape index: {}]
  %s1 = inlined_call_operand.hbm [shape: bf16[128,512], index: 1, kind: input, shape index: {}]
  %s2 = inlined_call_operand.hbm [shape: bf16[512,512], index: 2, kind: input, shape index: {}]
  %s3 = inlined_call_operand.hbm [shape: bf16[512,2048], index: 3, kind: input, shape index: {}]
  %s4 = inlined_call_operand.hbm [shape: bf16[2048,128], index: 4, kind: input, shape index: {}]
  %s5 = inlined_call_operand.hbm [shape: bf16[128,2048], index: 5, kind: input, shape index: {}]
  %s6 = inlined_call_operand.hbm [shape: bf16[2048,512], index: 6, kind: input, shape index: {}]
  %s7 = inlined_call_operand.hbm [shape: bf16[512,512], index: 7, kind: input, shape index: {}]
  %s8 = inlined_call_operand.hbm [shape: bf16[512,128], index: 8, kind: input, shape index: {}]
  %s9 = inlined_call_operand.hbm [shape: f32[8,2048], index: 9, kind: input, shape index: {}]
  %s10 = inlined_call_operand.hbm [shape: f32[8,128], index: 10, kind: output, shape index: {}]
  %s11 = sld [smem:[#allocation0]]
  $region90: #{tpu_custom_call.1} parent=0
    _
  %s13 = ssub.s32 1, %s11
  %s14 = scalar_select 0, %s13, %s11
  $region1: #{tpu_custom_call.1} parent=0
    #allocation2 [shape = 'u8[2048]{0}', space=vmem, size = 0x800, scoped, tag = 'input window, operand 0, single buffered']
    #allocation3 [shape = 's32[1]{0}', space=sflag, size = 0x4, scoped, tag = 'scoped memory for tpu_custom_call.1']
    #allocation4 [shape = 's32[1]{0}', space=sflag, size = 0x4, scoped, tag = 'scoped memory for tpu_custom_call.1']
    #allocation5 [shape = 'u8[131072]{0}', space=vmem, size = 0x20000, scoped, tag = 'input window, operand 1, single buffered']
    #allocation6 [shape = 's32[1]{0}', space=sflag, size = 0x4, scoped, tag = 'scoped memory for tpu_custom_call.1']
    #allocation7 [shape = 'u8[524288]{0}', space=vmem, size = 0x80000, scoped, tag = 'input window, operand 2, single buffered']
    #allocation8 [shape = 'u8[2097152]{0}', space=vmem, size = 0x200000, scoped, tag = 'input window, operand 3, single buffered']
    #allocation9 [shape = 's32[1]{0}', space=sflag, size = 0x4, scoped, tag = 'scoped memory for tpu_custom_call.1']
    #allocation10 [shape = 'u8[524288]{0}', space=vmem, size = 0x80000, scoped, tag = 'input window, operand 4, single buffered']
    #allocation11 [shape = 'u8[524288]{0}', space=vmem, size = 0x80000, scoped, tag = 'input window, operand 5, single buffered']
    #allocation12 [shape = 's32[1]{0}', space=sflag, size = 0x4, scoped, tag = 'scoped memory for tpu_custom_call.1']
    #allocation13 [shape = 'u8[2097152]{0}', space=vmem, size = 0x200000, scoped, tag = 'input window, operand 6, single buffered']
    #allocation14 [shape = 'u8[524288]{0}', space=vmem, size = 0x80000, scoped, tag = 'input window, operand 7, single buffered']
    #allocation15 [shape = 's32[1]{0}', space=sflag, size = 0x4, scoped, tag = 'scoped memory for tpu_custom_call.1']
    #allocation16 [shape = 'u8[131072]{0}', space=vmem, size = 0x20000, scoped, tag = 'input window, operand 8, single buffered']
    #allocation17 [shape = 'u8[65536]{0}', space=vmem, size = 0x10000, scoped, tag = 'input window, operand 9, single buffered']
    #allocation18 [shape = 's32[1]{0}', space=sflag, size = 0x4, scoped, tag = 'scoped memory for tpu_custom_call.1']
    #allocation19 [shape = 'u8[4096]{0}', space=vmem, size = 0x1000, scoped, tag = 'output window, operand 0, single buffered']
    %15 = vsyncpa [#allocation3], 0
    %16 = vsyncpa [#allocation6], 0
    %17 = vsyncpa [#allocation9], 0
    %18 = vsyncpa [#allocation12], 0
    %19 = vsyncpa [#allocation15], 0
    %20 = vsyncpa [#allocation18], 0
    %21 = vsyncpa [#allocation4], 0
    // Predicated region
    $region2: #{tpu_custom_call.1} parent=1 // pred_check
      _
    $region3: #{tpu_custom_call.1} parent=1 // pred_check_branch
      %23 = sbr.rel (0) target = $region5
    $region4: #{tpu_custom_call.1} parent=1 // pred_region
      %s25 = ssub.s32 64, 64
      %26 = vsyncadd [#allocation3], %s25
      %s28 = sshll.u32 [#allocation2], 4
      %s29 = int_to_ptr.vmem [resolvable:$true] %s28
      %31 = dma.hbm_to_vmem [thread:$0]  %s0, 64, %s29, [#allocation3]
    $region5: #{tpu_custom_call.1} parent=1 // pred_fallthru
      _
    // Predicated region
    $region6: #{tpu_custom_call.1} parent=1 // pred_check
      _
    $region7: #{tpu_custom_call.1} parent=1 // pred_check_branch
      %33 = sbr.rel (0) target = $region9
    $region8: #{tpu_custom_call.1} parent=1 // pred_region
      %s35 = ssub.s32 4096, 4096
      %36 = vsyncadd [#allocation6], %s35
      %s37 = sshll.u32 [#allocation5], 4
      %s38 = int_to_ptr.vmem [resolvable:$true] %s37
      %43 = dma.hbm_to_vmem [thread:$0]  %s1, 4096, %s38, [#allocation6], 256, 256, 16
    $region9: #{tpu_custom_call.1} parent=1 // pred_fallthru
      _
    // Predicated region
    $region10: #{tpu_custom_call.1} parent=1 // pred_check
      _
    $region11: #{tpu_custom_call.1} parent=1 // pred_check_branch
      %45 = sbr.rel (0) target = $region13
    $region12: #{tpu_custom_call.1} parent=1 // pred_region
      %s47 = ssub.s32 16384, 16384
      %48 = vsyncadd [#allocation6], %s47
      %s49 = sshll.u32 [#allocation7], 4
      %s50 = int_to_ptr.vmem [resolvable:$true] %s49
      %55 = dma.hbm_to_vmem [thread:$0]  %s2, 16384, %s50, [#allocation6], 256, 256, 16
    $region13: #{tpu_custom_call.1} parent=1 // pred_fallthru
      _
    // Predicated region
    $region14: #{tpu_custom_call.1} parent=1 // pred_check
      _
    $region15: #{tpu_custom_call.1} parent=1 // pred_check_branch
      %57 = sbr.rel (0) target = $region17
    $region16: #{tpu_custom_call.1} parent=1 // pred_region
      %s59 = ssub.s32 65536, 65536
      %60 = vsyncadd [#allocation9], %s59
      %s61 = sshll.u32 [#allocation8], 4
      %s62 = int_to_ptr.vmem [resolvable:$true] %s61
      %67 = dma.hbm_to_vmem [thread:$0]  %s3, 65536, %s62, [#allocation9], 1024, 1024, 64
    $region17: #{tpu_custom_call.1} parent=1 // pred_fallthru
      _
    // Predicated region
    $region18: #{tpu_custom_call.1} parent=1 // pred_check
      _
    $region19: #{tpu_custom_call.1} parent=1 // pred_check_branch
      %69 = sbr.rel (0) target = $region21
    $region20: #{tpu_custom_call.1} parent=1 // pred_region
      %s71 = ssub.s32 16384, 16384
      %72 = vsyncadd [#allocation9], %s71
      %s73 = sshll.u32 [#allocation10], 4
      %s74 = int_to_ptr.vmem [resolvable:$true] %s73
      %79 = dma.hbm_to_vmem [thread:$0]  %s4, 16384, %s74, [#allocation9], 64, 64, 4
    $region21: #{tpu_custom_call.1} parent=1 // pred_fallthru
      _
    // Predicated region
    $region22: #{tpu_custom_call.1} parent=1 // pred_check
      _
    $region23: #{tpu_custom_call.1} parent=1 // pred_check_branch
      %81 = sbr.rel (0) target = $region25
    $region24: #{tpu_custom_call.1} parent=1 // pred_region
      %s83 = ssub.s32 16384, 16384
      %84 = vsyncadd [#allocation12], %s83
      %s85 = sshll.u32 [#allocation11], 4
      %s86 = int_to_ptr.vmem [resolvable:$true] %s85
      %91 = dma.hbm_to_vmem [thread:$0]  %s5, 16384, %s86, [#allocation12], 1024, 1024, 64
    $region25: #{tpu_custom_call.1} parent=1 // pred_fallthru
      _
    // Predicated region
    $region26: #{tpu_custom_call.1} parent=1 // pred_check
      _
    $region27: #{tpu_custom_call.1} parent=1 // pred_check_branch
      %93 = sbr.rel (0) target = $region29
    $region28: #{tpu_custom_call.1} parent=1 // pred_region
      %s95 = ssub.s32 65536, 65536
      %96 = vsyncadd [#allocation12], %s95
      %s97 = sshll.u32 [#allocation13], 4
      %s98 = int_to_ptr.vmem [resolvable:$true] %s97
      %103 = dma.hbm_to_vmem [thread:$0]  %s6, 65536, %s98, [#allocation12], 256, 256, 16
    $region29: #{tpu_custom_call.1} parent=1 // pred_fallthru
      _
    // Predicated region
    $region30: #{tpu_custom_call.1} parent=1 // pred_check
      _
    $region31: #{tpu_custom_call.1} parent=1 // pred_check_branch
      %105 = sbr.rel (0) target = $region33
    $region32: #{tpu_custom_call.1} parent=1 // pred_region
      %s107 = ssub.s32 16384, 16384
      %108 = vsyncadd [#allocation15], %s107
      %s109 = sshll.u32 [#allocation14], 4
      %s110 = int_to_ptr.vmem [resolvable:$true] %s109
      %115 = dma.hbm_to_vmem [thread:$0]  %s7, 16384, %s110, [#allocation15], 256, 256, 16
    $region33: #{tpu_custom_call.1} parent=1 // pred_fallthru
      _
    // Predicated region
    $region34: #{tpu_custom_call.1} parent=1 // pred_check
      _
    $region35: #{tpu_custom_call.1} parent=1 // pred_check_branch
      %117 = sbr.rel (0) target = $region37
    $region36: #{tpu_custom_call.1} parent=1 // pred_region
      %s119 = ssub.s32 4096, 4096
      %120 = vsyncadd [#allocation15], %s119
      %s121 = sshll.u32 [#allocation16], 4
      %s122 = int_to_ptr.vmem [resolvable:$true] %s121
      %127 = dma.hbm_to_vmem [thread:$0]  %s8, 4096, %s122, [#allocation15], 64, 64, 4
    $region37: #{tpu_custom_call.1} parent=1 // pred_fallthru
      _
    // Predicated region
    $region38: #{tpu_custom_call.1} parent=1 // pred_check
      _
    $region39: #{tpu_custom_call.1} parent=1 // pred_check_branch
      %129 = sbr.rel (0) target = $region41
    $region40: #{tpu_custom_call.1} parent=1 // pred_region
      %s131 = ssub.s32 2048, 2048
      %132 = vsyncadd [#allocation18], %s131
      %s134 = sshll.u32 [#allocation17], 4
      %s135 = int_to_ptr.vmem [resolvable:$true] %s134
      %137 = dma.hbm_to_vmem [thread:$0]  %s9, 2048, %s135, [#allocation18]
    $region41: #{tpu_custom_call.1} parent=1 // pred_fallthru
      _
    // Predicated region
    $region42: #{tpu_custom_call.1} parent=1 // pred_check
      _
    $region43: #{tpu_custom_call.1} parent=1 // pred_check_branch
      %139 = sbr.rel (0) target = $region45
    $region44: #{tpu_custom_call.1} parent=1 // pred_region
      %140 = dma.done [#allocation3], 64
    $region45: #{tpu_custom_call.1} parent=1 // pred_fallthru
      _
    // Predicated region
    $region46: #{tpu_custom_call.1} parent=1 // pred_check
      _
    $region47: #{tpu_custom_call.1} parent=1 // pred_check_branch
      %142 = sbr.rel (0) target = $region49
    $region48: #{tpu_custom_call.1} parent=1 // pred_region
      %143 = dma.done [#allocation6], 4096
    $region49: #{tpu_custom_call.1} parent=1 // pred_fallthru
      _
    // Predicated region
    $region50: #{tpu_custom_call.1} parent=1 // pred_check
      _
    $region51: #{tpu_custom_call.1} parent=1 // pred_check_branch
      %145 = sbr.rel (0) target = $region53
    $region52: #{tpu_custom_call.1} parent=1 // pred_region
      %146 = dma.done [#allocation6], 16384
    $region53: #{tpu_custom_call.1} parent=1 // pred_fallthru
      _
    // Predicated region
    $region54: #{tpu_custom_call.1} parent=1 // pred_check
      _
    $region55: #{tpu_custom_call.1} parent=1 // pred_check_branch
      %148 = sbr.rel (0) target = $region57
    $region56: #{tpu_custom_call.1} parent=1 // pred_region
      %149 = dma.done [#allocation9], 65536
    $region57: #{tpu_custom_call.1} parent=1 // pred_fallthru
      _
    // Predicated region
    $region58: #{tpu_custom_call.1} parent=1 // pred_check
      _
    $region59: #{tpu_custom_call.1} parent=1 // pred_check_branch
      %151 = sbr.rel (0) target = $region61
    $region60: #{tpu_custom_call.1} parent=1 // pred_region
      %152 = dma.done [#allocation9], 16384
    $region61: #{tpu_custom_call.1} parent=1 // pred_fallthru
      _
    // Predicated region
    $region62: #{tpu_custom_call.1} parent=1 // pred_check
      _
    $region63: #{tpu_custom_call.1} parent=1 // pred_check_branch
      %154 = sbr.rel (0) target = $region65
    $region64: #{tpu_custom_call.1} parent=1 // pred_region
      %155 = dma.done [#allocation12], 16384
    $region65: #{tpu_custom_call.1} parent=1 // pred_fallthru
      _
    // Predicated region
    $region66: #{tpu_custom_call.1} parent=1 // pred_check
      _
    $region67: #{tpu_custom_call.1} parent=1 // pred_check_branch
      %157 = sbr.rel (0) target = $region69
    $region68: #{tpu_custom_call.1} parent=1 // pred_region
      %158 = dma.done [#allocation12], 65536
    $region69: #{tpu_custom_call.1} parent=1 // pred_fallthru
      _
    // Predicated region
    $region70: #{tpu_custom_call.1} parent=1 // pred_check
      _
    $region71: #{tpu_custom_call.1} parent=1 // pred_check_branch
      %160 = sbr.rel (0) target = $region73
    $region72: #{tpu_custom_call.1} parent=1 // pred_region
      %161 = dma.done [#allocation15], 16384
    $region73: #{tpu_custom_call.1} parent=1 // pred_fallthru
      _
    // Predicated region
    $region74: #{tpu_custom_call.1} parent=1 // pred_check
      _
    $region75: #{tpu_custom_call.1} parent=1 // pred_check_branch
      %163 = sbr.rel (0) target = $region77
    $region76: #{tpu_custom_call.1} parent=1 // pred_region
      %164 = dma.done [#allocation15], 4096
    $region77: #{tpu_custom_call.1} parent=1 // pred_fallthru
      _
    // Predicated region
    $region78: #{tpu_custom_call.1} parent=1 // pred_check
      _
    $region79: #{tpu_custom_call.1} parent=1 // pred_check_branch
      %166 = sbr.rel (0) target = $region81
    $region80: #{tpu_custom_call.1} parent=1 // pred_region
      %167 = dma.done [#allocation18], 2048
    $region81: #{tpu_custom_call.1} parent=1 // pred_fallthru
      _
    %v169 = vld [vmem:[#allocation2] sm:$0xf]
    %v170 = vld [vmem:[#allocation5] sm:$0xff]
    %v171 = vld [vmem:[#allocation5 + $0x8] sm:$0xff]
    %v172 = vld [vmem:[#allocation5 + $0x10] sm:$0xff]
    %v173 = vld [vmem:[#allocation5 + $0x18] sm:$0xff]
    %v174 = vld [vmem:[#allocation5 + $0x20] sm:$0xff]
    %v175 = vld [vmem:[#allocation5 + $0x28] sm:$0xff]
    %v176 = vld [vmem:[#allocation5 + $0x30] sm:$0xff]
    %v177 = vld [vmem:[#allocation5 + $0x38] sm:$0xff]
    %v178 = vld [vmem:[#allocation5 + $0x40] sm:$0xff]
    %v179 = vld [vmem:[#allocation5 + $0x48] sm:$0xff]
    %v180 = vld [vmem:[#allocation5 + $0x50] sm:$0xff]
    %v181 = vld [vmem:[#allocation5 + $0x58] sm:$0xff]
    %v182 = vld [vmem:[#allocation5 + $0x60] sm:$0xff]
    %v183 = vld [vmem:[#allocation5 + $0x68] sm:$0xff]
    %v184 = vld [vmem:[#allocation5 + $0x70] sm:$0xff]
    %v185 = vld [vmem:[#allocation5 + $0x78] sm:$0xff]
    %v186 = vld [vmem:[#allocation5 + $0x80] sm:$0xff]
    %v187 = vld [vmem:[#allocation5 + $0x88] sm:$0xff]
    %v188 = vld [vmem:[#allocation5 + $0x90] sm:$0xff]
    %v189 = vld [vmem:[#allocation5 + $0x98] sm:$0xff]
    %v190 = vld [vmem:[#allocation5 + $0xa0] sm:$0xff]
    %v191 = vld [vmem:[#allocation5 + $0xa8] sm:$0xff]
    %v192 = vld [vmem:[#allocation5 + $0xb0] sm:$0xff]
    %v193 = vld [vmem:[#allocation5 + $0xb8] sm:$0xff]
    %v194 = vld [vmem:[#allocation5 + $0xc0] sm:$0xff]
    %v195 = vld [vmem:[#allocation5 + $0xc8] sm:$0xff]
    %v196 = vld [vmem:[#allocation5 + $0xd0] sm:$0xff]
    %v197 = vld [vmem:[#allocation5 + $0xd8] sm:$0xff]
    %v198 = vld [vmem:[#allocation5 + $0xe0] sm:$0xff]
    %v199 = vld [vmem:[#allocation5 + $0xe8] sm:$0xff]
    %v200 = vld [vmem:[#allocation5 + $0xf0] sm:$0xff]
    %v201 = vld [vmem:[#allocation5 + $0xf8] sm:$0xff]
    %v202 = vld [vmem:[#allocation17] ss:$8 sm:$0xf]
    %v204 = vlaneseq
    %v205 = vshrl.u32 %v204, 7
    %v206 = vsub.s32 0, %v205
    %v207 = vrot.slane %v202, %v206
    %v208 = vlaneseq
    %v209 = vshrl.u32 %v208, 7
    %v210 = vsub.s32 1, %v209
    %v211 = vrot.slane %v202, %v210
    %v212 = vlaneseq
    %v213 = vshrl.u32 %v212, 7
    %v214 = vsub.s32 2, %v213
    %v215 = vrot.slane %v202, %v214
    %v216 = vlaneseq
    %v217 = vshrl.u32 %v216, 7
    %v218 = vsub.s32 3, %v217
    %v219 = vrot.slane %v202, %v218
    %v256 = vunpack.c.l.b16 %v170
    %v257 = vunpack.c.h.b16 %v170
    %v258 = vunpack.c.l.b16 %v171
    %v259 = vunpack.c.h.b16 %v171
    %v260 = vunpack.c.l.b16 %v172
    %v261 = vunpack.c.h.b16 %v172
    %v262 = vunpack.c.l.b16 %v173
    %v263 = vunpack.c.h.b16 %v173
    %v264 = vunpack.c.l.b16 %v174
    %v265 = vunpack.c.h.b16 %v174
    %v266 = vunpack.c.l.b16 %v175
    %v267 = vunpack.c.h.b16 %v175
    %v268 = vunpack.c.l.b16 %v176
    %v269 = vunpack.c.h.b16 %v176
    %v270 = vunpack.c.l.b16 %v177
    %v271 = vunpack.c.h.b16 %v177
    %v272 = vunpack.c.l.b16 %v178
    %v273 = vunpack.c.h.b16 %v178
    %v274 = vunpack.c.l.b16 %v179
    %v275 = vunpack.c.h.b16 %v179
    %v276 = vunpack.c.l.b16 %v180
    %v277 = vunpack.c.h.b16 %v180
    %v278 = vunpack.c.l.b16 %v181
    %v279 = vunpack.c.h.b16 %v181
    %v280 = vunpack.c.l.b16 %v182
    %v281 = vunpack.c.h.b16 %v182
    %v282 = vunpack.c.l.b16 %v183
    %v283 = vunpack.c.h.b16 %v183
    %v284 = vunpack.c.l.b16 %v184
    %v285 = vunpack.c.h.b16 %v184
    %v286 = vunpack.c.l.b16 %v185
    %v287 = vunpack.c.h.b16 %v185
    %v288 = vunpack.c.l.b16 %v186
    %v289 = vunpack.c.h.b16 %v186
    %v290 = vunpack.c.l.b16 %v187
    %v291 = vunpack.c.h.b16 %v187
    %v292 = vunpack.c.l.b16 %v188
    %v293 = vunpack.c.h.b16 %v188
    %v294 = vunpack.c.l.b16 %v189
    %v295 = vunpack.c.h.b16 %v189
    %v296 = vunpack.c.l.b16 %v190
    %v297 = vunpack.c.h.b16 %v190
    %v298 = vunpack.c.l.b16 %v191
    %v299 = vunpack.c.h.b16 %v191
    %v300 = vunpack.c.l.b16 %v192
    %v301 = vunpack.c.h.b16 %v192
    %v302 = vunpack.c.l.b16 %v193
    %v303 = vunpack.c.h.b16 %v193
    %v304 = vunpack.c.l.b16 %v194
    %v305 = vunpack.c.h.b16 %v194
    %v306 = vunpack.c.l.b16 %v195
    %v307 = vunpack.c.h.b16 %v195
    %v308 = vunpack.c.l.b16 %v196
    %v309 = vunpack.c.h.b16 %v196
    %v310 = vunpack.c.l.b16 %v197
    %v311 = vunpack.c.h.b16 %v197
    %v312 = vunpack.c.l.b16 %v198
    %v313 = vunpack.c.h.b16 %v198
    %v314 = vunpack.c.l.b16 %v199
    %v315 = vunpack.c.h.b16 %v199
    %v316 = vunpack.c.l.b16 %v200
    %v317 = vunpack.c.h.b16 %v200
    %v318 = vunpack.c.l.b16 %v201
    %v319 = vunpack.c.h.b16 %v201
    %v320 = vpack.c.b16 %v260, %v256
    %v321 = vpack.c.b16 %v261, %v257
    %v322 = vpack.c.b16 %v262, %v258
    %v323 = vpack.c.b16 %v263, %v259
    %v324 = vpack.c.b16 %v268, %v264
    %v325 = vpack.c.b16 %v269, %v265
    %v326 = vpack.c.b16 %v270, %v266
    %v327 = vpack.c.b16 %v271, %v267
    %v328 = vpack.c.b16 %v276, %v272
    %v329 = vpack.c.b16 %v277, %v273
    %v330 = vpack.c.b16 %v278, %v274
    %v331 = vpack.c.b16 %v279, %v275
    %v332 = vpack.c.b16 %v284, %v280
    %v333 = vpack.c.b16 %v285, %v281
    %v334 = vpack.c.b16 %v286, %v282
    %v335 = vpack.c.b16 %v287, %v283
    %v336 = vpack.c.b16 %v292, %v288
    %v337 = vpack.c.b16 %v293, %v289
    %v338 = vpack.c.b16 %v294, %v290
    %v339 = vpack.c.b16 %v295, %v291
    %v340 = vpack.c.b16 %v300, %v296
    %v341 = vpack.c.b16 %v301, %v297
    %v342 = vpack.c.b16 %v302, %v298
    %v343 = vpack.c.b16 %v303, %v299
    %v344 = vpack.c.b16 %v308, %v304
    %v345 = vpack.c.b16 %v309, %v305
    %v346 = vpack.c.b16 %v310, %v306
    %v347 = vpack.c.b16 %v311, %v307
    %v348 = vpack.c.b16 %v316, %v312
    %v349 = vpack.c.b16 %v317, %v313
    %v350 = vpack.c.b16 %v318, %v314
    %v351 = vpack.c.b16 %v319, %v315
    %384 = vmatprep.subr.bf16.mxu0 %v321
    %385 = vmatpush1.bf16.msra.mxu0 %v320
    %386 = vmatprep.subr.bf16.mxu0 %v325
    %387 = vmatpush1.bf16.msra.mxu0 %v324
    %388 = vmatprep.subr.bf16.mxu0 %v329
    %389 = vmatpush1.bf16.msra.mxu0 %v328
    %390 = vmatprep.subr.bf16.mxu0 %v333
    %391 = vmatpush1.bf16.msra.mxu0 %v332
    %392 = vmatprep.subr.bf16.mxu0 %v337
    %393 = vmatpush1.bf16.msra.mxu0 %v336
    %394 = vmatprep.subr.bf16.mxu0 %v341
    %395 = vmatpush1.bf16.msra.mxu0 %v340
    %396 = vmatprep.subr.bf16.mxu0 %v345
    %397 = vmatpush1.bf16.msra.mxu0 %v344
    %398 = vmatprep.subr.bf16.mxu0 %v349
    %399 = vmatpush1.bf16.msra.mxu0 %v348
    %400 = vmatprep.subr.bf16.mxu0 0
    %401 = vmatpush1.bf16.msra.mxu0 0
    %402 = vmatprep.subr.bf16.mxu0 0
    %403 = vmatpush1.bf16.msra.mxu0 0
    %404 = vmatprep.subr.bf16.mxu0 0
    %405 = vmatpush1.bf16.msra.mxu0 0
    %406 = vmatprep.subr.bf16.mxu0 0
    %407 = vmatpush1.bf16.msra.mxu0 0
    %408 = vmatprep.subr.bf16.mxu0 0
    %409 = vmatpush1.bf16.msra.mxu0 0
    %410 = vmatprep.subr.bf16.mxu0 0
    %411 = vmatpush1.bf16.msra.mxu0 0
    %412 = vmatprep.subr.bf16.mxu0 0
    %413 = vmatpush1.bf16.msra.mxu0 0
    %414 = vmatprep.subr.bf16.mxu0 0
    %415 = vmatpush1.bf16.msra.mxu0 0
    %416 = vmatprep.mubr.bf16.mxu0 0
    %417 = vmatmul.mubr.bf16.gmra.mrb[0].mxu0 %v169
    %v418 = vpop.f32.mrb[0].mxu0
    %v419 = vadd.f32 %v207, %v418
    %v420 = vpop.f32.mrb[0].mxu0
    %v421 = vadd.f32 %v211, %v420
    %v422 = vpop.f32.mrb[0].mxu0
    %v423 = vpop.f32.mrb[0].mxu0
    %424 = vdwg.mxu0
    %425 = vmatprep.subr.bf16.mxu0 %v323
    %426 = vmatpush1.bf16.msra.mxu0 %v322
    %427 = vmatprep.subr.bf16.mxu0 %v327
    %428 = vmatpush1.bf16.msra.mxu0 %v326
    %429 = vmatprep.subr.bf16.mxu0 %v331
    %430 = vmatpush1.bf16.msra.mxu0 %v330
    %431 = vmatprep.subr.bf16.mxu0 %v335
    %432 = vmatpush1.bf16.msra.mxu0 %v334
    %433 = vmatprep.subr.bf16.mxu0 %v339
    %434 = vmatpush1.bf16.msra.mxu0 %v338
    %435 = vmatprep.subr.bf16.mxu0 %v343
    %436 = vmatpush1.bf16.msra.mxu0 %v342
    %437 = vmatprep.subr.bf16.mxu0 %v347
    %438 = vmatpush1.bf16.msra.mxu0 %v346
    %439 = vmatprep.subr.bf16.mxu0 %v351
    %440 = vmatpush1.bf16.msra.mxu0 %v350
    %441 = vmatprep.subr.bf16.mxu0 0
    %442 = vmatpush1.bf16.msra.mxu0 0
    %443 = vmatprep.subr.bf16.mxu0 0
    %444 = vmatpush1.bf16.msra.mxu0 0
    %445 = vmatprep.subr.bf16.mxu0 0
    %446 = vmatpush1.bf16.msra.mxu0 0
    %447 = vmatprep.subr.bf16.mxu0 0
    %448 = vmatpush1.bf16.msra.mxu0 0
    %449 = vmatprep.subr.bf16.mxu0 0
    %450 = vmatpush1.bf16.msra.mxu0 0
    %451 = vmatprep.subr.bf16.mxu0 0
    %452 = vmatpush1.bf16.msra.mxu0 0
    %453 = vmatprep.subr.bf16.mxu0 0
    %454 = vmatpush1.bf16.msra.mxu0 0
    %455 = vmatprep.subr.bf16.mxu0 0
    %456 = vmatpush1.bf16.msra.mxu0 0
    %457 = vmatprep.mubr.bf16.mxu0 0
    %458 = vmatmul.mubr.bf16.gmra.mrb[0].mxu0 %v169
    %v459 = vpop.f32.mrb[0].mxu0
    %v460 = vadd.f32 %v215, %v459
    %v461 = vpop.f32.mrb[0].mxu0
    %v462 = vadd.f32 %v219, %v461
    %v463 = vpop.f32.mrb[0].mxu0
    %v464 = vpop.f32.mrb[0].mxu0
    %465 = vdwg.mxu0
    %v466 = vmax.f32 %v419, 0.0
    %v467 = vmax.f32 %v421, 0.0
    %v468 = vmax.f32 %v460, 0.0
    %v469 = vmax.f32 %v462, 0.0
    %v470 = vpack.c.bf16 %v466, %v466
    %v471 = vpack.c.bf16 %v467, %v467
    %v472 = vpack.c.bf16 %v468, %v468
    %v473 = vpack.c.bf16 %v469, %v469
    %v474 = vld [vmem:[#allocation7] sm:$0xff]
    %v475 = vld [vmem:[#allocation7 + $0x8] sm:$0xff]
    %v476 = vld [vmem:[#allocation7 + $0x10] sm:$0xff]
    %v477 = vld [vmem:[#allocation7 + $0x18] sm:$0xff]
    %v478 = vld [vmem:[#allocation7 + $0x20] sm:$0xff]
    %v479 = vld [vmem:[#allocation7 + $0x28] sm:$0xff]
    %v480 = vld [vmem:[#allocation7 + $0x30] sm:$0xff]
    %v481 = vld [vmem:[#allocation7 + $0x38] sm:$0xff]
    %v482 = vld [vmem:[#allocation7 + $0x40] sm:$0xff]
    %v483 = vld [vmem:[#allocation7 + $0x48] sm:$0xff]
    %v484 = vld [vmem:[#allocation7 + $0x50] sm:$0xff]
    %v485 = vld [vmem:[#allocation7 + $0x58] sm:$0xff]
    %v486 = vld [vmem:[#allocation7 + $0x60] sm:$0xff]
    %v487 = vld [vmem:[#allocation7 + $0x68] sm:$0xff]
    %v488 = vld [vmem:[#allocation7 + $0x70] sm:$0xff]
    %v489 = vld [vmem:[#allocation7 + $0x78] sm:$0xff]
    %v490 = vld [vmem:[#allocation7 + $0x80] sm:$0xff]
    %v491 = vld [vmem:[#allocation7 + $0x88] sm:$0xff]
    %v492 = vld [vmem:[#allocation7 + $0x90] sm:$0xff]
    %v493 = vld [vmem:[#allocation7 + $0x98] sm:$0xff]
    %v494 = vld [vmem:[#allocation7 + $0xa0] sm:$0xff]
    %v495 = vld [vmem:[#allocation7 + $0xa8] sm:$0xff]
    %v496 = vld [vmem:[#allocation7 + $0xb0] sm:$0xff]
    %v497 = vld [vmem:[#allocation7 + $0xb8] sm:$0xff]
    %v498 = vld [vmem:[#allocation7 + $0xc0] sm:$0xff]
    %v499 = vld [vmem:[#allocation7 + $0xc8] sm:$0xff]
    %v500 = vld [vmem:[#allocation7 + $0xd0] sm:$0xff]
    %v501 = vld [vmem:[#allocation7 + $0xd8] sm:$0xff]
    %v502 = vld [vmem:[#allocation7 + $0xe0] sm:$0xff]
    %v503 = vld [vmem:[#allocation7 + $0xe8] sm:$0xff]
    %v504 = vld [vmem:[#allocation7 + $0xf0] sm:$0xff]
    %v505 = vld [vmem:[#allocation7 + $0xf8] sm:$0xff]
    %v506 = vld [vmem:[#allocation7 + $0x100] sm:$0xff]
    %v507 = vld [vmem:[#allocation7 + $0x108] sm:$0xff]
    %v508 = vld [vmem:[#allocation7 + $0x110] sm:$0xff]
    %v509 = vld [vmem:[#allocation7 + $0x118] sm:$0xff]
    %v510 = vld [vmem:[#allocation7 + $0x120] sm:$0xff]
    %v511 = vld [vmem:[#allocation7 + $0x128] sm:$0xff]
    %v512 = vld [vmem:[#allocation7 + $0x130] sm:$0xff]
    %v513 = vld [vmem:[#allocation7 + $0x138] sm:$0xff]
    %v514 = vld [vmem:[#allocation7 + $0x140] sm:$0xff]
    %v515 = vld [vmem:[#allocation7 + $0x148] sm:$0xff]
    %v516 = vld [vmem:[#allocation7 + $0x150] sm:$0xff]
    %v517 = vld [vmem:[#allocation7 + $0x158] sm:$0xff]
    %v518 = vld [vmem:[#allocation7 + $0x160] sm:$0xff]
    %v519 = vld [vmem:[#allocation7 + $0x168] sm:$0xff]
    %v520 = vld [vmem:[#allocation7 + $0x170] sm:$0xff]
    %v521 = vld [vmem:[#allocation7 + $0x178] sm:$0xff]
    %v522 = vld [vmem:[#allocation7 + $0x180] sm:$0xff]
    %v523 = vld [vmem:[#allocation7 + $0x188] sm:$0xff]
    %v524 = vld [vmem:[#allocation7 + $0x190] sm:$0xff]
    %v525 = vld [vmem:[#allocation7 + $0x198] sm:$0xff]
    %v526 = vld [vmem:[#allocation7 + $0x1a0] sm:$0xff]
    %v527 = vld [vmem:[#allocation7 + $0x1a8] sm:$0xff]
    %v528 = vld [vmem:[#allocation7 + $0x1b0] sm:$0xff]
    %v529 = vld [vmem:[#allocation7 + $0x1b8] sm:$0xff]
    %v530 = vld [vmem:[#allocation7 + $0x1c0] sm:$0xff]
    %v531 = vld [vmem:[#allocation7 + $0x1c8] sm:$0xff]
    %v532 = vld [vmem:[#allocation7 + $0x1d0] sm:$0xff]
    %v533 = vld [vmem:[#allocation7 + $0x1d8] sm:$0xff]
    %v534 = vld [vmem:[#allocation7 + $0x1e0] sm:$0xff]
    %v535 = vld [vmem:[#allocation7 + $0x1e8] sm:$0xff]
    %v536 = vld [vmem:[#allocation7 + $0x1f0] sm:$0xff]
    %v537 = vld [vmem:[#allocation7 + $0x1f8] sm:$0xff]
    %v538 = vld [vmem:[#allocation7 + $0x200] sm:$0xff]
    %v539 = vld [vmem:[#allocation7 + $0x208] sm:$0xff]
    %v540 = vld [vmem:[#allocation7 + $0x210] sm:$0xff]
    %v541 = vld [vmem:[#allocation7 + $0x218] sm:$0xff]
    %v542 = vld [vmem:[#allocation7 + $0x220] sm:$0xff]
    %v543 = vld [vmem:[#allocation7 + $0x228] sm:$0xff]
    %v544 = vld [vmem:[#allocation7 + $0x230] sm:$0xff]
    %v545 = vld [vmem:[#allocation7 + $0x238] sm:$0xff]
    %v546 = vld [vmem:[#allocation7 + $0x240] sm:$0xff]
    %v547 = vld [vmem:[#allocation7 + $0x248] sm:$0xff]
    %v548 = vld [vmem:[#allocation7 + $0x250] sm:$0xff]
    %v549 = vld [vmem:[#allocation7 + $0x258] sm:$0xff]
    %v550 = vld [vmem:[#allocation7 + $0x260] sm:$0xff]
    %v551 = vld [vmem:[#allocation7 + $0x268] sm:$0xff]
    %v552 = vld [vmem:[#allocation7 + $0x270] sm:$0xff]
    %v553 = vld [vmem:[#allocation7 + $0x278] sm:$0xff]
    %v554 = vld [vmem:[#allocation7 + $0x280] sm:$0xff]
    %v555 = vld [vmem:[#allocation7 + $0x288] sm:$0xff]
    %v556 = vld [vmem:[#allocation7 + $0x290] sm:$0xff]
    %v557 = vld [vmem:[#allocation7 + $0x298] sm:$0xff]
    %v558 = vld [vmem:[#allocation7 + $0x2a0] sm:$0xff]
    %v559 = vld [vmem:[#allocation7 + $0x2a8] sm:$0xff]
    %v560 = vld [vmem:[#allocation7 + $0x2b0] sm:$0xff]
    %v561 = vld [vmem:[#allocation7 + $0x2b8] sm:$0xff]
    %v562 = vld [vmem:[#allocation7 + $0x2c0] sm:$0xff]
    %v563 = vld [vmem:[#allocation7 + $0x2c8] sm:$0xff]
    %v564 = vld [vmem:[#allocation7 + $0x2d0] sm:$0xff]
    %v565 = vld [vmem:[#allocation7 + $0x2d8] sm:$0xff]
    %v566 = vld [vmem:[#allocation7 + $0x2e0] sm:$0xff]
    %v567 = vld [vmem:[#allocation7 + $0x2e8] sm:$0xff]
    %v568 = vld [vmem:[#allocation7 + $0x2f0] sm:$0xff]
    %v569 = vld [vmem:[#allocation7 + $0x2f8] sm:$0xff]
    %v570 = vld [vmem:[#allocation7 + $0x300] sm:$0xff]
    %v571 = vld [vmem:[#allocation7 + $0x308] sm:$0xff]
    %v572 = vld [vmem:[#allocation7 + $0x310] sm:$0xff]
    %v573 = vld [vmem:[#allocation7 + $0x318] sm:$0xff]
    %v574 = vld [vmem:[#allocation7 + $0x320] sm:$0xff]
    %v575 = vld [vmem:[#allocation7 + $0x328] sm:$0xff]
    %v576 = vld [vmem:[#allocation7 + $0x330] sm:$0xff]
    %v577 = vld [vmem:[#allocation7 + $0x338] sm:$0xff]
    %v578 = vld [vmem:[#allocation7 + $0x340] sm:$0xff]
    %v579 = vld [vmem:[#allocation7 + $0x348] sm:$0xff]
    %v580 = vld [vmem:[#allocation7 + $0x350] sm:$0xff]
    %v581 = vld [vmem:[#allocation7 + $0x358] sm:$0xff]
    %v582 = vld [vmem:[#allocation7 + $0x360] sm:$0xff]
    %v583 = vld [vmem:[#allocation7 + $0x368] sm:$0xff]
    %v584 = vld [vmem:[#allocation7 + $0x370] sm:$0xff]
    %v585 = vld [vmem:[#allocation7 + $0x378] sm:$0xff]
    %v586 = vld [vmem:[#allocation7 + $0x380] sm:$0xff]
    %v587 = vld [vmem:[#allocation7 + $0x388] sm:$0xff]
    %v588 = vld [vmem:[#allocation7 + $0x390] sm:$0xff]
    %v589 = vld [vmem:[#allocation7 + $0x398] sm:$0xff]
    %v590 = vld [vmem:[#allocation7 + $0x3a0] sm:$0xff]
    %v591 = vld [vmem:[#allocation7 + $0x3a8] sm:$0xff]
    %v592 = vld [vmem:[#allocation7 + $0x3b0] sm:$0xff]
    %v593 = vld [vmem:[#allocation7 + $0x3b8] sm:$0xff]
    %v594 = vld [vmem:[#allocation7 + $0x3c0] sm:$0xff]
    %v595 = vld [vmem:[#allocation7 + $0x3c8] sm:$0xff]
    %v596 = vld [vmem:[#allocation7 + $0x3d0] sm:$0xff]
    %v597 = vld [vmem:[#allocation7 + $0x3d8] sm:$0xff]
    %v598 = vld [vmem:[#allocation7 + $0x3e0] sm:$0xff]
    %v599 = vld [vmem:[#allocation7 + $0x3e8] sm:$0xff]
    %v600 = vld [vmem:[#allocation7 + $0x3f0] sm:$0xff]
    %v601 = vld [vmem:[#allocation7 + $0x3f8] sm:$0xff]
    %s602 = scalar_lea.vmem [#allocation17], 1
    %v603 = vld [vmem:[%s602] ss:$8 sm:$0xf]
    %v605 = vlaneseq
    %v606 = vshrl.u32 %v605, 7
    %v607 = vsub.s32 0, %v606
    %v608 = vrot.slane %v603, %v607
    %v609 = vlaneseq
    %v610 = vshrl.u32 %v609, 7
    %v611 = vsub.s32 1, %v610
    %v612 = vrot.slane %v603, %v611
    %v613 = vlaneseq
    %v614 = vshrl.u32 %v613, 7
    %v615 = vsub.s32 2, %v614
    %v616 = vrot.slane %v603, %v615
    %v617 = vlaneseq
    %v618 = vshrl.u32 %v617, 7
    %v619 = vsub.s32 3, %v618
    %v620 = vrot.slane %v603, %v619
    %v753 = vunpack.c.l.b16 %v474
    %v754 = vunpack.c.h.b16 %v474
    %v755 = vunpack.c.l.b16 %v475
    %v756 = vunpack.c.h.b16 %v475
    %v757 = vunpack.c.l.b16 %v476
    %v758 = vunpack.c.h.b16 %v476
    %v759 = vunpack.c.l.b16 %v477
    %v760 = vunpack.c.h.b16 %v477
    %v761 = vunpack.c.l.b16 %v478
    %v762 = vunpack.c.h.b16 %v478
    %v763 = vunpack.c.l.b16 %v479
    %v764 = vunpack.c.h.b16 %v479
    %v765 = vunpack.c.l.b16 %v480
    %v766 = vunpack.c.h.b16 %v480
    %v767 = vunpack.c.l.b16 %v481
    %v768 = vunpack.c.h.b16 %v481
    %v769 = vunpack.c.l.b16 %v482
    %v770 = vunpack.c.h.b16 %v482
    %v771 = vunpack.c.l.b16 %v483
    %v772 = vunpack.c.h.b16 %v483
    %v773 = vunpack.c.l.b16 %v484
    %v774 = vunpack.c.h.b16 %v484
    %v775 = vunpack.c.l.b16 %v485
    %v776 = vunpack.c.h.b16 %v485
    %v777 = vunpack.c.l.b16 %v486
    %v778 = vunpack.c.h.b16 %v486
    %v779 = vunpack.c.l.b16 %v487
    %v780 = vunpack.c.h.b16 %v487
    %v781 = vunpack.c.l.b16 %v488
    %v782 = vunpack.c.h.b16 %v488
    %v783 = vunpack.c.l.b16 %v489
    %v784 = vunpack.c.h.b16 %v489
    %v785 = vunpack.c.l.b16 %v490
    %v786 = vunpack.c.h.b16 %v490
    %v787 = vunpack.c.l.b16 %v491
    %v788 = vunpack.c.h.b16 %v491
    %v789 = vunpack.c.l.b16 %v492
    %v790 = vunpack.c.h.b16 %v492
    %v791 = vunpack.c.l.b16 %v493
    %v792 = vunpack.c.h.b16 %v493
    %v793 = vunpack.c.l.b16 %v494
    %v794 = vunpack.c.h.b16 %v494
    %v795 = vunpack.c.l.b16 %v495
    %v796 = vunpack.c.h.b16 %v495
    %v797 = vunpack.c.l.b16 %v496
    %v798 = vunpack.c.h.b16 %v496
    %v799 = vunpack.c.l.b16 %v497
    %v800 = vunpack.c.h.b16 %v497
    %v801 = vunpack.c.l.b16 %v498
    %v802 = vunpack.c.h.b16 %v498
    %v803 = vunpack.c.l.b16 %v499
    %v804 = vunpack.c.h.b16 %v499
    %v805 = vunpack.c.l.b16 %v500
    %v806 = vunpack.c.h.b16 %v500
    %v807 = vunpack.c.l.b16 %v501
    %v808 = vunpack.c.h.b16 %v501
    %v809 = vunpack.c.l.b16 %v502
    %v810 = vunpack.c.h.b16 %v502
    %v811 = vunpack.c.l.b16 %v503
    %v812 = vunpack.c.h.b16 %v503
    %v813 = vunpack.c.l.b16 %v504
    %v814 = vunpack.c.h.b16 %v504
    %v815 = vunpack.c.l.b16 %v505
    %v816 = vunpack.c.h.b16 %v505
    %v817 = vunpack.c.l.b16 %v506
    %v818 = vunpack.c.h.b16 %v506
    %v819 = vunpack.c.l.b16 %v507
    %v820 = vunpack.c.h.b16 %v507
    %v821 = vunpack.c.l.b16 %v508
    %v822 = vunpack.c.h.b16 %v508
    %v823 = vunpack.c.l.b16 %v509
    %v824 = vunpack.c.h.b16 %v509
    %v825 = vunpack.c.l.b16 %v510
    %v826 = vunpack.c.h.b16 %v510
    %v827 = vunpack.c.l.b16 %v511
    %v828 = vunpack.c.h.b16 %v511
    %v829 = vunpack.c.l.b16 %v512
    %v830 = vunpack.c.h.b16 %v512
    %v831 = vunpack.c.l.b16 %v513
    %v832 = vunpack.c.h.b16 %v513
    %v833 = vunpack.c.l.b16 %v514
    %v834 = vunpack.c.h.b16 %v514
    %v835 = vunpack.c.l.b16 %v515
    %v836 = vunpack.c.h.b16 %v515
    %v837 = vunpack.c.l.b16 %v516
    %v838 = vunpack.c.h.b16 %v516
    %v839 = vunpack.c.l.b16 %v517
    %v840 = vunpack.c.h.b16 %v517
    %v841 = vunpack.c.l.b16 %v518
    %v842 = vunpack.c.h.b16 %v518
    %v843 = vunpack.c.l.b16 %v519
    %v844 = vunpack.c.h.b16 %v519
    %v845 = vunpack.c.l.b16 %v520
    %v846 = vunpack.c.h.b16 %v520
    %v847 = vunpack.c.l.b16 %v521
    %v848 = vunpack.c.h.b16 %v521
    %v849 = vunpack.c.l.b16 %v522
    %v850 = vunpack.c.h.b16 %v522
    %v851 = vunpack.c.l.b16 %v523
    %v852 = vunpack.c.h.b16 %v523
    %v853 = vunpack.c.l.b16 %v524
    %v854 = vunpack.c.h.b16 %v524
    %v855 = vunpack.c.l.b16 %v525
    %v856 = vunpack.c.h.b16 %v525
    %v857 = vunpack.c.l.b16 %v526
    %v858 = vunpack.c.h.b16 %v526
    %v859 = vunpack.c.l.b16 %v527
    %v860 = vunpack.c.h.b16 %v527
    %v861 = vunpack.c.l.b16 %v528
    %v862 = vunpack.c.h.b16 %v528
    %v863 = vunpack.c.l.b16 %v529
    %v864 = vunpack.c.h.b16 %v529
    %v865 = vunpack.c.l.b16 %v530
    %v866 = vunpack.c.h.b16 %v530
    %v867 = vunpack.c.l.b16 %v531
    %v868 = vunpack.c.h.b16 %v531
    %v869 = vunpack.c.l.b16 %v532
    %v870 = vunpack.c.h.b16 %v532
    %v871 = vunpack.c.l.b16 %v533
    %v872 = vunpack.c.h.b16 %v533
    %v873 = vunpack.c.l.b16 %v534
    %v874 = vunpack.c.h.b16 %v534
    %v875 = vunpack.c.l.b16 %v535
    %v876 = vunpack.c.h.b16 %v535
    %v877 = vunpack.c.l.b16 %v536
    %v878 = vunpack.c.h.b16 %v536
    %v879 = vunpack.c.l.b16 %v537
    %v880 = vunpack.c.h.b16 %v537
    %v881 = vunpack.c.l.b16 %v538
    %v882 = vunpack.c.h.b16 %v538
    %v883 = vunpack.c.l.b16 %v539
    %v884 = vunpack.c.h.b16 %v539
    %v885 = vunpack.c.l.b16 %v540
    %v886 = vunpack.c.h.b16 %v540
    %v887 = vunpack.c.l.b16 %v541
    %v888 = vunpack.c.h.b16 %v541
    %v889 = vunpack.c.l.b16 %v542
    %v890 = vunpack.c.h.b16 %v542
    %v891 = vunpack.c.l.b16 %v543
    %v892 = vunpack.c.h.b16 %v543
    %v893 = vunpack.c.l.b16 %v544
    %v894 = vunpack.c.h.b16 %v544
    %v895 = vunpack.c.l.b16 %v545
    %v896 = vunpack.c.h.b16 %v545
    %v897 = vunpack.c.l.b16 %v546
    %v898 = vunpack.c.h.b16 %v546
    %v899 = vunpack.c.l.b16 %v547
    %v900 = vunpack.c.h.b16 %v547
    %v901 = vunpack.c.l.b16 %v548
    %v902 = vunpack.c.h.b16 %v548
    %v903 = vunpack.c.l.b16 %v549
    %v904 = vunpack.c.h.b16 %v549
    %v905 = vunpack.c.l.b16 %v550
    %v906 = vunpack.c.h.b16 %v550
    %v907 = vunpack.c.l.b16 %v551
    %v908 = vunpack.c.h.b16 %v551
    %v909 = vunpack.c.l.b16 %v552
    %v910 = vunpack.c.h.b16 %v552
    %v911 = vunpack.c.l.b16 %v553
    %v912 = vunpack.c.h.b16 %v553
    %v913 = vunpack.c.l.b16 %v554
    %v914 = vunpack.c.h.b16 %v554
    %v915 = vunpack.c.l.b16 %v555
    %v916 = vunpack.c.h.b16 %v555
    %v917 = vunpack.c.l.b16 %v556
    %v918 = vunpack.c.h.b16 %v556
    %v919 = vunpack.c.l.b16 %v557
    %v920 = vunpack.c.h.b16 %v557
    %v921 = vunpack.c.l.b16 %v558
    %v922 = vunpack.c.h.b16 %v558
    %v923 = vunpack.c.l.b16 %v559
    %v924 = vunpack.c.h.b16 %v559
    %v925 = vunpack.c.l.b16 %v560
    %v926 = vunpack.c.h.b16 %v560
    %v927 = vunpack.c.l.b16 %v561
    %v928 = vunpack.c.h.b16 %v561
    %v929 = vunpack.c.l.b16 %v562
    %v930 = vunpack.c.h.b16 %v562
    %v931 = vunpack.c.l.b16 %v563
    %v932 = vunpack.c.h.b16 %v563
    %v933 = vunpack.c.l.b16 %v564
    %v934 = vunpack.c.h.b16 %v564
    %v935 = vunpack.c.l.b16 %v565
    %v936 = vunpack.c.h.b16 %v565
    %v937 = vunpack.c.l.b16 %v566
    %v938 = vunpack.c.h.b16 %v566
    %v939 = vunpack.c.l.b16 %v567
    %v940 = vunpack.c.h.b16 %v567
    %v941 = vunpack.c.l.b16 %v568
    %v942 = vunpack.c.h.b16 %v568
    %v943 = vunpack.c.l.b16 %v569
    %v944 = vunpack.c.h.b16 %v569
    %v945 = vunpack.c.l.b16 %v570
    %v946 = vunpack.c.h.b16 %v570
    %v947 = vunpack.c.l.b16 %v571
    %v948 = vunpack.c.h.b16 %v571
    %v949 = vunpack.c.l.b16 %v572
    %v950 = vunpack.c.h.b16 %v572
    %v951 = vunpack.c.l.b16 %v573
    %v952 = vunpack.c.h.b16 %v573
    %v953 = vunpack.c.l.b16 %v574
    %v954 = vunpack.c.h.b16 %v574
    %v955 = vunpack.c.l.b16 %v575
    %v956 = vunpack.c.h.b16 %v575
    %v957 = vunpack.c.l.b16 %v576
    %v958 = vunpack.c.h.b16 %v576
    %v959 = vunpack.c.l.b16 %v577
    %v960 = vunpack.c.h.b16 %v577
    %v961 = vunpack.c.l.b16 %v578
    %v962 = vunpack.c.h.b16 %v578
    %v963 = vunpack.c.l.b16 %v579
    %v964 = vunpack.c.h.b16 %v579
    %v965 = vunpack.c.l.b16 %v580
    %v966 = vunpack.c.h.b16 %v580
    %v967 = vunpack.c.l.b16 %v581
    %v968 = vunpack.c.h.b16 %v581
    %v969 = vunpack.c.l.b16 %v582
    %v970 = vunpack.c.h.b16 %v582
    %v971 = vunpack.c.l.b16 %v583
    %v972 = vunpack.c.h.b16 %v583
    %v973 = vunpack.c.l.b16 %v584
    %v974 = vunpack.c.h.b16 %v584
    %v975 = vunpack.c.l.b16 %v585
    %v976 = vunpack.c.h.b16 %v585
    %v977 = vunpack.c.l.b16 %v586
    %v978 = vunpack.c.h.b16 %v586
    %v979 = vunpack.c.l.b16 %v587
    %v980 = vunpack.c.h.b16 %v587
    %v981 = vunpack.c.l.b16 %v588
    %v982 = vunpack.c.h.b16 %v588
    %v983 = vunpack.c.l.b16 %v589
    %v984 = vunpack.c.h.b16 %v589
    %v985 = vunpack.c.l.b16 %v590
    %v986 = vunpack.c.h.b16 %v590
    %v987 = vunpack.c.l.b16 %v591
    %v988 = vunpack.c.h.b16 %v591
    %v989 = vunpack.c.l.b16 %v592
    %v990 = vunpack.c.h.b16 %v592
    %v991 = vunpack.c.l.b16 %v593
    %v992 = vunpack.c.h.b16 %v593
    %v993 = vunpack.c.l.b16 %v594
    %v994 = vunpack.c.h.b16 %v594
    %v995 = vunpack.c.l.b16 %v595
    %v996 = vunpack.c.h.b16 %v595
    %v997 = vunpack.c.l.b16 %v596
    %v998 = vunpack.c.h.b16 %v596
    %v999 = vunpack.c.l.b16 %v597
    %v1000 = vunpack.c.h.b16 %v597
    %v1001 = vunpack.c.l.b16 %v598
    %v1002 = vunpack.c.h.b16 %v598
    %v1003 = vunpack.c.l.b16 %v599
    %v1004 = vunpack.c.h.b16 %v599
    %v1005 = vunpack.c.l.b16 %v600
    %v1006 = vunpack.c.h.b16 %v600
    %v1007 = vunpack.c.l.b16 %v601
    %v1008 = vunpack.c.h.b16 %v601
    %v1009 = vpack.c.b16 %v757, %v753
    %v1010 = vpack.c.b16 %v758, %v754
    %v1011 = vpack.c.b16 %v759, %v755
    %v1012 = vpack.c.b16 %v760, %v756
    %v1013 = vpack.c.b16 %v765, %v761
    %v1014 = vpack.c.b16 %v766, %v762
    %v1015 = vpack.c.b16 %v767, %v763
    %v1016 = vpack.c.b16 %v768, %v764
    %v1017 = vpack.c.b16 %v773, %v769
    %v1018 = vpack.c.b16 %v774, %v770
    %v1019 = vpack.c.b16 %v775, %v771
    %v1020 = vpack.c.b16 %v776, %v772
    %v1021 = vpack.c.b16 %v781, %v777
    %v1022 = vpack.c.b16 %v782, %v778
    %v1023 = vpack.c.b16 %v783, %v779
    %v1024 = vpack.c.b16 %v784, %v780
    %v1025 = vpack.c.b16 %v789, %v785
    %v1026 = vpack.c.b16 %v790, %v786
    %v1027 = vpack.c.b16 %v791, %v787
    %v1028 = vpack.c.b16 %v792, %v788
    %v1029 = vpack.c.b16 %v797, %v793
    %v1030 = vpack.c.b16 %v798, %v794
    %v1031 = vpack.c.b16 %v799, %v795
    %v1032 = vpack.c.b16 %v800, %v796
    %v1033 = vpack.c.b16 %v805, %v801
    %v1034 = vpack.c.b16 %v806, %v802
    %v1035 = vpack.c.b16 %v807, %v803
    %v1036 = vpack.c.b16 %v808, %v804
    %v1037 = vpack.c.b16 %v813, %v809
    %v1038 = vpack.c.b16 %v814, %v810
    %v1039 = vpack.c.b16 %v815, %v811
    %v1040 = vpack.c.b16 %v816, %v812
    %v1041 = vpack.c.b16 %v821, %v817
    %v1042 = vpack.c.b16 %v822, %v818
    %v1043 = vpack.c.b16 %v823, %v819
    %v1044 = vpack.c.b16 %v824, %v820
    %v1045 = vpack.c.b16 %v829, %v825
    %v1046 = vpack.c.b16 %v830, %v826
    %v1047 = vpack.c.b16 %v831, %v827
    %v1048 = vpack.c.b16 %v832, %v828
    %v1049 = vpack.c.b16 %v837, %v833
    %v1050 = vpack.c.b16 %v838, %v834
    %v1051 = vpack.c.b16 %v839, %v835
    %v1052 = vpack.c.b16 %v840, %v836
    %v1053 = vpack.c.b16 %v845, %v841
    %v1054 = vpack.c.b16 %v846, %v842
    %v1055 = vpack.c.b16 %v847, %v843
    %v1056 = vpack.c.b16 %v848, %v844
    %v1057 = vpack.c.b16 %v853, %v849
    %v1058 = vpack.c.b16 %v854, %v850
    %v1059 = vpack.c.b16 %v855, %v851
    %v1060 = vpack.c.b16 %v856, %v852
    %v1061 = vpack.c.b16 %v861, %v857
    %v1062 = vpack.c.b16 %v862, %v858
    %v1063 = vpack.c.b16 %v863, %v859
    %v1064 = vpack.c.b16 %v864, %v860
    %v1065 = vpack.c.b16 %v869, %v865
    %v1066 = vpack.c.b16 %v870, %v866
    %v1067 = vpack.c.b16 %v871, %v867
    %v1068 = vpack.c.b16 %v872, %v868
    %v1069 = vpack.c.b16 %v877, %v873
    %v1070 = vpack.c.b16 %v878, %v874
    %v1071 = vpack.c.b16 %v879, %v875
    %v1072 = vpack.c.b16 %v880, %v876
    %v1073 = vpack.c.b16 %v885, %v881
    %v1074 = vpack.c.b16 %v886, %v882
    %v1075 = vpack.c.b16 %v887, %v883
    %v1076 = vpack.c.b16 %v888, %v884
    %v1077 = vpack.c.b16 %v893, %v889
    %v1078 = vpack.c.b16 %v894, %v890
    %v1079 = vpack.c.b16 %v895, %v891
    %v1080 = vpack.c.b16 %v896, %v892
    %v1081 = vpack.c.b16 %v901, %v897
    %v1082 = vpack.c.b16 %v902, %v898
    %v1083 = vpack.c.b16 %v903, %v899
    %v1084 = vpack.c.b16 %v904, %v900
    %v1085 = vpack.c.b16 %v909, %v905
    %v1086 = vpack.c.b16 %v910, %v906
    %v1087 = vpack.c.b16 %v911, %v907
    %v1088 = vpack.c.b16 %v912, %v908
    %v1089 = vpack.c.b16 %v917, %v913
    %v1090 = vpack.c.b16 %v918, %v914
    %v1091 = vpack.c.b16 %v919, %v915
    %v1092 = vpack.c.b16 %v920, %v916
    %v1093 = vpack.c.b16 %v925, %v921
    %v1094 = vpack.c.b16 %v926, %v922
    %v1095 = vpack.c.b16 %v927, %v923
    %v1096 = vpack.c.b16 %v928, %v924
    %v1097 = vpack.c.b16 %v933, %v929
    %v1098 = vpack.c.b16 %v934, %v930
    %v1099 = vpack.c.b16 %v935, %v931
    %v1100 = vpack.c.b16 %v936, %v932
    %v1101 = vpack.c.b16 %v941, %v937
    %v1102 = vpack.c.b16 %v942, %v938
    %v1103 = vpack.c.b16 %v943, %v939
    %v1104 = vpack.c.b16 %v944, %v940
    %v1105 = vpack.c.b16 %v949, %v945
    %v1106 = vpack.c.b16 %v950, %v946
    %v1107 = vpack.c.b16 %v951, %v947
    %v1108 = vpack.c.b16 %v952, %v948
    %v1109 = vpack.c.b16 %v957, %v953
    %v1110 = vpack.c.b16 %v958, %v954
    %v1111 = vpack.c.b16 %v959, %v955
    %v1112 = vpack.c.b16 %v960, %v956
    %v1113 = vpack.c.b16 %v965, %v961
    %v1114 = vpack.c.b16 %v966, %v962
    %v1115 = vpack.c.b16 %v967, %v963
    %v1116 = vpack.c.b16 %v968, %v964
    %v1117 = vpack.c.b16 %v973, %v969
    %v1118 = vpack.c.b16 %v974, %v970
    %v1119 = vpack.c.b16 %v975, %v971
    %v1120 = vpack.c.b16 %v976, %v972
    %v1121 = vpack.c.b16 %v981, %v977
    %v1122 = vpack.c.b16 %v982, %v978
    %v1123 = vpack.c.b16 %v983, %v979
    %v1124 = vpack.c.b16 %v984, %v980
    %v1125 = vpack.c.b16 %v989, %v985
    %v1126 = vpack.c.b16 %v990, %v986
    %v1127 = vpack.c.b16 %v991, %v987
    %v1128 = vpack.c.b16 %v992, %v988
    %v1129 = vpack.c.b16 %v997, %v993
    %v1130 = vpack.c.b16 %v998, %v994
    %v1131 = vpack.c.b16 %v999, %v995
    %v1132 = vpack.c.b16 %v1000, %v996
    %v1133 = vpack.c.b16 %v1005, %v1001
    %v1134 = vpack.c.b16 %v1006, %v1002
    %v1135 = vpack.c.b16 %v1007, %v1003
    %v1136 = vpack.c.b16 %v1008, %v1004
    %1265 = vmatprep.subr.bf16.mxu0 %v1010
    %1266 = vmatpush1.bf16.msra.mxu0 %v1009
    %1267 = vmatprep.subr.bf16.mxu0 %v1014
    %1268 = vmatpush1.bf16.msra.mxu0 %v1013
    %1269 = vmatprep.subr.bf16.mxu0 %v1018
    %1270 = vmatpush1.bf16.msra.mxu0 %v1017
    %1271 = vmatprep.subr.bf16.mxu0 %v1022
    %1272 = vmatpush1.bf16.msra.mxu0 %v1021
    %1273 = vmatprep.subr.bf16.mxu0 %v1026
    %1274 = vmatpush1.bf16.msra.mxu0 %v1025
    %1275 = vmatprep.subr.bf16.mxu0 %v1030
    %1276 = vmatpush1.bf16.msra.mxu0 %v1029
    %1277 = vmatprep.subr.bf16.mxu0 %v1034
    %1278 = vmatpush1.bf16.msra.mxu0 %v1033
    %1279 = vmatprep.subr.bf16.mxu0 %v1038
    %1280 = vmatpush1.bf16.msra.mxu0 %v1037
    %1281 = vmatprep.subr.bf16.mxu0 %v1042
    %1282 = vmatpush1.bf16.msra.mxu0 %v1041
    %1283 = vmatprep.subr.bf16.mxu0 %v1046
    %1284 = vmatpush1.bf16.msra.mxu0 %v1045
    %1285 = vmatprep.subr.bf16.mxu0 %v1050
    %1286 = vmatpush1.bf16.msra.mxu0 %v1049
    %1287 = vmatprep.subr.bf16.mxu0 %v1054
    %1288 = vmatpush1.bf16.msra.mxu0 %v1053
    %1289 = vmatprep.subr.bf16.mxu0 %v1058
    %1290 = vmatpush1.bf16.msra.mxu0 %v1057
    %1291 = vmatprep.subr.bf16.mxu0 %v1062
    %1292 = vmatpush1.bf16.msra.mxu0 %v1061
    %1293 = vmatprep.subr.bf16.mxu0 %v1066
    %1294 = vmatpush1.bf16.msra.mxu0 %v1065
    %1295 = vmatprep.subr.bf16.mxu0 %v1070
    %1296 = vmatpush1.bf16.msra.mxu0 %v1069
    %1297 = vmatprep.mubr.bf16.mxu0 %v471
    %1298 = vmatmul.mubr.bf16.gmra.mrb[0].mxu0 %v470
    %v1299 = vpop.f32.mrb[0].mxu0
    %v1300 = vadd.f32 %v608, %v1299
    %v1301 = vpop.f32.mrb[0].mxu0
    %v1302 = vadd.f32 %v612, %v1301
    %v1303 = vpop.f32.mrb[0].mxu0
    %v1304 = vpop.f32.mrb[0].mxu0
    %1305 = vdwg.mxu0
    %1306 = vmatprep.subr.bf16.mxu0 %v1074
    %1307 = vmatpush1.bf16.msra.mxu0 %v1073
    %1308 = vmatprep.subr.bf16.mxu0 %v1078
    %1309 = vmatpush1.bf16.msra.mxu0 %v1077
    %1310 = vmatprep.subr.bf16.mxu0 %v1082
    %1311 = vmatpush1.bf16.msra.mxu0 %v1081
    %1312 = vmatprep.subr.bf16.mxu0 %v1086
    %1313 = vmatpush1.bf16.msra.mxu0 %v1085
    %1314 = vmatprep.subr.bf16.mxu0 %v1090
    %1315 = vmatpush1.bf16.msra.mxu0 %v1089
    %1316 = vmatprep.subr.bf16.mxu0 %v1094
    %1317 = vmatpush1.bf16.msra.mxu0 %v1093
    %1318 = vmatprep.subr.bf16.mxu0 %v1098
    %1319 = vmatpush1.bf16.msra.mxu0 %v1097
    %1320 = vmatprep.subr.bf16.mxu0 %v1102
    %1321 = vmatpush1.bf16.msra.mxu0 %v1101
    %1322 = vmatprep.subr.bf16.mxu0 %v1106
    %1323 = vmatpush1.bf16.msra.mxu0 %v1105
    %1324 = vmatprep.subr.bf16.mxu0 %v1110
    %1325 = vmatpush1.bf16.msra.mxu0 %v1109
    %1326 = vmatprep.subr.bf16.mxu0 %v1114
    %1327 = vmatpush1.bf16.msra.mxu0 %v1113
    %1328 = vmatprep.subr.bf16.mxu0 %v1118
    %1329 = vmatpush1.bf16.msra.mxu0 %v1117
    %1330 = vmatprep.subr.bf16.mxu0 %v1122
    %1331 = vmatpush1.bf16.msra.mxu0 %v1121
    %1332 = vmatprep.subr.bf16.mxu0 %v1126
    %1333 = vmatpush1.bf16.msra.mxu0 %v1125
    %1334 = vmatprep.subr.bf16.mxu0 %v1130
    %1335 = vmatpush1.bf16.msra.mxu0 %v1129
    %1336 = vmatprep.subr.bf16.mxu0 %v1134
    %1337 = vmatpush1.bf16.msra.mxu0 %v1133
    %1338 = vmatprep.mubr.bf16.mxu0 %v473
    %1339 = vmatmul.mubr.bf16.gmra.mrb[0].mxu0 %v472
    %v1340 = vpop.f32.mrb[0].mxu0
    %v1341 = vadd.f32 %v1300, %v1340
    %v1342 = vpop.f32.mrb[0].mxu0
    %v1343 = vadd.f32 %v1302, %v1342
    %v1344 = vpop.f32.mrb[0].mxu0
    %v1345 = vpop.f32.mrb[0].mxu0
    %1346 = vdwg.mxu0
    %1347 = vmatprep.subr.bf16.mxu0 %v1012
    %1348 = vmatpush1.bf16.msra.mxu0 %v1011
    %1349 = vmatprep.subr.bf16.mxu0 %v1016
    %1350 = vmatpush1.bf16.msra.mxu0 %v1015
    %1351 = vmatprep.subr.bf16.mxu0 %v1020
    %1352 = vmatpush1.bf16.msra.mxu0 %v1019
    %1353 = vmatprep.subr.bf16.mxu0 %v1024
    %1354 = vmatpush1.bf16.msra.mxu0 %v1023
    %1355 = vmatprep.subr.bf16.mxu0 %v1028
    %1356 = vmatpush1.bf16.msra.mxu0 %v1027
    %1357 = vmatprep.subr.bf16.mxu0 %v1032
    %1358 = vmatpush1.bf16.msra.mxu0 %v1031
    %1359 = vmatprep.subr.bf16.mxu0 %v1036
    %1360 = vmatpush1.bf16.msra.mxu0 %v1035
    %1361 = vmatprep.subr.bf16.mxu0 %v1040
    %1362 = vmatpush1.bf16.msra.mxu0 %v1039
    %1363 = vmatprep.subr.bf16.mxu0 %v1044
    %1364 = vmatpush1.bf16.msra.mxu0 %v1043
    %1365 = vmatprep.subr.bf16.mxu0 %v1048
    %1366 = vmatpush1.bf16.msra.mxu0 %v1047
    %1367 = vmatprep.subr.bf16.mxu0 %v1052
    %1368 = vmatpush1.bf16.msra.mxu0 %v1051
    %1369 = vmatprep.subr.bf16.mxu0 %v1056
    %1370 = vmatpush1.bf16.msra.mxu0 %v1055
    %1371 = vmatprep.subr.bf16.mxu0 %v1060
    %1372 = vmatpush1.bf16.msra.mxu0 %v1059
    %1373 = vmatprep.subr.bf16.mxu0 %v1064
    %1374 = vmatpush1.bf16.msra.mxu0 %v1063
    %1375 = vmatprep.subr.bf16.mxu0 %v1068
    %1376 = vmatpush1.bf16.msra.mxu0 %v1067
    %1377 = vmatprep.subr.bf16.mxu0 %v1072
    %1378 = vmatpush1.bf16.msra.mxu0 %v1071
    %1379 = vmatprep.mubr.bf16.mxu0 %v471
    %1380 = vmatmul.mubr.bf16.gmra.mrb[0].mxu0 %v470
    %v1381 = vpop.f32.mrb[0].mxu0
    %v1382 = vadd.f32 %v616, %v1381
    %v1383 = vpop.f32.mrb[0].mxu0
    %v1384 = vadd.f32 %v620, %v1383
    %v1385 = vpop.f32.mrb[0].mxu0
    %v1386 = vpop.f32.mrb[0].mxu0
    %1387 = vdwg.mxu0
    %1388 = vmatprep.subr.bf16.mxu0 %v1076
    %1389 = vmatpush1.bf16.msra.mxu0 %v1075
    %1390 = vmatprep.subr.bf16.mxu0 %v1080
    %1391 = vmatpush1.bf16.msra.mxu0 %v1079
    %1392 = vmatprep.subr.bf16.mxu0 %v1084
    %1393 = vmatpush1.bf16.msra.mxu0 %v1083
    %1394 = vmatprep.subr.bf16.mxu0 %v1088
    %1395 = vmatpush1.bf16.msra.mxu0 %v1087
    %1396 = vmatprep.subr.bf16.mxu0 %v1092
    %1397 = vmatpush1.bf16.msra.mxu0 %v1091
    %1398 = vmatprep.subr.bf16.mxu0 %v1096
    %1399 = vmatpush1.bf16.msra.mxu0 %v1095
    %1400 = vmatprep.subr.bf16.mxu0 %v1100
    %1401 = vmatpush1.bf16.msra.mxu0 %v1099
    %1402 = vmatprep.subr.bf16.mxu0 %v1104
    %1403 = vmatpush1.bf16.msra.mxu0 %v1103
    %1404 = vmatprep.subr.bf16.mxu0 %v1108
    %1405 = vmatpush1.bf16.msra.mxu0 %v1107
    %1406 = vmatprep.subr.bf16.mxu0 %v1112
    %1407 = vmatpush1.bf16.msra.mxu0 %v1111
    %1408 = vmatprep.subr.bf16.mxu0 %v1116
    %1409 = vmatpush1.bf16.msra.mxu0 %v1115
    %1410 = vmatprep.subr.bf16.mxu0 %v1120
    %1411 = vmatpush1.bf16.msra.mxu0 %v1119
    %1412 = vmatprep.subr.bf16.mxu0 %v1124
    %1413 = vmatpush1.bf16.msra.mxu0 %v1123
    %1414 = vmatprep.subr.bf16.mxu0 %v1128
    %1415 = vmatpush1.bf16.msra.mxu0 %v1127
    %1416 = vmatprep.subr.bf16.mxu0 %v1132
    %1417 = vmatpush1.bf16.msra.mxu0 %v1131
    %1418 = vmatprep.subr.bf16.mxu0 %v1136
    %1419 = vmatpush1.bf16.msra.mxu0 %v1135
    %1420 = vmatprep.mubr.bf16.mxu0 %v473
    %1421 = vmatmul.mubr.bf16.gmra.mrb[0].mxu0 %v472
    %v1422 = vpop.f32.mrb[0].mxu0
    %v1423 = vadd.f32 %v1382, %v1422
    %v1424 = vpop.f32.mrb[0].mxu0
    %v1425 = vadd.f32 %v1384, %v1424
    %v1426 = vpop.f32.mrb[0].mxu0
    %v1427 = vpop.f32.mrb[0].mxu0
    %1428 = vdwg.mxu0
    %v1429 = vmax.f32 %v1341, 0.0
    %v1430 = vmax.f32 %v1343, 0.0
    %v1431 = vmax.f32 %v1423, 0.0
    %v1432 = vmax.f32 %v1425, 0.0
    %v1433 = vpack.c.bf16 %v1429, %v1429
    %v1434 = vpack.c.bf16 %v1430, %v1430
    %v1435 = vpack.c.bf16 %v1431, %v1431
    %v1436 = vpack.c.bf16 %v1432, %v1432
    %v1437 = vld [vmem:[#allocation8] sm:$0xff]
    %v1438 = vld [vmem:[#allocation8 + $0x8] sm:$0xff]
    %v1439 = vld [vmem:[#allocation8 + $0x10] sm:$0xff]
    %v1440 = vld [vmem:[#allocation8 + $0x18] sm:$0xff]
    %v1441 = vld [vmem:[#allocation8 + $0x20] sm:$0xff]
    %v1442 = vld [vmem:[#allocation8 + $0x28] sm:$0xff]
    %v1443 = vld [vmem:[#allocation8 + $0x30] sm:$0xff]
    %v1444 = vld [vmem:[#allocation8 + $0x38] sm:$0xff]
    %v1445 = vld [vmem:[#allocation8 + $0x40] sm:$0xff]
    %v1446 = vld [vmem:[#allocation8 + $0x48] sm:$0xff]
    %v1447 = vld [vmem:[#allocation8 + $0x50] sm:$0xff]
    %v1448 = vld [vmem:[#allocation8 + $0x58] sm:$0xff]
    %v1449 = vld [vmem:[#allocation8 + $0x60] sm:$0xff]
    %v1450 = vld [vmem:[#allocation8 + $0x68] sm:$0xff]
    %v1451 = vld [vmem:[#allocation8 + $0x70] sm:$0xff]
    %v1452 = vld [vmem:[#allocation8 + $0x78] sm:$0xff]
    %v1453 = vld [vmem:[#allocation8 + $0x80] sm:$0xff]
    %v1454 = vld [vmem:[#allocation8 + $0x88] sm:$0xff]
    %v1455 = vld [vmem:[#allocation8 + $0x90] sm:$0xff]
    %v1456 = vld [vmem:[#allocation8 + $0x98] sm:$0xff]
    %v1457 = vld [vmem:[#allocation8 + $0xa0] sm:$0xff]
    %v1458 = vld [vmem:[#allocation8 + $0xa8] sm:$0xff]
    %v1459 = vld [vmem:[#allocation8 + $0xb0] sm:$0xff]
    %v1460 = vld [vmem:[#allocation8 + $0xb8] sm:$0xff]
    %v1461 = vld [vmem:[#allocation8 + $0xc0] sm:$0xff]
    %v1462 = vld [vmem:[#allocation8 + $0xc8] sm:$0xff]
    %v1463 = vld [vmem:[#allocation8 + $0xd0] sm:$0xff]
    %v1464 = vld [vmem:[#allocation8 + $0xd8] sm:$0xff]
    %v1465 = vld [vmem:[#allocation8 + $0xe0] sm:$0xff]
    %v1466 = vld [vmem:[#allocation8 + $0xe8] sm:$0xff]
    %v1467 = vld [vmem:[#allocation8 + $0xf0] sm:$0xff]
    %v1468 = vld [vmem:[#allocation8 + $0xf8] sm:$0xff]
    %v1469 = vld [vmem:[#allocation8 + $0x100] sm:$0xff]
    %v1470 = vld [vmem:[#allocation8 + $0x108] sm:$0xff]
    %v1471 = vld [vmem:[#allocation8 + $0x110] sm:$0xff]
    %v1472 = vld [vmem:[#allocation8 + $0x118] sm:$0xff]
    %v1473 = vld [vmem:[#allocation8 + $0x120] sm:$0xff]
    %v1474 = vld [vmem:[#allocation8 + $0x128] sm:$0xff]
    %v1475 = vld [vmem:[#allocation8 + $0x130] sm:$0xff]
    %v1476 = vld [vmem:[#allocation8 + $0x138] sm:$0xff]
    %v1477 = vld [vmem:[#allocation8 + $0x140] sm:$0xff]
    %v1478 = vld [vmem:[#allocation8 + $0x148] sm:$0xff]
    %v1479 = vld [vmem:[#allocation8 + $0x150] sm:$0xff]
    %v1480 = vld [vmem:[#allocation8 + $0x158] sm:$0xff]
    %v1481 = vld [vmem:[#allocation8 + $0x160] sm:$0xff]
    %v1482 = vld [vmem:[#allocation8 + $0x168] sm:$0xff]
    %v1483 = vld [vmem:[#allocation8 + $0x170] sm:$0xff]
    %v1484 = vld [vmem:[#allocation8 + $0x178] sm:$0xff]
    %v1485 = vld [vmem:[#allocation8 + $0x180] sm:$0xff]
    %v1486 = vld [vmem:[#allocation8 + $0x188] sm:$0xff]
    %v1487 = vld [vmem:[#allocation8 + $0x190] sm:$0xff]
    %v1488 = vld [vmem:[#allocation8 + $0x198] sm:$0xff]
    %v1489 = vld [vmem:[#allocation8 + $0x1a0] sm:$0xff]
    %v1490 = vld [vmem:[#allocation8 + $0x1a8] sm:$0xff]
    %v1491 = vld [vmem:[#allocation8 + $0x1b0] sm:$0xff]
    %v1492 = vld [vmem:[#allocation8 + $0x1b8] sm:$0xff]
    %v1493 = vld [vmem:[#allocation8 + $0x1c0] sm:$0xff]
    %v1494 = vld [vmem:[#allocation8 + $0x1c8] sm:$0xff]
    %v1495 = vld [vmem:[#allocation8 + $0x1d0] sm:$0xff]
    %v1496 = vld [vmem:[#allocation8 + $0x1d8] sm:$0xff]
    %v1497 = vld [vmem:[#allocation8 + $0x1e0] sm:$0xff]
    %v1498 = vld [vmem:[#allocation8 + $0x1e8] sm:$0xff]
    %v1499 = vld [vmem:[#allocation8 + $0x1f0] sm:$0xff]
    %v1500 = vld [vmem:[#allocation8 + $0x1f8] sm:$0xff]
    %v1501 = vld [vmem:[#allocation8 + $0x200] sm:$0xff]
    %v1502 = vld [vmem:[#allocation8 + $0x208] sm:$0xff]
    %v1503 = vld [vmem:[#allocation8 + $0x210] sm:$0xff]
    %v1504 = vld [vmem:[#allocation8 + $0x218] sm:$0xff]
    %v1505 = vld [vmem:[#allocation8 + $0x220] sm:$0xff]
    %v1506 = vld [vmem:[#allocation8 + $0x228] sm:$0xff]
    %v1507 = vld [vmem:[#allocation8 + $0x230] sm:$0xff]
    %v1508 = vld [vmem:[#allocation8 + $0x238] sm:$0xff]
    %v1509 = vld [vmem:[#allocation8 + $0x240] sm:$0xff]
    %v1510 = vld [vmem:[#allocation8 + $0x248] sm:$0xff]
    %v1511 = vld [vmem:[#allocation8 + $0x250] sm:$0xff]
    %v1512 = vld [vmem:[#allocation8 + $0x258] sm:$0xff]
    %v1513 = vld [vmem:[#allocation8 + $0x260] sm:$0xff]
    %v1514 = vld [vmem:[#allocation8 + $0x268] sm:$0xff]
    %v1515 = vld [vmem:[#allocation8 + $0x270] sm:$0xff]
    %v1516 = vld [vmem:[#allocation8 + $0x278] sm:$0xff]
    %v1517 = vld [vmem:[#allocation8 + $0x280] sm:$0xff]
    %v1518 = vld [vmem:[#allocation8 + $0x288] sm:$0xff]
    %v1519 = vld [vmem:[#allocation8 + $0x290] sm:$0xff]
    %v1520 = vld [vmem:[#allocation8 + $0x298] sm:$0xff]
    %v1521 = vld [vmem:[#allocation8 + $0x2a0] sm:$0xff]
    %v1522 = vld [vmem:[#allocation8 + $0x2a8] sm:$0xff]
    %v1523 = vld [vmem:[#allocation8 + $0x2b0] sm:$0xff]
    %v1524 = vld [vmem:[#allocation8 + $0x2b8] sm:$0xff]
    %v1525 = vld [vmem:[#allocation8 + $0x2c0] sm:$0xff]
    %v1526 = vld [vmem:[#allocation8 + $0x2c8] sm:$0xff]
    %v1527 = vld [vmem:[#allocation8 + $0x2d0] sm:$0xff]
    %v1528 = vld [vmem:[#allocation8 + $0x2d8] sm:$0xff]
    %v1529 = vld [vmem:[#allocation8 + $0x2e0] sm:$0xff]
    %v1530 = vld [vmem:[#allocation8 + $0x2e8] sm:$0xff]
    %v1531 = vld [vmem:[#allocation8 + $0x2f0] sm:$0xff]
    %v1532 = vld [vmem:[#allocation8 + $0x2f8] sm:$0xff]
    %v1533 = vld [vmem:[#allocation8 + $0x300] sm:$0xff]
    %v1534 = vld [vmem:[#allocation8 + $0x308] sm:$0xff]
    %v1535 = vld [vmem:[#allocation8 + $0x310] sm:$0xff]
    %v1536 = vld [vmem:[#allocation8 + $0x318] sm:$0xff]
    %v1537 = vld [vmem:[#allocation8 + $0x320] sm:$0xff]
    %v1538 = vld [vmem:[#allocation8 + $0x328] sm:$0xff]
    %v1539 = vld [vmem:[#allocation8 + $0x330] sm:$0xff]
    %v1540 = vld [vmem:[#allocation8 + $0x338] sm:$0xff]
    %v1541 = vld [vmem:[#allocation8 + $0x340] sm:$0xff]
    %v1542 = vld [vmem:[#allocation8 + $0x348] sm:$0xff]
    %v1543 = vld [vmem:[#allocation8 + $0x350] sm:$0xff]
    %v1544 = vld [vmem:[#allocation8 + $0x358] sm:$0xff]
    %v1545 = vld [vmem:[#allocation8 + $0x360] sm:$0xff]
    %v1546 = vld [vmem:[#allocation8 + $0x368] sm:$0xff]
    %v1547 = vld [vmem:[#allocation8 + $0x370] sm:$0xff]
    %v1548 = vld [vmem:[#allocation8 + $0x378] sm:$0xff]
    %v1549 = vld [vmem:[#allocation8 + $0x380] sm:$0xff]
    %v1550 = vld [vmem:[#allocation8 + $0x388] sm:$0xff]
    %v1551 = vld [vmem:[#allocation8 + $0x390] sm:$0xff]
    %v1552 = vld [vmem:[#allocation8 + $0x398] sm:$0xff]
    %v1553 = vld [vmem:[#allocation8 + $0x3a0] sm:$0xff]
    %v1554 = vld [vmem:[#allocation8 + $0x3a8] sm:$0xff]
    %v1555 = vld [vmem:[#allocation8 + $0x3b0] sm:$0xff]
    %v1556 = vld [vmem:[#allocation8 + $0x3b8] sm:$0xff]
    %v1557 = vld [vmem:[#allocation8 + $0x3c0] sm:$0xff]
    %v1558 = vld [vmem:[#allocation8 + $0x3c8] sm:$0xff]
    %v1559 = vld [vmem:[#allocation8 + $0x3d0] sm:$0xff]
    %v1560 = vld [vmem:[#allocation8 + $0x3d8] sm:$0xff]
    %v1561 = vld [vmem:[#allocation8 + $0x3e0] sm:$0xff]
    %v1562 = vld [vmem:[#allocation8 + $0x3e8] sm:$0xff]
    %v1563 = vld [vmem:[#allocation8 + $0x3f0] sm:$0xff]
    %v1564 = vld [vmem:[#allocation8 + $0x3f8] sm:$0xff]
    %v1565 = vld [vmem:[#allocation8 + $0x400] sm:$0xff]
    %v1566 = vld [vmem:[#allocation8 + $0x408] sm:$0xff]
    %v1567 = vld [vmem:[#allocation8 + $0x410] sm:$0xff]
    %v1568 = vld [vmem:[#allocation8 + $0x418] sm:$0xff]
    %v1569 = vld [vmem:[#allocation8 + $0x420] sm:$0xff]
    %v1570 = vld [vmem:[#allocation8 + $0x428] sm:$0xff]
    %v1571 = vld [vmem:[#allocation8 + $0x430] sm:$0xff]
    %v1572 = vld [vmem:[#allocation8 + $0x438] sm:$0xff]
    %v1573 = vld [vmem:[#allocation8 + $0x440] sm:$0xff]
    %v1574 = vld [vmem:[#allocation8 + $0x448] sm:$0xff]
    %v1575 = vld [vmem:[#allocation8 + $0x450] sm:$0xff]
    %v1576 = vld [vmem:[#allocation8 + $0x458] sm:$0xff]
    %v1577 = vld [vmem:[#allocation8 + $0x460] sm:$0xff]
    %v1578 = vld [vmem:[#allocation8 + $0x468] sm:$0xff]
    %v1579 = vld [vmem:[#allocation8 + $0x470] sm:$0xff]
    %v1580 = vld [vmem:[#allocation8 + $0x478] sm:$0xff]
    %v1581 = vld [vmem:[#allocation8 + $0x480] sm:$0xff]
    %v1582 = vld [vmem:[#allocation8 + $0x488] sm:$0xff]
    %v1583 = vld [vmem:[#allocation8 + $0x490] sm:$0xff]
    %v1584 = vld [vmem:[#allocation8 + $0x498] sm:$0xff]
    %v1585 = vld [vmem:[#allocation8 + $0x4a0] sm:$0xff]
    %v1586 = vld [vmem:[#allocation8 + $0x4a8] sm:$0xff]
    %v1587 = vld [vmem:[#allocation8 + $0x4b0] sm:$0xff]
    %v1588 = vld [vmem:[#allocation8 + $0x4b8] sm:$0xff]
    %v1589 = vld [vmem:[#allocation8 + $0x4c0] sm:$0xff]
    %v1590 = vld [vmem:[#allocation8 + $0x4c8] sm:$0xff]
    %v1591 = vld [vmem:[#allocation8 + $0x4d0] sm:$0xff]
    %v1592 = vld [vmem:[#allocation8 + $0x4d8] sm:$0xff]
    %v1593 = vld [vmem:[#allocation8 + $0x4e0] sm:$0xff]
    %v1594 = vld [vmem:[#allocation8 + $0x4e8] sm:$0xff]
    %v1595 = vld [vmem:[#allocation8 + $0x4f0] sm:$0xff]
    %v1596 = vld [vmem:[#allocation8 + $0x4f8] sm:$0xff]
    %v1597 = vld [vmem:[#allocation8 + $0x500] sm:$0xff]
    %v1598 = vld [vmem:[#allocation8 + $0x508] sm:$0xff]
    %v1599 = vld [vmem:[#allocation8 + $0x510] sm:$0xff]
    %v1600 = vld [vmem:[#allocation8 + $0x518] sm:$0xff]
    %v1601 = vld [vmem:[#allocation8 + $0x520] sm:$0xff]
    %v1602 = vld [vmem:[#allocation8 + $0x528] sm:$0xff]
    %v1603 = vld [vmem:[#allocation8 + $0x530] sm:$0xff]
    %v1604 = vld [vmem:[#allocation8 + $0x538] sm:$0xff]
    %v1605 = vld [vmem:[#allocation8 + $0x540] sm:$0xff]
    %v1606 = vld [vmem:[#allocation8 + $0x548] sm:$0xff]
    %v1607 = vld [vmem:[#allocation8 + $0x550] sm:$0xff]
    %v1608 = vld [vmem:[#allocation8 + $0x558] sm:$0xff]
    %v1609 = vld [vmem:[#allocation8 + $0x560] sm:$0xff]
    %v1610 = vld [vmem:[#allocation8 + $0x568] sm:$0xff]
    %v1611 = vld [vmem:[#allocation8 + $0x570] sm:$0xff]
    %v1612 = vld [vmem:[#allocation8 + $0x578] sm:$0xff]
    %v1613 = vld [vmem:[#allocation8 + $0x580] sm:$0xff]
    %v1614 = vld [vmem:[#allocation8 + $0x588] sm:$0xff]
    %v1615 = vld [vmem:[#allocation8 + $0x590] sm:$0xff]
    %v1616 = vld [vmem:[#allocation8 + $0x598] sm:$0xff]
    %v1617 = vld [vmem:[#allocation8 + $0x5a0] sm:$0xff]
    %v1618 = vld [vmem:[#allocation8 + $0x5a8] sm:$0xff]
    %v1619 = vld [vmem:[#allocation8 + $0x5b0] sm:$0xff]
    %v1620 = vld [vmem:[#allocation8 + $0x5b8] sm:$0xff]
    %v1621 = vld [vmem:[#allocation8 + $0x5c0] sm:$0xff]
    %v1622 = vld [vmem:[#allocation8 + $0x5c8] sm:$0xff]
    %v1623 = vld [vmem:[#allocation8 + $0x5d0] sm:$0xff]
    %v1624 = vld [vmem:[#allocation8 + $0x5d8] sm:$0xff]
    %v1625 = vld [vmem:[#allocation8 + $0x5e0] sm:$0xff]
    %v1626 = vld [vmem:[#allocation8 + $0x5e8] sm:$0xff]
    %v1627 = vld [vmem:[#allocation8 + $0x5f0] sm:$0xff]
    %v1628 = vld [vmem:[#allocation8 + $0x5f8] sm:$0xff]
    %v1629 = vld [vmem:[#allocation8 + $0x600] sm:$0xff]
    %v1630 = vld [vmem:[#allocation8 + $0x608] sm:$0xff]
    %v1631 = vld [vmem:[#allocation8 + $0x610] sm:$0xff]
    %v1632 = vld [vmem:[#allocation8 + $0x618] sm:$0xff]
    %v1633 = vld [vmem:[#allocation8 + $0x620] sm:$0xff]
    %v1634 = vld [vmem:[#allocation8 + $0x628] sm:$0xff]
    %v1635 = vld [vmem:[#allocation8 + $0x630] sm:$0xff]
    %v1636 = vld [vmem:[#allocation8 + $0x638] sm:$0xff]
    %v1637 = vld [vmem:[#allocation8 + $0x640] sm:$0xff]
    %v1638 = vld [vmem:[#allocation8 + $0x648] sm:$0xff]
    %v1639 = vld [vmem:[#allocation8 + $0x650] sm:$0xff]
    %v1640 = vld [vmem:[#allocation8 + $0x658] sm:$0xff]
    %v1641 = vld [vmem:[#allocation8 + $0x660] sm:$0xff]
    %v1642 = vld [vmem:[#allocation8 + $0x668] sm:$0xff]
    %v1643 = vld [vmem:[#allocation8 + $0x670] sm:$0xff]
    %v1644 = vld [vmem:[#allocation8 + $0x678] sm:$0xff]
    %v1645 = vld [vmem:[#allocation8 + $0x680] sm:$0xff]
    %v1646 = vld [vmem:[#allocation8 + $0x688] sm:$0xff]
    %v1647 = vld [vmem:[#allocation8 + $0x690] sm:$0xff]
    %v1648 = vld [vmem:[#allocation8 + $0x698] sm:$0xff]
    %v1649 = vld [vmem:[#allocation8 + $0x6a0] sm:$0xff]
    %v1650 = vld [vmem:[#allocation8 + $0x6a8] sm:$0xff]
    %v1651 = vld [vmem:[#allocation8 + $0x6b0] sm:$0xff]
    %v1652 = vld [vmem:[#allocation8 + $0x6b8] sm:$0xff]
    %v1653 = vld [vmem:[#allocation8 + $0x6c0] sm:$0xff]
    %v1654 = vld [vmem:[#allocation8 + $0x6c8] sm:$0xff]
    %v1655 = vld [vmem:[#allocation8 + $0x6d0] sm:$0xff]
    %v1656 = vld [vmem:[#allocation8 + $0x6d8] sm:$0xff]
    %v1657 = vld [vmem:[#allocation8 + $0x6e0] sm:$0xff]
    %v1658 = vld [vmem:[#allocation8 + $0x6e8] sm:$0xff]
    %v1659 = vld [vmem:[#allocation8 + $0x6f0] sm:$0xff]
    %v1660 = vld [vmem:[#allocation8 + $0x6f8] sm:$0xff]
    %v1661 = vld [vmem:[#allocation8 + $0x700] sm:$0xff]
    %v1662 = vld [vmem:[#allocation8 + $0x708] sm:$0xff]
    %v1663 = vld [vmem:[#allocation8 + $0x710] sm:$0xff]
    %v1664 = vld [vmem:[#allocation8 + $0x718] sm:$0xff]
    %v1665 = vld [vmem:[#allocation8 + $0x720] sm:$0xff]
    %v1666 = vld [vmem:[#allocation8 + $0x728] sm:$0xff]
    %v1667 = vld [vmem:[#allocation8 + $0x730] sm:$0xff]
    %v1668 = vld [vmem:[#allocation8 + $0x738] sm:$0xff]
    %v1669 = vld [vmem:[#allocation8 + $0x740] sm:$0xff]
    %v1670 = vld [vmem:[#allocation8 + $0x748] sm:$0xff]
    %v1671 = vld [vmem:[#allocation8 + $0x750] sm:$0xff]
    %v1672 = vld [vmem:[#allocation8 + $0x758] sm:$0xff]
    %v1673 = vld [vmem:[#allocation8 + $0x760] sm:$0xff]
    %v1674 = vld [vmem:[#allocation8 + $0x768] sm:$0xff]
    %v1675 = vld [vmem:[#allocation8 + $0x770] sm:$0xff]
    %v1676 = vld [vmem:[#allocation8 + $0x778] sm:$0xff]
    %v1677 = vld [vmem:[#allocation8 + $0x780] sm:$0xff]
    %v1678 = vld [vmem:[#allocation8 + $0x788] sm:$0xff]
    %v1679 = vld [vmem:[#allocation8 + $0x790] sm:$0xff]
    %v1680 = vld [vmem:[#allocation8 + $0x798] sm:$0xff]
    %v1681 = vld [vmem:[#allocation8 + $0x7a0] sm:$0xff]
    %v1682 = vld [vmem:[#allocation8 + $0x7a8] sm:$0xff]
    %v1683 = vld [vmem:[#allocation8 + $0x7b0] sm:$0xff]
    %v1684 = vld [vmem:[#allocation8 + $0x7b8] sm:$0xff]
    %v1685 = vld [vmem:[#allocation8 + $0x7c0] sm:$0xff]
    %v1686 = vld [vmem:[#allocation8 + $0x7c8] sm:$0xff]
    %v1687 = vld [vmem:[#allocation8 + $0x7d0] sm:$0xff]
    %v1688 = vld [vmem:[#allocation8 + $0x7d8] sm:$0xff]
    %v1689 = vld [vmem:[#allocation8 + $0x7e0] sm:$0xff]
    %v1690 = vld [vmem:[#allocation8 + $0x7e8] sm:$0xff]
    %v1691 = vld [vmem:[#allocation8 + $0x7f0] sm:$0xff]
    %v1692 = vld [vmem:[#allocation8 + $0x7f8] sm:$0xff]
    %v1693 = vld [vmem:[#allocation8 + $0x800] sm:$0xff]
    %v1694 = vld [vmem:[#allocation8 + $0x808] sm:$0xff]
    %v1695 = vld [vmem:[#allocation8 + $0x810] sm:$0xff]
    %v1696 = vld [vmem:[#allocation8 + $0x818] sm:$0xff]
    %v1697 = vld [vmem:[#allocation8 + $0x820] sm:$0xff]
    %v1698 = vld [vmem:[#allocation8 + $0x828] sm:$0xff]
    %v1699 = vld [vmem:[#allocation8 + $0x830] sm:$0xff]
    %v1700 = vld [vmem:[#allocation8 + $0x838] sm:$0xff]
    %v1701 = vld [vmem:[#allocation8 + $0x840] sm:$0xff]
    %v1702 = vld [vmem:[#allocation8 + $0x848] sm:$0xff]
    %v1703 = vld [vmem:[#allocation8 + $0x850] sm:$0xff]
    %v1704 = vld [vmem:[#allocation8 + $0x858] sm:$0xff]
    %v1705 = vld [vmem:[#allocation8 + $0x860] sm:$0xff]
    %v1706 = vld [vmem:[#allocation8 + $0x868] sm:$0xff]
    %v1707 = vld [vmem:[#allocation8 + $0x870] sm:$0xff]
    %v1708 = vld [vmem:[#allocation8 + $0x878] sm:$0xff]
    %v1709 = vld [vmem:[#allocation8 + $0x880] sm:$0xff]
    %v1710 = vld [vmem:[#allocation8 + $0x888] sm:$0xff]
    %v1711 = vld [vmem:[#allocation8 + $0x890] sm:$0xff]
    %v1712 = vld [vmem:[#allocation8 + $0x898] sm:$0xff]
    %v1713 = vld [vmem:[#allocation8 + $0x8a0] sm:$0xff]
    %v1714 = vld [vmem:[#allocation8 + $0x8a8] sm:$0xff]
    %v1715 = vld [vmem:[#allocation8 + $0x8b0] sm:$0xff]
    %v1716 = vld [vmem:[#allocation8 + $0x8b8] sm:$0xff]
    %v1717 = vld [vmem:[#allocation8 + $0x8c0] sm:$0xff]
    %v1718 = vld [vmem:[#allocation8 + $0x8c8] sm:$0xff]
    %v1719 = vld [vmem:[#allocation8 + $0x8d0] sm:$0xff]
    %v1720 = vld [vmem:[#allocation8 + $0x8d8] sm:$0xff]
    %v1721 = vld [vmem:[#allocation8 + $0x8e0] sm:$0xff]
    %v1722 = vld [vmem:[#allocation8 + $0x8e8] sm:$0xff]
    %v1723 = vld [vmem:[#allocation8 + $0x8f0] sm:$0xff]
    %v1724 = vld [vmem:[#allocation8 + $0x8f8] sm:$0xff]
    %v1725 = vld [vmem:[#allocation8 + $0x900] sm:$0xff]
    %v1726 = vld [vmem:[#allocation8 + $0x908] sm:$0xff]
    %v1727 = vld [vmem:[#allocation8 + $0x910] sm:$0xff]
    %v1728 = vld [vmem:[#allocation8 + $0x918] sm:$0xff]
    %v1729 = vld [vmem:[#allocation8 + $0x920] sm:$0xff]
    %v1730 = vld [vmem:[#allocation8 + $0x928] sm:$0xff]
    %v1731 = vld [vmem:[#allocation8 + $0x930] sm:$0xff]
    %v1732 = vld [vmem:[#allocation8 + $0x938] sm:$0xff]
    %v1733 = vld [vmem:[#allocation8 + $0x940] sm:$0xff]
    %v1734 = vld [vmem:[#allocation8 + $0x948] sm:$0xff]
    %v1735 = vld [vmem:[#allocation8 + $0x950] sm:$0xff]
    %v1736 = vld [vmem:[#allocation8 + $0x958] sm:$0xff]
    %v1737 = vld [vmem:[#allocation8 + $0x960] sm:$0xff]
    %v1738 = vld [vmem:[#allocation8 + $0x968] sm:$0xff]
    %v1739 = vld [vmem:[#allocation8 + $0x970] sm:$0xff]
    %v1740 = vld [vmem:[#allocation8 + $0x978] sm:$0xff]
    %v1741 = vld [vmem:[#allocation8 + $0x980] sm:$0xff]
    %v1742 = vld [vmem:[#allocation8 + $0x988] sm:$0xff]
    %v1743 = vld [vmem:[#allocation8 + $0x990] sm:$0xff]
    %v1744 = vld [vmem:[#allocation8 + $0x998] sm:$0xff]
    %v1745 = vld [vmem:[#allocation8 + $0x9a0] sm:$0xff]
    %v1746 = vld [vmem:[#allocation8 + $0x9a8] sm:$0xff]
    %v1747 = vld [vmem:[#allocation8 + $0x9b0] sm:$0xff]
    %v1748 = vld [vmem:[#allocation8 + $0x9b8] sm:$0xff]
    %v1749 = vld [vmem:[#allocation8 + $0x9c0] sm:$0xff]
    %v1750 = vld [vmem:[#allocation8 + $0x9c8] sm:$0xff]
    %v1751 = vld [vmem:[#allocation8 + $0x9d0] sm:$0xff]
    %v1752 = vld [vmem:[#allocation8 + $0x9d8] sm:$0xff]
    %v1753 = vld [vmem:[#allocation8 + $0x9e0] sm:$0xff]
    %v1754 = vld [vmem:[#allocation8 + $0x9e8] sm:$0xff]
    %v1755 = vld [vmem:[#allocation8 + $0x9f0] sm:$0xff]
    %v1756 = vld [vmem:[#allocation8 + $0x9f8] sm:$0xff]
    %v1757 = vld [vmem:[#allocation8 + $0xa00] sm:$0xff]
    %v1758 = vld [vmem:[#allocation8 + $0xa08] sm:$0xff]
    %v1759 = vld [vmem:[#allocation8 + $0xa10] sm:$0xff]
    %v1760 = vld [vmem:[#allocation8 + $0xa18] sm:$0xff]
    %v1761 = vld [vmem:[#allocation8 + $0xa20] sm:$0xff]
    %v1762 = vld [vmem:[#allocation8 + $0xa28] sm:$0xff]
    %v1763 = vld [vmem:[#allocation8 + $0xa30] sm:$0xff]
    %v1764 = vld [vmem:[#allocation8 + $0xa38] sm:$0xff]
    %v1765 = vld [vmem:[#allocation8 + $0xa40] sm:$0xff]
    %v1766 = vld [vmem:[#allocation8 + $0xa48] sm:$0xff]
    %v1767 = vld [vmem:[#allocation8 + $0xa50] sm:$0xff]
    %v1768 = vld [vmem:[#allocation8 + $0xa58] sm:$0xff]
    %v1769 = vld [vmem:[#allocation8 + $0xa60] sm:$0xff]
    %v1770 = vld [vmem:[#allocation8 + $0xa68] sm:$0xff]
    %v1771 = vld [vmem:[#allocation8 + $0xa70] sm:$0xff]
    %v1772 = vld [vmem:[#allocation8 + $0xa78] sm:$0xff]
    %v1773 = vld [vmem:[#allocation8 + $0xa80] sm:$0xff]
    %v1774 = vld [vmem:[#allocation8 + $0xa88] sm:$0xff]
    %v1775 = vld [vmem:[#allocation8 + $0xa90] sm:$0xff]
    %v1776 = vld [vmem:[#allocation8 + $0xa98] sm:$0xff]
    %v1777 = vld [vmem:[#allocation8 + $0xaa0] sm:$0xff]
    %v1778 = vld [vmem:[#allocation8 + $0xaa8] sm:$0xff]
    %v1779 = vld [vmem:[#allocation8 + $0xab0] sm:$0xff]
    %v1780 = vld [vmem:[#allocation8 + $0xab8] sm:$0xff]
    %v1781 = vld [vmem:[#allocation8 + $0xac0] sm:$0xff]
    %v1782 = vld [vmem:[#allocation8 + $0xac8] sm:$0xff]
    %v1783 = vld [vmem:[#allocation8 + $0xad0] sm:$0xff]
    %v1784 = vld [vmem:[#allocation8 + $0xad8] sm:$0xff]
    %v1785 = vld [vmem:[#allocation8 + $0xae0] sm:$0xff]
    %v1786 = vld [vmem:[#allocation8 + $0xae8] sm:$0xff]
    %v1787 = vld [vmem:[#allocation8 + $0xaf0] sm:$0xff]
    %v1788 = vld [vmem:[#allocation8 + $0xaf8] sm:$0xff]
    %v1789 = vld [vmem:[#allocation8 + $0xb00] sm:$0xff]
    %v1790 = vld [vmem:[#allocation8 + $0xb08] sm:$0xff]
    %v1791 = vld [vmem:[#allocation8 + $0xb10] sm:$0xff]
    %v1792 = vld [vmem:[#allocation8 + $0xb18] sm:$0xff]
    %v1793 = vld [vmem:[#allocation8 + $0xb20] sm:$0xff]
    %v1794 = vld [vmem:[#allocation8 + $0xb28] sm:$0xff]
    %v1795 = vld [vmem:[#allocation8 + $0xb30] sm:$0xff]
    %v1796 = vld [vmem:[#allocation8 + $0xb38] sm:$0xff]
    %v1797 = vld [vmem:[#allocation8 + $0xb40] sm:$0xff]
    %v1798 = vld [vmem:[#allocation8 + $0xb48] sm:$0xff]
    %v1799 = vld [vmem:[#allocation8 + $0xb50] sm:$0xff]
    %v1800 = vld [vmem:[#allocation8 + $0xb58] sm:$0xff]
    %v1801 = vld [vmem:[#allocation8 + $0xb60] sm:$0xff]
    %v1802 = vld [vmem:[#allocation8 + $0xb68] sm:$0xff]
    %v1803 = vld [vmem:[#allocation8 + $0xb70] sm:$0xff]
    %v1804 = vld [vmem:[#allocation8 + $0xb78] sm:$0xff]
    %v1805 = vld [vmem:[#allocation8 + $0xb80] sm:$0xff]
    %v1806 = vld [vmem:[#allocation8 + $0xb88] sm:$0xff]
    %v1807 = vld [vmem:[#allocation8 + $0xb90] sm:$0xff]
    %v1808 = vld [vmem:[#allocation8 + $0xb98] sm:$0xff]
    %v1809 = vld [vmem:[#allocation8 + $0xba0] sm:$0xff]
    %v1810 = vld [vmem:[#allocation8 + $0xba8] sm:$0xff]
    %v1811 = vld [vmem:[#allocation8 + $0xbb0] sm:$0xff]
    %v1812 = vld [vmem:[#allocation8 + $0xbb8] sm:$0xff]
    %v1813 = vld [vmem:[#allocation8 + $0xbc0] sm:$0xff]
    %v1814 = vld [vmem:[#allocation8 + $0xbc8] sm:$0xff]
    %v1815 = vld [vmem:[#allocation8 + $0xbd0] sm:$0xff]
    %v1816 = vld [vmem:[#allocation8 + $0xbd8] sm:$0xff]
    %v1817 = vld [vmem:[#allocation8 + $0xbe0] sm:$0xff]
    %v1818 = vld [vmem:[#allocation8 + $0xbe8] sm:$0xff]
    %v1819 = vld [vmem:[#allocation8 + $0xbf0] sm:$0xff]
    %v1820 = vld [vmem:[#allocation8 + $0xbf8] sm:$0xff]
    %v1821 = vld [vmem:[#allocation8 + $0xc00] sm:$0xff]
    %v1822 = vld [vmem:[#allocation8 + $0xc08] sm:$0xff]
    %v1823 = vld [vmem:[#allocation8 + $0xc10] sm:$0xff]
    %v1824 = vld [vmem:[#allocation8 + $0xc18] sm:$0xff]
    %v1825 = vld [vmem:[#allocation8 + $0xc20] sm:$0xff]
    %v1826 = vld [vmem:[#allocation8 + $0xc28] sm:$0xff]
    %v1827 = vld [vmem:[#allocation8 + $0xc30] sm:$0xff]
    %v1828 = vld [vmem:[#allocation8 + $0xc38] sm:$0xff]
    %v1829 = vld [vmem:[#allocation8 + $0xc40] sm:$0xff]
    %v1830 = vld [vmem:[#allocation8 + $0xc48] sm:$0xff]
    %v1831 = vld [vmem:[#allocation8 + $0xc50] sm:$0xff]
    %v1832 = vld [vmem:[#allocation8 + $0xc58] sm:$0xff]
    %v1833 = vld [vmem:[#allocation8 + $0xc60] sm:$0xff]
    %v1834 = vld [vmem:[#allocation8 + $0xc68] sm:$0xff]
    %v1835 = vld [vmem:[#allocation8 + $0xc70] sm:$0xff]
    %v1836 = vld [vmem:[#allocation8 + $0xc78] sm:$0xff]
    %v1837 = vld [vmem:[#allocation8 + $0xc80] sm:$0xff]
    %v1838 = vld [vmem:[#allocation8 + $0xc88] sm:$0xff]
    %v1839 = vld [vmem:[#allocation8 + $0xc90] sm:$0xff]
    %v1840 = vld [vmem:[#allocation8 + $0xc98] sm:$0xff]
    %v1841 = vld [vmem:[#allocation8 + $0xca0] sm:$0xff]
    %v1842 = vld [vmem:[#allocation8 + $0xca8] sm:$0xff]
    %v1843 = vld [vmem:[#allocation8 + $0xcb0] sm:$0xff]
    %v1844 = vld [vmem:[#allocation8 + $0xcb8] sm:$0xff]
    %v1845 = vld [vmem:[#allocation8 + $0xcc0] sm:$0xff]
    %v1846 = vld [vmem:[#allocation8 + $0xcc8] sm:$0xff]
    %v1847 = vld [vmem:[#allocation8 + $0xcd0] sm:$0xff]
    %v1848 = vld [vmem:[#allocation8 + $0xcd8] sm:$0xff]
    %v1849 = vld [vmem:[#allocation8 + $0xce0] sm:$0xff]
    %v1850 = vld [vmem:[#allocation8 + $0xce8] sm:$0xff]
    %v1851 = vld [vmem:[#allocation8 + $0xcf0] sm:$0xff]
    %v1852 = vld [vmem:[#allocation8 + $0xcf8] sm:$0xff]
    %v1853 = vld [vmem:[#allocation8 + $0xd00] sm:$0xff]
    %v1854 = vld [vmem:[#allocation8 + $0xd08] sm:$0xff]
    %v1855 = vld [vmem:[#allocation8 + $0xd10] sm:$0xff]
    %v1856 = vld [vmem:[#allocation8 + $0xd18] sm:$0xff]
    %v1857 = vld [vmem:[#allocation8 + $0xd20] sm:$0xff]
    %v1858 = vld [vmem:[#allocation8 + $0xd28] sm:$0xff]
    %v1859 = vld [vmem:[#allocation8 + $0xd30] sm:$0xff]
    %v1860 = vld [vmem:[#allocation8 + $0xd38] sm:$0xff]
    %v1861 = vld [vmem:[#allocation8 + $0xd40] sm:$0xff]
    %v1862 = vld [vmem:[#allocation8 + $0xd48] sm:$0xff]
    %v1863 = vld [vmem:[#allocation8 + $0xd50] sm:$0xff]
    %v1864 = vld [vmem:[#allocation8 + $0xd58] sm:$0xff]
    %v1865 = vld [vmem:[#allocation8 + $0xd60] sm:$0xff]
    %v1866 = vld [vmem:[#allocation8 + $0xd68] sm:$0xff]
    %v1867 = vld [vmem:[#allocation8 + $0xd70] sm:$0xff]
    %v1868 = vld [vmem:[#allocation8 + $0xd78] sm:$0xff]
    %v1869 = vld [vmem:[#allocation8 + $0xd80] sm:$0xff]
    %v1870 = vld [vmem:[#allocation8 + $0xd88] sm:$0xff]
    %v1871 = vld [vmem:[#allocation8 + $0xd90] sm:$0xff]
    %v1872 = vld [vmem:[#allocation8 + $0xd98] sm:$0xff]
    %v1873 = vld [vmem:[#allocation8 + $0xda0] sm:$0xff]
    %v1874 = vld [vmem:[#allocation8 + $0xda8] sm:$0xff]
    %v1875 = vld [vmem:[#allocation8 + $0xdb0] sm:$0xff]
    %v1876 = vld [vmem:[#allocation8 + $0xdb8] sm:$0xff]
    %v1877 = vld [vmem:[#allocation8 + $0xdc0] sm:$0xff]
    %v1878 = vld [vmem:[#allocation8 + $0xdc8] sm:$0xff]
    %v1879 = vld [vmem:[#allocation8 + $0xdd0] sm:$0xff]
    %v1880 = vld [vmem:[#allocation8 + $0xdd8] sm:$0xff]
    %v1881 = vld [vmem:[#allocation8 + $0xde0] sm:$0xff]
    %v1882 = vld [vmem:[#allocation8 + $0xde8] sm:$0xff]
    %v1883 = vld [vmem:[#allocation8 + $0xdf0] sm:$0xff]
    %v1884 = vld [vmem:[#allocation8 + $0xdf8] sm:$0xff]
    %v1885 = vld [vmem:[#allocation8 + $0xe00] sm:$0xff]
    %v1886 = vld [vmem:[#allocation8 + $0xe08] sm:$0xff]
    %v1887 = vld [vmem:[#allocation8 + $0xe10] sm:$0xff]
    %v1888 = vld [vmem:[#allocation8 + $0xe18] sm:$0xff]
    %v1889 = vld [vmem:[#allocation8 + $0xe20] sm:$0xff]
    %v1890 = vld [vmem:[#allocation8 + $0xe28] sm:$0xff]
    %v1891 = vld [vmem:[#allocation8 + $0xe30] sm:$0xff]
    %v1892 = vld [vmem:[#allocation8 + $0xe38] sm:$0xff]
    %v1893 = vld [vmem:[#allocation8 + $0xe40] sm:$0xff]
    %v1894 = vld [vmem:[#allocation8 + $0xe48] sm:$0xff]
    %v1895 = vld [vmem:[#allocation8 + $0xe50] sm:$0xff]
    %v1896 = vld [vmem:[#allocation8 + $0xe58] sm:$0xff]
    %v1897 = vld [vmem:[#allocation8 + $0xe60] sm:$0xff]
    %v1898 = vld [vmem:[#allocation8 + $0xe68] sm:$0xff]
    %v1899 = vld [vmem:[#allocation8 + $0xe70] sm:$0xff]
    %v1900 = vld [vmem:[#allocation8 + $0xe78] sm:$0xff]
    %v1901 = vld [vmem:[#allocation8 + $0xe80] sm:$0xff]
    %v1902 = vld [vmem:[#allocation8 + $0xe88] sm:$0xff]
    %v1903 = vld [vmem:[#allocation8 + $0xe90] sm:$0xff]
    %v1904 = vld [vmem:[#allocation8 + $0xe98] sm:$0xff]
    %v1905 = vld [vmem:[#allocation8 + $0xea0] sm:$0xff]
    %v1906 = vld [vmem:[#allocation8 + $0xea8] sm:$0xff]
    %v1907 = vld [vmem:[#allocation8 + $0xeb0] sm:$0xff]
    %v1908 = vld [vmem:[#allocation8 + $0xeb8] sm:$0xff]
    %v1909 = vld [vmem:[#allocation8 + $0xec0] sm:$0xff]
    %v1910 = vld [vmem:[#allocation8 + $0xec8] sm:$0xff]
    %v1911 = vld [vmem:[#allocation8 + $0xed0] sm:$0xff]
    %v1912 = vld [vmem:[#allocation8 + $0xed8] sm:$0xff]
    %v1913 = vld [vmem:[#allocation8 + $0xee0] sm:$0xff]
    %v1914 = vld [vmem:[#allocation8 + $0xee8] sm:$0xff]
    %v1915 = vld [vmem:[#allocation8 + $0xef0] sm:$0xff]
    %v1916 = vld [vmem:[#allocation8 + $0xef8] sm:$0xff]
    %v1917 = vld [vmem:[#allocation8 + $0xf00] sm:$0xff]
    %v1918 = vld [vmem:[#allocation8 + $0xf08] sm:$0xff]
    %v1919 = vld [vmem:[#allocation8 + $0xf10] sm:$0xff]
    %v1920 = vld [vmem:[#allocation8 + $0xf18] sm:$0xff]
    %v1921 = vld [vmem:[#allocation8 + $0xf20] sm:$0xff]
    %v1922 = vld [vmem:[#allocation8 + $0xf28] sm:$0xff]
    %v1923 = vld [vmem:[#allocation8 + $0xf30] sm:$0xff]
    %v1924 = vld [vmem:[#allocation8 + $0xf38] sm:$0xff]
    %v1925 = vld [vmem:[#allocation8 + $0xf40] sm:$0xff]
    %v1926 = vld [vmem:[#allocation8 + $0xf48] sm:$0xff]
    %v1927 = vld [vmem:[#allocation8 + $0xf50] sm:$0xff]
    %v1928 = vld [vmem:[#allocation8 + $0xf58] sm:$0xff]
    %v1929 = vld [vmem:[#allocation8 + $0xf60] sm:$0xff]
    %v1930 = vld [vmem:[#allocation8 + $0xf68] sm:$0xff]
    %v1931 = vld [vmem:[#allocation8 + $0xf70] sm:$0xff]
    %v1932 = vld [vmem:[#allocation8 + $0xf78] sm:$0xff]
    %v1933 = vld [vmem:[#allocation8 + $0xf80] sm:$0xff]
    %v1934 = vld [vmem:[#allocation8 + $0xf88] sm:$0xff]
    %v1935 = vld [vmem:[#allocation8 + $0xf90] sm:$0xff]
    %v1936 = vld [vmem:[#allocation8 + $0xf98] sm:$0xff]
    %v1937 = vld [vmem:[#allocation8 + $0xfa0] sm:$0xff]
    %v1938 = vld [vmem:[#allocation8 + $0xfa8] sm:$0xff]
    %v1939 = vld [vmem:[#allocation8 + $0xfb0] sm:$0xff]
    %v1940 = vld [vmem:[#allocation8 + $0xfb8] sm:$0xff]
    %v1941 = vld [vmem:[#allocation8 + $0xfc0] sm:$0xff]
    %v1942 = vld [vmem:[#allocation8 + $0xfc8] sm:$0xff]
    %v1943 = vld [vmem:[#allocation8 + $0xfd0] sm:$0xff]
    %v1944 = vld [vmem:[#allocation8 + $0xfd8] sm:$0xff]
    %v1945 = vld [vmem:[#allocation8 + $0xfe0] sm:$0xff]
    %v1946 = vld [vmem:[#allocation8 + $0xfe8] sm:$0xff]
    %v1947 = vld [vmem:[#allocation8 + $0xff0] sm:$0xff]
    %v1948 = vld [vmem:[#allocation8 + $0xff8] sm:$0xff]
    %s1949 = scalar_lea.vmem [#allocation17], 2
    %v1950 = vld [vmem:[%s1949] ss:$8 sm:$0xf]
    %v1951 = vld [vmem:[%s1949] ss:$8 sm:$0xf0]
    %v1952 = vor.u32 %v1950, %v1951
    %s1953 = scalar_lea.vmem [#allocation17], 66
    %v1954 = vld [vmem:[%s1953] ss:$8 sm:$0xf]
    %v1955 = vld [vmem:[%s1953] ss:$8 sm:$0xf0]
    %v1956 = vor.u32 %v1954, %v1955
    %v1959 = vlaneseq
    %v1960 = vshrl.u32 %v1959, 7
    %v1961 = vsub.s32 0, %v1960
    %v1962 = vrot.slane %v1952, %v1961
    %v1963 = vlaneseq
    %v1964 = vshrl.u32 %v1963, 7
    %v1965 = vsub.s32 1, %v1964
    %v1966 = vrot.slane %v1952, %v1965
    %v1967 = vlaneseq
    %v1968 = vshrl.u32 %v1967, 7
    %v1969 = vsub.s32 2, %v1968
    %v1970 = vrot.slane %v1952, %v1969
    %v1971 = vlaneseq
    %v1972 = vshrl.u32 %v1971, 7
    %v1973 = vsub.s32 3, %v1972
    %v1974 = vrot.slane %v1952, %v1973
    %v1975 = vlaneseq
    %v1976 = vshrl.u32 %v1975, 7
    %v1977 = vsub.s32 4, %v1976
    %v1978 = vrot.slane %v1952, %v1977
    %v1979 = vlaneseq
    %v1980 = vshrl.u32 %v1979, 7
    %v1981 = vsub.s32 5, %v1980
    %v1982 = vrot.slane %v1952, %v1981
    %v1983 = vlaneseq
    %v1984 = vshrl.u32 %v1983, 7
    %v1985 = vsub.s32 6, %v1984
    %v1986 = vrot.slane %v1952, %v1985
    %v1987 = vlaneseq
    %v1988 = vshrl.u32 %v1987, 7
    %v1989 = vsub.s32 7, %v1988
    %v1990 = vrot.slane %v1952, %v1989
    %v1991 = vlaneseq
    %v1992 = vshrl.u32 %v1991, 7
    %v1993 = vsub.s32 0, %v1992
    %v1994 = vrot.slane %v1956, %v1993
    %v1995 = vlaneseq
    %v1996 = vshrl.u32 %v1995, 7
    %v1997 = vsub.s32 1, %v1996
    %v1998 = vrot.slane %v1956, %v1997
    %v1999 = vlaneseq
    %v2000 = vshrl.u32 %v1999, 7
    %v2001 = vsub.s32 2, %v2000
    %v2002 = vrot.slane %v1956, %v2001
    %v2003 = vlaneseq
    %v2004 = vshrl.u32 %v2003, 7
    %v2005 = vsub.s32 3, %v2004
    %v2006 = vrot.slane %v1956, %v2005
    %v2007 = vlaneseq
    %v2008 = vshrl.u32 %v2007, 7
    %v2009 = vsub.s32 4, %v2008
    %v2010 = vrot.slane %v1956, %v2009
    %v2011 = vlaneseq
    %v2012 = vshrl.u32 %v2011, 7
    %v2013 = vsub.s32 5, %v2012
    %v2014 = vrot.slane %v1956, %v2013
    %v2015 = vlaneseq
    %v2016 = vshrl.u32 %v2015, 7
    %v2017 = vsub.s32 6, %v2016
    %v2018 = vrot.slane %v1956, %v2017
    %v2019 = vlaneseq
    %v2020 = vshrl.u32 %v2019, 7
    %v2021 = vsub.s32 7, %v2020
    %v2022 = vrot.slane %v1956, %v2021
    %v2551 = vunpack.c.l.b16 %v1437
    %v2552 = vunpack.c.h.b16 %v1437
    %v2553 = vunpack.c.l.b16 %v1438
    %v2554 = vunpack.c.h.b16 %v1438
    %v2555 = vunpack.c.l.b16 %v1439
    %v2556 = vunpack.c.h.b16 %v1439
    %v2557 = vunpack.c.l.b16 %v1440
    %v2558 = vunpack.c.h.b16 %v1440
    %v2559 = vunpack.c.l.b16 %v1441
    %v2560 = vunpack.c.h.b16 %v1441
    %v2561 = vunpack.c.l.b16 %v1442
    %v2562 = vunpack.c.h.b16 %v1442
    %v2563 = vunpack.c.l.b16 %v1443
    %v2564 = vunpack.c.h.b16 %v1443
    %v2565 = vunpack.c.l.b16 %v1444
    %v2566 = vunpack.c.h.b16 %v1444
    %v2567 = vunpack.c.l.b16 %v1445
    %v2568 = vunpack.c.h.b16 %v1445
    %v2569 = vunpack.c.l.b16 %v1446
    %v2570 = vunpack.c.h.b16 %v1446
    %v2571 = vunpack.c.l.b16 %v1447
    %v2572 = vunpack.c.h.b16 %v1447
    %v2573 = vunpack.c.l.b16 %v1448
    %v2574 = vunpack.c.h.b16 %v1448
    %v2575 = vunpack.c.l.b16 %v1449
    %v2576 = vunpack.c.h.b16 %v1449
    %v2577 = vunpack.c.l.b16 %v1450
    %v2578 = vunpack.c.h.b16 %v1450
    %v2579 = vunpack.c.l.b16 %v1451
    %v2580 = vunpack.c.h.b16 %v1451
    %v2581 = vunpack.c.l.b16 %v1452
    %v2582 = vunpack.c.h.b16 %v1452
    %v2583 = vunpack.c.l.b16 %v1453
    %v2584 = vunpack.c.h.b16 %v1453
    %v2585 = vunpack.c.l.b16 %v1454
    %v2586 = vunpack.c.h.b16 %v1454
    %v2587 = vunpack.c.l.b16 %v1455
    %v2588 = vunpack.c.h.b16 %v1455
    %v2589 = vunpack.c.l.b16 %v1456
    %v2590 = vunpack.c.h.b16 %v1456
    %v2591 = vunpack.c.l.b16 %v1457
    %v2592 = vunpack.c.h.b16 %v1457
    %v2593 = vunpack.c.l.b16 %v1458
    %v2594 = vunpack.c.h.b16 %v1458
    %v2595 = vunpack.c.l.b16 %v1459
    %v2596 = vunpack.c.h.b16 %v1459
    %v2597 = vunpack.c.l.b16 %v1460
    %v2598 = vunpack.c.h.b16 %v1460
    %v2599 = vunpack.c.l.b16 %v1461
    %v2600 = vunpack.c.h.b16 %v1461
    %v2601 = vunpack.c.l.b16 %v1462
    %v2602 = vunpack.c.h.b16 %v1462
    %v2603 = vunpack.c.l.b16 %v1463
    %v2604 = vunpack.c.h.b16 %v1463
    %v2605 = vunpack.c.l.b16 %v1464
    %v2606 = vunpack.c.h.b16 %v1464
    %v2607 = vunpack.c.l.b16 %v1465
    %v2608 = vunpack.c.h.b16 %v1465
    %v2609 = vunpack.c.l.b16 %v1466
    %v2610 = vunpack.c.h.b16 %v1466
    %v2611 = vunpack.c.l.b16 %v1467
    %v2612 = vunpack.c.h.b16 %v1467
    %v2613 = vunpack.c.l.b16 %v1468
    %v2614 = vunpack.c.h.b16 %v1468
    %v2615 = vunpack.c.l.b16 %v1469
    %v2616 = vunpack.c.h.b16 %v1469
    %v2617 = vunpack.c.l.b16 %v1470
    %v2618 = vunpack.c.h.b16 %v1470
    %v2619 = vunpack.c.l.b16 %v1471
    %v2620 = vunpack.c.h.b16 %v1471
    %v2621 = vunpack.c.l.b16 %v1472
    %v2622 = vunpack.c.h.b16 %v1472
    %v2623 = vunpack.c.l.b16 %v1473
    %v2624 = vunpack.c.h.b16 %v1473
    %v2625 = vunpack.c.l.b16 %v1474
    %v2626 = vunpack.c.h.b16 %v1474
    %v2627 = vunpack.c.l.b16 %v1475
    %v2628 = vunpack.c.h.b16 %v1475
    %v2629 = vunpack.c.l.b16 %v1476
    %v2630 = vunpack.c.h.b16 %v1476
    %v2631 = vunpack.c.l.b16 %v1477
    %v2632 = vunpack.c.h.b16 %v1477
    %v2633 = vunpack.c.l.b16 %v1478
    %v2634 = vunpack.c.h.b16 %v1478
    %v2635 = vunpack.c.l.b16 %v1479
    %v2636 = vunpack.c.h.b16 %v1479
    %v2637 = vunpack.c.l.b16 %v1480
    %v2638 = vunpack.c.h.b16 %v1480
    %v2639 = vunpack.c.l.b16 %v1481
    %v2640 = vunpack.c.h.b16 %v1481
    %v2641 = vunpack.c.l.b16 %v1482
    %v2642 = vunpack.c.h.b16 %v1482
    %v2643 = vunpack.c.l.b16 %v1483
    %v2644 = vunpack.c.h.b16 %v1483
    %v2645 = vunpack.c.l.b16 %v1484
    %v2646 = vunpack.c.h.b16 %v1484
    %v2647 = vunpack.c.l.b16 %v1485
    %v2648 = vunpack.c.h.b16 %v1485
    %v2649 = vunpack.c.l.b16 %v1486
    %v2650 = vunpack.c.h.b16 %v1486
    %v2651 = vunpack.c.l.b16 %v1487
    %v2652 = vunpack.c.h.b16 %v1487
    %v2653 = vunpack.c.l.b16 %v1488
    %v2654 = vunpack.c.h.b16 %v1488
    %v2655 = vunpack.c.l.b16 %v1489
    %v2656 = vunpack.c.h.b16 %v1489
    %v2657 = vunpack.c.l.b16 %v1490
    %v2658 = vunpack.c.h.b16 %v1490
    %v2659 = vunpack.c.l.b16 %v1491
    %v2660 = vunpack.c.h.b16 %v1491
    %v2661 = vunpack.c.l.b16 %v1492
    %v2662 = vunpack.c.h.b16 %v1492
    %v2663 = vunpack.c.l.b16 %v1493
    %v2664 = vunpack.c.h.b16 %v1493
    %v2665 = vunpack.c.l.b16 %v1494
    %v2666 = vunpack.c.h.b16 %v1494
    %v2667 = vunpack.c.l.b16 %v1495
    %v2668 = vunpack.c.h.b16 %v1495
    %v2669 = vunpack.c.l.b16 %v1496
    %v2670 = vunpack.c.h.b16 %v1496
    %v2671 = vunpack.c.l.b16 %v1497
    %v2672 = vunpack.c.h.b16 %v1497
    %v2673 = vunpack.c.l.b16 %v1498
    %v2674 = vunpack.c.h.b16 %v1498
    %v2675 = vunpack.c.l.b16 %v1499
    %v2676 = vunpack.c.h.b16 %v1499
    %v2677 = vunpack.c.l.b16 %v1500
    %v2678 = vunpack.c.h.b16 %v1500
    %v2679 = vunpack.c.l.b16 %v1501
    %v2680 = vunpack.c.h.b16 %v1501
    %v2681 = vunpack.c.l.b16 %v1502
    %v2682 = vunpack.c.h.b16 %v1502
    %v2683 = vunpack.c.l.b16 %v1503
    %v2684 = vunpack.c.h.b16 %v1503
    %v2685 = vunpack.c.l.b16 %v1504
    %v2686 = vunpack.c.h.b16 %v1504
    %v2687 = vunpack.c.l.b16 %v1505
    %v2688 = vunpack.c.h.b16 %v1505
    %v2689 = vunpack.c.l.b16 %v1506
    %v2690 = vunpack.c.h.b16 %v1506
    %v2691 = vunpack.c.l.b16 %v1507
    %v2692 = vunpack.c.h.b16 %v1507
    %v2693 = vunpack.c.l.b16 %v1508
    %v2694 = vunpack.c.h.b16 %v1508
    %v2695 = vunpack.c.l.b16 %v1509
    %v2696 = vunpack.c.h.b16 %v1509
    %v2697 = vunpack.c.l.b16 %v1510
    %v2698 = vunpack.c.h.b16 %v1510
    %v2699 = vunpack.c.l.b16 %v1511
    %v2700 = vunpack.c.h.b16 %v1511
    %v2701 = vunpack.c.l.b16 %v1512
    %v2702 = vunpack.c.h.b16 %v1512
    %v2703 = vunpack.c.l.b16 %v1513
    %v2704 = vunpack.c.h.b16 %v1513
    %v2705 = vunpack.c.l.b16 %v1514
    %v2706 = vunpack.c.h.b16 %v1514
    %v2707 = vunpack.c.l.b16 %v1515
    %v2708 = vunpack.c.h.b16 %v1515
    %v2709 = vunpack.c.l.b16 %v1516
    %v2710 = vunpack.c.h.b16 %v1516
    %v2711 = vunpack.c.l.b16 %v1517
    %v2712 = vunpack.c.h.b16 %v1517
    %v2713 = vunpack.c.l.b16 %v1518
    %v2714 = vunpack.c.h.b16 %v1518
    %v2715 = vunpack.c.l.b16 %v1519
    %v2716 = vunpack.c.h.b16 %v1519
    %v2717 = vunpack.c.l.b16 %v1520
    %v2718 = vunpack.c.h.b16 %v1520
    %v2719 = vunpack.c.l.b16 %v1521
    %v2720 = vunpack.c.h.b16 %v1521
    %v2721 = vunpack.c.l.b16 %v1522
    %v2722 = vunpack.c.h.b16 %v1522
    %v2723 = vunpack.c.l.b16 %v1523
    %v2724 = vunpack.c.h.b16 %v1523
    %v2725 = vunpack.c.l.b16 %v1524
    %v2726 = vunpack.c.h.b16 %v1524
    %v2727 = vunpack.c.l.b16 %v1525
    %v2728 = vunpack.c.h.b16 %v1525
    %v2729 = vunpack.c.l.b16 %v1526
    %v2730 = vunpack.c.h.b16 %v1526
    %v2731 = vunpack.c.l.b16 %v1527
    %v2732 = vunpack.c.h.b16 %v1527
    %v2733 = vunpack.c.l.b16 %v1528
    %v2734 = vunpack.c.h.b16 %v1528
    %v2735 = vunpack.c.l.b16 %v1529
    %v2736 = vunpack.c.h.b16 %v1529
    %v2737 = vunpack.c.l.b16 %v1530
    %v2738 = vunpack.c.h.b16 %v1530
    %v2739 = vunpack.c.l.b16 %v1531
    %v2740 = vunpack.c.h.b16 %v1531
    %v2741 = vunpack.c.l.b16 %v1532
    %v2742 = vunpack.c.h.b16 %v1532
    %v2743 = vunpack.c.l.b16 %v1533
    %v2744 = vunpack.c.h.b16 %v1533
    %v2745 = vunpack.c.l.b16 %v1534
    %v2746 = vunpack.c.h.b16 %v1534
    %v2747 = vunpack.c.l.b16 %v1535
    %v2748 = vunpack.c.h.b16 %v1535
    %v2749 = vunpack.c.l.b16 %v1536
    %v2750 = vunpack.c.h.b16 %v1536
    %v2751 = vunpack.c.l.b16 %v1537
    %v2752 = vunpack.c.h.b16 %v1537
    %v2753 = vunpack.c.l.b16 %v1538
    %v2754 = vunpack.c.h.b16 %v1538
    %v2755 = vunpack.c.l.b16 %v1539
    %v2756 = vunpack.c.h.b16 %v1539
    %v2757 = vunpack.c.l.b16 %v1540
    %v2758 = vunpack.c.h.b16 %v1540
    %v2759 = vunpack.c.l.b16 %v1541
    %v2760 = vunpack.c.h.b16 %v1541
    %v2761 = vunpack.c.l.b16 %v1542
    %v2762 = vunpack.c.h.b16 %v1542
    %v2763 = vunpack.c.l.b16 %v1543
    %v2764 = vunpack.c.h.b16 %v1543
    %v2765 = vunpack.c.l.b16 %v1544
    %v2766 = vunpack.c.h.b16 %v1544
    %v2767 = vunpack.c.l.b16 %v1545
    %v2768 = vunpack.c.h.b16 %v1545
    %v2769 = vunpack.c.l.b16 %v1546
    %v2770 = vunpack.c.h.b16 %v1546
    %v2771 = vunpack.c.l.b16 %v1547
    %v2772 = vunpack.c.h.b16 %v1547
    %v2773 = vunpack.c.l.b16 %v1548
    %v2774 = vunpack.c.h.b16 %v1548
    %v2775 = vunpack.c.l.b16 %v1549
    %v2776 = vunpack.c.h.b16 %v1549
    %v2777 = vunpack.c.l.b16 %v1550
    %v2778 = vunpack.c.h.b16 %v1550
    %v2779 = vunpack.c.l.b16 %v1551
    %v2780 = vunpack.c.h.b16 %v1551
    %v2781 = vunpack.c.l.b16 %v1552
    %v2782 = vunpack.c.h.b16 %v1552
    %v2783 = vunpack.c.l.b16 %v1553
    %v2784 = vunpack.c.h.b16 %v1553
    %v2785 = vunpack.c.l.b16 %v1554
    %v2786 = vunpack.c.h.b16 %v1554
    %v2787 = vunpack.c.l.b16 %v1555
    %v2788 = vunpack.c.h.b16 %v1555
    %v2789 = vunpack.c.l.b16 %v1556
    %v2790 = vunpack.c.h.b16 %v1556
    %v2791 = vunpack.c.l.b16 %v1557
    %v2792 = vunpack.c.h.b16 %v1557
    %v2793 = vunpack.c.l.b16 %v1558
    %v2794 = vunpack.c.h.b16 %v1558
    %v2795 = vunpack.c.l.b16 %v1559
    %v2796 = vunpack.c.h.b16 %v1559
    %v2797 = vunpack.c.l.b16 %v1560
    %v2798 = vunpack.c.h.b16 %v1560
    %v2799 = vunpack.c.l.b16 %v1561
    %v2800 = vunpack.c.h.b16 %v1561
    %v2801 = vunpack.c.l.b16 %v1562
    %v2802 = vunpack.c.h.b16 %v1562
    %v2803 = vunpack.c.l.b16 %v1563
    %v2804 = vunpack.c.h.b16 %v1563
    %v2805 = vunpack.c.l.b16 %v1564
    %v2806 = vunpack.c.h.b16 %v1564
    %v2807 = vunpack.c.l.b16 %v1565
    %v2808 = vunpack.c.h.b16 %v1565
    %v2809 = vunpack.c.l.b16 %v1566
    %v2810 = vunpack.c.h.b16 %v1566
    %v2811 = vunpack.c.l.b16 %v1567
    %v2812 = vunpack.c.h.b16 %v1567
    %v2813 = vunpack.c.l.b16 %v1568
    %v2814 = vunpack.c.h.b16 %v1568
    %v2815 = vunpack.c.l.b16 %v1569
    %v2816 = vunpack.c.h.b16 %v1569
    %v2817 = vunpack.c.l.b16 %v1570
    %v2818 = vunpack.c.h.b16 %v1570
    %v2819 = vunpack.c.l.b16 %v1571
    %v2820 = vunpack.c.h.b16 %v1571
    %v2821 = vunpack.c.l.b16 %v1572
    %v2822 = vunpack.c.h.b16 %v1572
    %v2823 = vunpack.c.l.b16 %v1573
    %v2824 = vunpack.c.h.b16 %v1573
    %v2825 = vunpack.c.l.b16 %v1574
    %v2826 = vunpack.c.h.b16 %v1574
    %v2827 = vunpack.c.l.b16 %v1575
    %v2828 = vunpack.c.h.b16 %v1575
    %v2829 = vunpack.c.l.b16 %v1576
    %v2830 = vunpack.c.h.b16 %v1576
    %v2831 = vunpack.c.l.b16 %v1577
    %v2832 = vunpack.c.h.b16 %v1577
    %v2833 = vunpack.c.l.b16 %v1578
    %v2834 = vunpack.c.h.b16 %v1578
    %v2835 = vunpack.c.l.b16 %v1579
    %v2836 = vunpack.c.h.b16 %v1579
    %v2837 = vunpack.c.l.b16 %v1580
    %v2838 = vunpack.c.h.b16 %v1580
    %v2839 = vunpack.c.l.b16 %v1581
    %v2840 = vunpack.c.h.b16 %v1581
    %v2841 = vunpack.c.l.b16 %v1582
    %v2842 = vunpack.c.h.b16 %v1582
    %v2843 = vunpack.c.l.b16 %v1583
    %v2844 = vunpack.c.h.b16 %v1583
    %v2845 = vunpack.c.l.b16 %v1584
    %v2846 = vunpack.c.h.b16 %v1584
    %v2847 = vunpack.c.l.b16 %v1585
    %v2848 = vunpack.c.h.b16 %v1585
    %v2849 = vunpack.c.l.b16 %v1586
    %v2850 = vunpack.c.h.b16 %v1586
    %v2851 = vunpack.c.l.b16 %v1587
    %v2852 = vunpack.c.h.b16 %v1587
    %v2853 = vunpack.c.l.b16 %v1588
    %v2854 = vunpack.c.h.b16 %v1588
    %v2855 = vunpack.c.l.b16 %v1589
    %v2856 = vunpack.c.h.b16 %v1589
    %v2857 = vunpack.c.l.b16 %v1590
    %v2858 = vunpack.c.h.b16 %v1590
    %v2859 = vunpack.c.l.b16 %v1591
    %v2860 = vunpack.c.h.b16 %v1591
    %v2861 = vunpack.c.l.b16 %v1592
    %v2862 = vunpack.c.h.b16 %v1592
    %v2863 = vunpack.c.l.b16 %v1593
    %v2864 = vunpack.c.h.b16 %v1593
    %v2865 = vunpack.c.l.b16 %v1594
    %v2866 = vunpack.c.h.b16 %v1594
    %v2867 = vunpack.c.l.b16 %v1595
    %v2868 = vunpack.c.h.b16 %v1595
    %v2869 = vunpack.c.l.b16 %v1596
    %v2870 = vunpack.c.h.b16 %v1596
    %v2871 = vunpack.c.l.b16 %v1597
    %v2872 = vunpack.c.h.b16 %v1597
    %v2873 = vunpack.c.l.b16 %v1598
    %v2874 = vunpack.c.h.b16 %v1598
    %v2875 = vunpack.c.l.b16 %v1599
    %v2876 = vunpack.c.h.b16 %v1599
    %v2877 = vunpack.c.l.b16 %v1600
    %v2878 = vunpack.c.h.b16 %v1600
    %v2879 = vunpack.c.l.b16 %v1601
    %v2880 = vunpack.c.h.b16 %v1601
    %v2881 = vunpack.c.l.b16 %v1602
    %v2882 = vunpack.c.h.b16 %v1602
    %v2883 = vunpack.c.l.b16 %v1603
    %v2884 = vunpack.c.h.b16 %v1603
    %v2885 = vunpack.c.l.b16 %v1604
    %v2886 = vunpack.c.h.b16 %v1604
    %v2887 = vunpack.c.l.b16 %v1605
    %v2888 = vunpack.c.h.b16 %v1605
    %v2889 = vunpack.c.l.b16 %v1606
    %v2890 = vunpack.c.h.b16 %v1606
    %v2891 = vunpack.c.l.b16 %v1607
    %v2892 = vunpack.c.h.b16 %v1607
    %v2893 = vunpack.c.l.b16 %v1608
    %v2894 = vunpack.c.h.b16 %v1608
    %v2895 = vunpack.c.l.b16 %v1609
    %v2896 = vunpack.c.h.b16 %v1609
    %v2897 = vunpack.c.l.b16 %v1610
    %v2898 = vunpack.c.h.b16 %v1610
    %v2899 = vunpack.c.l.b16 %v1611
    %v2900 = vunpack.c.h.b16 %v1611
    %v2901 = vunpack.c.l.b16 %v1612
    %v2902 = vunpack.c.h.b16 %v1612
    %v2903 = vunpack.c.l.b16 %v1613
    %v2904 = vunpack.c.h.b16 %v1613
    %v2905 = vunpack.c.l.b16 %v1614
    %v2906 = vunpack.c.h.b16 %v1614
    %v2907 = vunpack.c.l.b16 %v1615
    %v2908 = vunpack.c.h.b16 %v1615
    %v2909 = vunpack.c.l.b16 %v1616
    %v2910 = vunpack.c.h.b16 %v1616
    %v2911 = vunpack.c.l.b16 %v1617
    %v2912 = vunpack.c.h.b16 %v1617
    %v2913 = vunpack.c.l.b16 %v1618
    %v2914 = vunpack.c.h.b16 %v1618
    %v2915 = vunpack.c.l.b16 %v1619
    %v2916 = vunpack.c.h.b16 %v1619
    %v2917 = vunpack.c.l.b16 %v1620
    %v2918 = vunpack.c.h.b16 %v1620
    %v2919 = vunpack.c.l.b16 %v1621
    %v2920 = vunpack.c.h.b16 %v1621
    %v2921 = vunpack.c.l.b16 %v1622
    %v2922 = vunpack.c.h.b16 %v1622
    %v2923 = vunpack.c.l.b16 %v1623
    %v2924 = vunpack.c.h.b16 %v1623
    %v2925 = vunpack.c.l.b16 %v1624
    %v2926 = vunpack.c.h.b16 %v1624
    %v2927 = vunpack.c.l.b16 %v1625
    %v2928 = vunpack.c.h.b16 %v1625
    %v2929 = vunpack.c.l.b16 %v1626
    %v2930 = vunpack.c.h.b16 %v1626
    %v2931 = vunpack.c.l.b16 %v1627
    %v2932 = vunpack.c.h.b16 %v1627
    %v2933 = vunpack.c.l.b16 %v1628
    %v2934 = vunpack.c.h.b16 %v1628
    %v2935 = vunpack.c.l.b16 %v1629
    %v2936 = vunpack.c.h.b16 %v1629
    %v2937 = vunpack.c.l.b16 %v1630
    %v2938 = vunpack.c.h.b16 %v1630
    %v2939 = vunpack.c.l.b16 %v1631
    %v2940 = vunpack.c.h.b16 %v1631
    %v2941 = vunpack.c.l.b16 %v1632
    %v2942 = vunpack.c.h.b16 %v1632
    %v2943 = vunpack.c.l.b16 %v1633
    %v2944 = vunpack.c.h.b16 %v1633
    %v2945 = vunpack.c.l.b16 %v1634
    %v2946 = vunpack.c.h.b16 %v1634
    %v2947 = vunpack.c.l.b16 %v1635
    %v2948 = vunpack.c.h.b16 %v1635
    %v2949 = vunpack.c.l.b16 %v1636
    %v2950 = vunpack.c.h.b16 %v1636
    %v2951 = vunpack.c.l.b16 %v1637
    %v2952 = vunpack.c.h.b16 %v1637
    %v2953 = vunpack.c.l.b16 %v1638
    %v2954 = vunpack.c.h.b16 %v1638
    %v2955 = vunpack.c.l.b16 %v1639
    %v2956 = vunpack.c.h.b16 %v1639
    %v2957 = vunpack.c.l.b16 %v1640
    %v2958 = vunpack.c.h.b16 %v1640
    %v2959 = vunpack.c.l.b16 %v1641
    %v2960 = vunpack.c.h.b16 %v1641
    %v2961 = vunpack.c.l.b16 %v1642
    %v2962 = vunpack.c.h.b16 %v1642
    %v2963 = vunpack.c.l.b16 %v1643
    %v2964 = vunpack.c.h.b16 %v1643
    %v2965 = vunpack.c.l.b16 %v1644
    %v2966 = vunpack.c.h.b16 %v1644
    %v2967 = vunpack.c.l.b16 %v1645
    %v2968 = vunpack.c.h.b16 %v1645
    %v2969 = vunpack.c.l.b16 %v1646
    %v2970 = vunpack.c.h.b16 %v1646
    %v2971 = vunpack.c.l.b16 %v1647
    %v2972 = vunpack.c.h.b16 %v1647
    %v2973 = vunpack.c.l.b16 %v1648
    %v2974 = vunpack.c.h.b16 %v1648
    %v2975 = vunpack.c.l.b16 %v1649
    %v2976 = vunpack.c.h.b16 %v1649
    %v2977 = vunpack.c.l.b16 %v1650
    %v2978 = vunpack.c.h.b16 %v1650
    %v2979 = vunpack.c.l.b16 %v1651
    %v2980 = vunpack.c.h.b16 %v1651
    %v2981 = vunpack.c.l.b16 %v1652
    %v2982 = vunpack.c.h.b16 %v1652
    %v2983 = vunpack.c.l.b16 %v1653
    %v2984 = vunpack.c.h.b16 %v1653
    %v2985 = vunpack.c.l.b16 %v1654
    %v2986 = vunpack.c.h.b16 %v1654
    %v2987 = vunpack.c.l.b16 %v1655
    %v2988 = vunpack.c.h.b16 %v1655
    %v2989 = vunpack.c.l.b16 %v1656
    %v2990 = vunpack.c.h.b16 %v1656
    %v2991 = vunpack.c.l.b16 %v1657
    %v2992 = vunpack.c.h.b16 %v1657
    %v2993 = vunpack.c.l.b16 %v1658
    %v2994 = vunpack.c.h.b16 %v1658
    %v2995 = vunpack.c.l.b16 %v1659
    %v2996 = vunpack.c.h.b16 %v1659
    %v2997 = vunpack.c.l.b16 %v1660
    %v2998 = vunpack.c.h.b16 %v1660
    %v2999 = vunpack.c.l.b16 %v1661
    %v3000 = vunpack.c.h.b16 %v1661
    %v3001 = vunpack.c.l.b16 %v1662
    %v3002 = vunpack.c.h.b16 %v1662
    %v3003 = vunpack.c.l.b16 %v1663
    %v3004 = vunpack.c.h.b16 %v1663
    %v3005 = vunpack.c.l.b16 %v1664
    %v3006 = vunpack.c.h.b16 %v1664
    %v3007 = vunpack.c.l.b16 %v1665
    %v3008 = vunpack.c.h.b16 %v1665
    %v3009 = vunpack.c.l.b16 %v1666
    %v3010 = vunpack.c.h.b16 %v1666
    %v3011 = vunpack.c.l.b16 %v1667
    %v3012 = vunpack.c.h.b16 %v1667
    %v3013 = vunpack.c.l.b16 %v1668
    %v3014 = vunpack.c.h.b16 %v1668
    %v3015 = vunpack.c.l.b16 %v1669
    %v3016 = vunpack.c.h.b16 %v1669
    %v3017 = vunpack.c.l.b16 %v1670
    %v3018 = vunpack.c.h.b16 %v1670
    %v3019 = vunpack.c.l.b16 %v1671
    %v3020 = vunpack.c.h.b16 %v1671
    %v3021 = vunpack.c.l.b16 %v1672
    %v3022 = vunpack.c.h.b16 %v1672
    %v3023 = vunpack.c.l.b16 %v1673
    %v3024 = vunpack.c.h.b16 %v1673
    %v3025 = vunpack.c.l.b16 %v1674
    %v3026 = vunpack.c.h.b16 %v1674
    %v3027 = vunpack.c.l.b16 %v1675
    %v3028 = vunpack.c.h.b16 %v1675
    %v3029 = vunpack.c.l.b16 %v1676
    %v3030 = vunpack.c.h.b16 %v1676
    %v3031 = vunpack.c.l.b16 %v1677
    %v3032 = vunpack.c.h.b16 %v1677
    %v3033 = vunpack.c.l.b16 %v1678
    %v3034 = vunpack.c.h.b16 %v1678
    %v3035 = vunpack.c.l.b16 %v1679
    %v3036 = vunpack.c.h.b16 %v1679
    %v3037 = vunpack.c.l.b16 %v1680
    %v3038 = vunpack.c.h.b16 %v1680
    %v3039 = vunpack.c.l.b16 %v1681
    %v3040 = vunpack.c.h.b16 %v1681
    %v3041 = vunpack.c.l.b16 %v1682
    %v3042 = vunpack.c.h.b16 %v1682
    %v3043 = vunpack.c.l.b16 %v1683
    %v3044 = vunpack.c.h.b16 %v1683
    %v3045 = vunpack.c.l.b16 %v1684
    %v3046 = vunpack.c.h.b16 %v1684
    %v3047 = vunpack.c.l.b16 %v1685
    %v3048 = vunpack.c.h.b16 %v1685
    %v3049 = vunpack.c.l.b16 %v1686
    %v3050 = vunpack.c.h.b16 %v1686
    %v3051 = vunpack.c.l.b16 %v1687
    %v3052 = vunpack.c.h.b16 %v1687
    %v3053 = vunpack.c.l.b16 %v1688
    %v3054 = vunpack.c.h.b16 %v1688
    %v3055 = vunpack.c.l.b16 %v1689
    %v3056 = vunpack.c.h.b16 %v1689
    %v3057 = vunpack.c.l.b16 %v1690
    %v3058 = vunpack.c.h.b16 %v1690
    %v3059 = vunpack.c.l.b16 %v1691
    %v3060 = vunpack.c.h.b16 %v1691
    %v3061 = vunpack.c.l.b16 %v1692
    %v3062 = vunpack.c.h.b16 %v1692
    %v3063 = vunpack.c.l.b16 %v1693
    %v3064 = vunpack.c.h.b16 %v1693
    %v3065 = vunpack.c.l.b16 %v1694
    %v3066 = vunpack.c.h.b16 %v1694
    %v3067 = vunpack.c.l.b16 %v1695
    %v3068 = vunpack.c.h.b16 %v1695
    %v3069 = vunpack.c.l.b16 %v1696
    %v3070 = vunpack.c.h.b16 %v1696
    %v3071 = vunpack.c.l.b16 %v1697
    %v3072 = vunpack.c.h.b16 %v1697
    %v3073 = vunpack.c.l.b16 %v1698
    %v3074 = vunpack.c.h.b16 %v1698
    %v3075 = vunpack.c.l.b16 %v1699
    %v3076 = vunpack.c.h.b16 %v1699
    %v3077 = vunpack.c.l.b16 %v1700
    %v3078 = vunpack.c.h.b16 %v1700
    %v3079 = vunpack.c.l.b16 %v1701
    %v3080 = vunpack.c.h.b16 %v1701
    %v3081 = vunpack.c.l.b16 %v1702
    %v3082 = vunpack.c.h.b16 %v1702
    %v3083 = vunpack.c.l.b16 %v1703
    %v3084 = vunpack.c.h.b16 %v1703
    %v3085 = vunpack.c.l.b16 %v1704
    %v3086 = vunpack.c.h.b16 %v1704
    %v3087 = vunpack.c.l.b16 %v1705
    %v3088 = vunpack.c.h.b16 %v1705
    %v3089 = vunpack.c.l.b16 %v1706
    %v3090 = vunpack.c.h.b16 %v1706
    %v3091 = vunpack.c.l.b16 %v1707
    %v3092 = vunpack.c.h.b16 %v1707
    %v3093 = vunpack.c.l.b16 %v1708
    %v3094 = vunpack.c.h.b16 %v1708
    %v3095 = vunpack.c.l.b16 %v1709
    %v3096 = vunpack.c.h.b16 %v1709
    %v3097 = vunpack.c.l.b16 %v1710
    %v3098 = vunpack.c.h.b16 %v1710
    %v3099 = vunpack.c.l.b16 %v1711
    %v3100 = vunpack.c.h.b16 %v1711
    %v3101 = vunpack.c.l.b16 %v1712
    %v3102 = vunpack.c.h.b16 %v1712
    %v3103 = vunpack.c.l.b16 %v1713
    %v3104 = vunpack.c.h.b16 %v1713
    %v3105 = vunpack.c.l.b16 %v1714
    %v3106 = vunpack.c.h.b16 %v1714
    %v3107 = vunpack.c.l.b16 %v1715
    %v3108 = vunpack.c.h.b16 %v1715
    %v3109 = vunpack.c.l.b16 %v1716
    %v3110 = vunpack.c.h.b16 %v1716
    %v3111 = vunpack.c.l.b16 %v1717
    %v3112 = vunpack.c.h.b16 %v1717
    %v3113 = vunpack.c.l.b16 %v1718
    %v3114 = vunpack.c.h.b16 %v1718
    %v3115 = vunpack.c.l.b16 %v1719
    %v3116 = vunpack.c.h.b16 %v1719
    %v3117 = vunpack.c.l.b16 %v1720
    %v3118 = vunpack.c.h.b16 %v1720
    %v3119 = vunpack.c.l.b16 %v1721
    %v3120 = vunpack.c.h.b16 %v1721
    %v3121 = vunpack.c.l.b16 %v1722
    %v3122 = vunpack.c.h.b16 %v1722
    %v3123 = vunpack.c.l.b16 %v1723
    %v3124 = vunpack.c.h.b16 %v1723
    %v3125 = vunpack.c.l.b16 %v1724
    %v3126 = vunpack.c.h.b16 %v1724
    %v3127 = vunpack.c.l.b16 %v1725
    %v3128 = vunpack.c.h.b16 %v1725
    %v3129 = vunpack.c.l.b16 %v1726
    %v3130 = vunpack.c.h.b16 %v1726
    %v3131 = vunpack.c.l.b16 %v1727
    %v3132 = vunpack.c.h.b16 %v1727
    %v3133 = vunpack.c.l.b16 %v1728
    %v3134 = vunpack.c.h.b16 %v1728
    %v3135 = vunpack.c.l.b16 %v1729
    %v3136 = vunpack.c.h.b16 %v1729
    %v3137 = vunpack.c.l.b16 %v1730
    %v3138 = vunpack.c.h.b16 %v1730
    %v3139 = vunpack.c.l.b16 %v1731
    %v3140 = vunpack.c.h.b16 %v1731
    %v3141 = vunpack.c.l.b16 %v1732
    %v3142 = vunpack.c.h.b16 %v1732
    %v3143 = vunpack.c.l.b16 %v1733
    %v3144 = vunpack.c.h.b16 %v1733
    %v3145 = vunpack.c.l.b16 %v1734
    %v3146 = vunpack.c.h.b16 %v1734
    %v3147 = vunpack.c.l.b16 %v1735
    %v3148 = vunpack.c.h.b16 %v1735
    %v3149 = vunpack.c.l.b16 %v1736
    %v3150 = vunpack.c.h.b16 %v1736
    %v3151 = vunpack.c.l.b16 %v1737
    %v3152 = vunpack.c.h.b16 %v1737
    %v3153 = vunpack.c.l.b16 %v1738
    %v3154 = vunpack.c.h.b16 %v1738
    %v3155 = vunpack.c.l.b16 %v1739
    %v3156 = vunpack.c.h.b16 %v1739
    %v3157 = vunpack.c.l.b16 %v1740
    %v3158 = vunpack.c.h.b16 %v1740
    %v3159 = vunpack.c.l.b16 %v1741
    %v3160 = vunpack.c.h.b16 %v1741
    %v3161 = vunpack.c.l.b16 %v1742
    %v3162 = vunpack.c.h.b16 %v1742
    %v3163 = vunpack.c.l.b16 %v1743
    %v3164 = vunpack.c.h.b16 %v1743
    %v3165 = vunpack.c.l.b16 %v1744
    %v3166 = vunpack.c.h.b16 %v1744
    %v3167 = vunpack.c.l.b16 %v1745
    %v3168 = vunpack.c.h.b16 %v1745
    %v3169 = vunpack.c.l.b16 %v1746
    %v3170 = vunpack.c.h.b16 %v1746
    %v3171 = vunpack.c.l.b16 %v1747
    %v3172 = vunpack.c.h.b16 %v1747
    %v3173 = vunpack.c.l.b16 %v1748
    %v3174 = vunpack.c.h.b16 %v1748
    %v3175 = vunpack.c.l.b16 %v1749
    %v3176 = vunpack.c.h.b16 %v1749
    %v3177 = vunpack.c.l.b16 %v1750
    %v3178 = vunpack.c.h.b16 %v1750
    %v3179 = vunpack.c.l.b16 %v1751
    %v3180 = vunpack.c.h.b16 %v1751
    %v3181 = vunpack.c.l.b16 %v1752
    %v3182 = vunpack.c.h.b16 %v1752
    %v3183 = vunpack.c.l.b16 %v1753
    %v3184 = vunpack.c.h.b16 %v1753
    %v3185 = vunpack.c.l.b16 %v1754
    %v3186 = vunpack.c.h.b16 %v1754
    %v3187 = vunpack.c.l.b16 %v1755
    %v3188 = vunpack.c.h.b16 %v1755
    %v3189 = vunpack.c.l.b16 %v1756
    %v3190 = vunpack.c.h.b16 %v1756
    %v3191 = vunpack.c.l.b16 %v1757
    %v3192 = vunpack.c.h.b16 %v1757
    %v3193 = vunpack.c.l.b16 %v1758
    %v3194 = vunpack.c.h.b16 %v1758
    %v3195 = vunpack.c.l.b16 %v1759
    %v3196 = vunpack.c.h.b16 %v1759
    %v3197 = vunpack.c.l.b16 %v1760
    %v3198 = vunpack.c.h.b16 %v1760
    %v3199 = vunpack.c.l.b16 %v1761
    %v3200 = vunpack.c.h.b16 %v1761
    %v3201 = vunpack.c.l.b16 %v1762
    %v3202 = vunpack.c.h.b16 %v1762
    %v3203 = vunpack.c.l.b16 %v1763
    %v3204 = vunpack.c.h.b16 %v1763
    %v3205 = vunpack.c.l.b16 %v1764
    %v3206 = vunpack.c.h.b16 %v1764
    %v3207 = vunpack.c.l.b16 %v1765
    %v3208 = vunpack.c.h.b16 %v1765
    %v3209 = vunpack.c.l.b16 %v1766
    %v3210 = vunpack.c.h.b16 %v1766
    %v3211 = vunpack.c.l.b16 %v1767
    %v3212 = vunpack.c.h.b16 %v1767
    %v3213 = vunpack.c.l.b16 %v1768
    %v3214 = vunpack.c.h.b16 %v1768
    %v3215 = vunpack.c.l.b16 %v1769
    %v3216 = vunpack.c.h.b16 %v1769
    %v3217 = vunpack.c.l.b16 %v1770
    %v3218 = vunpack.c.h.b16 %v1770
    %v3219 = vunpack.c.l.b16 %v1771
    %v3220 = vunpack.c.h.b16 %v1771
    %v3221 = vunpack.c.l.b16 %v1772
    %v3222 = vunpack.c.h.b16 %v1772
    %v3223 = vunpack.c.l.b16 %v1773
    %v3224 = vunpack.c.h.b16 %v1773
    %v3225 = vunpack.c.l.b16 %v1774
    %v3226 = vunpack.c.h.b16 %v1774
    %v3227 = vunpack.c.l.b16 %v1775
    %v3228 = vunpack.c.h.b16 %v1775
    %v3229 = vunpack.c.l.b16 %v1776
    %v3230 = vunpack.c.h.b16 %v1776
    %v3231 = vunpack.c.l.b16 %v1777
    %v3232 = vunpack.c.h.b16 %v1777
    %v3233 = vunpack.c.l.b16 %v1778
    %v3234 = vunpack.c.h.b16 %v1778
    %v3235 = vunpack.c.l.b16 %v1779
    %v3236 = vunpack.c.h.b16 %v1779
    %v3237 = vunpack.c.l.b16 %v1780
    %v3238 = vunpack.c.h.b16 %v1780
    %v3239 = vunpack.c.l.b16 %v1781
    %v3240 = vunpack.c.h.b16 %v1781
    %v3241 = vunpack.c.l.b16 %v1782
    %v3242 = vunpack.c.h.b16 %v1782
    %v3243 = vunpack.c.l.b16 %v1783
    %v3244 = vunpack.c.h.b16 %v1783
    %v3245 = vunpack.c.l.b16 %v1784
    %v3246 = vunpack.c.h.b16 %v1784
    %v3247 = vunpack.c.l.b16 %v1785
    %v3248 = vunpack.c.h.b16 %v1785
    %v3249 = vunpack.c.l.b16 %v1786
    %v3250 = vunpack.c.h.b16 %v1786
    %v3251 = vunpack.c.l.b16 %v1787
    %v3252 = vunpack.c.h.b16 %v1787
    %v3253 = vunpack.c.l.b16 %v1788
    %v3254 = vunpack.c.h.b16 %v1788
    %v3255 = vunpack.c.l.b16 %v1789
    %v3256 = vunpack.c.h.b16 %v1789
    %v3257 = vunpack.c.l.b16 %v1790
    %v3258 = vunpack.c.h.b16 %v1790
    %v3259 = vunpack.c.l.b16 %v1791
    %v3260 = vunpack.c.h.b16 %v1791
    %v3261 = vunpack.c.l.b16 %v1792
    %v3262 = vunpack.c.h.b16 %v1792
    %v3263 = vunpack.c.l.b16 %v1793
    %v3264 = vunpack.c.h.b16 %v1793
    %v3265 = vunpack.c.l.b16 %v1794
    %v3266 = vunpack.c.h.b16 %v1794
    %v3267 = vunpack.c.l.b16 %v1795
    %v3268 = vunpack.c.h.b16 %v1795
    %v3269 = vunpack.c.l.b16 %v1796
    %v3270 = vunpack.c.h.b16 %v1796
    %v3271 = vunpack.c.l.b16 %v1797
    %v3272 = vunpack.c.h.b16 %v1797
    %v3273 = vunpack.c.l.b16 %v1798
    %v3274 = vunpack.c.h.b16 %v1798
    %v3275 = vunpack.c.l.b16 %v1799
    %v3276 = vunpack.c.h.b16 %v1799
    %v3277 = vunpack.c.l.b16 %v1800
    %v3278 = vunpack.c.h.b16 %v1800
    %v3279 = vunpack.c.l.b16 %v1801
    %v3280 = vunpack.c.h.b16 %v1801
    %v3281 = vunpack.c.l.b16 %v1802
    %v3282 = vunpack.c.h.b16 %v1802
    %v3283 = vunpack.c.l.b16 %v1803
    %v3284 = vunpack.c.h.b16 %v1803
    %v3285 = vunpack.c.l.b16 %v1804
    %v3286 = vunpack.c.h.b16 %v1804
    %v3287 = vunpack.c.l.b16 %v1805
    %v3288 = vunpack.c.h.b16 %v1805
    %v3289 = vunpack.c.l.b16 %v1806
    %v3290 = vunpack.c.h.b16 %v1806
    %v3291 = vunpack.c.l.b16 %v1807
    %v3292 = vunpack.c.h.b16 %v1807
    %v3293 = vunpack.c.l.b16 %v1808
    %v3294 = vunpack.c.h.b16 %v1808
    %v3295 = vunpack.c.l.b16 %v1809
    %v3296 = vunpack.c.h.b16 %v1809
    %v3297 = vunpack.c.l.b16 %v1810
    %v3298 = vunpack.c.h.b16 %v1810
    %v3299 = vunpack.c.l.b16 %v1811
    %v3300 = vunpack.c.h.b16 %v1811
    %v3301 = vunpack.c.l.b16 %v1812
    %v3302 = vunpack.c.h.b16 %v1812
    %v3303 = vunpack.c.l.b16 %v1813
    %v3304 = vunpack.c.h.b16 %v1813
    %v3305 = vunpack.c.l.b16 %v1814
    %v3306 = vunpack.c.h.b16 %v1814
    %v3307 = vunpack.c.l.b16 %v1815
    %v3308 = vunpack.c.h.b16 %v1815
    %v3309 = vunpack.c.l.b16 %v1816
    %v3310 = vunpack.c.h.b16 %v1816
    %v3311 = vunpack.c.l.b16 %v1817
    %v3312 = vunpack.c.h.b16 %v1817
    %v3313 = vunpack.c.l.b16 %v1818
    %v3314 = vunpack.c.h.b16 %v1818
    %v3315 = vunpack.c.l.b16 %v1819
    %v3316 = vunpack.c.h.b16 %v1819
    %v3317 = vunpack.c.l.b16 %v1820
    %v3318 = vunpack.c.h.b16 %v1820
    %v3319 = vunpack.c.l.b16 %v1821
    %v3320 = vunpack.c.h.b16 %v1821
    %v3321 = vunpack.c.l.b16 %v1822
    %v3322 = vunpack.c.h.b16 %v1822
    %v3323 = vunpack.c.l.b16 %v1823
    %v3324 = vunpack.c.h.b16 %v1823
    %v3325 = vunpack.c.l.b16 %v1824
    %v3326 = vunpack.c.h.b16 %v1824
    %v3327 = vunpack.c.l.b16 %v1825
    %v3328 = vunpack.c.h.b16 %v1825
    %v3329 = vunpack.c.l.b16 %v1826
    %v3330 = vunpack.c.h.b16 %v1826
    %v3331 = vunpack.c.l.b16 %v1827
    %v3332 = vunpack.c.h.b16 %v1827
    %v3333 = vunpack.c.l.b16 %v1828
    %v3334 = vunpack.c.h.b16 %v1828
    %v3335 = vunpack.c.l.b16 %v1829
    %v3336 = vunpack.c.h.b16 %v1829
    %v3337 = vunpack.c.l.b16 %v1830
    %v3338 = vunpack.c.h.b16 %v1830
    %v3339 = vunpack.c.l.b16 %v1831
    %v3340 = vunpack.c.h.b16 %v1831
    %v3341 = vunpack.c.l.b16 %v1832
    %v3342 = vunpack.c.h.b16 %v1832
    %v3343 = vunpack.c.l.b16 %v1833
    %v3344 = vunpack.c.h.b16 %v1833
    %v3345 = vunpack.c.l.b16 %v1834
    %v3346 = vunpack.c.h.b16 %v1834
    %v3347 = vunpack.c.l.b16 %v1835
    %v3348 = vunpack.c.h.b16 %v1835
    %v3349 = vunpack.c.l.b16 %v1836
    %v3350 = vunpack.c.h.b16 %v1836
    %v3351 = vunpack.c.l.b16 %v1837
    %v3352 = vunpack.c.h.b16 %v1837
    %v3353 = vunpack.c.l.b16 %v1838
    %v3354 = vunpack.c.h.b16 %v1838
    %v3355 = vunpack.c.l.b16 %v1839
    %v3356 = vunpack.c.h.b16 %v1839
    %v3357 = vunpack.c.l.b16 %v1840
    %v3358 = vunpack.c.h.b16 %v1840
    %v3359 = vunpack.c.l.b16 %v1841
    %v3360 = vunpack.c.h.b16 %v1841
    %v3361 = vunpack.c.l.b16 %v1842
    %v3362 = vunpack.c.h.b16 %v1842
    %v3363 = vunpack.c.l.b16 %v1843
    %v3364 = vunpack.c.h.b16 %v1843
    %v3365 = vunpack.c.l.b16 %v1844
    %v3366 = vunpack.c.h.b16 %v1844
    %v3367 = vunpack.c.l.b16 %v1845
    %v3368 = vunpack.c.h.b16 %v1845
    %v3369 = vunpack.c.l.b16 %v1846
    %v3370 = vunpack.c.h.b16 %v1846
    %v3371 = vunpack.c.l.b16 %v1847
    %v3372 = vunpack.c.h.b16 %v1847
    %v3373 = vunpack.c.l.b16 %v1848
    %v3374 = vunpack.c.h.b16 %v1848
    %v3375 = vunpack.c.l.b16 %v1849
    %v3376 = vunpack.c.h.b16 %v1849
    %v3377 = vunpack.c.l.b16 %v1850
    %v3378 = vunpack.c.h.b16 %v1850
    %v3379 = vunpack.c.l.b16 %v1851
    %v3380 = vunpack.c.h.b16 %v1851
    %v3381 = vunpack.c.l.b16 %v1852
    %v3382 = vunpack.c.h.b16 %v1852
    %v3383 = vunpack.c.l.b16 %v1853
    %v3384 = vunpack.c.h.b16 %v1853
    %v3385 = vunpack.c.l.b16 %v1854
    %v3386 = vunpack.c.h.b16 %v1854
    %v3387 = vunpack.c.l.b16 %v1855
    %v3388 = vunpack.c.h.b16 %v1855
    %v3389 = vunpack.c.l.b16 %v1856
    %v3390 = vunpack.c.h.b16 %v1856
    %v3391 = vunpack.c.l.b16 %v1857
    %v3392 = vunpack.c.h.b16 %v1857
    %v3393 = vunpack.c.l.b16 %v1858
    %v3394 = vunpack.c.h.b16 %v1858
    %v3395 = vunpack.c.l.b16 %v1859
    %v3396 = vunpack.c.h.b16 %v1859
    %v3397 = vunpack.c.l.b16 %v1860
    %v3398 = vunpack.c.h.b16 %v1860
    %v3399 = vunpack.c.l.b16 %v1861
    %v3400 = vunpack.c.h.b16 %v1861
    %v3401 = vunpack.c.l.b16 %v1862
    %v3402 = vunpack.c.h.b16 %v1862
    %v3403 = vunpack.c.l.b16 %v1863
    %v3404 = vunpack.c.h.b16 %v1863
    %v3405 = vunpack.c.l.b16 %v1864
    %v3406 = vunpack.c.h.b16 %v1864
    %v3407 = vunpack.c.l.b16 %v1865
    %v3408 = vunpack.c.h.b16 %v1865
    %v3409 = vunpack.c.l.b16 %v1866
    %v3410 = vunpack.c.h.b16 %v1866
    %v3411 = vunpack.c.l.b16 %v1867
    %v3412 = vunpack.c.h.b16 %v1867
    %v3413 = vunpack.c.l.b16 %v1868
    %v3414 = vunpack.c.h.b16 %v1868
    %v3415 = vunpack.c.l.b16 %v1869
    %v3416 = vunpack.c.h.b16 %v1869
    %v3417 = vunpack.c.l.b16 %v1870
    %v3418 = vunpack.c.h.b16 %v1870
    %v3419 = vunpack.c.l.b16 %v1871
    %v3420 = vunpack.c.h.b16 %v1871
    %v3421 = vunpack.c.l.b16 %v1872
    %v3422 = vunpack.c.h.b16 %v1872
    %v3423 = vunpack.c.l.b16 %v1873
    %v3424 = vunpack.c.h.b16 %v1873
    %v3425 = vunpack.c.l.b16 %v1874
    %v3426 = vunpack.c.h.b16 %v1874
    %v3427 = vunpack.c.l.b16 %v1875
    %v3428 = vunpack.c.h.b16 %v1875
    %v3429 = vunpack.c.l.b16 %v1876
    %v3430 = vunpack.c.h.b16 %v1876
    %v3431 = vunpack.c.l.b16 %v1877
    %v3432 = vunpack.c.h.b16 %v1877
    %v3433 = vunpack.c.l.b16 %v1878
    %v3434 = vunpack.c.h.b16 %v1878
    %v3435 = vunpack.c.l.b16 %v1879
    %v3436 = vunpack.c.h.b16 %v1879
    %v3437 = vunpack.c.l.b16 %v1880
    %v3438 = vunpack.c.h.b16 %v1880
    %v3439 = vunpack.c.l.b16 %v1881
    %v3440 = vunpack.c.h.b16 %v1881
    %v3441 = vunpack.c.l.b16 %v1882
    %v3442 = vunpack.c.h.b16 %v1882
    %v3443 = vunpack.c.l.b16 %v1883
    %v3444 = vunpack.c.h.b16 %v1883
    %v3445 = vunpack.c.l.b16 %v1884
    %v3446 = vunpack.c.h.b16 %v1884
    %v3447 = vunpack.c.l.b16 %v1885
    %v3448 = vunpack.c.h.b16 %v1885
    %v3449 = vunpack.c.l.b16 %v1886
    %v3450 = vunpack.c.h.b16 %v1886
    %v3451 = vunpack.c.l.b16 %v1887
    %v3452 = vunpack.c.h.b16 %v1887
    %v3453 = vunpack.c.l.b16 %v1888
    %v3454 = vunpack.c.h.b16 %v1888
    %v3455 = vunpack.c.l.b16 %v1889
    %v3456 = vunpack.c.h.b16 %v1889
    %v3457 = vunpack.c.l.b16 %v1890
    %v3458 = vunpack.c.h.b16 %v1890
    %v3459 = vunpack.c.l.b16 %v1891
    %v3460 = vunpack.c.h.b16 %v1891
    %v3461 = vunpack.c.l.b16 %v1892
    %v3462 = vunpack.c.h.b16 %v1892
    %v3463 = vunpack.c.l.b16 %v1893
    %v3464 = vunpack.c.h.b16 %v1893
    %v3465 = vunpack.c.l.b16 %v1894
    %v3466 = vunpack.c.h.b16 %v1894
    %v3467 = vunpack.c.l.b16 %v1895
    %v3468 = vunpack.c.h.b16 %v1895
    %v3469 = vunpack.c.l.b16 %v1896
    %v3470 = vunpack.c.h.b16 %v1896
    %v3471 = vunpack.c.l.b16 %v1897
    %v3472 = vunpack.c.h.b16 %v1897
    %v3473 = vunpack.c.l.b16 %v1898
    %v3474 = vunpack.c.h.b16 %v1898
    %v3475 = vunpack.c.l.b16 %v1899
    %v3476 = vunpack.c.h.b16 %v1899
    %v3477 = vunpack.c.l.b16 %v1900
    %v3478 = vunpack.c.h.b16 %v1900
    %v3479 = vunpack.c.l.b16 %v1901
    %v3480 = vunpack.c.h.b16 %v1901
    %v3481 = vunpack.c.l.b16 %v1902
    %v3482 = vunpack.c.h.b16 %v1902
    %v3483 = vunpack.c.l.b16 %v1903
    %v3484 = vunpack.c.h.b16 %v1903
    %v3485 = vunpack.c.l.b16 %v1904
    %v3486 = vunpack.c.h.b16 %v1904
    %v3487 = vunpack.c.l.b16 %v1905
    %v3488 = vunpack.c.h.b16 %v1905
    %v3489 = vunpack.c.l.b16 %v1906
    %v3490 = vunpack.c.h.b16 %v1906
    %v3491 = vunpack.c.l.b16 %v1907
    %v3492 = vunpack.c.h.b16 %v1907
    %v3493 = vunpack.c.l.b16 %v1908
    %v3494 = vunpack.c.h.b16 %v1908
    %v3495 = vunpack.c.l.b16 %v1909
    %v3496 = vunpack.c.h.b16 %v1909
    %v3497 = vunpack.c.l.b16 %v1910
    %v3498 = vunpack.c.h.b16 %v1910
    %v3499 = vunpack.c.l.b16 %v1911
    %v3500 = vunpack.c.h.b16 %v1911
    %v3501 = vunpack.c.l.b16 %v1912
    %v3502 = vunpack.c.h.b16 %v1912
    %v3503 = vunpack.c.l.b16 %v1913
    %v3504 = vunpack.c.h.b16 %v1913
    %v3505 = vunpack.c.l.b16 %v1914
    %v3506 = vunpack.c.h.b16 %v1914
    %v3507 = vunpack.c.l.b16 %v1915
    %v3508 = vunpack.c.h.b16 %v1915
    %v3509 = vunpack.c.l.b16 %v1916
    %v3510 = vunpack.c.h.b16 %v1916
    %v3511 = vunpack.c.l.b16 %v1917
    %v3512 = vunpack.c.h.b16 %v1917
    %v3513 = vunpack.c.l.b16 %v1918
    %v3514 = vunpack.c.h.b16 %v1918
    %v3515 = vunpack.c.l.b16 %v1919
    %v3516 = vunpack.c.h.b16 %v1919
    %v3517 = vunpack.c.l.b16 %v1920
    %v3518 = vunpack.c.h.b16 %v1920
    %v3519 = vunpack.c.l.b16 %v1921
    %v3520 = vunpack.c.h.b16 %v1921
    %v3521 = vunpack.c.l.b16 %v1922
    %v3522 = vunpack.c.h.b16 %v1922
    %v3523 = vunpack.c.l.b16 %v1923
    %v3524 = vunpack.c.h.b16 %v1923
    %v3525 = vunpack.c.l.b16 %v1924
    %v3526 = vunpack.c.h.b16 %v1924
    %v3527 = vunpack.c.l.b16 %v1925
    %v3528 = vunpack.c.h.b16 %v1925
    %v3529 = vunpack.c.l.b16 %v1926
    %v3530 = vunpack.c.h.b16 %v1926
    %v3531 = vunpack.c.l.b16 %v1927
    %v3532 = vunpack.c.h.b16 %v1927
    %v3533 = vunpack.c.l.b16 %v1928
    %v3534 = vunpack.c.h.b16 %v1928
    %v3535 = vunpack.c.l.b16 %v1929
    %v3536 = vunpack.c.h.b16 %v1929
    %v3537 = vunpack.c.l.b16 %v1930
    %v3538 = vunpack.c.h.b16 %v1930
    %v3539 = vunpack.c.l.b16 %v1931
    %v3540 = vunpack.c.h.b16 %v1931
    %v3541 = vunpack.c.l.b16 %v1932
    %v3542 = vunpack.c.h.b16 %v1932
    %v3543 = vunpack.c.l.b16 %v1933
    %v3544 = vunpack.c.h.b16 %v1933
    %v3545 = vunpack.c.l.b16 %v1934
    %v3546 = vunpack.c.h.b16 %v1934
    %v3547 = vunpack.c.l.b16 %v1935
    %v3548 = vunpack.c.h.b16 %v1935
    %v3549 = vunpack.c.l.b16 %v1936
    %v3550 = vunpack.c.h.b16 %v1936
    %v3551 = vunpack.c.l.b16 %v1937
    %v3552 = vunpack.c.h.b16 %v1937
    %v3553 = vunpack.c.l.b16 %v1938
    %v3554 = vunpack.c.h.b16 %v1938
    %v3555 = vunpack.c.l.b16 %v1939
    %v3556 = vunpack.c.h.b16 %v1939
    %v3557 = vunpack.c.l.b16 %v1940
    %v3558 = vunpack.c.h.b16 %v1940
    %v3559 = vunpack.c.l.b16 %v1941
    %v3560 = vunpack.c.h.b16 %v1941
    %v3561 = vunpack.c.l.b16 %v1942
    %v3562 = vunpack.c.h.b16 %v1942
    %v3563 = vunpack.c.l.b16 %v1943
    %v3564 = vunpack.c.h.b16 %v1943
    %v3565 = vunpack.c.l.b16 %v1944
    %v3566 = vunpack.c.h.b16 %v1944
    %v3567 = vunpack.c.l.b16 %v1945
    %v3568 = vunpack.c.h.b16 %v1945
    %v3569 = vunpack.c.l.b16 %v1946
    %v3570 = vunpack.c.h.b16 %v1946
    %v3571 = vunpack.c.l.b16 %v1947
    %v3572 = vunpack.c.h.b16 %v1947
    %v3573 = vunpack.c.l.b16 %v1948
    %v3574 = vunpack.c.h.b16 %v1948
    %v3575 = vpack.c.b16 %v2567, %v2551
    %v3576 = vpack.c.b16 %v2568, %v2552
    %v3577 = vpack.c.b16 %v2569, %v2553
    %v3578 = vpack.c.b16 %v2570, %v2554
    %v3579 = vpack.c.b16 %v2571, %v2555
    %v3580 = vpack.c.b16 %v2572, %v2556
    %v3581 = vpack.c.b16 %v2573, %v2557
    %v3582 = vpack.c.b16 %v2574, %v2558
    %v3583 = vpack.c.b16 %v2575, %v2559
    %v3584 = vpack.c.b16 %v2576, %v2560
    %v3585 = vpack.c.b16 %v2577, %v2561
    %v3586 = vpack.c.b16 %v2578, %v2562
    %v3587 = vpack.c.b16 %v2579, %v2563
    %v3588 = vpack.c.b16 %v2580, %v2564
    %v3589 = vpack.c.b16 %v2581, %v2565
    %v3590 = vpack.c.b16 %v2582, %v2566
    %v3591 = vpack.c.b16 %v2599, %v2583
    %v3592 = vpack.c.b16 %v2600, %v2584
    %v3593 = vpack.c.b16 %v2601, %v2585
    %v3594 = vpack.c.b16 %v2602, %v2586
    %v3595 = vpack.c.b16 %v2603, %v2587
    %v3596 = vpack.c.b16 %v2604, %v2588
    %v3597 = vpack.c.b16 %v2605, %v2589
    %v3598 = vpack.c.b16 %v2606, %v2590
    %v3599 = vpack.c.b16 %v2607, %v2591
    %v3600 = vpack.c.b16 %v2608, %v2592
    %v3601 = vpack.c.b16 %v2609, %v2593
    %v3602 = vpack.c.b16 %v2610, %v2594
    %v3603 = vpack.c.b16 %v2611, %v2595
    %v3604 = vpack.c.b16 %v2612, %v2596
    %v3605 = vpack.c.b16 %v2613, %v2597
    %v3606 = vpack.c.b16 %v2614, %v2598
    %v3607 = vpack.c.b16 %v2631, %v2615
    %v3608 = vpack.c.b16 %v2632, %v2616
    %v3609 = vpack.c.b16 %v2633, %v2617
    %v3610 = vpack.c.b16 %v2634, %v2618
    %v3611 = vpack.c.b16 %v2635, %v2619
    %v3612 = vpack.c.b16 %v2636, %v2620
    %v3613 = vpack.c.b16 %v2637, %v2621
    %v3614 = vpack.c.b16 %v2638, %v2622
    %v3615 = vpack.c.b16 %v2639, %v2623
    %v3616 = vpack.c.b16 %v2640, %v2624
    %v3617 = vpack.c.b16 %v2641, %v2625
    %v3618 = vpack.c.b16 %v2642, %v2626
    %v3619 = vpack.c.b16 %v2643, %v2627
    %v3620 = vpack.c.b16 %v2644, %v2628
    %v3621 = vpack.c.b16 %v2645, %v2629
    %v3622 = vpack.c.b16 %v2646, %v2630
    %v3623 = vpack.c.b16 %v2663, %v2647
    %v3624 = vpack.c.b16 %v2664, %v2648
    %v3625 = vpack.c.b16 %v2665, %v2649
    %v3626 = vpack.c.b16 %v2666, %v2650
    %v3627 = vpack.c.b16 %v2667, %v2651
    %v3628 = vpack.c.b16 %v2668, %v2652
    %v3629 = vpack.c.b16 %v2669, %v2653
    %v3630 = vpack.c.b16 %v2670, %v2654
    %v3631 = vpack.c.b16 %v2671, %v2655
    %v3632 = vpack.c.b16 %v2672, %v2656
    %v3633 = vpack.c.b16 %v2673, %v2657
    %v3634 = vpack.c.b16 %v2674, %v2658
    %v3635 = vpack.c.b16 %v2675, %v2659
    %v3636 = vpack.c.b16 %v2676, %v2660
    %v3637 = vpack.c.b16 %v2677, %v2661
    %v3638 = vpack.c.b16 %v2678, %v2662
    %v3639 = vpack.c.b16 %v2695, %v2679
    %v3640 = vpack.c.b16 %v2696, %v2680
    %v3641 = vpack.c.b16 %v2697, %v2681
    %v3642 = vpack.c.b16 %v2698, %v2682
    %v3643 = vpack.c.b16 %v2699, %v2683
    %v3644 = vpack.c.b16 %v2700, %v2684
    %v3645 = vpack.c.b16 %v2701, %v2685
    %v3646 = vpack.c.b16 %v2702, %v2686
    %v3647 = vpack.c.b16 %v2703, %v2687
    %v3648 = vpack.c.b16 %v2704, %v2688
    %v3649 = vpack.c.b16 %v2705, %v2689
    %v3650 = vpack.c.b16 %v2706, %v2690
    %v3651 = vpack.c.b16 %v2707, %v2691
    %v3652 = vpack.c.b16 %v2708, %v2692
    %v3653 = vpack.c.b16 %v2709, %v2693
    %v3654 = vpack.c.b16 %v2710, %v2694
    %v3655 = vpack.c.b16 %v2727, %v2711
    %v3656 = vpack.c.b16 %v2728, %v2712
    %v3657 = vpack.c.b16 %v2729, %v2713
    %v3658 = vpack.c.b16 %v2730, %v2714
    %v3659 = vpack.c.b16 %v2731, %v2715
    %v3660 = vpack.c.b16 %v2732, %v2716
    %v3661 = vpack.c.b16 %v2733, %v2717
    %v3662 = vpack.c.b16 %v2734, %v2718
    %v3663 = vpack.c.b16 %v2735, %v2719
    %v3664 = vpack.c.b16 %v2736, %v2720
    %v3665 = vpack.c.b16 %v2737, %v2721
    %v3666 = vpack.c.b16 %v2738, %v2722
    %v3667 = vpack.c.b16 %v2739, %v2723
    %v3668 = vpack.c.b16 %v2740, %v2724
    %v3669 = vpack.c.b16 %v2741, %v2725
    %v3670 = vpack.c.b16 %v2742, %v2726
    %v3671 = vpack.c.b16 %v2759, %v2743
    %v3672 = vpack.c.b16 %v2760, %v2744
    %v3673 = vpack.c.b16 %v2761, %v2745
    %v3674 = vpack.c.b16 %v2762, %v2746
    %v3675 = vpack.c.b16 %v2763, %v2747
    %v3676 = vpack.c.b16 %v2764, %v2748
    %v3677 = vpack.c.b16 %v2765, %v2749
    %v3678 = vpack.c.b16 %v2766, %v2750
    %v3679 = vpack.c.b16 %v2767, %v2751
    %v3680 = vpack.c.b16 %v2768, %v2752
    %v3681 = vpack.c.b16 %v2769, %v2753
    %v3682 = vpack.c.b16 %v2770, %v2754
    %v3683 = vpack.c.b16 %v2771, %v2755
    %v3684 = vpack.c.b16 %v2772, %v2756
    %v3685 = vpack.c.b16 %v2773, %v2757
    %v3686 = vpack.c.b16 %v2774, %v2758
    %v3687 = vpack.c.b16 %v2791, %v2775
    %v3688 = vpack.c.b16 %v2792, %v2776
    %v3689 = vpack.c.b16 %v2793, %v2777
    %v3690 = vpack.c.b16 %v2794, %v2778
    %v3691 = vpack.c.b16 %v2795, %v2779
    %v3692 = vpack.c.b16 %v2796, %v2780
    %v3693 = vpack.c.b16 %v2797, %v2781
    %v3694 = vpack.c.b16 %v2798, %v2782
    %v3695 = vpack.c.b16 %v2799, %v2783
    %v3696 = vpack.c.b16 %v2800, %v2784
    %v3697 = vpack.c.b16 %v2801, %v2785
    %v3698 = vpack.c.b16 %v2802, %v2786
    %v3699 = vpack.c.b16 %v2803, %v2787
    %v3700 = vpack.c.b16 %v2804, %v2788
    %v3701 = vpack.c.b16 %v2805, %v2789
    %v3702 = vpack.c.b16 %v2806, %v2790
    %v3703 = vpack.c.b16 %v2823, %v2807
    %v3704 = vpack.c.b16 %v2824, %v2808
    %v3705 = vpack.c.b16 %v2825, %v2809
    %v3706 = vpack.c.b16 %v2826, %v2810
    %v3707 = vpack.c.b16 %v2827, %v2811
    %v3708 = vpack.c.b16 %v2828, %v2812
    %v3709 = vpack.c.b16 %v2829, %v2813
    %v3710 = vpack.c.b16 %v2830, %v2814
    %v3711 = vpack.c.b16 %v2831, %v2815
    %v3712 = vpack.c.b16 %v2832, %v2816
    %v3713 = vpack.c.b16 %v2833, %v2817
    %v3714 = vpack.c.b16 %v2834, %v2818
    %v3715 = vpack.c.b16 %v2835, %v2819
    %v3716 = vpack.c.b16 %v2836, %v2820
    %v3717 = vpack.c.b16 %v2837, %v2821
    %v3718 = vpack.c.b16 %v2838, %v2822
    %v3719 = vpack.c.b16 %v2855, %v2839
    %v3720 = vpack.c.b16 %v2856, %v2840
    %v3721 = vpack.c.b16 %v2857, %v2841
    %v3722 = vpack.c.b16 %v2858, %v2842
    %v3723 = vpack.c.b16 %v2859, %v2843
    %v3724 = vpack.c.b16 %v2860, %v2844
    %v3725 = vpack.c.b16 %v2861, %v2845
    %v3726 = vpack.c.b16 %v2862, %v2846
    %v3727 = vpack.c.b16 %v2863, %v2847
    %v3728 = vpack.c.b16 %v2864, %v2848
    %v3729 = vpack.c.b16 %v2865, %v2849
    %v3730 = vpack.c.b16 %v2866, %v2850
    %v3731 = vpack.c.b16 %v2867, %v2851
    %v3732 = vpack.c.b16 %v2868, %v2852
    %v3733 = vpack.c.b16 %v2869, %v2853
    %v3734 = vpack.c.b16 %v2870, %v2854
    %v3735 = vpack.c.b16 %v2887, %v2871
    %v3736 = vpack.c.b16 %v2888, %v2872
    %v3737 = vpack.c.b16 %v2889, %v2873
    %v3738 = vpack.c.b16 %v2890, %v2874
    %v3739 = vpack.c.b16 %v2891, %v2875
    %v3740 = vpack.c.b16 %v2892, %v2876
    %v3741 = vpack.c.b16 %v2893, %v2877
    %v3742 = vpack.c.b16 %v2894, %v2878
    %v3743 = vpack.c.b16 %v2895, %v2879
    %v3744 = vpack.c.b16 %v2896, %v2880
    %v3745 = vpack.c.b16 %v2897, %v2881
    %v3746 = vpack.c.b16 %v2898, %v2882
    %v3747 = vpack.c.b16 %v2899, %v2883
    %v3748 = vpack.c.b16 %v2900, %v2884
    %v3749 = vpack.c.b16 %v2901, %v2885
    %v3750 = vpack.c.b16 %v2902, %v2886
    %v3751 = vpack.c.b16 %v2919, %v2903
    %v3752 = vpack.c.b16 %v2920, %v2904
    %v3753 = vpack.c.b16 %v2921, %v2905
    %v3754 = vpack.c.b16 %v2922, %v2906
    %v3755 = vpack.c.b16 %v2923, %v2907
    %v3756 = vpack.c.b16 %v2924, %v2908
    %v3757 = vpack.c.b16 %v2925, %v2909
    %v3758 = vpack.c.b16 %v2926, %v2910
    %v3759 = vpack.c.b16 %v2927, %v2911
    %v3760 = vpack.c.b16 %v2928, %v2912
    %v3761 = vpack.c.b16 %v2929, %v2913
    %v3762 = vpack.c.b16 %v2930, %v2914
    %v3763 = vpack.c.b16 %v2931, %v2915
    %v3764 = vpack.c.b16 %v2932, %v2916
    %v3765 = vpack.c.b16 %v2933, %v2917
    %v3766 = vpack.c.b16 %v2934, %v2918
    %v3767 = vpack.c.b16 %v2951, %v2935
    %v3768 = vpack.c.b16 %v2952, %v2936
    %v3769 = vpack.c.b16 %v2953, %v2937
    %v3770 = vpack.c.b16 %v2954, %v2938
    %v3771 = vpack.c.b16 %v2955, %v2939
    %v3772 = vpack.c.b16 %v2956, %v2940
    %v3773 = vpack.c.b16 %v2957, %v2941
    %v3774 = vpack.c.b16 %v2958, %v2942
    %v3775 = vpack.c.b16 %v2959, %v2943
    %v3776 = vpack.c.b16 %v2960, %v2944
    %v3777 = vpack.c.b16 %v2961, %v2945
    %v3778 = vpack.c.b16 %v2962, %v2946
    %v3779 = vpack.c.b16 %v2963, %v2947
    %v3780 = vpack.c.b16 %v2964, %v2948
    %v3781 = vpack.c.b16 %v2965, %v2949
    %v3782 = vpack.c.b16 %v2966, %v2950
    %v3783 = vpack.c.b16 %v2983, %v2967
    %v3784 = vpack.c.b16 %v2984, %v2968
    %v3785 = vpack.c.b16 %v2985, %v2969
    %v3786 = vpack.c.b16 %v2986, %v2970
    %v3787 = vpack.c.b16 %v2987, %v2971
    %v3788 = vpack.c.b16 %v2988, %v2972
    %v3789 = vpack.c.b16 %v2989, %v2973
    %v3790 = vpack.c.b16 %v2990, %v2974
    %v3791 = vpack.c.b16 %v2991, %v2975
    %v3792 = vpack.c.b16 %v2992, %v2976
    %v3793 = vpack.c.b16 %v2993, %v2977
    %v3794 = vpack.c.b16 %v2994, %v2978
    %v3795 = vpack.c.b16 %v2995, %v2979
    %v3796 = vpack.c.b16 %v2996, %v2980
    %v3797 = vpack.c.b16 %v2997, %v2981
    %v3798 = vpack.c.b16 %v2998, %v2982
    %v3799 = vpack.c.b16 %v3015, %v2999
    %v3800 = vpack.c.b16 %v3016, %v3000
    %v3801 = vpack.c.b16 %v3017, %v3001
    %v3802 = vpack.c.b16 %v3018, %v3002
    %v3803 = vpack.c.b16 %v3019, %v3003
    %v3804 = vpack.c.b16 %v3020, %v3004
    %v3805 = vpack.c.b16 %v3021, %v3005
    %v3806 = vpack.c.b16 %v3022, %v3006
    %v3807 = vpack.c.b16 %v3023, %v3007
    %v3808 = vpack.c.b16 %v3024, %v3008
    %v3809 = vpack.c.b16 %v3025, %v3009
    %v3810 = vpack.c.b16 %v3026, %v3010
    %v3811 = vpack.c.b16 %v3027, %v3011
    %v3812 = vpack.c.b16 %v3028, %v3012
    %v3813 = vpack.c.b16 %v3029, %v3013
    %v3814 = vpack.c.b16 %v3030, %v3014
    %v3815 = vpack.c.b16 %v3047, %v3031
    %v3816 = vpack.c.b16 %v3048, %v3032
    %v3817 = vpack.c.b16 %v3049, %v3033
    %v3818 = vpack.c.b16 %v3050, %v3034
    %v3819 = vpack.c.b16 %v3051, %v3035
    %v3820 = vpack.c.b16 %v3052, %v3036
    %v3821 = vpack.c.b16 %v3053, %v3037
    %v3822 = vpack.c.b16 %v3054, %v3038
    %v3823 = vpack.c.b16 %v3055, %v3039
    %v3824 = vpack.c.b16 %v3056, %v3040
    %v3825 = vpack.c.b16 %v3057, %v3041
    %v3826 = vpack.c.b16 %v3058, %v3042
    %v3827 = vpack.c.b16 %v3059, %v3043
    %v3828 = vpack.c.b16 %v3060, %v3044
    %v3829 = vpack.c.b16 %v3061, %v3045
    %v3830 = vpack.c.b16 %v3062, %v3046
    %v3831 = vpack.c.b16 %v3079, %v3063
    %v3832 = vpack.c.b16 %v3080, %v3064
    %v3833 = vpack.c.b16 %v3081, %v3065
    %v3834 = vpack.c.b16 %v3082, %v3066
    %v3835 = vpack.c.b16 %v3083, %v3067
    %v3836 = vpack.c.b16 %v3084, %v3068
    %v3837 = vpack.c.b16 %v3085, %v3069
    %v3838 = vpack.c.b16 %v3086, %v3070
    %v3839 = vpack.c.b16 %v3087, %v3071
    %v3840 = vpack.c.b16 %v3088, %v3072
    %v3841 = vpack.c.b16 %v3089, %v3073
    %v3842 = vpack.c.b16 %v3090, %v3074
    %v3843 = vpack.c.b16 %v3091, %v3075
    %v3844 = vpack.c.b16 %v3092, %v3076
    %v3845 = vpack.c.b16 %v3093, %v3077
    %v3846 = vpack.c.b16 %v3094, %v3078
    %v3847 = vpack.c.b16 %v3111, %v3095
    %v3848 = vpack.c.b16 %v3112, %v3096
    %v3849 = vpack.c.b16 %v3113, %v3097
    %v3850 = vpack.c.b16 %v3114, %v3098
    %v3851 = vpack.c.b16 %v3115, %v3099
    %v3852 = vpack.c.b16 %v3116, %v3100
    %v3853 = vpack.c.b16 %v3117, %v3101
    %v3854 = vpack.c.b16 %v3118, %v3102
    %v3855 = vpack.c.b16 %v3119, %v3103
    %v3856 = vpack.c.b16 %v3120, %v3104
    %v3857 = vpack.c.b16 %v3121, %v3105
    %v3858 = vpack.c.b16 %v3122, %v3106
    %v3859 = vpack.c.b16 %v3123, %v3107
    %v3860 = vpack.c.b16 %v3124, %v3108
    %v3861 = vpack.c.b16 %v3125, %v3109
    %v3862 = vpack.c.b16 %v3126, %v3110
    %v3863 = vpack.c.b16 %v3143, %v3127
    %v3864 = vpack.c.b16 %v3144, %v3128
    %v3865 = vpack.c.b16 %v3145, %v3129
    %v3866 = vpack.c.b16 %v3146, %v3130
    %v3867 = vpack.c.b16 %v3147, %v3131
    %v3868 = vpack.c.b16 %v3148, %v3132
    %v3869 = vpack.c.b16 %v3149, %v3133
    %v3870 = vpack.c.b16 %v3150, %v3134
    %v3871 = vpack.c.b16 %v3151, %v3135
    %v3872 = vpack.c.b16 %v3152, %v3136
    %v3873 = vpack.c.b16 %v3153, %v3137
    %v3874 = vpack.c.b16 %v3154, %v3138
    %v3875 = vpack.c.b16 %v3155, %v3139
    %v3876 = vpack.c.b16 %v3156, %v3140
    %v3877 = vpack.c.b16 %v3157, %v3141
    %v3878 = vpack.c.b16 %v3158, %v3142
    %v3879 = vpack.c.b16 %v3175, %v3159
    %v3880 = vpack.c.b16 %v3176, %v3160
    %v3881 = vpack.c.b16 %v3177, %v3161
    %v3882 = vpack.c.b16 %v3178, %v3162
    %v3883 = vpack.c.b16 %v3179, %v3163
    %v3884 = vpack.c.b16 %v3180, %v3164
    %v3885 = vpack.c.b16 %v3181, %v3165
    %v3886 = vpack.c.b16 %v3182, %v3166
    %v3887 = vpack.c.b16 %v3183, %v3167
    %v3888 = vpack.c.b16 %v3184, %v3168
    %v3889 = vpack.c.b16 %v3185, %v3169
    %v3890 = vpack.c.b16 %v3186, %v3170
    %v3891 = vpack.c.b16 %v3187, %v3171
    %v3892 = vpack.c.b16 %v3188, %v3172
    %v3893 = vpack.c.b16 %v3189, %v3173
    %v3894 = vpack.c.b16 %v3190, %v3174
    %v3895 = vpack.c.b16 %v3207, %v3191
    %v3896 = vpack.c.b16 %v3208, %v3192
    %v3897 = vpack.c.b16 %v3209, %v3193
    %v3898 = vpack.c.b16 %v3210, %v3194
    %v3899 = vpack.c.b16 %v3211, %v3195
    %v3900 = vpack.c.b16 %v3212, %v3196
    %v3901 = vpack.c.b16 %v3213, %v3197
    %v3902 = vpack.c.b16 %v3214, %v3198
    %v3903 = vpack.c.b16 %v3215, %v3199
    %v3904 = vpack.c.b16 %v3216, %v3200
    %v3905 = vpack.c.b16 %v3217, %v3201
    %v3906 = vpack.c.b16 %v3218, %v3202
    %v3907 = vpack.c.b16 %v3219, %v3203
    %v3908 = vpack.c.b16 %v3220, %v3204
    %v3909 = vpack.c.b16 %v3221, %v3205
    %v3910 = vpack.c.b16 %v3222, %v3206
    %v3911 = vpack.c.b16 %v3239, %v3223
    %v3912 = vpack.c.b16 %v3240, %v3224
    %v3913 = vpack.c.b16 %v3241, %v3225
    %v3914 = vpack.c.b16 %v3242, %v3226
    %v3915 = vpack.c.b16 %v3243, %v3227
    %v3916 = vpack.c.b16 %v3244, %v3228
    %v3917 = vpack.c.b16 %v3245, %v3229
    %v3918 = vpack.c.b16 %v3246, %v3230
    %v3919 = vpack.c.b16 %v3247, %v3231
    %v3920 = vpack.c.b16 %v3248, %v3232
    %v3921 = vpack.c.b16 %v3249, %v3233
    %v3922 = vpack.c.b16 %v3250, %v3234
    %v3923 = vpack.c.b16 %v3251, %v3235
    %v3924 = vpack.c.b16 %v3252, %v3236
    %v3925 = vpack.c.b16 %v3253, %v3237
    %v3926 = vpack.c.b16 %v3254, %v3238
    %v3927 = vpack.c.b16 %v3271, %v3255
    %v3928 = vpack.c.b16 %v3272, %v3256
    %v3929 = vpack.c.b16 %v3273, %v3257
    %v3930 = vpack.c.b16 %v3274, %v3258
    %v3931 = vpack.c.b16 %v3275, %v3259
    %v3932 = vpack.c.b16 %v3276, %v3260
    %v3933 = vpack.c.b16 %v3277, %v3261
    %v3934 = vpack.c.b16 %v3278, %v3262
    %v3935 = vpack.c.b16 %v3279, %v3263
    %v3936 = vpack.c.b16 %v3280, %v3264
    %v3937 = vpack.c.b16 %v3281, %v3265
    %v3938 = vpack.c.b16 %v3282, %v3266
    %v3939 = vpack.c.b16 %v3283, %v3267
    %v3940 = vpack.c.b16 %v3284, %v3268
    %v3941 = vpack.c.b16 %v3285, %v3269
    %v3942 = vpack.c.b16 %v3286, %v3270
    %v3943 = vpack.c.b16 %v3303, %v3287
    %v3944 = vpack.c.b16 %v3304, %v3288
    %v3945 = vpack.c.b16 %v3305, %v3289
    %v3946 = vpack.c.b16 %v3306, %v3290
    %v3947 = vpack.c.b16 %v3307, %v3291
    %v3948 = vpack.c.b16 %v3308, %v3292
    %v3949 = vpack.c.b16 %v3309, %v3293
    %v3950 = vpack.c.b16 %v3310, %v3294
    %v3951 = vpack.c.b16 %v3311, %v3295
    %v3952 = vpack.c.b16 %v3312, %v3296
    %v3953 = vpack.c.b16 %v3313, %v3297
    %v3954 = vpack.c.b16 %v3314, %v3298
    %v3955 = vpack.c.b16 %v3315, %v3299
    %v3956 = vpack.c.b16 %v3316, %v3300
    %v3957 = vpack.c.b16 %v3317, %v3301
    %v3958 = vpack.c.b16 %v3318, %v3302
    %v3959 = vpack.c.b16 %v3335, %v3319
    %v3960 = vpack.c.b16 %v3336, %v3320
    %v3961 = vpack.c.b16 %v3337, %v3321
    %v3962 = vpack.c.b16 %v3338, %v3322
    %v3963 = vpack.c.b16 %v3339, %v3323
    %v3964 = vpack.c.b16 %v3340, %v3324
    %v3965 = vpack.c.b16 %v3341, %v3325
    %v3966 = vpack.c.b16 %v3342, %v3326
    %v3967 = vpack.c.b16 %v3343, %v3327
    %v3968 = vpack.c.b16 %v3344, %v3328
    %v3969 = vpack.c.b16 %v3345, %v3329
    %v3970 = vpack.c.b16 %v3346, %v3330
    %v3971 = vpack.c.b16 %v3347, %v3331
    %v3972 = vpack.c.b16 %v3348, %v3332
    %v3973 = vpack.c.b16 %v3349, %v3333
    %v3974 = vpack.c.b16 %v3350, %v3334
    %v3975 = vpack.c.b16 %v3367, %v3351
    %v3976 = vpack.c.b16 %v3368, %v3352
    %v3977 = vpack.c.b16 %v3369, %v3353
    %v3978 = vpack.c.b16 %v3370, %v3354
    %v3979 = vpack.c.b16 %v3371, %v3355
    %v3980 = vpack.c.b16 %v3372, %v3356
    %v3981 = vpack.c.b16 %v3373, %v3357
    %v3982 = vpack.c.b16 %v3374, %v3358
    %v3983 = vpack.c.b16 %v3375, %v3359
    %v3984 = vpack.c.b16 %v3376, %v3360
    %v3985 = vpack.c.b16 %v3377, %v3361
    %v3986 = vpack.c.b16 %v3378, %v3362
    %v3987 = vpack.c.b16 %v3379, %v3363
    %v3988 = vpack.c.b16 %v3380, %v3364
    %v3989 = vpack.c.b16 %v3381, %v3365
    %v3990 = vpack.c.b16 %v3382, %v3366
    %v3991 = vpack.c.b16 %v3399, %v3383
    %v3992 = vpack.c.b16 %v3400, %v3384
    %v3993 = vpack.c.b16 %v3401, %v3385
    %v3994 = vpack.c.b16 %v3402, %v3386
    %v3995 = vpack.c.b16 %v3403, %v3387
    %v3996 = vpack.c.b16 %v3404, %v3388
    %v3997 = vpack.c.b16 %v3405, %v3389
    %v3998 = vpack.c.b16 %v3406, %v3390
    %v3999 = vpack.c.b16 %v3407, %v3391
    %v4000 = vpack.c.b16 %v3408, %v3392
    %v4001 = vpack.c.b16 %v3409, %v3393
    %v4002 = vpack.c.b16 %v3410, %v3394
    %v4003 = vpack.c.b16 %v3411, %v3395
    %v4004 = vpack.c.b16 %v3412, %v3396
    %v4005 = vpack.c.b16 %v3413, %v3397
    %v4006 = vpack.c.b16 %v3414, %v3398
    %v4007 = vpack.c.b16 %v3431, %v3415
    %v4008 = vpack.c.b16 %v3432, %v3416
    %v4009 = vpack.c.b16 %v3433, %v3417
    %v4010 = vpack.c.b16 %v3434, %v3418
    %v4011 = vpack.c.b16 %v3435, %v3419
    %v4012 = vpack.c.b16 %v3436, %v3420
    %v4013 = vpack.c.b16 %v3437, %v3421
    %v4014 = vpack.c.b16 %v3438, %v3422
    %v4015 = vpack.c.b16 %v3439, %v3423
    %v4016 = vpack.c.b16 %v3440, %v3424
    %v4017 = vpack.c.b16 %v3441, %v3425
    %v4018 = vpack.c.b16 %v3442, %v3426
    %v4019 = vpack.c.b16 %v3443, %v3427
    %v4020 = vpack.c.b16 %v3444, %v3428
    %v4021 = vpack.c.b16 %v3445, %v3429
    %v4022 = vpack.c.b16 %v3446, %v3430
    %v4023 = vpack.c.b16 %v3463, %v3447
    %v4024 = vpack.c.b16 %v3464, %v3448
    %v4025 = vpack.c.b16 %v3465, %v3449
    %v4026 = vpack.c.b16 %v3466, %v3450
    %v4027 = vpack.c.b16 %v3467, %v3451
    %v4028 = vpack.c.b16 %v3468, %v3452
    %v4029 = vpack.c.b16 %v3469, %v3453
    %v4030 = vpack.c.b16 %v3470, %v3454
    %v4031 = vpack.c.b16 %v3471, %v3455
    %v4032 = vpack.c.b16 %v3472, %v3456
    %v4033 = vpack.c.b16 %v3473, %v3457
    %v4034 = vpack.c.b16 %v3474, %v3458
    %v4035 = vpack.c.b16 %v3475, %v3459
    %v4036 = vpack.c.b16 %v3476, %v3460
    %v4037 = vpack.c.b16 %v3477, %v3461
    %v4038 = vpack.c.b16 %v3478, %v3462
    %v4039 = vpack.c.b16 %v3495, %v3479
    %v4040 = vpack.c.b16 %v3496, %v3480
    %v4041 = vpack.c.b16 %v3497, %v3481
    %v4042 = vpack.c.b16 %v3498, %v3482
    %v4043 = vpack.c.b16 %v3499, %v3483
    %v4044 = vpack.c.b16 %v3500, %v3484
    %v4045 = vpack.c.b16 %v3501, %v3485
    %v4046 = vpack.c.b16 %v3502, %v3486
    %v4047 = vpack.c.b16 %v3503, %v3487
    %v4048 = vpack.c.b16 %v3504, %v3488
    %v4049 = vpack.c.b16 %v3505, %v3489
    %v4050 = vpack.c.b16 %v3506, %v3490
    %v4051 = vpack.c.b16 %v3507, %v3491
    %v4052 = vpack.c.b16 %v3508, %v3492
    %v4053 = vpack.c.b16 %v3509, %v3493
    %v4054 = vpack.c.b16 %v3510, %v3494
    %v4055 = vpack.c.b16 %v3527, %v3511
    %v4056 = vpack.c.b16 %v3528, %v3512
    %v4057 = vpack.c.b16 %v3529, %v3513
    %v4058 = vpack.c.b16 %v3530, %v3514
    %v4059 = vpack.c.b16 %v3531, %v3515
    %v4060 = vpack.c.b16 %v3532, %v3516
    %v4061 = vpack.c.b16 %v3533, %v3517
    %v4062 = vpack.c.b16 %v3534, %v3518
    %v4063 = vpack.c.b16 %v3535, %v3519
    %v4064 = vpack.c.b16 %v3536, %v3520
    %v4065 = vpack.c.b16 %v3537, %v3521
    %v4066 = vpack.c.b16 %v3538, %v3522
    %v4067 = vpack.c.b16 %v3539, %v3523
    %v4068 = vpack.c.b16 %v3540, %v3524
    %v4069 = vpack.c.b16 %v3541, %v3525
    %v4070 = vpack.c.b16 %v3542, %v3526
    %v4071 = vpack.c.b16 %v3559, %v3543
    %v4072 = vpack.c.b16 %v3560, %v3544
    %v4073 = vpack.c.b16 %v3561, %v3545
    %v4074 = vpack.c.b16 %v3562, %v3546
    %v4075 = vpack.c.b16 %v3563, %v3547
    %v4076 = vpack.c.b16 %v3564, %v3548
    %v4077 = vpack.c.b16 %v3565, %v3549
    %v4078 = vpack.c.b16 %v3566, %v3550
    %v4079 = vpack.c.b16 %v3567, %v3551
    %v4080 = vpack.c.b16 %v3568, %v3552
    %v4081 = vpack.c.b16 %v3569, %v3553
    %v4082 = vpack.c.b16 %v3570, %v3554
    %v4083 = vpack.c.b16 %v3571, %v3555
    %v4084 = vpack.c.b16 %v3572, %v3556
    %v4085 = vpack.c.b16 %v3573, %v3557
    %v4086 = vpack.c.b16 %v3574, %v3558
    %4599 = vmatprep.subr.bf16.mxu0 %v3576
    %4600 = vmatpush1.bf16.msra.mxu0 %v3575
    %4601 = vmatprep.subr.bf16.mxu0 %v3592
    %4602 = vmatpush1.bf16.msra.mxu0 %v3591
    %4603 = vmatprep.subr.bf16.mxu0 %v3608
    %4604 = vmatpush1.bf16.msra.mxu0 %v3607
    %4605 = vmatprep.subr.bf16.mxu0 %v3624
    %4606 = vmatpush1.bf16.msra.mxu0 %v3623
    %4607 = vmatprep.subr.bf16.mxu0 %v3640
    %4608 = vmatpush1.bf16.msra.mxu0 %v3639
    %4609 = vmatprep.subr.bf16.mxu0 %v3656
    %4610 = vmatpush1.bf16.msra.mxu0 %v3655
    %4611 = vmatprep.subr.bf16.mxu0 %v3672
    %4612 = vmatpush1.bf16.msra.mxu0 %v3671
    %4613 = vmatprep.subr.bf16.mxu0 %v3688
    %4614 = vmatpush1.bf16.msra.mxu0 %v3687
    %4615 = vmatprep.subr.bf16.mxu0 %v3704
    %4616 = vmatpush1.bf16.msra.mxu0 %v3703
    %4617 = vmatprep.subr.bf16.mxu0 %v3720
    %4618 = vmatpush1.bf16.msra.mxu0 %v3719
    %4619 = vmatprep.subr.bf16.mxu0 %v3736
    %4620 = vmatpush1.bf16.msra.mxu0 %v3735
    %4621 = vmatprep.subr.bf16.mxu0 %v3752
    %4622 = vmatpush1.bf16.msra.mxu0 %v3751
    %4623 = vmatprep.subr.bf16.mxu0 %v3768
    %4624 = vmatpush1.bf16.msra.mxu0 %v3767
    %4625 = vmatprep.subr.bf16.mxu0 %v3784
    %4626 = vmatpush1.bf16.msra.mxu0 %v3783
    %4627 = vmatprep.subr.bf16.mxu0 %v3800
    %4628 = vmatpush1.bf16.msra.mxu0 %v3799
    %4629 = vmatprep.subr.bf16.mxu0 %v3816
    %4630 = vmatpush1.bf16.msra.mxu0 %v3815
    %4631 = vmatprep.mubr.bf16.mxu0 %v1434
    %4632 = vmatmul.mubr.bf16.gmra.mrb[0].mxu0 %v1433
    %v4633 = vpop.f32.mrb[0].mxu0
    %v4634 = vadd.f32 %v1962, %v4633
    %v4635 = vpop.f32.mrb[0].mxu0
    %v4636 = vadd.f32 %v1966, %v4635
    %v4637 = vpop.f32.mrb[0].mxu0
    %v4638 = vpop.f32.mrb[0].mxu0
    %4639 = vdwg.mxu0
    %4640 = vmatprep.subr.bf16.mxu0 %v3832
    %4641 = vmatpush1.bf16.msra.mxu0 %v3831
    %4642 = vmatprep.subr.bf16.mxu0 %v3848
    %4643 = vmatpush1.bf16.msra.mxu0 %v3847
    %4644 = vmatprep.subr.bf16.mxu0 %v3864
    %4645 = vmatpush1.bf16.msra.mxu0 %v3863
    %4646 = vmatprep.subr.bf16.mxu0 %v3880
    %4647 = vmatpush1.bf16.msra.mxu0 %v3879
    %4648 = vmatprep.subr.bf16.mxu0 %v3896
    %4649 = vmatpush1.bf16.msra.mxu0 %v3895
    %4650 = vmatprep.subr.bf16.mxu0 %v3912
    %4651 = vmatpush1.bf16.msra.mxu0 %v3911
    %4652 = vmatprep.subr.bf16.mxu0 %v3928
    %4653 = vmatpush1.bf16.msra.mxu0 %v3927
    %4654 = vmatprep.subr.bf16.mxu0 %v3944
    %4655 = vmatpush1.bf16.msra.mxu0 %v3943
    %4656 = vmatprep.subr.bf16.mxu0 %v3960
    %4657 = vmatpush1.bf16.msra.mxu0 %v3959
    %4658 = vmatprep.subr.bf16.mxu0 %v3976
    %4659 = vmatpush1.bf16.msra.mxu0 %v3975
    %4660 = vmatprep.subr.bf16.mxu0 %v3992
    %4661 = vmatpush1.bf16.msra.mxu0 %v3991
    %4662 = vmatprep.subr.bf16.mxu0 %v4008
    %4663 = vmatpush1.bf16.msra.mxu0 %v4007
    %4664 = vmatprep.subr.bf16.mxu0 %v4024
    %4665 = vmatpush1.bf16.msra.mxu0 %v4023
    %4666 = vmatprep.subr.bf16.mxu0 %v4040
    %4667 = vmatpush1.bf16.msra.mxu0 %v4039
    %4668 = vmatprep.subr.bf16.mxu0 %v4056
    %4669 = vmatpush1.bf16.msra.mxu0 %v4055
    %4670 = vmatprep.subr.bf16.mxu0 %v4072
    %4671 = vmatpush1.bf16.msra.mxu0 %v4071
    %4672 = vmatprep.mubr.bf16.mxu0 %v1436
    %4673 = vmatmul.mubr.bf16.gmra.mrb[0].mxu0 %v1435
    %v4674 = vpop.f32.mrb[0].mxu0
    %v4675 = vadd.f32 %v4634, %v4674
    %v4676 = vpop.f32.mrb[0].mxu0
    %v4677 = vadd.f32 %v4636, %v4676
    %v4678 = vpop.f32.mrb[0].mxu0
    %v4679 = vpop.f32.mrb[0].mxu0
    %4680 = vdwg.mxu0
    %4681 = vmatprep.subr.bf16.mxu0 %v3578
    %4682 = vmatpush1.bf16.msra.mxu0 %v3577
    %4683 = vmatprep.subr.bf16.mxu0 %v3594
    %4684 = vmatpush1.bf16.msra.mxu0 %v3593
    %4685 = vmatprep.subr.bf16.mxu0 %v3610
    %4686 = vmatpush1.bf16.msra.mxu0 %v3609
    %4687 = vmatprep.subr.bf16.mxu0 %v3626
    %4688 = vmatpush1.bf16.msra.mxu0 %v3625
    %4689 = vmatprep.subr.bf16.mxu0 %v3642
    %4690 = vmatpush1.bf16.msra.mxu0 %v3641
    %4691 = vmatprep.subr.bf16.mxu0 %v3658
    %4692 = vmatpush1.bf16.msra.mxu0 %v3657
    %4693 = vmatprep.subr.bf16.mxu0 %v3674
    %4694 = vmatpush1.bf16.msra.mxu0 %v3673
    %4695 = vmatprep.subr.bf16.mxu0 %v3690
    %4696 = vmatpush1.bf16.msra.mxu0 %v3689
    %4697 = vmatprep.subr.bf16.mxu0 %v3706
    %4698 = vmatpush1.bf16.msra.mxu0 %v3705
    %4699 = vmatprep.subr.bf16.mxu0 %v3722
    %4700 = vmatpush1.bf16.msra.mxu0 %v3721
    %4701 = vmatprep.subr.bf16.mxu0 %v3738
    %4702 = vmatpush1.bf16.msra.mxu0 %v3737
    %4703 = vmatprep.subr.bf16.mxu0 %v3754
    %4704 = vmatpush1.bf16.msra.mxu0 %v3753
    %4705 = vmatprep.subr.bf16.mxu0 %v3770
    %4706 = vmatpush1.bf16.msra.mxu0 %v3769
    %4707 = vmatprep.subr.bf16.mxu0 %v3786
    %4708 = vmatpush1.bf16.msra.mxu0 %v3785
    %4709 = vmatprep.subr.bf16.mxu0 %v3802
    %4710 = vmatpush1.bf16.msra.mxu0 %v3801
    %4711 = vmatprep.subr.bf16.mxu0 %v3818
    %4712 = vmatpush1.bf16.msra.mxu0 %v3817
    %4713 = vmatprep.mubr.bf16.mxu0 %v1434
    %4714 = vmatmul.mubr.bf16.gmra.mrb[0].mxu0 %v1433
    %v4715 = vpop.f32.mrb[0].mxu0
    %v4716 = vadd.f32 %v1970, %v4715
    %v4717 = vpop.f32.mrb[0].mxu0
    %v4718 = vadd.f32 %v1974, %v4717
    %v4719 = vpop.f32.mrb[0].mxu0
    %v4720 = vpop.f32.mrb[0].mxu0
    %4721 = vdwg.mxu0
    %4722 = vmatprep.subr.bf16.mxu0 %v3834
    %4723 = vmatpush1.bf16.msra.mxu0 %v3833
    %4724 = vmatprep.subr.bf16.mxu0 %v3850
    %4725 = vmatpush1.bf16.msra.mxu0 %v3849
    %4726 = vmatprep.subr.bf16.mxu0 %v3866
    %4727 = vmatpush1.bf16.msra.mxu0 %v3865
    %4728 = vmatprep.subr.bf16.mxu0 %v3882
    %4729 = vmatpush1.bf16.msra.mxu0 %v3881
    %4730 = vmatprep.subr.bf16.mxu0 %v3898
    %4731 = vmatpush1.bf16.msra.mxu0 %v3897
    %4732 = vmatprep.subr.bf16.mxu0 %v3914
    %4733 = vmatpush1.bf16.msra.mxu0 %v3913
    %4734 = vmatprep.subr.bf16.mxu0 %v3930
    %4735 = vmatpush1.bf16.msra.mxu0 %v3929
    %4736 = vmatprep.subr.bf16.mxu0 %v3946
    %4737 = vmatpush1.bf16.msra.mxu0 %v3945
    %4738 = vmatprep.subr.bf16.mxu0 %v3962
    %4739 = vmatpush1.bf16.msra.mxu0 %v3961
    %4740 = vmatprep.subr.bf16.mxu0 %v3978
    %4741 = vmatpush1.bf16.msra.mxu0 %v3977
    %4742 = vmatprep.subr.bf16.mxu0 %v3994
    %4743 = vmatpush1.bf16.msra.mxu0 %v3993
    %4744 = vmatprep.subr.bf16.mxu0 %v4010
    %4745 = vmatpush1.bf16.msra.mxu0 %v4009
    %4746 = vmatprep.subr.bf16.mxu0 %v4026
    %4747 = vmatpush1.bf16.msra.mxu0 %v4025
    %4748 = vmatprep.subr.bf16.mxu0 %v4042
    %4749 = vmatpush1.bf16.msra.mxu0 %v4041
    %4750 = vmatprep.subr.bf16.mxu0 %v4058
    %4751 = vmatpush1.bf16.msra.mxu0 %v4057
    %4752 = vmatprep.subr.bf16.mxu0 %v4074
    %4753 = vmatpush1.bf16.msra.mxu0 %v4073
    %4754 = vmatprep.mubr.bf16.mxu0 %v1436
    %4755 = vmatmul.mubr.bf16.gmra.mrb[0].mxu0 %v1435
    %v4756 = vpop.f32.mrb[0].mxu0
    %v4757 = vadd.f32 %v4716, %v4756
    %v4758 = vpop.f32.mrb[0].mxu0
    %v4759 = vadd.f32 %v4718, %v4758
    %v4760 = vpop.f32.mrb[0].mxu0
    %v4761 = vpop.f32.mrb[0].mxu0
    %4762 = vdwg.mxu0
    %4763 = vmatprep.subr.bf16.mxu0 %v3580
    %4764 = vmatpush1.bf16.msra.mxu0 %v3579
    %4765 = vmatprep.subr.bf16.mxu0 %v3596
    %4766 = vmatpush1.bf16.msra.mxu0 %v3595
    %4767 = vmatprep.subr.bf16.mxu0 %v3612
    %4768 = vmatpush1.bf16.msra.mxu0 %v3611
    %4769 = vmatprep.subr.bf16.mxu0 %v3628
    %4770 = vmatpush1.bf16.msra.mxu0 %v3627
    %4771 = vmatprep.subr.bf16.mxu0 %v3644
    %4772 = vmatpush1.bf16.msra.mxu0 %v3643
    %4773 = vmatprep.subr.bf16.mxu0 %v3660
    %4774 = vmatpush1.bf16.msra.mxu0 %v3659
    %4775 = vmatprep.subr.bf16.mxu0 %v3676
    %4776 = vmatpush1.bf16.msra.mxu0 %v3675
    %4777 = vmatprep.subr.bf16.mxu0 %v3692
    %4778 = vmatpush1.bf16.msra.mxu0 %v3691
    %4779 = vmatprep.subr.bf16.mxu0 %v3708
    %4780 = vmatpush1.bf16.msra.mxu0 %v3707
    %4781 = vmatprep.subr.bf16.mxu0 %v3724
    %4782 = vmatpush1.bf16.msra.mxu0 %v3723
    %4783 = vmatprep.subr.bf16.mxu0 %v3740
    %4784 = vmatpush1.bf16.msra.mxu0 %v3739
    %4785 = vmatprep.subr.bf16.mxu0 %v3756
    %4786 = vmatpush1.bf16.msra.mxu0 %v3755
    %4787 = vmatprep.subr.bf16.mxu0 %v3772
    %4788 = vmatpush1.bf16.msra.mxu0 %v3771
    %4789 = vmatprep.subr.bf16.mxu0 %v3788
    %4790 = vmatpush1.bf16.msra.mxu0 %v3787
    %4791 = vmatprep.subr.bf16.mxu0 %v3804
    %4792 = vmatpush1.bf16.msra.mxu0 %v3803
    %4793 = vmatprep.subr.bf16.mxu0 %v3820
    %4794 = vmatpush1.bf16.msra.mxu0 %v3819
    %4795 = vmatprep.mubr.bf16.mxu0 %v1434
    %4796 = vmatmul.mubr.bf16.gmra.mrb[0].mxu0 %v1433
    %v4797 = vpop.f32.mrb[0].mxu0
    %v4798 = vadd.f32 %v1978, %v4797
    %v4799 = vpop.f32.mrb[0].mxu0
    %v4800 = vadd.f32 %v1982, %v4799
    %v4801 = vpop.f32.mrb[0].mxu0
    %v4802 = vpop.f32.mrb[0].mxu0
    %4803 = vdwg.mxu0
    %4804 = vmatprep.subr.bf16.mxu0 %v3836
    %4805 = vmatpush1.bf16.msra.mxu0 %v3835
    %4806 = vmatprep.subr.bf16.mxu0 %v3852
    %4807 = vmatpush1.bf16.msra.mxu0 %v3851
    %4808 = vmatprep.subr.bf16.mxu0 %v3868
    %4809 = vmatpush1.bf16.msra.mxu0 %v3867
    %4810 = vmatprep.subr.bf16.mxu0 %v3884
    %4811 = vmatpush1.bf16.msra.mxu0 %v3883
    %4812 = vmatprep.subr.bf16.mxu0 %v3900
    %4813 = vmatpush1.bf16.msra.mxu0 %v3899
    %4814 = vmatprep.subr.bf16.mxu0 %v3916
    %4815 = vmatpush1.bf16.msra.mxu0 %v3915
    %4816 = vmatprep.subr.bf16.mxu0 %v3932
    %4817 = vmatpush1.bf16.msra.mxu0 %v3931
    %4818 = vmatprep.subr.bf16.mxu0 %v3948
    %4819 = vmatpush1.bf16.msra.mxu0 %v3947
    %4820 = vmatprep.subr.bf16.mxu0 %v3964
    %4821 = vmatpush1.bf16.msra.mxu0 %v3963
    %4822 = vmatprep.subr.bf16.mxu0 %v3980
    %4823 = vmatpush1.bf16.msra.mxu0 %v3979
    %4824 = vmatprep.subr.bf16.mxu0 %v3996
    %4825 = vmatpush1.bf16.msra.mxu0 %v3995
    %4826 = vmatprep.subr.bf16.mxu0 %v4012
    %4827 = vmatpush1.bf16.msra.mxu0 %v4011
    %4828 = vmatprep.subr.bf16.mxu0 %v4028
    %4829 = vmatpush1.bf16.msra.mxu0 %v4027
    %4830 = vmatprep.subr.bf16.mxu0 %v4044
    %4831 = vmatpush1.bf16.msra.mxu0 %v4043
    %4832 = vmatprep.subr.bf16.mxu0 %v4060
    %4833 = vmatpush1.bf16.msra.mxu0 %v4059
    %4834 = vmatprep.subr.bf16.mxu0 %v4076
    %4835 = vmatpush1.bf16.msra.mxu0 %v4075
    %4836 = vmatprep.mubr.bf16.mxu0 %v1436
    %4837 = vmatmul.mubr.bf16.gmra.mrb[0].mxu0 %v1435
    %v4838 = vpop.f32.mrb[0].mxu0
    %v4839 = vadd.f32 %v4798, %v4838
    %v4840 = vpop.f32.mrb[0].mxu0
    %v4841 = vadd.f32 %v4800, %v4840
    %v4842 = vpop.f32.mrb[0].mxu0
    %v4843 = vpop.f32.mrb[0].mxu0
    %4844 = vdwg.mxu0
    %4845 = vmatprep.subr.bf16.mxu0 %v3582
    %4846 = vmatpush1.bf16.msra.mxu0 %v3581
    %4847 = vmatprep.subr.bf16.mxu0 %v3598
    %4848 = vmatpush1.bf16.msra.mxu0 %v3597
    %4849 = vmatprep.subr.bf16.mxu0 %v3614
    %4850 = vmatpush1.bf16.msra.mxu0 %v3613
    %4851 = vmatprep.subr.bf16.mxu0 %v3630
    %4852 = vmatpush1.bf16.msra.mxu0 %v3629
    %4853 = vmatprep.subr.bf16.mxu0 %v3646
    %4854 = vmatpush1.bf16.msra.mxu0 %v3645
    %4855 = vmatprep.subr.bf16.mxu0 %v3662
    %4856 = vmatpush1.bf16.msra.mxu0 %v3661
    %4857 = vmatprep.subr.bf16.mxu0 %v3678
    %4858 = vmatpush1.bf16.msra.mxu0 %v3677
    %4859 = vmatprep.subr.bf16.mxu0 %v3694
    %4860 = vmatpush1.bf16.msra.mxu0 %v3693
    %4861 = vmatprep.subr.bf16.mxu0 %v3710
    %4862 = vmatpush1.bf16.msra.mxu0 %v3709
    %4863 = vmatprep.subr.bf16.mxu0 %v3726
    %4864 = vmatpush1.bf16.msra.mxu0 %v3725
    %4865 = vmatprep.subr.bf16.mxu0 %v3742
    %4866 = vmatpush1.bf16.msra.mxu0 %v3741
    %4867 = vmatprep.subr.bf16.mxu0 %v3758
    %4868 = vmatpush1.bf16.msra.mxu0 %v3757
    %4869 = vmatprep.subr.bf16.mxu0 %v3774
    %4870 = vmatpush1.bf16.msra.mxu0 %v3773
    %4871 = vmatprep.subr.bf16.mxu0 %v3790
    %4872 = vmatpush1.bf16.msra.mxu0 %v3789
    %4873 = vmatprep.subr.bf16.mxu0 %v3806
    %4874 = vmatpush1.bf16.msra.mxu0 %v3805
    %4875 = vmatprep.subr.bf16.mxu0 %v3822
    %4876 = vmatpush1.bf16.msra.mxu0 %v3821
    %4877 = vmatprep.mubr.bf16.mxu0 %v1434
    %4878 = vmatmul.mubr.bf16.gmra.mrb[0].mxu0 %v1433
    %v4879 = vpop.f32.mrb[0].mxu0
    %v4880 = vadd.f32 %v1986, %v4879
    %v4881 = vpop.f32.mrb[0].mxu0
    %v4882 = vadd.f32 %v1990, %v4881
    %v4883 = vpop.f32.mrb[0].mxu0
    %v4884 = vpop.f32.mrb[0].mxu0
    %4885 = vdwg.mxu0
    %4886 = vmatprep.subr.bf16.mxu0 %v3838
    %4887 = vmatpush1.bf16.msra.mxu0 %v3837
    %4888 = vmatprep.subr.bf16.mxu0 %v3854
    %4889 = vmatpush1.bf16.msra.mxu0 %v3853
    %4890 = vmatprep.subr.bf16.mxu0 %v3870
    %4891 = vmatpush1.bf16.msra.mxu0 %v3869
    %4892 = vmatprep.subr.bf16.mxu0 %v3886
    %4893 = vmatpush1.bf16.msra.mxu0 %v3885
    %4894 = vmatprep.subr.bf16.mxu0 %v3902
    %4895 = vmatpush1.bf16.msra.mxu0 %v3901
    %4896 = vmatprep.subr.bf16.mxu0 %v3918
    %4897 = vmatpush1.bf16.msra.mxu0 %v3917
    %4898 = vmatprep.subr.bf16.mxu0 %v3934
    %4899 = vmatpush1.bf16.msra.mxu0 %v3933
    %4900 = vmatprep.subr.bf16.mxu0 %v3950
    %4901 = vmatpush1.bf16.msra.mxu0 %v3949
    %4902 = vmatprep.subr.bf16.mxu0 %v3966
    %4903 = vmatpush1.bf16.msra.mxu0 %v3965
    %4904 = vmatprep.subr.bf16.mxu0 %v3982
    %4905 = vmatpush1.bf16.msra.mxu0 %v3981
    %4906 = vmatprep.subr.bf16.mxu0 %v3998
    %4907 = vmatpush1.bf16.msra.mxu0 %v3997
    %4908 = vmatprep.subr.bf16.mxu0 %v4014
    %4909 = vmatpush1.bf16.msra.mxu0 %v4013
    %4910 = vmatprep.subr.bf16.mxu0 %v4030
    %4911 = vmatpush1.bf16.msra.mxu0 %v4029
    %4912 = vmatprep.subr.bf16.mxu0 %v4046
    %4913 = vmatpush1.bf16.msra.mxu0 %v4045
    %4914 = vmatprep.subr.bf16.mxu0 %v4062
    %4915 = vmatpush1.bf16.msra.mxu0 %v4061
    %4916 = vmatprep.subr.bf16.mxu0 %v4078
    %4917 = vmatpush1.bf16.msra.mxu0 %v4077
    %4918 = vmatprep.mubr.bf16.mxu0 %v1436
    %4919 = vmatmul.mubr.bf16.gmra.mrb[0].mxu0 %v1435
    %v4920 = vpop.f32.mrb[0].mxu0
    %v4921 = vadd.f32 %v4880, %v4920
    %v4922 = vpop.f32.mrb[0].mxu0
    %v4923 = vadd.f32 %v4882, %v4922
    %v4924 = vpop.f32.mrb[0].mxu0
    %v4925 = vpop.f32.mrb[0].mxu0
    %4926 = vdwg.mxu0
    %4927 = vmatprep.subr.bf16.mxu0 %v3584
    %4928 = vmatpush1.bf16.msra.mxu0 %v3583
    %4929 = vmatprep.subr.bf16.mxu0 %v3600
    %4930 = vmatpush1.bf16.msra.mxu0 %v3599
    %4931 = vmatprep.subr.bf16.mxu0 %v3616
    %4932 = vmatpush1.bf16.msra.mxu0 %v3615
    %4933 = vmatprep.subr.bf16.mxu0 %v3632
    %4934 = vmatpush1.bf16.msra.mxu0 %v3631
    %4935 = vmatprep.subr.bf16.mxu0 %v3648
    %4936 = vmatpush1.bf16.msra.mxu0 %v3647
    %4937 = vmatprep.subr.bf16.mxu0 %v3664
    %4938 = vmatpush1.bf16.msra.mxu0 %v3663
    %4939 = vmatprep.subr.bf16.mxu0 %v3680
    %4940 = vmatpush1.bf16.msra.mxu0 %v3679
    %4941 = vmatprep.subr.bf16.mxu0 %v3696
    %4942 = vmatpush1.bf16.msra.mxu0 %v3695
    %4943 = vmatprep.subr.bf16.mxu0 %v3712
    %4944 = vmatpush1.bf16.msra.mxu0 %v3711
    %4945 = vmatprep.subr.bf16.mxu0 %v3728
    %4946 = vmatpush1.bf16.msra.mxu0 %v3727
    %4947 = vmatprep.subr.bf16.mxu0 %v3744
    %4948 = vmatpush1.bf16.msra.mxu0 %v3743
    %4949 = vmatprep.subr.bf16.mxu0 %v3760
    %4950 = vmatpush1.bf16.msra.mxu0 %v3759
    %4951 = vmatprep.subr.bf16.mxu0 %v3776
    %4952 = vmatpush1.bf16.msra.mxu0 %v3775
    %4953 = vmatprep.subr.bf16.mxu0 %v3792
    %4954 = vmatpush1.bf16.msra.mxu0 %v3791
    %4955 = vmatprep.subr.bf16.mxu0 %v3808
    %4956 = vmatpush1.bf16.msra.mxu0 %v3807
    %4957 = vmatprep.subr.bf16.mxu0 %v3824
    %4958 = vmatpush1.bf16.msra.mxu0 %v3823
    %4959 = vmatprep.mubr.bf16.mxu0 %v1434
    %4960 = vmatmul.mubr.bf16.gmra.mrb[0].mxu0 %v1433
    %v4961 = vpop.f32.mrb[0].mxu0
    %v4962 = vadd.f32 %v1994, %v4961
    %v4963 = vpop.f32.mrb[0].mxu0
    %v4964 = vadd.f32 %v1998, %v4963
    %v4965 = vpop.f32.mrb[0].mxu0
    %v4966 = vpop.f32.mrb[0].mxu0
    %4967 = vdwg.mxu0
    %4968 = vmatprep.subr.bf16.mxu0 %v3840
    %4969 = vmatpush1.bf16.msra.mxu0 %v3839
    %4970 = vmatprep.subr.bf16.mxu0 %v3856
    %4971 = vmatpush1.bf16.msra.mxu0 %v3855
    %4972 = vmatprep.subr.bf16.mxu0 %v3872
    %4973 = vmatpush1.bf16.msra.mxu0 %v3871
    %4974 = vmatprep.subr.bf16.mxu0 %v3888
    %4975 = vmatpush1.bf16.msra.mxu0 %v3887
    %4976 = vmatprep.subr.bf16.mxu0 %v3904
    %4977 = vmatpush1.bf16.msra.mxu0 %v3903
    %4978 = vmatprep.subr.bf16.mxu0 %v3920
    %4979 = vmatpush1.bf16.msra.mxu0 %v3919
    %4980 = vmatprep.subr.bf16.mxu0 %v3936
    %4981 = vmatpush1.bf16.msra.mxu0 %v3935
    %4982 = vmatprep.subr.bf16.mxu0 %v3952
    %4983 = vmatpush1.bf16.msra.mxu0 %v3951
    %4984 = vmatprep.subr.bf16.mxu0 %v3968
    %4985 = vmatpush1.bf16.msra.mxu0 %v3967
    %4986 = vmatprep.subr.bf16.mxu0 %v3984
    %4987 = vmatpush1.bf16.msra.mxu0 %v3983
    %4988 = vmatprep.subr.bf16.mxu0 %v4000
    %4989 = vmatpush1.bf16.msra.mxu0 %v3999
    %4990 = vmatprep.subr.bf16.mxu0 %v4016
    %4991 = vmatpush1.bf16.msra.mxu0 %v4015
    %4992 = vmatprep.subr.bf16.mxu0 %v4032
    %4993 = vmatpush1.bf16.msra.mxu0 %v4031
    %4994 = vmatprep.subr.bf16.mxu0 %v4048
    %4995 = vmatpush1.bf16.msra.mxu0 %v4047
    %4996 = vmatprep.subr.bf16.mxu0 %v4064
    %4997 = vmatpush1.bf16.msra.mxu0 %v4063
    %4998 = vmatprep.subr.bf16.mxu0 %v4080
    %4999 = vmatpush1.bf16.msra.mxu0 %v4079
    %5000 = vmatprep.mubr.bf16.mxu0 %v1436
    %5001 = vmatmul.mubr.bf16.gmra.mrb[0].mxu0 %v1435
    %v5002 = vpop.f32.mrb[0].mxu0
    %v5003 = vadd.f32 %v4962, %v5002
    %v5004 = vpop.f32.mrb[0].mxu0
    %v5005 = vadd.f32 %v4964, %v5004
    %v5006 = vpop.f32.mrb[0].mxu0
    %v5007 = vpop.f32.mrb[0].mxu0
    %5008 = vdwg.mxu0
    %5009 = vmatprep.subr.bf16.mxu0 %v3586
    %5010 = vmatpush1.bf16.msra.mxu0 %v3585
    %5011 = vmatprep.subr.bf16.mxu0 %v3602
    %5012 = vmatpush1.bf16.msra.mxu0 %v3601
    %5013 = vmatprep.subr.bf16.mxu0 %v3618
    %5014 = vmatpush1.bf16.msra.mxu0 %v3617
    %5015 = vmatprep.subr.bf16.mxu0 %v3634
    %5016 = vmatpush1.bf16.msra.mxu0 %v3633
    %5017 = vmatprep.subr.bf16.mxu0 %v3650
    %5018 = vmatpush1.bf16.msra.mxu0 %v3649
    %5019 = vmatprep.subr.bf16.mxu0 %v3666
    %5020 = vmatpush1.bf16.msra.mxu0 %v3665
    %5021 = vmatprep.subr.bf16.mxu0 %v3682
    %5022 = vmatpush1.bf16.msra.mxu0 %v3681
    %5023 = vmatprep.subr.bf16.mxu0 %v3698
    %5024 = vmatpush1.bf16.msra.mxu0 %v3697
    %5025 = vmatprep.subr.bf16.mxu0 %v3714
    %5026 = vmatpush1.bf16.msra.mxu0 %v3713
    %5027 = vmatprep.subr.bf16.mxu0 %v3730
    %5028 = vmatpush1.bf16.msra.mxu0 %v3729
    %5029 = vmatprep.subr.bf16.mxu0 %v3746
    %5030 = vmatpush1.bf16.msra.mxu0 %v3745
    %5031 = vmatprep.subr.bf16.mxu0 %v3762
    %5032 = vmatpush1.bf16.msra.mxu0 %v3761
    %5033 = vmatprep.subr.bf16.mxu0 %v3778
    %5034 = vmatpush1.bf16.msra.mxu0 %v3777
    %5035 = vmatprep.subr.bf16.mxu0 %v3794
    %5036 = vmatpush1.bf16.msra.mxu0 %v3793
    %5037 = vmatprep.subr.bf16.mxu0 %v3810
    %5038 = vmatpush1.bf16.msra.mxu0 %v3809
    %5039 = vmatprep.subr.bf16.mxu0 %v3826
    %5040 = vmatpush1.bf16.msra.mxu0 %v3825
    %5041 = vmatprep.mubr.bf16.mxu0 %v1434
    %5042 = vmatmul.mubr.bf16.gmra.mrb[0].mxu0 %v1433
    %v5043 = vpop.f32.mrb[0].mxu0
    %v5044 = vadd.f32 %v2002, %v5043
    %v5045 = vpop.f32.mrb[0].mxu0
    %v5046 = vadd.f32 %v2006, %v5045
    %v5047 = vpop.f32.mrb[0].mxu0
    %v5048 = vpop.f32.mrb[0].mxu0
    %5049 = vdwg.mxu0
    %5050 = vmatprep.subr.bf16.mxu0 %v3842
    %5051 = vmatpush1.bf16.msra.mxu0 %v3841
    %5052 = vmatprep.subr.bf16.mxu0 %v3858
    %5053 = vmatpush1.bf16.msra.mxu0 %v3857
    %5054 = vmatprep.subr.bf16.mxu0 %v3874
    %5055 = vmatpush1.bf16.msra.mxu0 %v3873
    %5056 = vmatprep.subr.bf16.mxu0 %v3890
    %5057 = vmatpush1.bf16.msra.mxu0 %v3889
    %5058 = vmatprep.subr.bf16.mxu0 %v3906
    %5059 = vmatpush1.bf16.msra.mxu0 %v3905
    %5060 = vmatprep.subr.bf16.mxu0 %v3922
    %5061 = vmatpush1.bf16.msra.mxu0 %v3921
    %5062 = vmatprep.subr.bf16.mxu0 %v3938
    %5063 = vmatpush1.bf16.msra.mxu0 %v3937
    %5064 = vmatprep.subr.bf16.mxu0 %v3954
    %5065 = vmatpush1.bf16.msra.mxu0 %v3953
    %5066 = vmatprep.subr.bf16.mxu0 %v3970
    %5067 = vmatpush1.bf16.msra.mxu0 %v3969
    %5068 = vmatprep.subr.bf16.mxu0 %v3986
    %5069 = vmatpush1.bf16.msra.mxu0 %v3985
    %5070 = vmatprep.subr.bf16.mxu0 %v4002
    %5071 = vmatpush1.bf16.msra.mxu0 %v4001
    %5072 = vmatprep.subr.bf16.mxu0 %v4018
    %5073 = vmatpush1.bf16.msra.mxu0 %v4017
    %5074 = vmatprep.subr.bf16.mxu0 %v4034
    %5075 = vmatpush1.bf16.msra.mxu0 %v4033
    %5076 = vmatprep.subr.bf16.mxu0 %v4050
    %5077 = vmatpush1.bf16.msra.mxu0 %v4049
    %5078 = vmatprep.subr.bf16.mxu0 %v4066
    %5079 = vmatpush1.bf16.msra.mxu0 %v4065
    %5080 = vmatprep.subr.bf16.mxu0 %v4082
    %5081 = vmatpush1.bf16.msra.mxu0 %v4081
    %5082 = vmatprep.mubr.bf16.mxu0 %v1436
    %5083 = vmatmul.mubr.bf16.gmra.mrb[0].mxu0 %v1435
    %v5084 = vpop.f32.mrb[0].mxu0
    %v5085 = vadd.f32 %v5044, %v5084
    %v5086 = vpop.f32.mrb[0].mxu0
    %v5087 = vadd.f32 %v5046, %v5086
    %v5088 = vpop.f32.mrb[0].mxu0
    %v5089 = vpop.f32.mrb[0].mxu0
    %5090 = vdwg.mxu0
    %5091 = vmatprep.subr.bf16.mxu0 %v3588
    %5092 = vmatpush1.bf16.msra.mxu0 %v3587
    %5093 = vmatprep.subr.bf16.mxu0 %v3604
    %5094 = vmatpush1.bf16.msra.mxu0 %v3603
    %5095 = vmatprep.subr.bf16.mxu0 %v3620
    %5096 = vmatpush1.bf16.msra.mxu0 %v3619
    %5097 = vmatprep.subr.bf16.mxu0 %v3636
    %5098 = vmatpush1.bf16.msra.mxu0 %v3635
    %5099 = vmatprep.subr.bf16.mxu0 %v3652
    %5100 = vmatpush1.bf16.msra.mxu0 %v3651
    %5101 = vmatprep.subr.bf16.mxu0 %v3668
    %5102 = vmatpush1.bf16.msra.mxu0 %v3667
    %5103 = vmatprep.subr.bf16.mxu0 %v3684
    %5104 = vmatpush1.bf16.msra.mxu0 %v3683
    %5105 = vmatprep.subr.bf16.mxu0 %v3700
    %5106 = vmatpush1.bf16.msra.mxu0 %v3699
    %5107 = vmatprep.subr.bf16.mxu0 %v3716
    %5108 = vmatpush1.bf16.msra.mxu0 %v3715
    %5109 = vmatprep.subr.bf16.mxu0 %v3732
    %5110 = vmatpush1.bf16.msra.mxu0 %v3731
    %5111 = vmatprep.subr.bf16.mxu0 %v3748
    %5112 = vmatpush1.bf16.msra.mxu0 %v3747
    %5113 = vmatprep.subr.bf16.mxu0 %v3764
    %5114 = vmatpush1.bf16.msra.mxu0 %v3763
    %5115 = vmatprep.subr.bf16.mxu0 %v3780
    %5116 = vmatpush1.bf16.msra.mxu0 %v3779
    %5117 = vmatprep.subr.bf16.mxu0 %v3796
    %5118 = vmatpush1.bf16.msra.mxu0 %v3795
    %5119 = vmatprep.subr.bf16.mxu0 %v3812
    %5120 = vmatpush1.bf16.msra.mxu0 %v3811
    %5121 = vmatprep.subr.bf16.mxu0 %v3828
    %5122 = vmatpush1.bf16.msra.mxu0 %v3827
    %5123 = vmatprep.mubr.bf16.mxu0 %v1434
    %5124 = vmatmul.mubr.bf16.gmra.mrb[0].mxu0 %v1433
    %v5125 = vpop.f32.mrb[0].mxu0
    %v5126 = vadd.f32 %v2010, %v5125
    %v5127 = vpop.f32.mrb[0].mxu0
    %v5128 = vadd.f32 %v2014, %v5127
    %v5129 = vpop.f32.mrb[0].mxu0
    %v5130 = vpop.f32.mrb[0].mxu0
    %5131 = vdwg.mxu0
    %5132 = vmatprep.subr.bf16.mxu0 %v3844
    %5133 = vmatpush1.bf16.msra.mxu0 %v3843
    %5134 = vmatprep.subr.bf16.mxu0 %v3860
    %5135 = vmatpush1.bf16.msra.mxu0 %v3859
    %5136 = vmatprep.subr.bf16.mxu0 %v3876
    %5137 = vmatpush1.bf16.msra.mxu0 %v3875
    %5138 = vmatprep.subr.bf16.mxu0 %v3892
    %5139 = vmatpush1.bf16.msra.mxu0 %v3891
    %5140 = vmatprep.subr.bf16.mxu0 %v3908
    %5141 = vmatpush1.bf16.msra.mxu0 %v3907
    %5142 = vmatprep.subr.bf16.mxu0 %v3924
    %5143 = vmatpush1.bf16.msra.mxu0 %v3923
    %5144 = vmatprep.subr.bf16.mxu0 %v3940
    %5145 = vmatpush1.bf16.msra.mxu0 %v3939
    %5146 = vmatprep.subr.bf16.mxu0 %v3956
    %5147 = vmatpush1.bf16.msra.mxu0 %v3955
    %5148 = vmatprep.subr.bf16.mxu0 %v3972
    %5149 = vmatpush1.bf16.msra.mxu0 %v3971
    %5150 = vmatprep.subr.bf16.mxu0 %v3988
    %5151 = vmatpush1.bf16.msra.mxu0 %v3987
    %5152 = vmatprep.subr.bf16.mxu0 %v4004
    %5153 = vmatpush1.bf16.msra.mxu0 %v4003
    %5154 = vmatprep.subr.bf16.mxu0 %v4020
    %5155 = vmatpush1.bf16.msra.mxu0 %v4019
    %5156 = vmatprep.subr.bf16.mxu0 %v4036
    %5157 = vmatpush1.bf16.msra.mxu0 %v4035
    %5158 = vmatprep.subr.bf16.mxu0 %v4052
    %5159 = vmatpush1.bf16.msra.mxu0 %v4051
    %5160 = vmatprep.subr.bf16.mxu0 %v4068
    %5161 = vmatpush1.bf16.msra.mxu0 %v4067
    %5162 = vmatprep.subr.bf16.mxu0 %v4084
    %5163 = vmatpush1.bf16.msra.mxu0 %v4083
    %5164 = vmatprep.mubr.bf16.mxu0 %v1436
    %5165 = vmatmul.mubr.bf16.gmra.mrb[0].mxu0 %v1435
    %v5166 = vpop.f32.mrb[0].mxu0
    %v5167 = vadd.f32 %v5126, %v5166
    %v5168 = vpop.f32.mrb[0].mxu0
    %v5169 = vadd.f32 %v5128, %v5168
    %v5170 = vpop.f32.mrb[0].mxu0
    %v5171 = vpop.f32.mrb[0].mxu0
    %5172 = vdwg.mxu0
    %5173 = vmatprep.subr.bf16.mxu0 %v3590
    %5174 = vmatpush1.bf16.msra.mxu0 %v3589
    %5175 = vmatprep.subr.bf16.mxu0 %v3606
    %5176 = vmatpush1.bf16.msra.mxu0 %v3605
    %5177 = vmatprep.subr.bf16.mxu0 %v3622
    %5178 = vmatpush1.bf16.msra.mxu0 %v3621
    %5179 = vmatprep.subr.bf16.mxu0 %v3638
    %5180 = vmatpush1.bf16.msra.mxu0 %v3637
    %5181 = vmatprep.subr.bf16.mxu0 %v3654
    %5182 = vmatpush1.bf16.msra.mxu0 %v3653
    %5183 = vmatprep.subr.bf16.mxu0 %v3670
    %5184 = vmatpush1.bf16.msra.mxu0 %v3669
    %5185 = vmatprep.subr.bf16.mxu0 %v3686
    %5186 = vmatpush1.bf16.msra.mxu0 %v3685
    %5187 = vmatprep.subr.bf16.mxu0 %v3702
    %5188 = vmatpush1.bf16.msra.mxu0 %v3701
    %5189 = vmatprep.subr.bf16.mxu0 %v3718
    %5190 = vmatpush1.bf16.msra.mxu0 %v3717
    %5191 = vmatprep.subr.bf16.mxu0 %v3734
    %5192 = vmatpush1.bf16.msra.mxu0 %v3733
    %5193 = vmatprep.subr.bf16.mxu0 %v3750
    %5194 = vmatpush1.bf16.msra.mxu0 %v3749
    %5195 = vmatprep.subr.bf16.mxu0 %v3766
    %5196 = vmatpush1.bf16.msra.mxu0 %v3765
    %5197 = vmatprep.subr.bf16.mxu0 %v3782
    %5198 = vmatpush1.bf16.msra.mxu0 %v3781
    %5199 = vmatprep.subr.bf16.mxu0 %v3798
    %5200 = vmatpush1.bf16.msra.mxu0 %v3797
    %5201 = vmatprep.subr.bf16.mxu0 %v3814
    %5202 = vmatpush1.bf16.msra.mxu0 %v3813
    %5203 = vmatprep.subr.bf16.mxu0 %v3830
    %5204 = vmatpush1.bf16.msra.mxu0 %v3829
    %5205 = vmatprep.mubr.bf16.mxu0 %v1434
    %5206 = vmatmul.mubr.bf16.gmra.mrb[0].mxu0 %v1433
    %v5207 = vpop.f32.mrb[0].mxu0
    %v5208 = vadd.f32 %v2018, %v5207
    %v5209 = vpop.f32.mrb[0].mxu0
    %v5210 = vadd.f32 %v2022, %v5209
    %v5211 = vpop.f32.mrb[0].mxu0
    %v5212 = vpop.f32.mrb[0].mxu0
    %5213 = vdwg.mxu0
    %5214 = vmatprep.subr.bf16.mxu0 %v3846
    %5215 = vmatpush1.bf16.msra.mxu0 %v3845
    %5216 = vmatprep.subr.bf16.mxu0 %v3862
    %5217 = vmatpush1.bf16.msra.mxu0 %v3861
    %5218 = vmatprep.subr.bf16.mxu0 %v3878
    %5219 = vmatpush1.bf16.msra.mxu0 %v3877
    %5220 = vmatprep.subr.bf16.mxu0 %v3894
    %5221 = vmatpush1.bf16.msra.mxu0 %v3893
    %5222 = vmatprep.subr.bf16.mxu0 %v3910
    %5223 = vmatpush1.bf16.msra.mxu0 %v3909
    %5224 = vmatprep.subr.bf16.mxu0 %v3926
    %5225 = vmatpush1.bf16.msra.mxu0 %v3925
    %5226 = vmatprep.subr.bf16.mxu0 %v3942
    %5227 = vmatpush1.bf16.msra.mxu0 %v3941
    %5228 = vmatprep.subr.bf16.mxu0 %v3958
    %5229 = vmatpush1.bf16.msra.mxu0 %v3957
    %5230 = vmatprep.subr.bf16.mxu0 %v3974
    %5231 = vmatpush1.bf16.msra.mxu0 %v3973
    %5232 = vmatprep.subr.bf16.mxu0 %v3990
    %5233 = vmatpush1.bf16.msra.mxu0 %v3989
    %5234 = vmatprep.subr.bf16.mxu0 %v4006
    %5235 = vmatpush1.bf16.msra.mxu0 %v4005
    %5236 = vmatprep.subr.bf16.mxu0 %v4022
    %5237 = vmatpush1.bf16.msra.mxu0 %v4021
    %5238 = vmatprep.subr.bf16.mxu0 %v4038
    %5239 = vmatpush1.bf16.msra.mxu0 %v4037
    %5240 = vmatprep.subr.bf16.mxu0 %v4054
    %5241 = vmatpush1.bf16.msra.mxu0 %v4053
    %5242 = vmatprep.subr.bf16.mxu0 %v4070
    %5243 = vmatpush1.bf16.msra.mxu0 %v4069
    %5244 = vmatprep.subr.bf16.mxu0 %v4086
    %5245 = vmatpush1.bf16.msra.mxu0 %v4085
    %5246 = vmatprep.mubr.bf16.mxu0 %v1436
    %5247 = vmatmul.mubr.bf16.gmra.mrb[0].mxu0 %v1435
    %v5248 = vpop.f32.mrb[0].mxu0
    %v5249 = vadd.f32 %v5208, %v5248
    %v5250 = vpop.f32.mrb[0].mxu0
    %v5251 = vadd.f32 %v5210, %v5250
    %v5252 = vpop.f32.mrb[0].mxu0
    %v5253 = vpop.f32.mrb[0].mxu0
    %5254 = vdwg.mxu0
    %v5255 = vmax.f32 %v4675, 0.0
    %v5256 = vmax.f32 %v4677, 0.0
    %v5257 = vmax.f32 %v4757, 0.0
    %v5258 = vmax.f32 %v4759, 0.0
    %v5259 = vmax.f32 %v4839, 0.0
    %v5260 = vmax.f32 %v4841, 0.0
    %v5261 = vmax.f32 %v4921, 0.0
    %v5262 = vmax.f32 %v4923, 0.0
    %v5263 = vmax.f32 %v5003, 0.0
    %v5264 = vmax.f32 %v5005, 0.0
    %v5265 = vmax.f32 %v5085, 0.0
    %v5266 = vmax.f32 %v5087, 0.0
    %v5267 = vmax.f32 %v5167, 0.0
    %v5268 = vmax.f32 %v5169, 0.0
    %v5269 = vmax.f32 %v5249, 0.0
    %v5270 = vmax.f32 %v5251, 0.0
    %v5271 = vpack.c.bf16 %v5255, %v5255
    %v5272 = vpack.c.bf16 %v5256, %v5256
    %v5273 = vpack.c.bf16 %v5257, %v5257
    %v5274 = vpack.c.bf16 %v5258, %v5258
    %v5275 = vpack.c.bf16 %v5259, %v5259
    %v5276 = vpack.c.bf16 %v5260, %v5260
    %v5277 = vpack.c.bf16 %v5261, %v5261
    %v5278 = vpack.c.bf16 %v5262, %v5262
    %v5279 = vpack.c.bf16 %v5263, %v5263
    %v5280 = vpack.c.bf16 %v5264, %v5264
    %v5281 = vpack.c.bf16 %v5265, %v5265
    %v5282 = vpack.c.bf16 %v5266, %v5266
    %v5283 = vpack.c.bf16 %v5267, %v5267
    %v5284 = vpack.c.bf16 %v5268, %v5268
    %v5285 = vpack.c.bf16 %v5269, %v5269
    %v5286 = vpack.c.bf16 %v5270, %v5270
    %v5287 = vld [vmem:[#allocation10] sm:$0xf]
    %v5288 = vld [vmem:[#allocation10 + $0x4] sm:$0xf]
    %v5289 = vld [vmem:[#allocation10 + $0x8] sm:$0xf]
    %v5290 = vld [vmem:[#allocation10 + $0xc] sm:$0xf]
    %v5291 = vld [vmem:[#allocation10 + $0x10] sm:$0xf]
    %v5292 = vld [vmem:[#allocation10 + $0x14] sm:$0xf]
    %v5293 = vld [vmem:[#allocation10 + $0x18] sm:$0xf]
    %v5294 = vld [vmem:[#allocation10 + $0x1c] sm:$0xf]
    %v5295 = vld [vmem:[#allocation10 + $0x20] sm:$0xf]
    %v5296 = vld [vmem:[#allocation10 + $0x24] sm:$0xf]
    %v5297 = vld [vmem:[#allocation10 + $0x28] sm:$0xf]
    %v5298 = vld [vmem:[#allocation10 + $0x2c] sm:$0xf]
    %v5299 = vld [vmem:[#allocation10 + $0x30] sm:$0xf]
    %v5300 = vld [vmem:[#allocation10 + $0x34] sm:$0xf]
    %v5301 = vld [vmem:[#allocation10 + $0x38] sm:$0xf]
    %v5302 = vld [vmem:[#allocation10 + $0x3c] sm:$0xf]
    %v5303 = vld [vmem:[#allocation10 + $0x40] sm:$0xf]
    %v5304 = vld [vmem:[#allocation10 + $0x44] sm:$0xf]
    %v5305 = vld [vmem:[#allocation10 + $0x48] sm:$0xf]
    %v5306 = vld [vmem:[#allocation10 + $0x4c] sm:$0xf]
    %v5307 = vld [vmem:[#allocation10 + $0x50] sm:$0xf]
    %v5308 = vld [vmem:[#allocation10 + $0x54] sm:$0xf]
    %v5309 = vld [vmem:[#allocation10 + $0x58] sm:$0xf]
    %v5310 = vld [vmem:[#allocation10 + $0x5c] sm:$0xf]
    %v5311 = vld [vmem:[#allocation10 + $0x60] sm:$0xf]
    %v5312 = vld [vmem:[#allocation10 + $0x64] sm:$0xf]
    %v5313 = vld [vmem:[#allocation10 + $0x68] sm:$0xf]
    %v5314 = vld [vmem:[#allocation10 + $0x6c] sm:$0xf]
    %v5315 = vld [vmem:[#allocation10 + $0x70] sm:$0xf]
    %v5316 = vld [vmem:[#allocation10 + $0x74] sm:$0xf]
    %v5317 = vld [vmem:[#allocation10 + $0x78] sm:$0xf]
    %v5318 = vld [vmem:[#allocation10 + $0x7c] sm:$0xf]
    %v5319 = vld [vmem:[#allocation10 + $0x80] sm:$0xf]
    %v5320 = vld [vmem:[#allocation10 + $0x84] sm:$0xf]
    %v5321 = vld [vmem:[#allocation10 + $0x88] sm:$0xf]
    %v5322 = vld [vmem:[#allocation10 + $0x8c] sm:$0xf]
    %v5323 = vld [vmem:[#allocation10 + $0x90] sm:$0xf]
    %v5324 = vld [vmem:[#allocation10 + $0x94] sm:$0xf]
    %v5325 = vld [vmem:[#allocation10 + $0x98] sm:$0xf]
    %v5326 = vld [vmem:[#allocation10 + $0x9c] sm:$0xf]
    %v5327 = vld [vmem:[#allocation10 + $0xa0] sm:$0xf]
    %v5328 = vld [vmem:[#allocation10 + $0xa4] sm:$0xf]
    %v5329 = vld [vmem:[#allocation10 + $0xa8] sm:$0xf]
    %v5330 = vld [vmem:[#allocation10 + $0xac] sm:$0xf]
    %v5331 = vld [vmem:[#allocation10 + $0xb0] sm:$0xf]
    %v5332 = vld [vmem:[#allocation10 + $0xb4] sm:$0xf]
    %v5333 = vld [vmem:[#allocation10 + $0xb8] sm:$0xf]
    %v5334 = vld [vmem:[#allocation10 + $0xbc] sm:$0xf]
    %v5335 = vld [vmem:[#allocation10 + $0xc0] sm:$0xf]
    %v5336 = vld [vmem:[#allocation10 + $0xc4] sm:$0xf]
    %v5337 = vld [vmem:[#allocation10 + $0xc8] sm:$0xf]
    %v5338 = vld [vmem:[#allocation10 + $0xcc] sm:$0xf]
    %v5339 = vld [vmem:[#allocation10 + $0xd0] sm:$0xf]
    %v5340 = vld [vmem:[#allocation10 + $0xd4] sm:$0xf]
    %v5341 = vld [vmem:[#allocation10 + $0xd8] sm:$0xf]
    %v5342 = vld [vmem:[#allocation10 + $0xdc] sm:$0xf]
    %v5343 = vld [vmem:[#allocation10 + $0xe0] sm:$0xf]
    %v5344 = vld [vmem:[#allocation10 + $0xe4] sm:$0xf]
    %v5345 = vld [vmem:[#allocation10 + $0xe8] sm:$0xf]
    %v5346 = vld [vmem:[#allocation10 + $0xec] sm:$0xf]
    %v5347 = vld [vmem:[#allocation10 + $0xf0] sm:$0xf]
    %v5348 = vld [vmem:[#allocation10 + $0xf4] sm:$0xf]
    %v5349 = vld [vmem:[#allocation10 + $0xf8] sm:$0xf]
    %v5350 = vld [vmem:[#allocation10 + $0xfc] sm:$0xf]
    %v5351 = vld [vmem:[#allocation10 + $0x100] sm:$0xf]
    %v5352 = vld [vmem:[#allocation10 + $0x104] sm:$0xf]
    %v5353 = vld [vmem:[#allocation10 + $0x108] sm:$0xf]
    %v5354 = vld [vmem:[#allocation10 + $0x10c] sm:$0xf]
    %v5355 = vld [vmem:[#allocation10 + $0x110] sm:$0xf]
    %v5356 = vld [vmem:[#allocation10 + $0x114] sm:$0xf]
    %v5357 = vld [vmem:[#allocation10 + $0x118] sm:$0xf]
    %v5358 = vld [vmem:[#allocation10 + $0x11c] sm:$0xf]
    %v5359 = vld [vmem:[#allocation10 + $0x120] sm:$0xf]
    %v5360 = vld [vmem:[#allocation10 + $0x124] sm:$0xf]
    %v5361 = vld [vmem:[#allocation10 + $0x128] sm:$0xf]
    %v5362 = vld [vmem:[#allocation10 + $0x12c] sm:$0xf]
    %v5363 = vld [vmem:[#allocation10 + $0x130] sm:$0xf]
    %v5364 = vld [vmem:[#allocation10 + $0x134] sm:$0xf]
    %v5365 = vld [vmem:[#allocation10 + $0x138] sm:$0xf]
    %v5366 = vld [vmem:[#allocation10 + $0x13c] sm:$0xf]
    %v5367 = vld [vmem:[#allocation10 + $0x140] sm:$0xf]
    %v5368 = vld [vmem:[#allocation10 + $0x144] sm:$0xf]
    %v5369 = vld [vmem:[#allocation10 + $0x148] sm:$0xf]
    %v5370 = vld [vmem:[#allocation10 + $0x14c] sm:$0xf]
    %v5371 = vld [vmem:[#allocation10 + $0x150] sm:$0xf]
    %v5372 = vld [vmem:[#allocation10 + $0x154] sm:$0xf]
    %v5373 = vld [vmem:[#allocation10 + $0x158] sm:$0xf]
    %v5374 = vld [vmem:[#allocation10 + $0x15c] sm:$0xf]
    %v5375 = vld [vmem:[#allocation10 + $0x160] sm:$0xf]
    %v5376 = vld [vmem:[#allocation10 + $0x164] sm:$0xf]
    %v5377 = vld [vmem:[#allocation10 + $0x168] sm:$0xf]
    %v5378 = vld [vmem:[#allocation10 + $0x16c] sm:$0xf]
    %v5379 = vld [vmem:[#allocation10 + $0x170] sm:$0xf]
    %v5380 = vld [vmem:[#allocation10 + $0x174] sm:$0xf]
    %v5381 = vld [vmem:[#allocation10 + $0x178] sm:$0xf]
    %v5382 = vld [vmem:[#allocation10 + $0x17c] sm:$0xf]
    %v5383 = vld [vmem:[#allocation10 + $0x180] sm:$0xf]
    %v5384 = vld [vmem:[#allocation10 + $0x184] sm:$0xf]
    %v5385 = vld [vmem:[#allocation10 + $0x188] sm:$0xf]
    %v5386 = vld [vmem:[#allocation10 + $0x18c] sm:$0xf]
    %v5387 = vld [vmem:[#allocation10 + $0x190] sm:$0xf]
    %v5388 = vld [vmem:[#allocation10 + $0x194] sm:$0xf]
    %v5389 = vld [vmem:[#allocation10 + $0x198] sm:$0xf]
    %v5390 = vld [vmem:[#allocation10 + $0x19c] sm:$0xf]
    %v5391 = vld [vmem:[#allocation10 + $0x1a0] sm:$0xf]
    %v5392 = vld [vmem:[#allocation10 + $0x1a4] sm:$0xf]
    %v5393 = vld [vmem:[#allocation10 + $0x1a8] sm:$0xf]
    %v5394 = vld [vmem:[#allocation10 + $0x1ac] sm:$0xf]
    %v5395 = vld [vmem:[#allocation10 + $0x1b0] sm:$0xf]
    %v5396 = vld [vmem:[#allocation10 + $0x1b4] sm:$0xf]
    %v5397 = vld [vmem:[#allocation10 + $0x1b8] sm:$0xf]
    %v5398 = vld [vmem:[#allocation10 + $0x1bc] sm:$0xf]
    %v5399 = vld [vmem:[#allocation10 + $0x1c0] sm:$0xf]
    %v5400 = vld [vmem:[#allocation10 + $0x1c4] sm:$0xf]
    %v5401 = vld [vmem:[#allocation10 + $0x1c8] sm:$0xf]
    %v5402 = vld [vmem:[#allocation10 + $0x1cc] sm:$0xf]
    %v5403 = vld [vmem:[#allocation10 + $0x1d0] sm:$0xf]
    %v5404 = vld [vmem:[#allocation10 + $0x1d4] sm:$0xf]
    %v5405 = vld [vmem:[#allocation10 + $0x1d8] sm:$0xf]
    %v5406 = vld [vmem:[#allocation10 + $0x1dc] sm:$0xf]
    %v5407 = vld [vmem:[#allocation10 + $0x1e0] sm:$0xf]
    %v5408 = vld [vmem:[#allocation10 + $0x1e4] sm:$0xf]
    %v5409 = vld [vmem:[#allocation10 + $0x1e8] sm:$0xf]
    %v5410 = vld [vmem:[#allocation10 + $0x1ec] sm:$0xf]
    %v5411 = vld [vmem:[#allocation10 + $0x1f0] sm:$0xf]
    %v5412 = vld [vmem:[#allocation10 + $0x1f4] sm:$0xf]
    %v5413 = vld [vmem:[#allocation10 + $0x1f8] sm:$0xf]
    %v5414 = vld [vmem:[#allocation10 + $0x1fc] sm:$0xf]
    %v5415 = vld [vmem:[#allocation10 + $0x200] sm:$0xf]
    %v5416 = vld [vmem:[#allocation10 + $0x204] sm:$0xf]
    %v5417 = vld [vmem:[#allocation10 + $0x208] sm:$0xf]
    %v5418 = vld [vmem:[#allocation10 + $0x20c] sm:$0xf]
    %v5419 = vld [vmem:[#allocation10 + $0x210] sm:$0xf]
    %v5420 = vld [vmem:[#allocation10 + $0x214] sm:$0xf]
    %v5421 = vld [vmem:[#allocation10 + $0x218] sm:$0xf]
    %v5422 = vld [vmem:[#allocation10 + $0x21c] sm:$0xf]
    %v5423 = vld [vmem:[#allocation10 + $0x220] sm:$0xf]
    %v5424 = vld [vmem:[#allocation10 + $0x224] sm:$0xf]
    %v5425 = vld [vmem:[#allocation10 + $0x228] sm:$0xf]
    %v5426 = vld [vmem:[#allocation10 + $0x22c] sm:$0xf]
    %v5427 = vld [vmem:[#allocation10 + $0x230] sm:$0xf]
    %v5428 = vld [vmem:[#allocation10 + $0x234] sm:$0xf]
    %v5429 = vld [vmem:[#allocation10 + $0x238] sm:$0xf]
    %v5430 = vld [vmem:[#allocation10 + $0x23c] sm:$0xf]
    %v5431 = vld [vmem:[#allocation10 + $0x240] sm:$0xf]
    %v5432 = vld [vmem:[#allocation10 + $0x244] sm:$0xf]
    %v5433 = vld [vmem:[#allocation10 + $0x248] sm:$0xf]
    %v5434 = vld [vmem:[#allocation10 + $0x24c] sm:$0xf]
    %v5435 = vld [vmem:[#allocation10 + $0x250] sm:$0xf]
    %v5436 = vld [vmem:[#allocation10 + $0x254] sm:$0xf]
    %v5437 = vld [vmem:[#allocation10 + $0x258] sm:$0xf]
    %v5438 = vld [vmem:[#allocation10 + $0x25c] sm:$0xf]
    %v5439 = vld [vmem:[#allocation10 + $0x260] sm:$0xf]
    %v5440 = vld [vmem:[#allocation10 + $0x264] sm:$0xf]
    %v5441 = vld [vmem:[#allocation10 + $0x268] sm:$0xf]
    %v5442 = vld [vmem:[#allocation10 + $0x26c] sm:$0xf]
    %v5443 = vld [vmem:[#allocation10 + $0x270] sm:$0xf]
    %v5444 = vld [vmem:[#allocation10 + $0x274] sm:$0xf]
    %v5445 = vld [vmem:[#allocation10 + $0x278] sm:$0xf]
    %v5446 = vld [vmem:[#allocation10 + $0x27c] sm:$0xf]
    %v5447 = vld [vmem:[#allocation10 + $0x280] sm:$0xf]
    %v5448 = vld [vmem:[#allocation10 + $0x284] sm:$0xf]
    %v5449 = vld [vmem:[#allocation10 + $0x288] sm:$0xf]
    %v5450 = vld [vmem:[#allocation10 + $0x28c] sm:$0xf]
    %v5451 = vld [vmem:[#allocation10 + $0x290] sm:$0xf]
    %v5452 = vld [vmem:[#allocation10 + $0x294] sm:$0xf]
    %v5453 = vld [vmem:[#allocation10 + $0x298] sm:$0xf]
    %v5454 = vld [vmem:[#allocation10 + $0x29c] sm:$0xf]
    %v5455 = vld [vmem:[#allocation10 + $0x2a0] sm:$0xf]
    %v5456 = vld [vmem:[#allocation10 + $0x2a4] sm:$0xf]
    %v5457 = vld [vmem:[#allocation10 + $0x2a8] sm:$0xf]
    %v5458 = vld [vmem:[#allocation10 + $0x2ac] sm:$0xf]
    %v5459 = vld [vmem:[#allocation10 + $0x2b0] sm:$0xf]
    %v5460 = vld [vmem:[#allocation10 + $0x2b4] sm:$0xf]
    %v5461 = vld [vmem:[#allocation10 + $0x2b8] sm:$0xf]
    %v5462 = vld [vmem:[#allocation10 + $0x2bc] sm:$0xf]
    %v5463 = vld [vmem:[#allocation10 + $0x2c0] sm:$0xf]
    %v5464 = vld [vmem:[#allocation10 + $0x2c4] sm:$0xf]
    %v5465 = vld [vmem:[#allocation10 + $0x2c8] sm:$0xf]
    %v5466 = vld [vmem:[#allocation10 + $0x2cc] sm:$0xf]
    %v5467 = vld [vmem:[#allocation10 + $0x2d0] sm:$0xf]
    %v5468 = vld [vmem:[#allocation10 + $0x2d4] sm:$0xf]
    %v5469 = vld [vmem:[#allocation10 + $0x2d8] sm:$0xf]
    %v5470 = vld [vmem:[#allocation10 + $0x2dc] sm:$0xf]
    %v5471 = vld [vmem:[#allocation10 + $0x2e0] sm:$0xf]
    %v5472 = vld [vmem:[#allocation10 + $0x2e4] sm:$0xf]
    %v5473 = vld [vmem:[#allocation10 + $0x2e8] sm:$0xf]
    %v5474 = vld [vmem:[#allocation10 + $0x2ec] sm:$0xf]
    %v5475 = vld [vmem:[#allocation10 + $0x2f0] sm:$0xf]
    %v5476 = vld [vmem:[#allocation10 + $0x2f4] sm:$0xf]
    %v5477 = vld [vmem:[#allocation10 + $0x2f8] sm:$0xf]
    %v5478 = vld [vmem:[#allocation10 + $0x2fc] sm:$0xf]
    %v5479 = vld [vmem:[#allocation10 + $0x300] sm:$0xf]
    %v5480 = vld [vmem:[#allocation10 + $0x304] sm:$0xf]
    %v5481 = vld [vmem:[#allocation10 + $0x308] sm:$0xf]
    %v5482 = vld [vmem:[#allocation10 + $0x30c] sm:$0xf]
    %v5483 = vld [vmem:[#allocation10 + $0x310] sm:$0xf]
    %v5484 = vld [vmem:[#allocation10 + $0x314] sm:$0xf]
    %v5485 = vld [vmem:[#allocation10 + $0x318] sm:$0xf]
    %v5486 = vld [vmem:[#allocation10 + $0x31c] sm:$0xf]
    %v5487 = vld [vmem:[#allocation10 + $0x320] sm:$0xf]
    %v5488 = vld [vmem:[#allocation10 + $0x324] sm:$0xf]
    %v5489 = vld [vmem:[#allocation10 + $0x328] sm:$0xf]
    %v5490 = vld [vmem:[#allocation10 + $0x32c] sm:$0xf]
    %v5491 = vld [vmem:[#allocation10 + $0x330] sm:$0xf]
    %v5492 = vld [vmem:[#allocation10 + $0x334] sm:$0xf]
    %v5493 = vld [vmem:[#allocation10 + $0x338] sm:$0xf]
    %v5494 = vld [vmem:[#allocation10 + $0x33c] sm:$0xf]
    %v5495 = vld [vmem:[#allocation10 + $0x340] sm:$0xf]
    %v5496 = vld [vmem:[#allocation10 + $0x344] sm:$0xf]
    %v5497 = vld [vmem:[#allocation10 + $0x348] sm:$0xf]
    %v5498 = vld [vmem:[#allocation10 + $0x34c] sm:$0xf]
    %v5499 = vld [vmem:[#allocation10 + $0x350] sm:$0xf]
    %v5500 = vld [vmem:[#allocation10 + $0x354] sm:$0xf]
    %v5501 = vld [vmem:[#allocation10 + $0x358] sm:$0xf]
    %v5502 = vld [vmem:[#allocation10 + $0x35c] sm:$0xf]
    %v5503 = vld [vmem:[#allocation10 + $0x360] sm:$0xf]
    %v5504 = vld [vmem:[#allocation10 + $0x364] sm:$0xf]
    %v5505 = vld [vmem:[#allocation10 + $0x368] sm:$0xf]
    %v5506 = vld [vmem:[#allocation10 + $0x36c] sm:$0xf]
    %v5507 = vld [vmem:[#allocation10 + $0x370] sm:$0xf]
    %v5508 = vld [vmem:[#allocation10 + $0x374] sm:$0xf]
    %v5509 = vld [vmem:[#allocation10 + $0x378] sm:$0xf]
    %v5510 = vld [vmem:[#allocation10 + $0x37c] sm:$0xf]
    %v5511 = vld [vmem:[#allocation10 + $0x380] sm:$0xf]
    %v5512 = vld [vmem:[#allocation10 + $0x384] sm:$0xf]
    %v5513 = vld [vmem:[#allocation10 + $0x388] sm:$0xf]
    %v5514 = vld [vmem:[#allocation10 + $0x38c] sm:$0xf]
    %v5515 = vld [vmem:[#allocation10 + $0x390] sm:$0xf]
    %v5516 = vld [vmem:[#allocation10 + $0x394] sm:$0xf]
    %v5517 = vld [vmem:[#allocation10 + $0x398] sm:$0xf]
    %v5518 = vld [vmem:[#allocation10 + $0x39c] sm:$0xf]
    %v5519 = vld [vmem:[#allocation10 + $0x3a0] sm:$0xf]
    %v5520 = vld [vmem:[#allocation10 + $0x3a4] sm:$0xf]
    %v5521 = vld [vmem:[#allocation10 + $0x3a8] sm:$0xf]
    %v5522 = vld [vmem:[#allocation10 + $0x3ac] sm:$0xf]
    %v5523 = vld [vmem:[#allocation10 + $0x3b0] sm:$0xf]
    %v5524 = vld [vmem:[#allocation10 + $0x3b4] sm:$0xf]
    %v5525 = vld [vmem:[#allocation10 + $0x3b8] sm:$0xf]
    %v5526 = vld [vmem:[#allocation10 + $0x3bc] sm:$0xf]
    %v5527 = vld [vmem:[#allocation10 + $0x3c0] sm:$0xf]
    %v5528 = vld [vmem:[#allocation10 + $0x3c4] sm:$0xf]
    %v5529 = vld [vmem:[#allocation10 + $0x3c8] sm:$0xf]
    %v5530 = vld [vmem:[#allocation10 + $0x3cc] sm:$0xf]
    %v5531 = vld [vmem:[#allocation10 + $0x3d0] sm:$0xf]
    %v5532 = vld [vmem:[#allocation10 + $0x3d4] sm:$0xf]
    %v5533 = vld [vmem:[#allocation10 + $0x3d8] sm:$0xf]
    %v5534 = vld [vmem:[#allocation10 + $0x3dc] sm:$0xf]
    %v5535 = vld [vmem:[#allocation10 + $0x3e0] sm:$0xf]
    %v5536 = vld [vmem:[#allocation10 + $0x3e4] sm:$0xf]
    %v5537 = vld [vmem:[#allocation10 + $0x3e8] sm:$0xf]
    %v5538 = vld [vmem:[#allocation10 + $0x3ec] sm:$0xf]
    %v5539 = vld [vmem:[#allocation10 + $0x3f0] sm:$0xf]
    %v5540 = vld [vmem:[#allocation10 + $0x3f4] sm:$0xf]
    %v5541 = vld [vmem:[#allocation10 + $0x3f8] sm:$0xf]
    %v5542 = vld [vmem:[#allocation10 + $0x3fc] sm:$0xf]
    %v5543 = vld [vmem:[#allocation17 + $0x3] ss:$0 sm:$0xff]
    %v5800 = vunpack.c.l.b16 %v5287
    %v5801 = vunpack.c.l.b16 %v5288
    %v5802 = vunpack.c.l.b16 %v5289
    %v5803 = vunpack.c.l.b16 %v5290
    %v5804 = vunpack.c.l.b16 %v5291
    %v5805 = vunpack.c.l.b16 %v5292
    %v5806 = vunpack.c.l.b16 %v5293
    %v5807 = vunpack.c.l.b16 %v5294
    %v5808 = vunpack.c.l.b16 %v5295
    %v5809 = vunpack.c.l.b16 %v5296
    %v5810 = vunpack.c.l.b16 %v5297
    %v5811 = vunpack.c.l.b16 %v5298
    %v5812 = vunpack.c.l.b16 %v5299
    %v5813 = vunpack.c.l.b16 %v5300
    %v5814 = vunpack.c.l.b16 %v5301
    %v5815 = vunpack.c.l.b16 %v5302
    %v5816 = vunpack.c.l.b16 %v5303
    %v5817 = vunpack.c.l.b16 %v5304
    %v5818 = vunpack.c.l.b16 %v5305
    %v5819 = vunpack.c.l.b16 %v5306
    %v5820 = vunpack.c.l.b16 %v5307
    %v5821 = vunpack.c.l.b16 %v5308
    %v5822 = vunpack.c.l.b16 %v5309
    %v5823 = vunpack.c.l.b16 %v5310
    %v5824 = vunpack.c.l.b16 %v5311
    %v5825 = vunpack.c.l.b16 %v5312
    %v5826 = vunpack.c.l.b16 %v5313
    %v5827 = vunpack.c.l.b16 %v5314
    %v5828 = vunpack.c.l.b16 %v5315
    %v5829 = vunpack.c.l.b16 %v5316
    %v5830 = vunpack.c.l.b16 %v5317
    %v5831 = vunpack.c.l.b16 %v5318
    %v5832 = vunpack.c.l.b16 %v5319
    %v5833 = vunpack.c.l.b16 %v5320
    %v5834 = vunpack.c.l.b16 %v5321
    %v5835 = vunpack.c.l.b16 %v5322
    %v5836 = vunpack.c.l.b16 %v5323
    %v5837 = vunpack.c.l.b16 %v5324
    %v5838 = vunpack.c.l.b16 %v5325
    %v5839 = vunpack.c.l.b16 %v5326
    %v5840 = vunpack.c.l.b16 %v5327
    %v5841 = vunpack.c.l.b16 %v5328
    %v5842 = vunpack.c.l.b16 %v5329
    %v5843 = vunpack.c.l.b16 %v5330
    %v5844 = vunpack.c.l.b16 %v5331
    %v5845 = vunpack.c.l.b16 %v5332
    %v5846 = vunpack.c.l.b16 %v5333
    %v5847 = vunpack.c.l.b16 %v5334
    %v5848 = vunpack.c.l.b16 %v5335
    %v5849 = vunpack.c.l.b16 %v5336
    %v5850 = vunpack.c.l.b16 %v5337
    %v5851 = vunpack.c.l.b16 %v5338
    %v5852 = vunpack.c.l.b16 %v5339
    %v5853 = vunpack.c.l.b16 %v5340
    %v5854 = vunpack.c.l.b16 %v5341
    %v5855 = vunpack.c.l.b16 %v5342
    %v5856 = vunpack.c.l.b16 %v5343
    %v5857 = vunpack.c.l.b16 %v5344
    %v5858 = vunpack.c.l.b16 %v5345
    %v5859 = vunpack.c.l.b16 %v5346
    %v5860 = vunpack.c.l.b16 %v5347
    %v5861 = vunpack.c.l.b16 %v5348
    %v5862 = vunpack.c.l.b16 %v5349
    %v5863 = vunpack.c.l.b16 %v5350
    %v5864 = vunpack.c.l.b16 %v5351
    %v5865 = vunpack.c.l.b16 %v5352
    %v5866 = vunpack.c.l.b16 %v5353
    %v5867 = vunpack.c.l.b16 %v5354
    %v5868 = vunpack.c.l.b16 %v5355
    %v5869 = vunpack.c.l.b16 %v5356
    %v5870 = vunpack.c.l.b16 %v5357
    %v5871 = vunpack.c.l.b16 %v5358
    %v5872 = vunpack.c.l.b16 %v5359
    %v5873 = vunpack.c.l.b16 %v5360
    %v5874 = vunpack.c.l.b16 %v5361
    %v5875 = vunpack.c.l.b16 %v5362
    %v5876 = vunpack.c.l.b16 %v5363
    %v5877 = vunpack.c.l.b16 %v5364
    %v5878 = vunpack.c.l.b16 %v5365
    %v5879 = vunpack.c.l.b16 %v5366
    %v5880 = vunpack.c.l.b16 %v5367
    %v5881 = vunpack.c.l.b16 %v5368
    %v5882 = vunpack.c.l.b16 %v5369
    %v5883 = vunpack.c.l.b16 %v5370
    %v5884 = vunpack.c.l.b16 %v5371
    %v5885 = vunpack.c.l.b16 %v5372
    %v5886 = vunpack.c.l.b16 %v5373
    %v5887 = vunpack.c.l.b16 %v5374
    %v5888 = vunpack.c.l.b16 %v5375
    %v5889 = vunpack.c.l.b16 %v5376
    %v5890 = vunpack.c.l.b16 %v5377
    %v5891 = vunpack.c.l.b16 %v5378
    %v5892 = vunpack.c.l.b16 %v5379
    %v5893 = vunpack.c.l.b16 %v5380
    %v5894 = vunpack.c.l.b16 %v5381
    %v5895 = vunpack.c.l.b16 %v5382
    %v5896 = vunpack.c.l.b16 %v5383
    %v5897 = vunpack.c.l.b16 %v5384
    %v5898 = vunpack.c.l.b16 %v5385
    %v5899 = vunpack.c.l.b16 %v5386
    %v5900 = vunpack.c.l.b16 %v5387
    %v5901 = vunpack.c.l.b16 %v5388
    %v5902 = vunpack.c.l.b16 %v5389
    %v5903 = vunpack.c.l.b16 %v5390
    %v5904 = vunpack.c.l.b16 %v5391
    %v5905 = vunpack.c.l.b16 %v5392
    %v5906 = vunpack.c.l.b16 %v5393
    %v5907 = vunpack.c.l.b16 %v5394
    %v5908 = vunpack.c.l.b16 %v5395
    %v5909 = vunpack.c.l.b16 %v5396
    %v5910 = vunpack.c.l.b16 %v5397
    %v5911 = vunpack.c.l.b16 %v5398
    %v5912 = vunpack.c.l.b16 %v5399
    %v5913 = vunpack.c.l.b16 %v5400
    %v5914 = vunpack.c.l.b16 %v5401
    %v5915 = vunpack.c.l.b16 %v5402
    %v5916 = vunpack.c.l.b16 %v5403
    %v5917 = vunpack.c.l.b16 %v5404
    %v5918 = vunpack.c.l.b16 %v5405
    %v5919 = vunpack.c.l.b16 %v5406
    %v5920 = vunpack.c.l.b16 %v5407
    %v5921 = vunpack.c.l.b16 %v5408
    %v5922 = vunpack.c.l.b16 %v5409
    %v5923 = vunpack.c.l.b16 %v5410
    %v5924 = vunpack.c.l.b16 %v5411
    %v5925 = vunpack.c.l.b16 %v5412
    %v5926 = vunpack.c.l.b16 %v5413
    %v5927 = vunpack.c.l.b16 %v5414
    %v5928 = vunpack.c.l.b16 %v5415
    %v5929 = vunpack.c.l.b16 %v5416
    %v5930 = vunpack.c.l.b16 %v5417
    %v5931 = vunpack.c.l.b16 %v5418
    %v5932 = vunpack.c.l.b16 %v5419
    %v5933 = vunpack.c.l.b16 %v5420
    %v5934 = vunpack.c.l.b16 %v5421
    %v5935 = vunpack.c.l.b16 %v5422
    %v5936 = vunpack.c.l.b16 %v5423
    %v5937 = vunpack.c.l.b16 %v5424
    %v5938 = vunpack.c.l.b16 %v5425
    %v5939 = vunpack.c.l.b16 %v5426
    %v5940 = vunpack.c.l.b16 %v5427
    %v5941 = vunpack.c.l.b16 %v5428
    %v5942 = vunpack.c.l.b16 %v5429
    %v5943 = vunpack.c.l.b16 %v5430
    %v5944 = vunpack.c.l.b16 %v5431
    %v5945 = vunpack.c.l.b16 %v5432
    %v5946 = vunpack.c.l.b16 %v5433
    %v5947 = vunpack.c.l.b16 %v5434
    %v5948 = vunpack.c.l.b16 %v5435
    %v5949 = vunpack.c.l.b16 %v5436
    %v5950 = vunpack.c.l.b16 %v5437
    %v5951 = vunpack.c.l.b16 %v5438
    %v5952 = vunpack.c.l.b16 %v5439
    %v5953 = vunpack.c.l.b16 %v5440
    %v5954 = vunpack.c.l.b16 %v5441
    %v5955 = vunpack.c.l.b16 %v5442
    %v5956 = vunpack.c.l.b16 %v5443
    %v5957 = vunpack.c.l.b16 %v5444
    %v5958 = vunpack.c.l.b16 %v5445
    %v5959 = vunpack.c.l.b16 %v5446
    %v5960 = vunpack.c.l.b16 %v5447
    %v5961 = vunpack.c.l.b16 %v5448
    %v5962 = vunpack.c.l.b16 %v5449
    %v5963 = vunpack.c.l.b16 %v5450
    %v5964 = vunpack.c.l.b16 %v5451
    %v5965 = vunpack.c.l.b16 %v5452
    %v5966 = vunpack.c.l.b16 %v5453
    %v5967 = vunpack.c.l.b16 %v5454
    %v5968 = vunpack.c.l.b16 %v5455
    %v5969 = vunpack.c.l.b16 %v5456
    %v5970 = vunpack.c.l.b16 %v5457
    %v5971 = vunpack.c.l.b16 %v5458
    %v5972 = vunpack.c.l.b16 %v5459
    %v5973 = vunpack.c.l.b16 %v5460
    %v5974 = vunpack.c.l.b16 %v5461
    %v5975 = vunpack.c.l.b16 %v5462
    %v5976 = vunpack.c.l.b16 %v5463
    %v5977 = vunpack.c.l.b16 %v5464
    %v5978 = vunpack.c.l.b16 %v5465
    %v5979 = vunpack.c.l.b16 %v5466
    %v5980 = vunpack.c.l.b16 %v5467
    %v5981 = vunpack.c.l.b16 %v5468
    %v5982 = vunpack.c.l.b16 %v5469
    %v5983 = vunpack.c.l.b16 %v5470
    %v5984 = vunpack.c.l.b16 %v5471
    %v5985 = vunpack.c.l.b16 %v5472
    %v5986 = vunpack.c.l.b16 %v5473
    %v5987 = vunpack.c.l.b16 %v5474
    %v5988 = vunpack.c.l.b16 %v5475
    %v5989 = vunpack.c.l.b16 %v5476
    %v5990 = vunpack.c.l.b16 %v5477
    %v5991 = vunpack.c.l.b16 %v5478
    %v5992 = vunpack.c.l.b16 %v5479
    %v5993 = vunpack.c.l.b16 %v5480
    %v5994 = vunpack.c.l.b16 %v5481
    %v5995 = vunpack.c.l.b16 %v5482
    %v5996 = vunpack.c.l.b16 %v5483
    %v5997 = vunpack.c.l.b16 %v5484
    %v5998 = vunpack.c.l.b16 %v5485
    %v5999 = vunpack.c.l.b16 %v5486
    %v6000 = vunpack.c.l.b16 %v5487
    %v6001 = vunpack.c.l.b16 %v5488
    %v6002 = vunpack.c.l.b16 %v5489
    %v6003 = vunpack.c.l.b16 %v5490
    %v6004 = vunpack.c.l.b16 %v5491
    %v6005 = vunpack.c.l.b16 %v5492
    %v6006 = vunpack.c.l.b16 %v5493
    %v6007 = vunpack.c.l.b16 %v5494
    %v6008 = vunpack.c.l.b16 %v5495
    %v6009 = vunpack.c.l.b16 %v5496
    %v6010 = vunpack.c.l.b16 %v5497
    %v6011 = vunpack.c.l.b16 %v5498
    %v6012 = vunpack.c.l.b16 %v5499
    %v6013 = vunpack.c.l.b16 %v5500
    %v6014 = vunpack.c.l.b16 %v5501
    %v6015 = vunpack.c.l.b16 %v5502
    %v6016 = vunpack.c.l.b16 %v5503
    %v6017 = vunpack.c.l.b16 %v5504
    %v6018 = vunpack.c.l.b16 %v5505
    %v6019 = vunpack.c.l.b16 %v5506
    %v6020 = vunpack.c.l.b16 %v5507
    %v6021 = vunpack.c.l.b16 %v5508
    %v6022 = vunpack.c.l.b16 %v5509
    %v6023 = vunpack.c.l.b16 %v5510
    %v6024 = vunpack.c.l.b16 %v5511
    %v6025 = vunpack.c.l.b16 %v5512
    %v6026 = vunpack.c.l.b16 %v5513
    %v6027 = vunpack.c.l.b16 %v5514
    %v6028 = vunpack.c.l.b16 %v5515
    %v6029 = vunpack.c.l.b16 %v5516
    %v6030 = vunpack.c.l.b16 %v5517
    %v6031 = vunpack.c.l.b16 %v5518
    %v6032 = vunpack.c.l.b16 %v5519
    %v6033 = vunpack.c.l.b16 %v5520
    %v6034 = vunpack.c.l.b16 %v5521
    %v6035 = vunpack.c.l.b16 %v5522
    %v6036 = vunpack.c.l.b16 %v5523
    %v6037 = vunpack.c.l.b16 %v5524
    %v6038 = vunpack.c.l.b16 %v5525
    %v6039 = vunpack.c.l.b16 %v5526
    %v6040 = vunpack.c.l.b16 %v5527
    %v6041 = vunpack.c.l.b16 %v5528
    %v6042 = vunpack.c.l.b16 %v5529
    %v6043 = vunpack.c.l.b16 %v5530
    %v6044 = vunpack.c.l.b16 %v5531
    %v6045 = vunpack.c.l.b16 %v5532
    %v6046 = vunpack.c.l.b16 %v5533
    %v6047 = vunpack.c.l.b16 %v5534
    %v6048 = vunpack.c.l.b16 %v5535
    %v6049 = vunpack.c.l.b16 %v5536
    %v6050 = vunpack.c.l.b16 %v5537
    %v6051 = vunpack.c.l.b16 %v5538
    %v6052 = vunpack.c.l.b16 %v5539
    %v6053 = vunpack.c.l.b16 %v5540
    %v6054 = vunpack.c.l.b16 %v5541
    %v6055 = vunpack.c.l.b16 %v5542
    %v6056 = vpack.c.b16 %v5801, %v5800
    %v6057 = vpack.c.b16 %v5803, %v5802
    %v6058 = vpack.c.b16 %v5805, %v5804
    %v6059 = vpack.c.b16 %v5807, %v5806
    %v6060 = vpack.c.b16 %v5809, %v5808
    %v6061 = vpack.c.b16 %v5811, %v5810
    %v6062 = vpack.c.b16 %v5813, %v5812
    %v6063 = vpack.c.b16 %v5815, %v5814
    %v6064 = vpack.c.b16 %v5817, %v5816
    %v6065 = vpack.c.b16 %v5819, %v5818
    %v6066 = vpack.c.b16 %v5821, %v5820
    %v6067 = vpack.c.b16 %v5823, %v5822
    %v6068 = vpack.c.b16 %v5825, %v5824
    %v6069 = vpack.c.b16 %v5827, %v5826
    %v6070 = vpack.c.b16 %v5829, %v5828
    %v6071 = vpack.c.b16 %v5831, %v5830
    %v6072 = vpack.c.b16 %v5833, %v5832
    %v6073 = vpack.c.b16 %v5835, %v5834
    %v6074 = vpack.c.b16 %v5837, %v5836
    %v6075 = vpack.c.b16 %v5839, %v5838
    %v6076 = vpack.c.b16 %v5841, %v5840
    %v6077 = vpack.c.b16 %v5843, %v5842
    %v6078 = vpack.c.b16 %v5845, %v5844
    %v6079 = vpack.c.b16 %v5847, %v5846
    %v6080 = vpack.c.b16 %v5849, %v5848
    %v6081 = vpack.c.b16 %v5851, %v5850
    %v6082 = vpack.c.b16 %v5853, %v5852
    %v6083 = vpack.c.b16 %v5855, %v5854
    %v6084 = vpack.c.b16 %v5857, %v5856
    %v6085 = vpack.c.b16 %v5859, %v5858
    %v6086 = vpack.c.b16 %v5861, %v5860
    %v6087 = vpack.c.b16 %v5863, %v5862
    %v6088 = vpack.c.b16 %v5865, %v5864
    %v6089 = vpack.c.b16 %v5867, %v5866
    %v6090 = vpack.c.b16 %v5869, %v5868
    %v6091 = vpack.c.b16 %v5871, %v5870
    %v6092 = vpack.c.b16 %v5873, %v5872
    %v6093 = vpack.c.b16 %v5875, %v5874
    %v6094 = vpack.c.b16 %v5877, %v5876
    %v6095 = vpack.c.b16 %v5879, %v5878
    %v6096 = vpack.c.b16 %v5881, %v5880
    %v6097 = vpack.c.b16 %v5883, %v5882
    %v6098 = vpack.c.b16 %v5885, %v5884
    %v6099 = vpack.c.b16 %v5887, %v5886
    %v6100 = vpack.c.b16 %v5889, %v5888
    %v6101 = vpack.c.b16 %v5891, %v5890
    %v6102 = vpack.c.b16 %v5893, %v5892
    %v6103 = vpack.c.b16 %v5895, %v5894
    %v6104 = vpack.c.b16 %v5897, %v5896
    %v6105 = vpack.c.b16 %v5899, %v5898
    %v6106 = vpack.c.b16 %v5901, %v5900
    %v6107 = vpack.c.b16 %v5903, %v5902
    %v6108 = vpack.c.b16 %v5905, %v5904
    %v6109 = vpack.c.b16 %v5907, %v5906
    %v6110 = vpack.c.b16 %v5909, %v5908
    %v6111 = vpack.c.b16 %v5911, %v5910
    %v6112 = vpack.c.b16 %v5913, %v5912
    %v6113 = vpack.c.b16 %v5915, %v5914
    %v6114 = vpack.c.b16 %v5917, %v5916
    %v6115 = vpack.c.b16 %v5919, %v5918
    %v6116 = vpack.c.b16 %v5921, %v5920
    %v6117 = vpack.c.b16 %v5923, %v5922
    %v6118 = vpack.c.b16 %v5925, %v5924
    %v6119 = vpack.c.b16 %v5927, %v5926
    %v6120 = vpack.c.b16 %v5929, %v5928
    %v6121 = vpack.c.b16 %v5931, %v5930
    %v6122 = vpack.c.b16 %v5933, %v5932
    %v6123 = vpack.c.b16 %v5935, %v5934
    %v6124 = vpack.c.b16 %v5937, %v5936
    %v6125 = vpack.c.b16 %v5939, %v5938
    %v6126 = vpack.c.b16 %v5941, %v5940
    %v6127 = vpack.c.b16 %v5943, %v5942
    %v6128 = vpack.c.b16 %v5945, %v5944
    %v6129 = vpack.c.b16 %v5947, %v5946
    %v6130 = vpack.c.b16 %v5949, %v5948
    %v6131 = vpack.c.b16 %v5951, %v5950
    %v6132 = vpack.c.b16 %v5953, %v5952
    %v6133 = vpack.c.b16 %v5955, %v5954
    %v6134 = vpack.c.b16 %v5957, %v5956
    %v6135 = vpack.c.b16 %v5959, %v5958
    %v6136 = vpack.c.b16 %v5961, %v5960
    %v6137 = vpack.c.b16 %v5963, %v5962
    %v6138 = vpack.c.b16 %v5965, %v5964
    %v6139 = vpack.c.b16 %v5967, %v5966
    %v6140 = vpack.c.b16 %v5969, %v5968
    %v6141 = vpack.c.b16 %v5971, %v5970
    %v6142 = vpack.c.b16 %v5973, %v5972
    %v6143 = vpack.c.b16 %v5975, %v5974
    %v6144 = vpack.c.b16 %v5977, %v5976
    %v6145 = vpack.c.b16 %v5979, %v5978
    %v6146 = vpack.c.b16 %v5981, %v5980
    %v6147 = vpack.c.b16 %v5983, %v5982
    %v6148 = vpack.c.b16 %v5985, %v5984
    %v6149 = vpack.c.b16 %v5987, %v5986
    %v6150 = vpack.c.b16 %v5989, %v5988
    %v6151 = vpack.c.b16 %v5991, %v5990
    %v6152 = vpack.c.b16 %v5993, %v5992
    %v6153 = vpack.c.b16 %v5995, %v5994
    %v6154 = vpack.c.b16 %v5997, %v5996
    %v6155 = vpack.c.b16 %v5999, %v5998
    %v6156 = vpack.c.b16 %v6001, %v6000
    %v6157 = vpack.c.b16 %v6003, %v6002
    %v6158 = vpack.c.b16 %v6005, %v6004
    %v6159 = vpack.c.b16 %v6007, %v6006
    %v6160 = vpack.c.b16 %v6009, %v6008
    %v6161 = vpack.c.b16 %v6011, %v6010
    %v6162 = vpack.c.b16 %v6013, %v6012
    %v6163 = vpack.c.b16 %v6015, %v6014
    %v6164 = vpack.c.b16 %v6017, %v6016
    %v6165 = vpack.c.b16 %v6019, %v6018
    %v6166 = vpack.c.b16 %v6021, %v6020
    %v6167 = vpack.c.b16 %v6023, %v6022
    %v6168 = vpack.c.b16 %v6025, %v6024
    %v6169 = vpack.c.b16 %v6027, %v6026
    %v6170 = vpack.c.b16 %v6029, %v6028
    %v6171 = vpack.c.b16 %v6031, %v6030
    %v6172 = vpack.c.b16 %v6033, %v6032
    %v6173 = vpack.c.b16 %v6035, %v6034
    %v6174 = vpack.c.b16 %v6037, %v6036
    %v6175 = vpack.c.b16 %v6039, %v6038
    %v6176 = vpack.c.b16 %v6041, %v6040
    %v6177 = vpack.c.b16 %v6043, %v6042
    %v6178 = vpack.c.b16 %v6045, %v6044
    %v6179 = vpack.c.b16 %v6047, %v6046
    %v6180 = vpack.c.b16 %v6049, %v6048
    %v6181 = vpack.c.b16 %v6051, %v6050
    %v6182 = vpack.c.b16 %v6053, %v6052
    %v6183 = vpack.c.b16 %v6055, %v6054
    %6312 = vmatprep.subr.bf16.mxu0 0
    %6313 = vmatpush1.bf16.msra.mxu0 %v6056
    %6314 = vmatprep.subr.bf16.mxu0 0
    %6315 = vmatpush1.bf16.msra.mxu0 %v6057
    %6316 = vmatprep.subr.bf16.mxu0 0
    %6317 = vmatpush1.bf16.msra.mxu0 %v6058
    %6318 = vmatprep.subr.bf16.mxu0 0
    %6319 = vmatpush1.bf16.msra.mxu0 %v6059
    %6320 = vmatprep.subr.bf16.mxu0 0
    %6321 = vmatpush1.bf16.msra.mxu0 %v6060
    %6322 = vmatprep.subr.bf16.mxu0 0
    %6323 = vmatpush1.bf16.msra.mxu0 %v6061
    %6324 = vmatprep.subr.bf16.mxu0 0
    %6325 = vmatpush1.bf16.msra.mxu0 %v6062
    %6326 = vmatprep.subr.bf16.mxu0 0
    %6327 = vmatpush1.bf16.msra.mxu0 %v6063
    %6328 = vmatprep.subr.bf16.mxu0 0
    %6329 = vmatpush1.bf16.msra.mxu0 %v6064
    %6330 = vmatprep.subr.bf16.mxu0 0
    %6331 = vmatpush1.bf16.msra.mxu0 %v6065
    %6332 = vmatprep.subr.bf16.mxu0 0
    %6333 = vmatpush1.bf16.msra.mxu0 %v6066
    %6334 = vmatprep.subr.bf16.mxu0 0
    %6335 = vmatpush1.bf16.msra.mxu0 %v6067
    %6336 = vmatprep.subr.bf16.mxu0 0
    %6337 = vmatpush1.bf16.msra.mxu0 %v6068
    %6338 = vmatprep.subr.bf16.mxu0 0
    %6339 = vmatpush1.bf16.msra.mxu0 %v6069
    %6340 = vmatprep.subr.bf16.mxu0 0
    %6341 = vmatpush1.bf16.msra.mxu0 %v6070
    %6342 = vmatprep.subr.bf16.mxu0 0
    %6343 = vmatpush1.bf16.msra.mxu0 %v6071
    %6344 = vmatprep.mubr.bf16.mxu0 %v5272
    %6345 = vmatmul.mubr.bf16.gmra.mrb[0].mxu0 %v5271
    %v6346 = vpop.f32.mrb[0].mxu0
    %v6347 = vadd.f32 %v5543, %v6346
    %v6348 = vpop.f32.mrb[0].mxu0
    %v6349 = vpop.f32.mrb[0].mxu0
    %v6350 = vpop.f32.mrb[0].mxu0
    %6351 = vdwg.mxu0
    %6352 = vmatprep.subr.bf16.mxu0 0
    %6353 = vmatpush1.bf16.msra.mxu0 %v6072
    %6354 = vmatprep.subr.bf16.mxu0 0
    %6355 = vmatpush1.bf16.msra.mxu0 %v6073
    %6356 = vmatprep.subr.bf16.mxu0 0
    %6357 = vmatpush1.bf16.msra.mxu0 %v6074
    %6358 = vmatprep.subr.bf16.mxu0 0
    %6359 = vmatpush1.bf16.msra.mxu0 %v6075
    %6360 = vmatprep.subr.bf16.mxu0 0
    %6361 = vmatpush1.bf16.msra.mxu0 %v6076
    %6362 = vmatprep.subr.bf16.mxu0 0
    %6363 = vmatpush1.bf16.msra.mxu0 %v6077
    %6364 = vmatprep.subr.bf16.mxu0 0
    %6365 = vmatpush1.bf16.msra.mxu0 %v6078
    %6366 = vmatprep.subr.bf16.mxu0 0
    %6367 = vmatpush1.bf16.msra.mxu0 %v6079
    %6368 = vmatprep.subr.bf16.mxu0 0
    %6369 = vmatpush1.bf16.msra.mxu0 %v6080
    %6370 = vmatprep.subr.bf16.mxu0 0
    %6371 = vmatpush1.bf16.msra.mxu0 %v6081
    %6372 = vmatprep.subr.bf16.mxu0 0
    %6373 = vmatpush1.bf16.msra.mxu0 %v6082
    %6374 = vmatprep.subr.bf16.mxu0 0
    %6375 = vmatpush1.bf16.msra.mxu0 %v6083
    %6376 = vmatprep.subr.bf16.mxu0 0
    %6377 = vmatpush1.bf16.msra.mxu0 %v6084
    %6378 = vmatprep.subr.bf16.mxu0 0
    %6379 = vmatpush1.bf16.msra.mxu0 %v6085
    %6380 = vmatprep.subr.bf16.mxu0 0
    %6381 = vmatpush1.bf16.msra.mxu0 %v6086
    %6382 = vmatprep.subr.bf16.mxu0 0
    %6383 = vmatpush1.bf16.msra.mxu0 %v6087
    %6384 = vmatprep.mubr.bf16.mxu0 %v5274
    %6385 = vmatmul.mubr.bf16.gmra.mrb[0].mxu0 %v5273
    %v6386 = vpop.f32.mrb[0].mxu0
    %v6387 = vadd.f32 %v6347, %v6386
    %v6388 = vpop.f32.mrb[0].mxu0
    %v6389 = vpop.f32.mrb[0].mxu0
    %v6390 = vpop.f32.mrb[0].mxu0
    %6391 = vdwg.mxu0
    %6392 = vmatprep.subr.bf16.mxu0 0
    %6393 = vmatpush1.bf16.msra.mxu0 %v6088
    %6394 = vmatprep.subr.bf16.mxu0 0
    %6395 = vmatpush1.bf16.msra.mxu0 %v6089
    %6396 = vmatprep.subr.bf16.mxu0 0
    %6397 = vmatpush1.bf16.msra.mxu0 %v6090
    %6398 = vmatprep.subr.bf16.mxu0 0
    %6399 = vmatpush1.bf16.msra.mxu0 %v6091
    %6400 = vmatprep.subr.bf16.mxu0 0
    %6401 = vmatpush1.bf16.msra.mxu0 %v6092
    %6402 = vmatprep.subr.bf16.mxu0 0
    %6403 = vmatpush1.bf16.msra.mxu0 %v6093
    %6404 = vmatprep.subr.bf16.mxu0 0
    %6405 = vmatpush1.bf16.msra.mxu0 %v6094
    %6406 = vmatprep.subr.bf16.mxu0 0
    %6407 = vmatpush1.bf16.msra.mxu0 %v6095
    %6408 = vmatprep.subr.bf16.mxu0 0
    %6409 = vmatpush1.bf16.msra.mxu0 %v6096
    %6410 = vmatprep.subr.bf16.mxu0 0
    %6411 = vmatpush1.bf16.msra.mxu0 %v6097
    %6412 = vmatprep.subr.bf16.mxu0 0
    %6413 = vmatpush1.bf16.msra.mxu0 %v6098
    %6414 = vmatprep.subr.bf16.mxu0 0
    %6415 = vmatpush1.bf16.msra.mxu0 %v6099
    %6416 = vmatprep.subr.bf16.mxu0 0
    %6417 = vmatpush1.bf16.msra.mxu0 %v6100
    %6418 = vmatprep.subr.bf16.mxu0 0
    %6419 = vmatpush1.bf16.msra.mxu0 %v6101
    %6420 = vmatprep.subr.bf16.mxu0 0
    %6421 = vmatpush1.bf16.msra.mxu0 %v6102
    %6422 = vmatprep.subr.bf16.mxu0 0
    %6423 = vmatpush1.bf16.msra.mxu0 %v6103
    %6424 = vmatprep.mubr.bf16.mxu0 %v5276
    %6425 = vmatmul.mubr.bf16.gmra.mrb[0].mxu0 %v5275
    %v6426 = vpop.f32.mrb[0].mxu0
    %v6427 = vadd.f32 %v6387, %v6426
    %v6428 = vpop.f32.mrb[0].mxu0
    %v6429 = vpop.f32.mrb[0].mxu0
    %v6430 = vpop.f32.mrb[0].mxu0
    %6431 = vdwg.mxu0
    %6432 = vmatprep.subr.bf16.mxu0 0
    %6433 = vmatpush1.bf16.msra.mxu0 %v6104
    %6434 = vmatprep.subr.bf16.mxu0 0
    %6435 = vmatpush1.bf16.msra.mxu0 %v6105
    %6436 = vmatprep.subr.bf16.mxu0 0
    %6437 = vmatpush1.bf16.msra.mxu0 %v6106
    %6438 = vmatprep.subr.bf16.mxu0 0
    %6439 = vmatpush1.bf16.msra.mxu0 %v6107
    %6440 = vmatprep.subr.bf16.mxu0 0
    %6441 = vmatpush1.bf16.msra.mxu0 %v6108
    %6442 = vmatprep.subr.bf16.mxu0 0
    %6443 = vmatpush1.bf16.msra.mxu0 %v6109
    %6444 = vmatprep.subr.bf16.mxu0 0
    %6445 = vmatpush1.bf16.msra.mxu0 %v6110
    %6446 = vmatprep.subr.bf16.mxu0 0
    %6447 = vmatpush1.bf16.msra.mxu0 %v6111
    %6448 = vmatprep.subr.bf16.mxu0 0
    %6449 = vmatpush1.bf16.msra.mxu0 %v6112
    %6450 = vmatprep.subr.bf16.mxu0 0
    %6451 = vmatpush1.bf16.msra.mxu0 %v6113
    %6452 = vmatprep.subr.bf16.mxu0 0
    %6453 = vmatpush1.bf16.msra.mxu0 %v6114
    %6454 = vmatprep.subr.bf16.mxu0 0
    %6455 = vmatpush1.bf16.msra.mxu0 %v6115
    %6456 = vmatprep.subr.bf16.mxu0 0
    %6457 = vmatpush1.bf16.msra.mxu0 %v6116
    %6458 = vmatprep.subr.bf16.mxu0 0
    %6459 = vmatpush1.bf16.msra.mxu0 %v6117
    %6460 = vmatprep.subr.bf16.mxu0 0
    %6461 = vmatpush1.bf16.msra.mxu0 %v6118
    %6462 = vmatprep.subr.bf16.mxu0 0
    %6463 = vmatpush1.bf16.msra.mxu0 %v6119
    %6464 = vmatprep.mubr.bf16.mxu0 %v5278
    %6465 = vmatmul.mubr.bf16.gmra.mrb[0].mxu0 %v5277
    %v6466 = vpop.f32.mrb[0].mxu0
    %v6467 = vadd.f32 %v6427, %v6466
    %v6468 = vpop.f32.mrb[0].mxu0
    %v6469 = vpop.f32.mrb[0].mxu0
    %v6470 = vpop.f32.mrb[0].mxu0
    %6471 = vdwg.mxu0
    %6472 = vmatprep.subr.bf16.mxu0 0
    %6473 = vmatpush1.bf16.msra.mxu0 %v6120
    %6474 = vmatprep.subr.bf16.mxu0 0
    %6475 = vmatpush1.bf16.msra.mxu0 %v6121
    %6476 = vmatprep.subr.bf16.mxu0 0
    %6477 = vmatpush1.bf16.msra.mxu0 %v6122
    %6478 = vmatprep.subr.bf16.mxu0 0
    %6479 = vmatpush1.bf16.msra.mxu0 %v6123
    %6480 = vmatprep.subr.bf16.mxu0 0
    %6481 = vmatpush1.bf16.msra.mxu0 %v6124
    %6482 = vmatprep.subr.bf16.mxu0 0
    %6483 = vmatpush1.bf16.msra.mxu0 %v6125
    %6484 = vmatprep.subr.bf16.mxu0 0
    %6485 = vmatpush1.bf16.msra.mxu0 %v6126
    %6486 = vmatprep.subr.bf16.mxu0 0
    %6487 = vmatpush1.bf16.msra.mxu0 %v6127
    %6488 = vmatprep.subr.bf16.mxu0 0
    %6489 = vmatpush1.bf16.msra.mxu0 %v6128
    %6490 = vmatprep.subr.bf16.mxu0 0
    %6491 = vmatpush1.bf16.msra.mxu0 %v6129
    %6492 = vmatprep.subr.bf16.mxu0 0
    %6493 = vmatpush1.bf16.msra.mxu0 %v6130
    %6494 = vmatprep.subr.bf16.mxu0 0
    %6495 = vmatpush1.bf16.msra.mxu0 %v6131
    %6496 = vmatprep.subr.bf16.mxu0 0
    %6497 = vmatpush1.bf16.msra.mxu0 %v6132
    %6498 = vmatprep.subr.bf16.mxu0 0
    %6499 = vmatpush1.bf16.msra.mxu0 %v6133
    %6500 = vmatprep.subr.bf16.mxu0 0
    %6501 = vmatpush1.bf16.msra.mxu0 %v6134
    %6502 = vmatprep.subr.bf16.mxu0 0
    %6503 = vmatpush1.bf16.msra.mxu0 %v6135
    %6504 = vmatprep.mubr.bf16.mxu0 %v5280
    %6505 = vmatmul.mubr.bf16.gmra.mrb[0].mxu0 %v5279
    %v6506 = vpop.f32.mrb[0].mxu0
    %v6507 = vadd.f32 %v6467, %v6506
    %v6508 = vpop.f32.mrb[0].mxu0
    %v6509 = vpop.f32.mrb[0].mxu0
    %v6510 = vpop.f32.mrb[0].mxu0
    %6511 = vdwg.mxu0
    %6512 = vmatprep.subr.bf16.mxu0 0
    %6513 = vmatpush1.bf16.msra.mxu0 %v6136
    %6514 = vmatprep.subr.bf16.mxu0 0
    %6515 = vmatpush1.bf16.msra.mxu0 %v6137
    %6516 = vmatprep.subr.bf16.mxu0 0
    %6517 = vmatpush1.bf16.msra.mxu0 %v6138
    %6518 = vmatprep.subr.bf16.mxu0 0
    %6519 = vmatpush1.bf16.msra.mxu0 %v6139
    %6520 = vmatprep.subr.bf16.mxu0 0
    %6521 = vmatpush1.bf16.msra.mxu0 %v6140
    %6522 = vmatprep.subr.bf16.mxu0 0
    %6523 = vmatpush1.bf16.msra.mxu0 %v6141
    %6524 = vmatprep.subr.bf16.mxu0 0
    %6525 = vmatpush1.bf16.msra.mxu0 %v6142
    %6526 = vmatprep.subr.bf16.mxu0 0
    %6527 = vmatpush1.bf16.msra.mxu0 %v6143
    %6528 = vmatprep.subr.bf16.mxu0 0
    %6529 = vmatpush1.bf16.msra.mxu0 %v6144
    %6530 = vmatprep.subr.bf16.mxu0 0
    %6531 = vmatpush1.bf16.msra.mxu0 %v6145
    %6532 = vmatprep.subr.bf16.mxu0 0
    %6533 = vmatpush1.bf16.msra.mxu0 %v6146
    %6534 = vmatprep.subr.bf16.mxu0 0
    %6535 = vmatpush1.bf16.msra.mxu0 %v6147
    %6536 = vmatprep.subr.bf16.mxu0 0
    %6537 = vmatpush1.bf16.msra.mxu0 %v6148
    %6538 = vmatprep.subr.bf16.mxu0 0
    %6539 = vmatpush1.bf16.msra.mxu0 %v6149
    %6540 = vmatprep.subr.bf16.mxu0 0
    %6541 = vmatpush1.bf16.msra.mxu0 %v6150
    %6542 = vmatprep.subr.bf16.mxu0 0
    %6543 = vmatpush1.bf16.msra.mxu0 %v6151
    %6544 = vmatprep.mubr.bf16.mxu0 %v5282
    %6545 = vmatmul.mubr.bf16.gmra.mrb[0].mxu0 %v5281
    %v6546 = vpop.f32.mrb[0].mxu0
    %v6547 = vadd.f32 %v6507, %v6546
    %v6548 = vpop.f32.mrb[0].mxu0
    %v6549 = vpop.f32.mrb[0].mxu0
    %v6550 = vpop.f32.mrb[0].mxu0
    %6551 = vdwg.mxu0
    %6552 = vmatprep.subr.bf16.mxu0 0
    %6553 = vmatpush1.bf16.msra.mxu0 %v6152
    %6554 = vmatprep.subr.bf16.mxu0 0
    %6555 = vmatpush1.bf16.msra.mxu0 %v6153
    %6556 = vmatprep.subr.bf16.mxu0 0
    %6557 = vmatpush1.bf16.msra.mxu0 %v6154
    %6558 = vmatprep.subr.bf16.mxu0 0
    %6559 = vmatpush1.bf16.msra.mxu0 %v6155
    %6560 = vmatprep.subr.bf16.mxu0 0
    %6561 = vmatpush1.bf16.msra.mxu0 %v6156
    %6562 = vmatprep.subr.bf16.mxu0 0
    %6563 = vmatpush1.bf16.msra.mxu0 %v6157
    %6564 = vmatprep.subr.bf16.mxu0 0
    %6565 = vmatpush1.bf16.msra.mxu0 %v6158
    %6566 = vmatprep.subr.bf16.mxu0 0
    %6567 = vmatpush1.bf16.msra.mxu0 %v6159
    %6568 = vmatprep.subr.bf16.mxu0 0
    %6569 = vmatpush1.bf16.msra.mxu0 %v6160
    %6570 = vmatprep.subr.bf16.mxu0 0
    %6571 = vmatpush1.bf16.msra.mxu0 %v6161
    %6572 = vmatprep.subr.bf16.mxu0 0
    %6573 = vmatpush1.bf16.msra.mxu0 %v6162
    %6574 = vmatprep.subr.bf16.mxu0 0
    %6575 = vmatpush1.bf16.msra.mxu0 %v6163
    %6576 = vmatprep.subr.bf16.mxu0 0
    %6577 = vmatpush1.bf16.msra.mxu0 %v6164
    %6578 = vmatprep.subr.bf16.mxu0 0
    %6579 = vmatpush1.bf16.msra.mxu0 %v6165
    %6580 = vmatprep.subr.bf16.mxu0 0
    %6581 = vmatpush1.bf16.msra.mxu0 %v6166
    %6582 = vmatprep.subr.bf16.mxu0 0
    %6583 = vmatpush1.bf16.msra.mxu0 %v6167
    %6584 = vmatprep.mubr.bf16.mxu0 %v5284
    %6585 = vmatmul.mubr.bf16.gmra.mrb[0].mxu0 %v5283
    %v6586 = vpop.f32.mrb[0].mxu0
    %v6587 = vadd.f32 %v6547, %v6586
    %v6588 = vpop.f32.mrb[0].mxu0
    %v6589 = vpop.f32.mrb[0].mxu0
    %v6590 = vpop.f32.mrb[0].mxu0
    %6591 = vdwg.mxu0
    %6592 = vmatprep.subr.bf16.mxu0 0
    %6593 = vmatpush1.bf16.msra.mxu0 %v6168
    %6594 = vmatprep.subr.bf16.mxu0 0
    %6595 = vmatpush1.bf16.msra.mxu0 %v6169
    %6596 = vmatprep.subr.bf16.mxu0 0
    %6597 = vmatpush1.bf16.msra.mxu0 %v6170
    %6598 = vmatprep.subr.bf16.mxu0 0
    %6599 = vmatpush1.bf16.msra.mxu0 %v6171
    %6600 = vmatprep.subr.bf16.mxu0 0
    %6601 = vmatpush1.bf16.msra.mxu0 %v6172
    %6602 = vmatprep.subr.bf16.mxu0 0
    %6603 = vmatpush1.bf16.msra.mxu0 %v6173
    %6604 = vmatprep.subr.bf16.mxu0 0
    %6605 = vmatpush1.bf16.msra.mxu0 %v6174
    %6606 = vmatprep.subr.bf16.mxu0 0
    %6607 = vmatpush1.bf16.msra.mxu0 %v6175
    %6608 = vmatprep.subr.bf16.mxu0 0
    %6609 = vmatpush1.bf16.msra.mxu0 %v6176
    %6610 = vmatprep.subr.bf16.mxu0 0
    %6611 = vmatpush1.bf16.msra.mxu0 %v6177
    %6612 = vmatprep.subr.bf16.mxu0 0
    %6613 = vmatpush1.bf16.msra.mxu0 %v6178
    %6614 = vmatprep.subr.bf16.mxu0 0
    %6615 = vmatpush1.bf16.msra.mxu0 %v6179
    %6616 = vmatprep.subr.bf16.mxu0 0
    %6617 = vmatpush1.bf16.msra.mxu0 %v6180
    %6618 = vmatprep.subr.bf16.mxu0 0
    %6619 = vmatpush1.bf16.msra.mxu0 %v6181
    %6620 = vmatprep.subr.bf16.mxu0 0
    %6621 = vmatpush1.bf16.msra.mxu0 %v6182
    %6622 = vmatprep.subr.bf16.mxu0 0
    %6623 = vmatpush1.bf16.msra.mxu0 %v6183
    %6624 = vmatprep.mubr.bf16.mxu0 %v5286
    %6625 = vmatmul.mubr.bf16.gmra.mrb[0].mxu0 %v5285
    %v6626 = vpop.f32.mrb[0].mxu0
    %v6627 = vadd.f32 %v6587, %v6626
    %v6628 = vpop.f32.mrb[0].mxu0
    %v6629 = vpop.f32.mrb[0].mxu0
    %v6630 = vpop.f32.mrb[0].mxu0
    %6631 = vdwg.mxu0
    %v6632 = vmax.f32 %v6627, 0.0
    %v6633 = vpack.c.bf16 %v6632, %v6632
    %v6634 = vld [vmem:[#allocation11] sm:$0xff]
    %v6635 = vld [vmem:[#allocation11 + $0x8] sm:$0xff]
    %v6636 = vld [vmem:[#allocation11 + $0x10] sm:$0xff]
    %v6637 = vld [vmem:[#allocation11 + $0x18] sm:$0xff]
    %v6638 = vld [vmem:[#allocation11 + $0x20] sm:$0xff]
    %v6639 = vld [vmem:[#allocation11 + $0x28] sm:$0xff]
    %v6640 = vld [vmem:[#allocation11 + $0x30] sm:$0xff]
    %v6641 = vld [vmem:[#allocation11 + $0x38] sm:$0xff]
    %v6642 = vld [vmem:[#allocation11 + $0x40] sm:$0xff]
    %v6643 = vld [vmem:[#allocation11 + $0x48] sm:$0xff]
    %v6644 = vld [vmem:[#allocation11 + $0x50] sm:$0xff]
    %v6645 = vld [vmem:[#allocation11 + $0x58] sm:$0xff]
    %v6646 = vld [vmem:[#allocation11 + $0x60] sm:$0xff]
    %v6647 = vld [vmem:[#allocation11 + $0x68] sm:$0xff]
    %v6648 = vld [vmem:[#allocation11 + $0x70] sm:$0xff]
    %v6649 = vld [vmem:[#allocation11 + $0x78] sm:$0xff]
    %v6650 = vld [vmem:[#allocation11 + $0x80] sm:$0xff]
    %v6651 = vld [vmem:[#allocation11 + $0x88] sm:$0xff]
    %v6652 = vld [vmem:[#allocation11 + $0x90] sm:$0xff]
    %v6653 = vld [vmem:[#allocation11 + $0x98] sm:$0xff]
    %v6654 = vld [vmem:[#allocation11 + $0xa0] sm:$0xff]
    %v6655 = vld [vmem:[#allocation11 + $0xa8] sm:$0xff]
    %v6656 = vld [vmem:[#allocation11 + $0xb0] sm:$0xff]
    %v6657 = vld [vmem:[#allocation11 + $0xb8] sm:$0xff]
    %v6658 = vld [vmem:[#allocation11 + $0xc0] sm:$0xff]
    %v6659 = vld [vmem:[#allocation11 + $0xc8] sm:$0xff]
    %v6660 = vld [vmem:[#allocation11 + $0xd0] sm:$0xff]
    %v6661 = vld [vmem:[#allocation11 + $0xd8] sm:$0xff]
    %v6662 = vld [vmem:[#allocation11 + $0xe0] sm:$0xff]
    %v6663 = vld [vmem:[#allocation11 + $0xe8] sm:$0xff]
    %v6664 = vld [vmem:[#allocation11 + $0xf0] sm:$0xff]
    %v6665 = vld [vmem:[#allocation11 + $0xf8] sm:$0xff]
    %v6666 = vld [vmem:[#allocation11 + $0x100] sm:$0xff]
    %v6667 = vld [vmem:[#allocation11 + $0x108] sm:$0xff]
    %v6668 = vld [vmem:[#allocation11 + $0x110] sm:$0xff]
    %v6669 = vld [vmem:[#allocation11 + $0x118] sm:$0xff]
    %v6670 = vld [vmem:[#allocation11 + $0x120] sm:$0xff]
    %v6671 = vld [vmem:[#allocation11 + $0x128] sm:$0xff]
    %v6672 = vld [vmem:[#allocation11 + $0x130] sm:$0xff]
    %v6673 = vld [vmem:[#allocation11 + $0x138] sm:$0xff]
    %v6674 = vld [vmem:[#allocation11 + $0x140] sm:$0xff]
    %v6675 = vld [vmem:[#allocation11 + $0x148] sm:$0xff]
    %v6676 = vld [vmem:[#allocation11 + $0x150] sm:$0xff]
    %v6677 = vld [vmem:[#allocation11 + $0x158] sm:$0xff]
    %v6678 = vld [vmem:[#allocation11 + $0x160] sm:$0xff]
    %v6679 = vld [vmem:[#allocation11 + $0x168] sm:$0xff]
    %v6680 = vld [vmem:[#allocation11 + $0x170] sm:$0xff]
    %v6681 = vld [vmem:[#allocation11 + $0x178] sm:$0xff]
    %v6682 = vld [vmem:[#allocation11 + $0x180] sm:$0xff]
    %v6683 = vld [vmem:[#allocation11 + $0x188] sm:$0xff]
    %v6684 = vld [vmem:[#allocation11 + $0x190] sm:$0xff]
    %v6685 = vld [vmem:[#allocation11 + $0x198] sm:$0xff]
    %v6686 = vld [vmem:[#allocation11 + $0x1a0] sm:$0xff]
    %v6687 = vld [vmem:[#allocation11 + $0x1a8] sm:$0xff]
    %v6688 = vld [vmem:[#allocation11 + $0x1b0] sm:$0xff]
    %v6689 = vld [vmem:[#allocation11 + $0x1b8] sm:$0xff]
    %v6690 = vld [vmem:[#allocation11 + $0x1c0] sm:$0xff]
    %v6691 = vld [vmem:[#allocation11 + $0x1c8] sm:$0xff]
    %v6692 = vld [vmem:[#allocation11 + $0x1d0] sm:$0xff]
    %v6693 = vld [vmem:[#allocation11 + $0x1d8] sm:$0xff]
    %v6694 = vld [vmem:[#allocation11 + $0x1e0] sm:$0xff]
    %v6695 = vld [vmem:[#allocation11 + $0x1e8] sm:$0xff]
    %v6696 = vld [vmem:[#allocation11 + $0x1f0] sm:$0xff]
    %v6697 = vld [vmem:[#allocation11 + $0x1f8] sm:$0xff]
    %v6698 = vld [vmem:[#allocation11 + $0x200] sm:$0xff]
    %v6699 = vld [vmem:[#allocation11 + $0x208] sm:$0xff]
    %v6700 = vld [vmem:[#allocation11 + $0x210] sm:$0xff]
    %v6701 = vld [vmem:[#allocation11 + $0x218] sm:$0xff]
    %v6702 = vld [vmem:[#allocation11 + $0x220] sm:$0xff]
    %v6703 = vld [vmem:[#allocation11 + $0x228] sm:$0xff]
    %v6704 = vld [vmem:[#allocation11 + $0x230] sm:$0xff]
    %v6705 = vld [vmem:[#allocation11 + $0x238] sm:$0xff]
    %v6706 = vld [vmem:[#allocation11 + $0x240] sm:$0xff]
    %v6707 = vld [vmem:[#allocation11 + $0x248] sm:$0xff]
    %v6708 = vld [vmem:[#allocation11 + $0x250] sm:$0xff]
    %v6709 = vld [vmem:[#allocation11 + $0x258] sm:$0xff]
    %v6710 = vld [vmem:[#allocation11 + $0x260] sm:$0xff]
    %v6711 = vld [vmem:[#allocation11 + $0x268] sm:$0xff]
    %v6712 = vld [vmem:[#allocation11 + $0x270] sm:$0xff]
    %v6713 = vld [vmem:[#allocation11 + $0x278] sm:$0xff]
    %v6714 = vld [vmem:[#allocation11 + $0x280] sm:$0xff]
    %v6715 = vld [vmem:[#allocation11 + $0x288] sm:$0xff]
    %v6716 = vld [vmem:[#allocation11 + $0x290] sm:$0xff]
    %v6717 = vld [vmem:[#allocation11 + $0x298] sm:$0xff]
    %v6718 = vld [vmem:[#allocation11 + $0x2a0] sm:$0xff]
    %v6719 = vld [vmem:[#allocation11 + $0x2a8] sm:$0xff]
    %v6720 = vld [vmem:[#allocation11 + $0x2b0] sm:$0xff]
    %v6721 = vld [vmem:[#allocation11 + $0x2b8] sm:$0xff]
    %v6722 = vld [vmem:[#allocation11 + $0x2c0] sm:$0xff]
    %v6723 = vld [vmem:[#allocation11 + $0x2c8] sm:$0xff]
    %v6724 = vld [vmem:[#allocation11 + $0x2d0] sm:$0xff]
    %v6725 = vld [vmem:[#allocation11 + $0x2d8] sm:$0xff]
    %v6726 = vld [vmem:[#allocation11 + $0x2e0] sm:$0xff]
    %v6727 = vld [vmem:[#allocation11 + $0x2e8] sm:$0xff]
    %v6728 = vld [vmem:[#allocation11 + $0x2f0] sm:$0xff]
    %v6729 = vld [vmem:[#allocation11 + $0x2f8] sm:$0xff]
    %v6730 = vld [vmem:[#allocation11 + $0x300] sm:$0xff]
    %v6731 = vld [vmem:[#allocation11 + $0x308] sm:$0xff]
    %v6732 = vld [vmem:[#allocation11 + $0x310] sm:$0xff]
    %v6733 = vld [vmem:[#allocation11 + $0x318] sm:$0xff]
    %v6734 = vld [vmem:[#allocation11 + $0x320] sm:$0xff]
    %v6735 = vld [vmem:[#allocation11 + $0x328] sm:$0xff]
    %v6736 = vld [vmem:[#allocation11 + $0x330] sm:$0xff]
    %v6737 = vld [vmem:[#allocation11 + $0x338] sm:$0xff]
    %v6738 = vld [vmem:[#allocation11 + $0x340] sm:$0xff]
    %v6739 = vld [vmem:[#allocation11 + $0x348] sm:$0xff]
    %v6740 = vld [vmem:[#allocation11 + $0x350] sm:$0xff]
    %v6741 = vld [vmem:[#allocation11 + $0x358] sm:$0xff]
    %v6742 = vld [vmem:[#allocation11 + $0x360] sm:$0xff]
    %v6743 = vld [vmem:[#allocation11 + $0x368] sm:$0xff]
    %v6744 = vld [vmem:[#allocation11 + $0x370] sm:$0xff]
    %v6745 = vld [vmem:[#allocation11 + $0x378] sm:$0xff]
    %v6746 = vld [vmem:[#allocation11 + $0x380] sm:$0xff]
    %v6747 = vld [vmem:[#allocation11 + $0x388] sm:$0xff]
    %v6748 = vld [vmem:[#allocation11 + $0x390] sm:$0xff]
    %v6749 = vld [vmem:[#allocation11 + $0x398] sm:$0xff]
    %v6750 = vld [vmem:[#allocation11 + $0x3a0] sm:$0xff]
    %v6751 = vld [vmem:[#allocation11 + $0x3a8] sm:$0xff]
    %v6752 = vld [vmem:[#allocation11 + $0x3b0] sm:$0xff]
    %v6753 = vld [vmem:[#allocation11 + $0x3b8] sm:$0xff]
    %v6754 = vld [vmem:[#allocation11 + $0x3c0] sm:$0xff]
    %v6755 = vld [vmem:[#allocation11 + $0x3c8] sm:$0xff]
    %v6756 = vld [vmem:[#allocation11 + $0x3d0] sm:$0xff]
    %v6757 = vld [vmem:[#allocation11 + $0x3d8] sm:$0xff]
    %v6758 = vld [vmem:[#allocation11 + $0x3e0] sm:$0xff]
    %v6759 = vld [vmem:[#allocation11 + $0x3e8] sm:$0xff]
    %v6760 = vld [vmem:[#allocation11 + $0x3f0] sm:$0xff]
    %v6761 = vld [vmem:[#allocation11 + $0x3f8] sm:$0xff]
    %s6762 = scalar_lea.vmem [#allocation17], 4
    %v6763 = vld [vmem:[%s6762] ss:$8 sm:$0xf]
    %v6764 = vld [vmem:[%s6762] ss:$8 sm:$0xf0]
    %v6765 = vor.u32 %v6763, %v6764
    %s6766 = scalar_lea.vmem [#allocation17], 68
    %v6767 = vld [vmem:[%s6766] ss:$8 sm:$0xf]
    %v6768 = vld [vmem:[%s6766] ss:$8 sm:$0xf0]
    %v6769 = vor.u32 %v6767, %v6768
    %v6772 = vlaneseq
    %v6773 = vshrl.u32 %v6772, 7
    %v6774 = vsub.s32 0, %v6773
    %v6775 = vrot.slane %v6765, %v6774
    %v6776 = vlaneseq
    %v6777 = vshrl.u32 %v6776, 7
    %v6778 = vsub.s32 1, %v6777
    %v6779 = vrot.slane %v6765, %v6778
    %v6780 = vlaneseq
    %v6781 = vshrl.u32 %v6780, 7
    %v6782 = vsub.s32 2, %v6781
    %v6783 = vrot.slane %v6765, %v6782
    %v6784 = vlaneseq
    %v6785 = vshrl.u32 %v6784, 7
    %v6786 = vsub.s32 3, %v6785
    %v6787 = vrot.slane %v6765, %v6786
    %v6788 = vlaneseq
    %v6789 = vshrl.u32 %v6788, 7
    %v6790 = vsub.s32 4, %v6789
    %v6791 = vrot.slane %v6765, %v6790
    %v6792 = vlaneseq
    %v6793 = vshrl.u32 %v6792, 7
    %v6794 = vsub.s32 5, %v6793
    %v6795 = vrot.slane %v6765, %v6794
    %v6796 = vlaneseq
    %v6797 = vshrl.u32 %v6796, 7
    %v6798 = vsub.s32 6, %v6797
    %v6799 = vrot.slane %v6765, %v6798
    %v6800 = vlaneseq
    %v6801 = vshrl.u32 %v6800, 7
    %v6802 = vsub.s32 7, %v6801
    %v6803 = vrot.slane %v6765, %v6802
    %v6804 = vlaneseq
    %v6805 = vshrl.u32 %v6804, 7
    %v6806 = vsub.s32 0, %v6805
    %v6807 = vrot.slane %v6769, %v6806
    %v6808 = vlaneseq
    %v6809 = vshrl.u32 %v6808, 7
    %v6810 = vsub.s32 1, %v6809
    %v6811 = vrot.slane %v6769, %v6810
    %v6812 = vlaneseq
    %v6813 = vshrl.u32 %v6812, 7
    %v6814 = vsub.s32 2, %v6813
    %v6815 = vrot.slane %v6769, %v6814
    %v6816 = vlaneseq
    %v6817 = vshrl.u32 %v6816, 7
    %v6818 = vsub.s32 3, %v6817
    %v6819 = vrot.slane %v6769, %v6818
    %v6820 = vlaneseq
    %v6821 = vshrl.u32 %v6820, 7
    %v6822 = vsub.s32 4, %v6821
    %v6823 = vrot.slane %v6769, %v6822
    %v6824 = vlaneseq
    %v6825 = vshrl.u32 %v6824, 7
    %v6826 = vsub.s32 5, %v6825
    %v6827 = vrot.slane %v6769, %v6826
    %v6828 = vlaneseq
    %v6829 = vshrl.u32 %v6828, 7
    %v6830 = vsub.s32 6, %v6829
    %v6831 = vrot.slane %v6769, %v6830
    %v6832 = vlaneseq
    %v6833 = vshrl.u32 %v6832, 7
    %v6834 = vsub.s32 7, %v6833
    %v6835 = vrot.slane %v6769, %v6834
    %v6980 = vunpack.c.l.b16 %v6634
    %v6981 = vunpack.c.h.b16 %v6634
    %v6982 = vunpack.c.l.b16 %v6635
    %v6983 = vunpack.c.h.b16 %v6635
    %v6984 = vunpack.c.l.b16 %v6636
    %v6985 = vunpack.c.h.b16 %v6636
    %v6986 = vunpack.c.l.b16 %v6637
    %v6987 = vunpack.c.h.b16 %v6637
    %v6988 = vunpack.c.l.b16 %v6638
    %v6989 = vunpack.c.h.b16 %v6638
    %v6990 = vunpack.c.l.b16 %v6639
    %v6991 = vunpack.c.h.b16 %v6639
    %v6992 = vunpack.c.l.b16 %v6640
    %v6993 = vunpack.c.h.b16 %v6640
    %v6994 = vunpack.c.l.b16 %v6641
    %v6995 = vunpack.c.h.b16 %v6641
    %v6996 = vunpack.c.l.b16 %v6642
    %v6997 = vunpack.c.h.b16 %v6642
    %v6998 = vunpack.c.l.b16 %v6643
    %v6999 = vunpack.c.h.b16 %v6643
    %v7000 = vunpack.c.l.b16 %v6644
    %v7001 = vunpack.c.h.b16 %v6644
    %v7002 = vunpack.c.l.b16 %v6645
    %v7003 = vunpack.c.h.b16 %v6645
    %v7004 = vunpack.c.l.b16 %v6646
    %v7005 = vunpack.c.h.b16 %v6646
    %v7006 = vunpack.c.l.b16 %v6647
    %v7007 = vunpack.c.h.b16 %v6647
    %v7008 = vunpack.c.l.b16 %v6648
    %v7009 = vunpack.c.h.b16 %v6648
    %v7010 = vunpack.c.l.b16 %v6649
    %v7011 = vunpack.c.h.b16 %v6649
    %v7012 = vunpack.c.l.b16 %v6650
    %v7013 = vunpack.c.h.b16 %v6650
    %v7014 = vunpack.c.l.b16 %v6651
    %v7015 = vunpack.c.h.b16 %v6651
    %v7016 = vunpack.c.l.b16 %v6652
    %v7017 = vunpack.c.h.b16 %v6652
    %v7018 = vunpack.c.l.b16 %v6653
    %v7019 = vunpack.c.h.b16 %v6653
    %v7020 = vunpack.c.l.b16 %v6654
    %v7021 = vunpack.c.h.b16 %v6654
    %v7022 = vunpack.c.l.b16 %v6655
    %v7023 = vunpack.c.h.b16 %v6655
    %v7024 = vunpack.c.l.b16 %v6656
    %v7025 = vunpack.c.h.b16 %v6656
    %v7026 = vunpack.c.l.b16 %v6657
    %v7027 = vunpack.c.h.b16 %v6657
    %v7028 = vunpack.c.l.b16 %v6658
    %v7029 = vunpack.c.h.b16 %v6658
    %v7030 = vunpack.c.l.b16 %v6659
    %v7031 = vunpack.c.h.b16 %v6659
    %v7032 = vunpack.c.l.b16 %v6660
    %v7033 = vunpack.c.h.b16 %v6660
    %v7034 = vunpack.c.l.b16 %v6661
    %v7035 = vunpack.c.h.b16 %v6661
    %v7036 = vunpack.c.l.b16 %v6662
    %v7037 = vunpack.c.h.b16 %v6662
    %v7038 = vunpack.c.l.b16 %v6663
    %v7039 = vunpack.c.h.b16 %v6663
    %v7040 = vunpack.c.l.b16 %v6664
    %v7041 = vunpack.c.h.b16 %v6664
    %v7042 = vunpack.c.l.b16 %v6665
    %v7043 = vunpack.c.h.b16 %v6665
    %v7044 = vunpack.c.l.b16 %v6666
    %v7045 = vunpack.c.h.b16 %v6666
    %v7046 = vunpack.c.l.b16 %v6667
    %v7047 = vunpack.c.h.b16 %v6667
    %v7048 = vunpack.c.l.b16 %v6668
    %v7049 = vunpack.c.h.b16 %v6668
    %v7050 = vunpack.c.l.b16 %v6669
    %v7051 = vunpack.c.h.b16 %v6669
    %v7052 = vunpack.c.l.b16 %v6670
    %v7053 = vunpack.c.h.b16 %v6670
    %v7054 = vunpack.c.l.b16 %v6671
    %v7055 = vunpack.c.h.b16 %v6671
    %v7056 = vunpack.c.l.b16 %v6672
    %v7057 = vunpack.c.h.b16 %v6672
    %v7058 = vunpack.c.l.b16 %v6673
    %v7059 = vunpack.c.h.b16 %v6673
    %v7060 = vunpack.c.l.b16 %v6674
    %v7061 = vunpack.c.h.b16 %v6674
    %v7062 = vunpack.c.l.b16 %v6675
    %v7063 = vunpack.c.h.b16 %v6675
    %v7064 = vunpack.c.l.b16 %v6676
    %v7065 = vunpack.c.h.b16 %v6676
    %v7066 = vunpack.c.l.b16 %v6677
    %v7067 = vunpack.c.h.b16 %v6677
    %v7068 = vunpack.c.l.b16 %v6678
    %v7069 = vunpack.c.h.b16 %v6678
    %v7070 = vunpack.c.l.b16 %v6679
    %v7071 = vunpack.c.h.b16 %v6679
    %v7072 = vunpack.c.l.b16 %v6680
    %v7073 = vunpack.c.h.b16 %v6680
    %v7074 = vunpack.c.l.b16 %v6681
    %v7075 = vunpack.c.h.b16 %v6681
    %v7076 = vunpack.c.l.b16 %v6682
    %v7077 = vunpack.c.h.b16 %v6682
    %v7078 = vunpack.c.l.b16 %v6683
    %v7079 = vunpack.c.h.b16 %v6683
    %v7080 = vunpack.c.l.b16 %v6684
    %v7081 = vunpack.c.h.b16 %v6684
    %v7082 = vunpack.c.l.b16 %v6685
    %v7083 = vunpack.c.h.b16 %v6685
    %v7084 = vunpack.c.l.b16 %v6686
    %v7085 = vunpack.c.h.b16 %v6686
    %v7086 = vunpack.c.l.b16 %v6687
    %v7087 = vunpack.c.h.b16 %v6687
    %v7088 = vunpack.c.l.b16 %v6688
    %v7089 = vunpack.c.h.b16 %v6688
    %v7090 = vunpack.c.l.b16 %v6689
    %v7091 = vunpack.c.h.b16 %v6689
    %v7092 = vunpack.c.l.b16 %v6690
    %v7093 = vunpack.c.h.b16 %v6690
    %v7094 = vunpack.c.l.b16 %v6691
    %v7095 = vunpack.c.h.b16 %v6691
    %v7096 = vunpack.c.l.b16 %v6692
    %v7097 = vunpack.c.h.b16 %v6692
    %v7098 = vunpack.c.l.b16 %v6693
    %v7099 = vunpack.c.h.b16 %v6693
    %v7100 = vunpack.c.l.b16 %v6694
    %v7101 = vunpack.c.h.b16 %v6694
    %v7102 = vunpack.c.l.b16 %v6695
    %v7103 = vunpack.c.h.b16 %v6695
    %v7104 = vunpack.c.l.b16 %v6696
    %v7105 = vunpack.c.h.b16 %v6696
    %v7106 = vunpack.c.l.b16 %v6697
    %v7107 = vunpack.c.h.b16 %v6697
    %v7108 = vunpack.c.l.b16 %v6698
    %v7109 = vunpack.c.h.b16 %v6698
    %v7110 = vunpack.c.l.b16 %v6699
    %v7111 = vunpack.c.h.b16 %v6699
    %v7112 = vunpack.c.l.b16 %v6700
    %v7113 = vunpack.c.h.b16 %v6700
    %v7114 = vunpack.c.l.b16 %v6701
    %v7115 = vunpack.c.h.b16 %v6701
    %v7116 = vunpack.c.l.b16 %v6702
    %v7117 = vunpack.c.h.b16 %v6702
    %v7118 = vunpack.c.l.b16 %v6703
    %v7119 = vunpack.c.h.b16 %v6703
    %v7120 = vunpack.c.l.b16 %v6704
    %v7121 = vunpack.c.h.b16 %v6704
    %v7122 = vunpack.c.l.b16 %v6705
    %v7123 = vunpack.c.h.b16 %v6705
    %v7124 = vunpack.c.l.b16 %v6706
    %v7125 = vunpack.c.h.b16 %v6706
    %v7126 = vunpack.c.l.b16 %v6707
    %v7127 = vunpack.c.h.b16 %v6707
    %v7128 = vunpack.c.l.b16 %v6708
    %v7129 = vunpack.c.h.b16 %v6708
    %v7130 = vunpack.c.l.b16 %v6709
    %v7131 = vunpack.c.h.b16 %v6709
    %v7132 = vunpack.c.l.b16 %v6710
    %v7133 = vunpack.c.h.b16 %v6710
    %v7134 = vunpack.c.l.b16 %v6711
    %v7135 = vunpack.c.h.b16 %v6711
    %v7136 = vunpack.c.l.b16 %v6712
    %v7137 = vunpack.c.h.b16 %v6712
    %v7138 = vunpack.c.l.b16 %v6713
    %v7139 = vunpack.c.h.b16 %v6713
    %v7140 = vunpack.c.l.b16 %v6714
    %v7141 = vunpack.c.h.b16 %v6714
    %v7142 = vunpack.c.l.b16 %v6715
    %v7143 = vunpack.c.h.b16 %v6715
    %v7144 = vunpack.c.l.b16 %v6716
    %v7145 = vunpack.c.h.b16 %v6716
    %v7146 = vunpack.c.l.b16 %v6717
    %v7147 = vunpack.c.h.b16 %v6717
    %v7148 = vunpack.c.l.b16 %v6718
    %v7149 = vunpack.c.h.b16 %v6718
    %v7150 = vunpack.c.l.b16 %v6719
    %v7151 = vunpack.c.h.b16 %v6719
    %v7152 = vunpack.c.l.b16 %v6720
    %v7153 = vunpack.c.h.b16 %v6720
    %v7154 = vunpack.c.l.b16 %v6721
    %v7155 = vunpack.c.h.b16 %v6721
    %v7156 = vunpack.c.l.b16 %v6722
    %v7157 = vunpack.c.h.b16 %v6722
    %v7158 = vunpack.c.l.b16 %v6723
    %v7159 = vunpack.c.h.b16 %v6723
    %v7160 = vunpack.c.l.b16 %v6724
    %v7161 = vunpack.c.h.b16 %v6724
    %v7162 = vunpack.c.l.b16 %v6725
    %v7163 = vunpack.c.h.b16 %v6725
    %v7164 = vunpack.c.l.b16 %v6726
    %v7165 = vunpack.c.h.b16 %v6726
    %v7166 = vunpack.c.l.b16 %v6727
    %v7167 = vunpack.c.h.b16 %v6727
    %v7168 = vunpack.c.l.b16 %v6728
    %v7169 = vunpack.c.h.b16 %v6728
    %v7170 = vunpack.c.l.b16 %v6729
    %v7171 = vunpack.c.h.b16 %v6729
    %v7172 = vunpack.c.l.b16 %v6730
    %v7173 = vunpack.c.h.b16 %v6730
    %v7174 = vunpack.c.l.b16 %v6731
    %v7175 = vunpack.c.h.b16 %v6731
    %v7176 = vunpack.c.l.b16 %v6732
    %v7177 = vunpack.c.h.b16 %v6732
    %v7178 = vunpack.c.l.b16 %v6733
    %v7179 = vunpack.c.h.b16 %v6733
    %v7180 = vunpack.c.l.b16 %v6734
    %v7181 = vunpack.c.h.b16 %v6734
    %v7182 = vunpack.c.l.b16 %v6735
    %v7183 = vunpack.c.h.b16 %v6735
    %v7184 = vunpack.c.l.b16 %v6736
    %v7185 = vunpack.c.h.b16 %v6736
    %v7186 = vunpack.c.l.b16 %v6737
    %v7187 = vunpack.c.h.b16 %v6737
    %v7188 = vunpack.c.l.b16 %v6738
    %v7189 = vunpack.c.h.b16 %v6738
    %v7190 = vunpack.c.l.b16 %v6739
    %v7191 = vunpack.c.h.b16 %v6739
    %v7192 = vunpack.c.l.b16 %v6740
    %v7193 = vunpack.c.h.b16 %v6740
    %v7194 = vunpack.c.l.b16 %v6741
    %v7195 = vunpack.c.h.b16 %v6741
    %v7196 = vunpack.c.l.b16 %v6742
    %v7197 = vunpack.c.h.b16 %v6742
    %v7198 = vunpack.c.l.b16 %v6743
    %v7199 = vunpack.c.h.b16 %v6743
    %v7200 = vunpack.c.l.b16 %v6744
    %v7201 = vunpack.c.h.b16 %v6744
    %v7202 = vunpack.c.l.b16 %v6745
    %v7203 = vunpack.c.h.b16 %v6745
    %v7204 = vunpack.c.l.b16 %v6746
    %v7205 = vunpack.c.h.b16 %v6746
    %v7206 = vunpack.c.l.b16 %v6747
    %v7207 = vunpack.c.h.b16 %v6747
    %v7208 = vunpack.c.l.b16 %v6748
    %v7209 = vunpack.c.h.b16 %v6748
    %v7210 = vunpack.c.l.b16 %v6749
    %v7211 = vunpack.c.h.b16 %v6749
    %v7212 = vunpack.c.l.b16 %v6750
    %v7213 = vunpack.c.h.b16 %v6750
    %v7214 = vunpack.c.l.b16 %v6751
    %v7215 = vunpack.c.h.b16 %v6751
    %v7216 = vunpack.c.l.b16 %v6752
    %v7217 = vunpack.c.h.b16 %v6752
    %v7218 = vunpack.c.l.b16 %v6753
    %v7219 = vunpack.c.h.b16 %v6753
    %v7220 = vunpack.c.l.b16 %v6754
    %v7221 = vunpack.c.h.b16 %v6754
    %v7222 = vunpack.c.l.b16 %v6755
    %v7223 = vunpack.c.h.b16 %v6755
    %v7224 = vunpack.c.l.b16 %v6756
    %v7225 = vunpack.c.h.b16 %v6756
    %v7226 = vunpack.c.l.b16 %v6757
    %v7227 = vunpack.c.h.b16 %v6757
    %v7228 = vunpack.c.l.b16 %v6758
    %v7229 = vunpack.c.h.b16 %v6758
    %v7230 = vunpack.c.l.b16 %v6759
    %v7231 = vunpack.c.h.b16 %v6759
    %v7232 = vunpack.c.l.b16 %v6760
    %v7233 = vunpack.c.h.b16 %v6760
    %v7234 = vunpack.c.l.b16 %v6761
    %v7235 = vunpack.c.h.b16 %v6761
    %v7236 = vpack.c.b16 %v6996, %v6980
    %v7237 = vpack.c.b16 %v6997, %v6981
    %v7238 = vpack.c.b16 %v6998, %v6982
    %v7239 = vpack.c.b16 %v6999, %v6983
    %v7240 = vpack.c.b16 %v7000, %v6984
    %v7241 = vpack.c.b16 %v7001, %v6985
    %v7242 = vpack.c.b16 %v7002, %v6986
    %v7243 = vpack.c.b16 %v7003, %v6987
    %v7244 = vpack.c.b16 %v7004, %v6988
    %v7245 = vpack.c.b16 %v7005, %v6989
    %v7246 = vpack.c.b16 %v7006, %v6990
    %v7247 = vpack.c.b16 %v7007, %v6991
    %v7248 = vpack.c.b16 %v7008, %v6992
    %v7249 = vpack.c.b16 %v7009, %v6993
    %v7250 = vpack.c.b16 %v7010, %v6994
    %v7251 = vpack.c.b16 %v7011, %v6995
    %v7252 = vpack.c.b16 %v7028, %v7012
    %v7253 = vpack.c.b16 %v7029, %v7013
    %v7254 = vpack.c.b16 %v7030, %v7014
    %v7255 = vpack.c.b16 %v7031, %v7015
    %v7256 = vpack.c.b16 %v7032, %v7016
    %v7257 = vpack.c.b16 %v7033, %v7017
    %v7258 = vpack.c.b16 %v7034, %v7018
    %v7259 = vpack.c.b16 %v7035, %v7019
    %v7260 = vpack.c.b16 %v7036, %v7020
    %v7261 = vpack.c.b16 %v7037, %v7021
    %v7262 = vpack.c.b16 %v7038, %v7022
    %v7263 = vpack.c.b16 %v7039, %v7023
    %v7264 = vpack.c.b16 %v7040, %v7024
    %v7265 = vpack.c.b16 %v7041, %v7025
    %v7266 = vpack.c.b16 %v7042, %v7026
    %v7267 = vpack.c.b16 %v7043, %v7027
    %v7268 = vpack.c.b16 %v7060, %v7044
    %v7269 = vpack.c.b16 %v7061, %v7045
    %v7270 = vpack.c.b16 %v7062, %v7046
    %v7271 = vpack.c.b16 %v7063, %v7047
    %v7272 = vpack.c.b16 %v7064, %v7048
    %v7273 = vpack.c.b16 %v7065, %v7049
    %v7274 = vpack.c.b16 %v7066, %v7050
    %v7275 = vpack.c.b16 %v7067, %v7051
    %v7276 = vpack.c.b16 %v7068, %v7052
    %v7277 = vpack.c.b16 %v7069, %v7053
    %v7278 = vpack.c.b16 %v7070, %v7054
    %v7279 = vpack.c.b16 %v7071, %v7055
    %v7280 = vpack.c.b16 %v7072, %v7056
    %v7281 = vpack.c.b16 %v7073, %v7057
    %v7282 = vpack.c.b16 %v7074, %v7058
    %v7283 = vpack.c.b16 %v7075, %v7059
    %v7284 = vpack.c.b16 %v7092, %v7076
    %v7285 = vpack.c.b16 %v7093, %v7077
    %v7286 = vpack.c.b16 %v7094, %v7078
    %v7287 = vpack.c.b16 %v7095, %v7079
    %v7288 = vpack.c.b16 %v7096, %v7080
    %v7289 = vpack.c.b16 %v7097, %v7081
    %v7290 = vpack.c.b16 %v7098, %v7082
    %v7291 = vpack.c.b16 %v7099, %v7083
    %v7292 = vpack.c.b16 %v7100, %v7084
    %v7293 = vpack.c.b16 %v7101, %v7085
    %v7294 = vpack.c.b16 %v7102, %v7086
    %v7295 = vpack.c.b16 %v7103, %v7087
    %v7296 = vpack.c.b16 %v7104, %v7088
    %v7297 = vpack.c.b16 %v7105, %v7089
    %v7298 = vpack.c.b16 %v7106, %v7090
    %v7299 = vpack.c.b16 %v7107, %v7091
    %v7300 = vpack.c.b16 %v7124, %v7108
    %v7301 = vpack.c.b16 %v7125, %v7109
    %v7302 = vpack.c.b16 %v7126, %v7110
    %v7303 = vpack.c.b16 %v7127, %v7111
    %v7304 = vpack.c.b16 %v7128, %v7112
    %v7305 = vpack.c.b16 %v7129, %v7113
    %v7306 = vpack.c.b16 %v7130, %v7114
    %v7307 = vpack.c.b16 %v7131, %v7115
    %v7308 = vpack.c.b16 %v7132, %v7116
    %v7309 = vpack.c.b16 %v7133, %v7117
    %v7310 = vpack.c.b16 %v7134, %v7118
    %v7311 = vpack.c.b16 %v7135, %v7119
    %v7312 = vpack.c.b16 %v7136, %v7120
    %v7313 = vpack.c.b16 %v7137, %v7121
    %v7314 = vpack.c.b16 %v7138, %v7122
    %v7315 = vpack.c.b16 %v7139, %v7123
    %v7316 = vpack.c.b16 %v7156, %v7140
    %v7317 = vpack.c.b16 %v7157, %v7141
    %v7318 = vpack.c.b16 %v7158, %v7142
    %v7319 = vpack.c.b16 %v7159, %v7143
    %v7320 = vpack.c.b16 %v7160, %v7144
    %v7321 = vpack.c.b16 %v7161, %v7145
    %v7322 = vpack.c.b16 %v7162, %v7146
    %v7323 = vpack.c.b16 %v7163, %v7147
    %v7324 = vpack.c.b16 %v7164, %v7148
    %v7325 = vpack.c.b16 %v7165, %v7149
    %v7326 = vpack.c.b16 %v7166, %v7150
    %v7327 = vpack.c.b16 %v7167, %v7151
    %v7328 = vpack.c.b16 %v7168, %v7152
    %v7329 = vpack.c.b16 %v7169, %v7153
    %v7330 = vpack.c.b16 %v7170, %v7154
    %v7331 = vpack.c.b16 %v7171, %v7155
    %v7332 = vpack.c.b16 %v7188, %v7172
    %v7333 = vpack.c.b16 %v7189, %v7173
    %v7334 = vpack.c.b16 %v7190, %v7174
    %v7335 = vpack.c.b16 %v7191, %v7175
    %v7336 = vpack.c.b16 %v7192, %v7176
    %v7337 = vpack.c.b16 %v7193, %v7177
    %v7338 = vpack.c.b16 %v7194, %v7178
    %v7339 = vpack.c.b16 %v7195, %v7179
    %v7340 = vpack.c.b16 %v7196, %v7180
    %v7341 = vpack.c.b16 %v7197, %v7181
    %v7342 = vpack.c.b16 %v7198, %v7182
    %v7343 = vpack.c.b16 %v7199, %v7183
    %v7344 = vpack.c.b16 %v7200, %v7184
    %v7345 = vpack.c.b16 %v7201, %v7185
    %v7346 = vpack.c.b16 %v7202, %v7186
    %v7347 = vpack.c.b16 %v7203, %v7187
    %v7348 = vpack.c.b16 %v7220, %v7204
    %v7349 = vpack.c.b16 %v7221, %v7205
    %v7350 = vpack.c.b16 %v7222, %v7206
    %v7351 = vpack.c.b16 %v7223, %v7207
    %v7352 = vpack.c.b16 %v7224, %v7208
    %v7353 = vpack.c.b16 %v7225, %v7209
    %v7354 = vpack.c.b16 %v7226, %v7210
    %v7355 = vpack.c.b16 %v7227, %v7211
    %v7356 = vpack.c.b16 %v7228, %v7212
    %v7357 = vpack.c.b16 %v7229, %v7213
    %v7358 = vpack.c.b16 %v7230, %v7214
    %v7359 = vpack.c.b16 %v7231, %v7215
    %v7360 = vpack.c.b16 %v7232, %v7216
    %v7361 = vpack.c.b16 %v7233, %v7217
    %v7362 = vpack.c.b16 %v7234, %v7218
    %v7363 = vpack.c.b16 %v7235, %v7219
    %7492 = vmatprep.subr.bf16.mxu0 %v7237
    %7493 = vmatpush1.bf16.msra.mxu0 %v7236
    %7494 = vmatprep.subr.bf16.mxu0 %v7253
    %7495 = vmatpush1.bf16.msra.mxu0 %v7252
    %7496 = vmatprep.subr.bf16.mxu0 %v7269
    %7497 = vmatpush1.bf16.msra.mxu0 %v7268
    %7498 = vmatprep.subr.bf16.mxu0 %v7285
    %7499 = vmatpush1.bf16.msra.mxu0 %v7284
    %7500 = vmatprep.subr.bf16.mxu0 %v7301
    %7501 = vmatpush1.bf16.msra.mxu0 %v7300
    %7502 = vmatprep.subr.bf16.mxu0 %v7317
    %7503 = vmatpush1.bf16.msra.mxu0 %v7316
    %7504 = vmatprep.subr.bf16.mxu0 %v7333
    %7505 = vmatpush1.bf16.msra.mxu0 %v7332
    %7506 = vmatprep.subr.bf16.mxu0 %v7349
    %7507 = vmatpush1.bf16.msra.mxu0 %v7348
    %7508 = vmatprep.subr.bf16.mxu0 0
    %7509 = vmatpush1.bf16.msra.mxu0 0
    %7510 = vmatprep.subr.bf16.mxu0 0
    %7511 = vmatpush1.bf16.msra.mxu0 0
    %7512 = vmatprep.subr.bf16.mxu0 0
    %7513 = vmatpush1.bf16.msra.mxu0 0
    %7514 = vmatprep.subr.bf16.mxu0 0
    %7515 = vmatpush1.bf16.msra.mxu0 0
    %7516 = vmatprep.subr.bf16.mxu0 0
    %7517 = vmatpush1.bf16.msra.mxu0 0
    %7518 = vmatprep.subr.bf16.mxu0 0
    %7519 = vmatpush1.bf16.msra.mxu0 0
    %7520 = vmatprep.subr.bf16.mxu0 0
    %7521 = vmatpush1.bf16.msra.mxu0 0
    %7522 = vmatprep.subr.bf16.mxu0 0
    %7523 = vmatpush1.bf16.msra.mxu0 0
    %7524 = vmatprep.mubr.bf16.mxu0 0
    %7525 = vmatmul.mubr.bf16.gmra.mrb[0].mxu0 %v6633
    %v7526 = vpop.f32.mrb[0].mxu0
    %v7527 = vadd.f32 %v6775, %v7526
    %v7528 = vpop.f32.mrb[0].mxu0
    %v7529 = vadd.f32 %v6779, %v7528
    %v7530 = vpop.f32.mrb[0].mxu0
    %v7531 = vpop.f32.mrb[0].mxu0
    %7532 = vdwg.mxu0
    %7533 = vmatprep.subr.bf16.mxu0 %v7239
    %7534 = vmatpush1.bf16.msra.mxu0 %v7238
    %7535 = vmatprep.subr.bf16.mxu0 %v7255
    %7536 = vmatpush1.bf16.msra.mxu0 %v7254
    %7537 = vmatprep.subr.bf16.mxu0 %v7271
    %7538 = vmatpush1.bf16.msra.mxu0 %v7270
    %7539 = vmatprep.subr.bf16.mxu0 %v7287
    %7540 = vmatpush1.bf16.msra.mxu0 %v7286
    %7541 = vmatprep.subr.bf16.mxu0 %v7303
    %7542 = vmatpush1.bf16.msra.mxu0 %v7302
    %7543 = vmatprep.subr.bf16.mxu0 %v7319
    %7544 = vmatpush1.bf16.msra.mxu0 %v7318
    %7545 = vmatprep.subr.bf16.mxu0 %v7335
    %7546 = vmatpush1.bf16.msra.mxu0 %v7334
    %7547 = vmatprep.subr.bf16.mxu0 %v7351
    %7548 = vmatpush1.bf16.msra.mxu0 %v7350
    %7549 = vmatprep.subr.bf16.mxu0 0
    %7550 = vmatpush1.bf16.msra.mxu0 0
    %7551 = vmatprep.subr.bf16.mxu0 0
    %7552 = vmatpush1.bf16.msra.mxu0 0
    %7553 = vmatprep.subr.bf16.mxu0 0
    %7554 = vmatpush1.bf16.msra.mxu0 0
    %7555 = vmatprep.subr.bf16.mxu0 0
    %7556 = vmatpush1.bf16.msra.mxu0 0
    %7557 = vmatprep.subr.bf16.mxu0 0
    %7558 = vmatpush1.bf16.msra.mxu0 0
    %7559 = vmatprep.subr.bf16.mxu0 0
    %7560 = vmatpush1.bf16.msra.mxu0 0
    %7561 = vmatprep.subr.bf16.mxu0 0
    %7562 = vmatpush1.bf16.msra.mxu0 0
    %7563 = vmatprep.subr.bf16.mxu0 0
    %7564 = vmatpush1.bf16.msra.mxu0 0
    %7565 = vmatprep.mubr.bf16.mxu0 0
    %7566 = vmatmul.mubr.bf16.gmra.mrb[0].mxu0 %v6633
    %v7567 = vpop.f32.mrb[0].mxu0
    %v7568 = vadd.f32 %v6783, %v7567
    %v7569 = vpop.f32.mrb[0].mxu0
    %v7570 = vadd.f32 %v6787, %v7569
    %v7571 = vpop.f32.mrb[0].mxu0
    %v7572 = vpop.f32.mrb[0].mxu0
    %7573 = vdwg.mxu0
    %7574 = vmatprep.subr.bf16.mxu0 %v7241
    %7575 = vmatpush1.bf16.msra.mxu0 %v7240
    %7576 = vmatprep.subr.bf16.mxu0 %v7257
    %7577 = vmatpush1.bf16.msra.mxu0 %v7256
    %7578 = vmatprep.subr.bf16.mxu0 %v7273
    %7579 = vmatpush1.bf16.msra.mxu0 %v7272
    %7580 = vmatprep.subr.bf16.mxu0 %v7289
    %7581 = vmatpush1.bf16.msra.mxu0 %v7288
    %7582 = vmatprep.subr.bf16.mxu0 %v7305
    %7583 = vmatpush1.bf16.msra.mxu0 %v7304
    %7584 = vmatprep.subr.bf16.mxu0 %v7321
    %7585 = vmatpush1.bf16.msra.mxu0 %v7320
    %7586 = vmatprep.subr.bf16.mxu0 %v7337
    %7587 = vmatpush1.bf16.msra.mxu0 %v7336
    %7588 = vmatprep.subr.bf16.mxu0 %v7353
    %7589 = vmatpush1.bf16.msra.mxu0 %v7352
    %7590 = vmatprep.subr.bf16.mxu0 0
    %7591 = vmatpush1.bf16.msra.mxu0 0
    %7592 = vmatprep.subr.bf16.mxu0 0
    %7593 = vmatpush1.bf16.msra.mxu0 0
    %7594 = vmatprep.subr.bf16.mxu0 0
    %7595 = vmatpush1.bf16.msra.mxu0 0
    %7596 = vmatprep.subr.bf16.mxu0 0
    %7597 = vmatpush1.bf16.msra.mxu0 0
    %7598 = vmatprep.subr.bf16.mxu0 0
    %7599 = vmatpush1.bf16.msra.mxu0 0
    %7600 = vmatprep.subr.bf16.mxu0 0
    %7601 = vmatpush1.bf16.msra.mxu0 0
    %7602 = vmatprep.subr.bf16.mxu0 0
    %7603 = vmatpush1.bf16.msra.mxu0 0
    %7604 = vmatprep.subr.bf16.mxu0 0
    %7605 = vmatpush1.bf16.msra.mxu0 0
    %7606 = vmatprep.mubr.bf16.mxu0 0
    %7607 = vmatmul.mubr.bf16.gmra.mrb[0].mxu0 %v6633
    %v7608 = vpop.f32.mrb[0].mxu0
    %v7609 = vadd.f32 %v6791, %v7608
    %v7610 = vpop.f32.mrb[0].mxu0
    %v7611 = vadd.f32 %v6795, %v7610
    %v7612 = vpop.f32.mrb[0].mxu0
    %v7613 = vpop.f32.mrb[0].mxu0
    %7614 = vdwg.mxu0
    %7615 = vmatprep.subr.bf16.mxu0 %v7243
    %7616 = vmatpush1.bf16.msra.mxu0 %v7242
    %7617 = vmatprep.subr.bf16.mxu0 %v7259
    %7618 = vmatpush1.bf16.msra.mxu0 %v7258
    %7619 = vmatprep.subr.bf16.mxu0 %v7275
    %7620 = vmatpush1.bf16.msra.mxu0 %v7274
    %7621 = vmatprep.subr.bf16.mxu0 %v7291
    %7622 = vmatpush1.bf16.msra.mxu0 %v7290
    %7623 = vmatprep.subr.bf16.mxu0 %v7307
    %7624 = vmatpush1.bf16.msra.mxu0 %v7306
    %7625 = vmatprep.subr.bf16.mxu0 %v7323
    %7626 = vmatpush1.bf16.msra.mxu0 %v7322
    %7627 = vmatprep.subr.bf16.mxu0 %v7339
    %7628 = vmatpush1.bf16.msra.mxu0 %v7338
    %7629 = vmatprep.subr.bf16.mxu0 %v7355
    %7630 = vmatpush1.bf16.msra.mxu0 %v7354
    %7631 = vmatprep.subr.bf16.mxu0 0
    %7632 = vmatpush1.bf16.msra.mxu0 0
    %7633 = vmatprep.subr.bf16.mxu0 0
    %7634 = vmatpush1.bf16.msra.mxu0 0
    %7635 = vmatprep.subr.bf16.mxu0 0
    %7636 = vmatpush1.bf16.msra.mxu0 0
    %7637 = vmatprep.subr.bf16.mxu0 0
    %7638 = vmatpush1.bf16.msra.mxu0 0
    %7639 = vmatprep.subr.bf16.mxu0 0
    %7640 = vmatpush1.bf16.msra.mxu0 0
    %7641 = vmatprep.subr.bf16.mxu0 0
    %7642 = vmatpush1.bf16.msra.mxu0 0
    %7643 = vmatprep.subr.bf16.mxu0 0
    %7644 = vmatpush1.bf16.msra.mxu0 0
    %7645 = vmatprep.subr.bf16.mxu0 0
    %7646 = vmatpush1.bf16.msra.mxu0 0
    %7647 = vmatprep.mubr.bf16.mxu0 0
    %7648 = vmatmul.mubr.bf16.gmra.mrb[0].mxu0 %v6633
    %v7649 = vpop.f32.mrb[0].mxu0
    %v7650 = vadd.f32 %v6799, %v7649
    %v7651 = vpop.f32.mrb[0].mxu0
    %v7652 = vadd.f32 %v6803, %v7651
    %v7653 = vpop.f32.mrb[0].mxu0
    %v7654 = vpop.f32.mrb[0].mxu0
    %7655 = vdwg.mxu0
    %7656 = vmatprep.subr.bf16.mxu0 %v7245
    %7657 = vmatpush1.bf16.msra.mxu0 %v7244
    %7658 = vmatprep.subr.bf16.mxu0 %v7261
    %7659 = vmatpush1.bf16.msra.mxu0 %v7260
    %7660 = vmatprep.subr.bf16.mxu0 %v7277
    %7661 = vmatpush1.bf16.msra.mxu0 %v7276
    %7662 = vmatprep.subr.bf16.mxu0 %v7293
    %7663 = vmatpush1.bf16.msra.mxu0 %v7292
    %7664 = vmatprep.subr.bf16.mxu0 %v7309
    %7665 = vmatpush1.bf16.msra.mxu0 %v7308
    %7666 = vmatprep.subr.bf16.mxu0 %v7325
    %7667 = vmatpush1.bf16.msra.mxu0 %v7324
    %7668 = vmatprep.subr.bf16.mxu0 %v7341
    %7669 = vmatpush1.bf16.msra.mxu0 %v7340
    %7670 = vmatprep.subr.bf16.mxu0 %v7357
    %7671 = vmatpush1.bf16.msra.mxu0 %v7356
    %7672 = vmatprep.subr.bf16.mxu0 0
    %7673 = vmatpush1.bf16.msra.mxu0 0
    %7674 = vmatprep.subr.bf16.mxu0 0
    %7675 = vmatpush1.bf16.msra.mxu0 0
    %7676 = vmatprep.subr.bf16.mxu0 0
    %7677 = vmatpush1.bf16.msra.mxu0 0
    %7678 = vmatprep.subr.bf16.mxu0 0
    %7679 = vmatpush1.bf16.msra.mxu0 0
    %7680 = vmatprep.subr.bf16.mxu0 0
    %7681 = vmatpush1.bf16.msra.mxu0 0
    %7682 = vmatprep.subr.bf16.mxu0 0
    %7683 = vmatpush1.bf16.msra.mxu0 0
    %7684 = vmatprep.subr.bf16.mxu0 0
    %7685 = vmatpush1.bf16.msra.mxu0 0
    %7686 = vmatprep.subr.bf16.mxu0 0
    %7687 = vmatpush1.bf16.msra.mxu0 0
    %7688 = vmatprep.mubr.bf16.mxu0 0
    %7689 = vmatmul.mubr.bf16.gmra.mrb[0].mxu0 %v6633
    %v7690 = vpop.f32.mrb[0].mxu0
    %v7691 = vadd.f32 %v6807, %v7690
    %v7692 = vpop.f32.mrb[0].mxu0
    %v7693 = vadd.f32 %v6811, %v7692
    %v7694 = vpop.f32.mrb[0].mxu0
    %v7695 = vpop.f32.mrb[0].mxu0
    %7696 = vdwg.mxu0
    %7697 = vmatprep.subr.bf16.mxu0 %v7247
    %7698 = vmatpush1.bf16.msra.mxu0 %v7246
    %7699 = vmatprep.subr.bf16.mxu0 %v7263
    %7700 = vmatpush1.bf16.msra.mxu0 %v7262
    %7701 = vmatprep.subr.bf16.mxu0 %v7279
    %7702 = vmatpush1.bf16.msra.mxu0 %v7278
    %7703 = vmatprep.subr.bf16.mxu0 %v7295
    %7704 = vmatpush1.bf16.msra.mxu0 %v7294
    %7705 = vmatprep.subr.bf16.mxu0 %v7311
    %7706 = vmatpush1.bf16.msra.mxu0 %v7310
    %7707 = vmatprep.subr.bf16.mxu0 %v7327
    %7708 = vmatpush1.bf16.msra.mxu0 %v7326
    %7709 = vmatprep.subr.bf16.mxu0 %v7343
    %7710 = vmatpush1.bf16.msra.mxu0 %v7342
    %7711 = vmatprep.subr.bf16.mxu0 %v7359
    %7712 = vmatpush1.bf16.msra.mxu0 %v7358
    %7713 = vmatprep.subr.bf16.mxu0 0
    %7714 = vmatpush1.bf16.msra.mxu0 0
    %7715 = vmatprep.subr.bf16.mxu0 0
    %7716 = vmatpush1.bf16.msra.mxu0 0
    %7717 = vmatprep.subr.bf16.mxu0 0
    %7718 = vmatpush1.bf16.msra.mxu0 0
    %7719 = vmatprep.subr.bf16.mxu0 0
    %7720 = vmatpush1.bf16.msra.mxu0 0
    %7721 = vmatprep.subr.bf16.mxu0 0
    %7722 = vmatpush1.bf16.msra.mxu0 0
    %7723 = vmatprep.subr.bf16.mxu0 0
    %7724 = vmatpush1.bf16.msra.mxu0 0
    %7725 = vmatprep.subr.bf16.mxu0 0
    %7726 = vmatpush1.bf16.msra.mxu0 0
    %7727 = vmatprep.subr.bf16.mxu0 0
    %7728 = vmatpush1.bf16.msra.mxu0 0
    %7729 = vmatprep.mubr.bf16.mxu0 0
    %7730 = vmatmul.mubr.bf16.gmra.mrb[0].mxu0 %v6633
    %v7731 = vpop.f32.mrb[0].mxu0
    %v7732 = vadd.f32 %v6815, %v7731
    %v7733 = vpop.f32.mrb[0].mxu0
    %v7734 = vadd.f32 %v6819, %v7733
    %v7735 = vpop.f32.mrb[0].mxu0
    %v7736 = vpop.f32.mrb[0].mxu0
    %7737 = vdwg.mxu0
    %7738 = vmatprep.subr.bf16.mxu0 %v7249
    %7739 = vmatpush1.bf16.msra.mxu0 %v7248
    %7740 = vmatprep.subr.bf16.mxu0 %v7265
    %7741 = vmatpush1.bf16.msra.mxu0 %v7264
    %7742 = vmatprep.subr.bf16.mxu0 %v7281
    %7743 = vmatpush1.bf16.msra.mxu0 %v7280
    %7744 = vmatprep.subr.bf16.mxu0 %v7297
    %7745 = vmatpush1.bf16.msra.mxu0 %v7296
    %7746 = vmatprep.subr.bf16.mxu0 %v7313
    %7747 = vmatpush1.bf16.msra.mxu0 %v7312
    %7748 = vmatprep.subr.bf16.mxu0 %v7329
    %7749 = vmatpush1.bf16.msra.mxu0 %v7328
    %7750 = vmatprep.subr.bf16.mxu0 %v7345
    %7751 = vmatpush1.bf16.msra.mxu0 %v7344
    %7752 = vmatprep.subr.bf16.mxu0 %v7361
    %7753 = vmatpush1.bf16.msra.mxu0 %v7360
    %7754 = vmatprep.subr.bf16.mxu0 0
    %7755 = vmatpush1.bf16.msra.mxu0 0
    %7756 = vmatprep.subr.bf16.mxu0 0
    %7757 = vmatpush1.bf16.msra.mxu0 0
    %7758 = vmatprep.subr.bf16.mxu0 0
    %7759 = vmatpush1.bf16.msra.mxu0 0
    %7760 = vmatprep.subr.bf16.mxu0 0
    %7761 = vmatpush1.bf16.msra.mxu0 0
    %7762 = vmatprep.subr.bf16.mxu0 0
    %7763 = vmatpush1.bf16.msra.mxu0 0
    %7764 = vmatprep.subr.bf16.mxu0 0
    %7765 = vmatpush1.bf16.msra.mxu0 0
    %7766 = vmatprep.subr.bf16.mxu0 0
    %7767 = vmatpush1.bf16.msra.mxu0 0
    %7768 = vmatprep.subr.bf16.mxu0 0
    %7769 = vmatpush1.bf16.msra.mxu0 0
    %7770 = vmatprep.mubr.bf16.mxu0 0
    %7771 = vmatmul.mubr.bf16.gmra.mrb[0].mxu0 %v6633
    %v7772 = vpop.f32.mrb[0].mxu0
    %v7773 = vadd.f32 %v6823, %v7772
    %v7774 = vpop.f32.mrb[0].mxu0
    %v7775 = vadd.f32 %v6827, %v7774
    %v7776 = vpop.f32.mrb[0].mxu0
    %v7777 = vpop.f32.mrb[0].mxu0
    %7778 = vdwg.mxu0
    %7779 = vmatprep.subr.bf16.mxu0 %v7251
    %7780 = vmatpush1.bf16.msra.mxu0 %v7250
    %7781 = vmatprep.subr.bf16.mxu0 %v7267
    %7782 = vmatpush1.bf16.msra.mxu0 %v7266
    %7783 = vmatprep.subr.bf16.mxu0 %v7283
    %7784 = vmatpush1.bf16.msra.mxu0 %v7282
    %7785 = vmatprep.subr.bf16.mxu0 %v7299
    %7786 = vmatpush1.bf16.msra.mxu0 %v7298
    %7787 = vmatprep.subr.bf16.mxu0 %v7315
    %7788 = vmatpush1.bf16.msra.mxu0 %v7314
    %7789 = vmatprep.subr.bf16.mxu0 %v7331
    %7790 = vmatpush1.bf16.msra.mxu0 %v7330
    %7791 = vmatprep.subr.bf16.mxu0 %v7347
    %7792 = vmatpush1.bf16.msra.mxu0 %v7346
    %7793 = vmatprep.subr.bf16.mxu0 %v7363
    %7794 = vmatpush1.bf16.msra.mxu0 %v7362
    %7795 = vmatprep.subr.bf16.mxu0 0
    %7796 = vmatpush1.bf16.msra.mxu0 0
    %7797 = vmatprep.subr.bf16.mxu0 0
    %7798 = vmatpush1.bf16.msra.mxu0 0
    %7799 = vmatprep.subr.bf16.mxu0 0
    %7800 = vmatpush1.bf16.msra.mxu0 0
    %7801 = vmatprep.subr.bf16.mxu0 0
    %7802 = vmatpush1.bf16.msra.mxu0 0
    %7803 = vmatprep.subr.bf16.mxu0 0
    %7804 = vmatpush1.bf16.msra.mxu0 0
    %7805 = vmatprep.subr.bf16.mxu0 0
    %7806 = vmatpush1.bf16.msra.mxu0 0
    %7807 = vmatprep.subr.bf16.mxu0 0
    %7808 = vmatpush1.bf16.msra.mxu0 0
    %7809 = vmatprep.subr.bf16.mxu0 0
    %7810 = vmatpush1.bf16.msra.mxu0 0
    %7811 = vmatprep.mubr.bf16.mxu0 0
    %7812 = vmatmul.mubr.bf16.gmra.mrb[0].mxu0 %v6633
    %v7813 = vpop.f32.mrb[0].mxu0
    %v7814 = vadd.f32 %v6831, %v7813
    %v7815 = vpop.f32.mrb[0].mxu0
    %v7816 = vadd.f32 %v6835, %v7815
    %v7817 = vpop.f32.mrb[0].mxu0
    %v7818 = vpop.f32.mrb[0].mxu0
    %7819 = vdwg.mxu0
    %v7820 = vmax.f32 %v7527, 0.0
    %v7821 = vmax.f32 %v7529, 0.0
    %v7822 = vmax.f32 %v7568, 0.0
    %v7823 = vmax.f32 %v7570, 0.0
    %v7824 = vmax.f32 %v7609, 0.0
    %v7825 = vmax.f32 %v7611, 0.0
    %v7826 = vmax.f32 %v7650, 0.0
    %v7827 = vmax.f32 %v7652, 0.0
    %v7828 = vmax.f32 %v7691, 0.0
    %v7829 = vmax.f32 %v7693, 0.0
    %v7830 = vmax.f32 %v7732, 0.0
    %v7831 = vmax.f32 %v7734, 0.0
    %v7832 = vmax.f32 %v7773, 0.0
    %v7833 = vmax.f32 %v7775, 0.0
    %v7834 = vmax.f32 %v7814, 0.0
    %v7835 = vmax.f32 %v7816, 0.0
    %v7836 = vpack.c.bf16 %v7820, %v7820
    %v7837 = vpack.c.bf16 %v7821, %v7821
    %v7838 = vpack.c.bf16 %v7822, %v7822
    %v7839 = vpack.c.bf16 %v7823, %v7823
    %v7840 = vpack.c.bf16 %v7824, %v7824
    %v7841 = vpack.c.bf16 %v7825, %v7825
    %v7842 = vpack.c.bf16 %v7826, %v7826
    %v7843 = vpack.c.bf16 %v7827, %v7827
    %v7844 = vpack.c.bf16 %v7828, %v7828
    %v7845 = vpack.c.bf16 %v7829, %v7829
    %v7846 = vpack.c.bf16 %v7830, %v7830
    %v7847 = vpack.c.bf16 %v7831, %v7831
    %v7848 = vpack.c.bf16 %v7832, %v7832
    %v7849 = vpack.c.bf16 %v7833, %v7833
    %v7850 = vpack.c.bf16 %v7834, %v7834
    %v7851 = vpack.c.bf16 %v7835, %v7835
    %v7852 = vld [vmem:[#allocation13] sm:$0xff]
    %v7853 = vld [vmem:[#allocation13 + $0x8] sm:$0xff]
    %v7854 = vld [vmem:[#allocation13 + $0x10] sm:$0xff]
    %v7855 = vld [vmem:[#allocation13 + $0x18] sm:$0xff]
    %v7856 = vld [vmem:[#allocation13 + $0x20] sm:$0xff]
    %v7857 = vld [vmem:[#allocation13 + $0x28] sm:$0xff]
    %v7858 = vld [vmem:[#allocation13 + $0x30] sm:$0xff]
    %v7859 = vld [vmem:[#allocation13 + $0x38] sm:$0xff]
    %v7860 = vld [vmem:[#allocation13 + $0x40] sm:$0xff]
    %v7861 = vld [vmem:[#allocation13 + $0x48] sm:$0xff]
    %v7862 = vld [vmem:[#allocation13 + $0x50] sm:$0xff]
    %v7863 = vld [vmem:[#allocation13 + $0x58] sm:$0xff]
    %v7864 = vld [vmem:[#allocation13 + $0x60] sm:$0xff]
    %v7865 = vld [vmem:[#allocation13 + $0x68] sm:$0xff]
    %v7866 = vld [vmem:[#allocation13 + $0x70] sm:$0xff]
    %v7867 = vld [vmem:[#allocation13 + $0x78] sm:$0xff]
    %v7868 = vld [vmem:[#allocation13 + $0x80] sm:$0xff]
    %v7869 = vld [vmem:[#allocation13 + $0x88] sm:$0xff]
    %v7870 = vld [vmem:[#allocation13 + $0x90] sm:$0xff]
    %v7871 = vld [vmem:[#allocation13 + $0x98] sm:$0xff]
    %v7872 = vld [vmem:[#allocation13 + $0xa0] sm:$0xff]
    %v7873 = vld [vmem:[#allocation13 + $0xa8] sm:$0xff]
    %v7874 = vld [vmem:[#allocation13 + $0xb0] sm:$0xff]
    %v7875 = vld [vmem:[#allocation13 + $0xb8] sm:$0xff]
    %v7876 = vld [vmem:[#allocation13 + $0xc0] sm:$0xff]
    %v7877 = vld [vmem:[#allocation13 + $0xc8] sm:$0xff]
    %v7878 = vld [vmem:[#allocation13 + $0xd0] sm:$0xff]
    %v7879 = vld [vmem:[#allocation13 + $0xd8] sm:$0xff]
    %v7880 = vld [vmem:[#allocation13 + $0xe0] sm:$0xff]
    %v7881 = vld [vmem:[#allocation13 + $0xe8] sm:$0xff]
    %v7882 = vld [vmem:[#allocation13 + $0xf0] sm:$0xff]
    %v7883 = vld [vmem:[#allocation13 + $0xf8] sm:$0xff]
    %v7884 = vld [vmem:[#allocation13 + $0x100] sm:$0xff]
    %v7885 = vld [vmem:[#allocation13 + $0x108] sm:$0xff]
    %v7886 = vld [vmem:[#allocation13 + $0x110] sm:$0xff]
    %v7887 = vld [vmem:[#allocation13 + $0x118] sm:$0xff]
    %v7888 = vld [vmem:[#allocation13 + $0x120] sm:$0xff]
    %v7889 = vld [vmem:[#allocation13 + $0x128] sm:$0xff]
    %v7890 = vld [vmem:[#allocation13 + $0x130] sm:$0xff]
    %v7891 = vld [vmem:[#allocation13 + $0x138] sm:$0xff]
    %v7892 = vld [vmem:[#allocation13 + $0x140] sm:$0xff]
    %v7893 = vld [vmem:[#allocation13 + $0x148] sm:$0xff]
    %v7894 = vld [vmem:[#allocation13 + $0x150] sm:$0xff]
    %v7895 = vld [vmem:[#allocation13 + $0x158] sm:$0xff]
    %v7896 = vld [vmem:[#allocation13 + $0x160] sm:$0xff]
    %v7897 = vld [vmem:[#allocation13 + $0x168] sm:$0xff]
    %v7898 = vld [vmem:[#allocation13 + $0x170] sm:$0xff]
    %v7899 = vld [vmem:[#allocation13 + $0x178] sm:$0xff]
    %v7900 = vld [vmem:[#allocation13 + $0x180] sm:$0xff]
    %v7901 = vld [vmem:[#allocation13 + $0x188] sm:$0xff]
    %v7902 = vld [vmem:[#allocation13 + $0x190] sm:$0xff]
    %v7903 = vld [vmem:[#allocation13 + $0x198] sm:$0xff]
    %v7904 = vld [vmem:[#allocation13 + $0x1a0] sm:$0xff]
    %v7905 = vld [vmem:[#allocation13 + $0x1a8] sm:$0xff]
    %v7906 = vld [vmem:[#allocation13 + $0x1b0] sm:$0xff]
    %v7907 = vld [vmem:[#allocation13 + $0x1b8] sm:$0xff]
    %v7908 = vld [vmem:[#allocation13 + $0x1c0] sm:$0xff]
    %v7909 = vld [vmem:[#allocation13 + $0x1c8] sm:$0xff]
    %v7910 = vld [vmem:[#allocation13 + $0x1d0] sm:$0xff]
    %v7911 = vld [vmem:[#allocation13 + $0x1d8] sm:$0xff]
    %v7912 = vld [vmem:[#allocation13 + $0x1e0] sm:$0xff]
    %v7913 = vld [vmem:[#allocation13 + $0x1e8] sm:$0xff]
    %v7914 = vld [vmem:[#allocation13 + $0x1f0] sm:$0xff]
    %v7915 = vld [vmem:[#allocation13 + $0x1f8] sm:$0xff]
    %v7916 = vld [vmem:[#allocation13 + $0x200] sm:$0xff]
    %v7917 = vld [vmem:[#allocation13 + $0x208] sm:$0xff]
    %v7918 = vld [vmem:[#allocation13 + $0x210] sm:$0xff]
    %v7919 = vld [vmem:[#allocation13 + $0x218] sm:$0xff]
    %v7920 = vld [vmem:[#allocation13 + $0x220] sm:$0xff]
    %v7921 = vld [vmem:[#allocation13 + $0x228] sm:$0xff]
    %v7922 = vld [vmem:[#allocation13 + $0x230] sm:$0xff]
    %v7923 = vld [vmem:[#allocation13 + $0x238] sm:$0xff]
    %v7924 = vld [vmem:[#allocation13 + $0x240] sm:$0xff]
    %v7925 = vld [vmem:[#allocation13 + $0x248] sm:$0xff]
    %v7926 = vld [vmem:[#allocation13 + $0x250] sm:$0xff]
    %v7927 = vld [vmem:[#allocation13 + $0x258] sm:$0xff]
    %v7928 = vld [vmem:[#allocation13 + $0x260] sm:$0xff]
    %v7929 = vld [vmem:[#allocation13 + $0x268] sm:$0xff]
    %v7930 = vld [vmem:[#allocation13 + $0x270] sm:$0xff]
    %v7931 = vld [vmem:[#allocation13 + $0x278] sm:$0xff]
    %v7932 = vld [vmem:[#allocation13 + $0x280] sm:$0xff]
    %v7933 = vld [vmem:[#allocation13 + $0x288] sm:$0xff]
    %v7934 = vld [vmem:[#allocation13 + $0x290] sm:$0xff]
    %v7935 = vld [vmem:[#allocation13 + $0x298] sm:$0xff]
    %v7936 = vld [vmem:[#allocation13 + $0x2a0] sm:$0xff]
    %v7937 = vld [vmem:[#allocation13 + $0x2a8] sm:$0xff]
    %v7938 = vld [vmem:[#allocation13 + $0x2b0] sm:$0xff]
    %v7939 = vld [vmem:[#allocation13 + $0x2b8] sm:$0xff]
    %v7940 = vld [vmem:[#allocation13 + $0x2c0] sm:$0xff]
    %v7941 = vld [vmem:[#allocation13 + $0x2c8] sm:$0xff]
    %v7942 = vld [vmem:[#allocation13 + $0x2d0] sm:$0xff]
    %v7943 = vld [vmem:[#allocation13 + $0x2d8] sm:$0xff]
    %v7944 = vld [vmem:[#allocation13 + $0x2e0] sm:$0xff]
    %v7945 = vld [vmem:[#allocation13 + $0x2e8] sm:$0xff]
    %v7946 = vld [vmem:[#allocation13 + $0x2f0] sm:$0xff]
    %v7947 = vld [vmem:[#allocation13 + $0x2f8] sm:$0xff]
    %v7948 = vld [vmem:[#allocation13 + $0x300] sm:$0xff]
    %v7949 = vld [vmem:[#allocation13 + $0x308] sm:$0xff]
    %v7950 = vld [vmem:[#allocation13 + $0x310] sm:$0xff]
    %v7951 = vld [vmem:[#allocation13 + $0x318] sm:$0xff]
    %v7952 = vld [vmem:[#allocation13 + $0x320] sm:$0xff]
    %v7953 = vld [vmem:[#allocation13 + $0x328] sm:$0xff]
    %v7954 = vld [vmem:[#allocation13 + $0x330] sm:$0xff]
    %v7955 = vld [vmem:[#allocation13 + $0x338] sm:$0xff]
    %v7956 = vld [vmem:[#allocation13 + $0x340] sm:$0xff]
    %v7957 = vld [vmem:[#allocation13 + $0x348] sm:$0xff]
    %v7958 = vld [vmem:[#allocation13 + $0x350] sm:$0xff]
    %v7959 = vld [vmem:[#allocation13 + $0x358] sm:$0xff]
    %v7960 = vld [vmem:[#allocation13 + $0x360] sm:$0xff]
    %v7961 = vld [vmem:[#allocation13 + $0x368] sm:$0xff]
    %v7962 = vld [vmem:[#allocation13 + $0x370] sm:$0xff]
    %v7963 = vld [vmem:[#allocation13 + $0x378] sm:$0xff]
    %v7964 = vld [vmem:[#allocation13 + $0x380] sm:$0xff]
    %v7965 = vld [vmem:[#allocation13 + $0x388] sm:$0xff]
    %v7966 = vld [vmem:[#allocation13 + $0x390] sm:$0xff]
    %v7967 = vld [vmem:[#allocation13 + $0x398] sm:$0xff]
    %v7968 = vld [vmem:[#allocation13 + $0x3a0] sm:$0xff]
    %v7969 = vld [vmem:[#allocation13 + $0x3a8] sm:$0xff]
    %v7970 = vld [vmem:[#allocation13 + $0x3b0] sm:$0xff]
    %v7971 = vld [vmem:[#allocation13 + $0x3b8] sm:$0xff]
    %v7972 = vld [vmem:[#allocation13 + $0x3c0] sm:$0xff]
    %v7973 = vld [vmem:[#allocation13 + $0x3c8] sm:$0xff]
    %v7974 = vld [vmem:[#allocation13 + $0x3d0] sm:$0xff]
    %v7975 = vld [vmem:[#allocation13 + $0x3d8] sm:$0xff]
    %v7976 = vld [vmem:[#allocation13 + $0x3e0] sm:$0xff]
    %v7977 = vld [vmem:[#allocation13 + $0x3e8] sm:$0xff]
    %v7978 = vld [vmem:[#allocation13 + $0x3f0] sm:$0xff]
    %v7979 = vld [vmem:[#allocation13 + $0x3f8] sm:$0xff]
    %v7980 = vld [vmem:[#allocation13 + $0x400] sm:$0xff]
    %v7981 = vld [vmem:[#allocation13 + $0x408] sm:$0xff]
    %v7982 = vld [vmem:[#allocation13 + $0x410] sm:$0xff]
    %v7983 = vld [vmem:[#allocation13 + $0x418] sm:$0xff]
    %v7984 = vld [vmem:[#allocation13 + $0x420] sm:$0xff]
    %v7985 = vld [vmem:[#allocation13 + $0x428] sm:$0xff]
    %v7986 = vld [vmem:[#allocation13 + $0x430] sm:$0xff]
    %v7987 = vld [vmem:[#allocation13 + $0x438] sm:$0xff]
    %v7988 = vld [vmem:[#allocation13 + $0x440] sm:$0xff]
    %v7989 = vld [vmem:[#allocation13 + $0x448] sm:$0xff]
    %v7990 = vld [vmem:[#allocation13 + $0x450] sm:$0xff]
    %v7991 = vld [vmem:[#allocation13 + $0x458] sm:$0xff]
    %v7992 = vld [vmem:[#allocation13 + $0x460] sm:$0xff]
    %v7993 = vld [vmem:[#allocation13 + $0x468] sm:$0xff]
    %v7994 = vld [vmem:[#allocation13 + $0x470] sm:$0xff]
    %v7995 = vld [vmem:[#allocation13 + $0x478] sm:$0xff]
    %v7996 = vld [vmem:[#allocation13 + $0x480] sm:$0xff]
    %v7997 = vld [vmem:[#allocation13 + $0x488] sm:$0xff]
    %v7998 = vld [vmem:[#allocation13 + $0x490] sm:$0xff]
    %v7999 = vld [vmem:[#allocation13 + $0x498] sm:$0xff]
    %v8000 = vld [vmem:[#allocation13 + $0x4a0] sm:$0xff]
    %v8001 = vld [vmem:[#allocation13 + $0x4a8] sm:$0xff]
    %v8002 = vld [vmem:[#allocation13 + $0x4b0] sm:$0xff]
    %v8003 = vld [vmem:[#allocation13 + $0x4b8] sm:$0xff]
    %v8004 = vld [vmem:[#allocation13 + $0x4c0] sm:$0xff]
    %v8005 = vld [vmem:[#allocation13 + $0x4c8] sm:$0xff]
    %v8006 = vld [vmem:[#allocation13 + $0x4d0] sm:$0xff]
    %v8007 = vld [vmem:[#allocation13 + $0x4d8] sm:$0xff]
    %v8008 = vld [vmem:[#allocation13 + $0x4e0] sm:$0xff]
    %v8009 = vld [vmem:[#allocation13 + $0x4e8] sm:$0xff]
    %v8010 = vld [vmem:[#allocation13 + $0x4f0] sm:$0xff]
    %v8011 = vld [vmem:[#allocation13 + $0x4f8] sm:$0xff]
    %v8012 = vld [vmem:[#allocation13 + $0x500] sm:$0xff]
    %v8013 = vld [vmem:[#allocation13 + $0x508] sm:$0xff]
    %v8014 = vld [vmem:[#allocation13 + $0x510] sm:$0xff]
    %v8015 = vld [vmem:[#allocation13 + $0x518] sm:$0xff]
    %v8016 = vld [vmem:[#allocation13 + $0x520] sm:$0xff]
    %v8017 = vld [vmem:[#allocation13 + $0x528] sm:$0xff]
    %v8018 = vld [vmem:[#allocation13 + $0x530] sm:$0xff]
    %v8019 = vld [vmem:[#allocation13 + $0x538] sm:$0xff]
    %v8020 = vld [vmem:[#allocation13 + $0x540] sm:$0xff]
    %v8021 = vld [vmem:[#allocation13 + $0x548] sm:$0xff]
    %v8022 = vld [vmem:[#allocation13 + $0x550] sm:$0xff]
    %v8023 = vld [vmem:[#allocation13 + $0x558] sm:$0xff]
    %v8024 = vld [vmem:[#allocation13 + $0x560] sm:$0xff]
    %v8025 = vld [vmem:[#allocation13 + $0x568] sm:$0xff]
    %v8026 = vld [vmem:[#allocation13 + $0x570] sm:$0xff]
    %v8027 = vld [vmem:[#allocation13 + $0x578] sm:$0xff]
    %v8028 = vld [vmem:[#allocation13 + $0x580] sm:$0xff]
    %v8029 = vld [vmem:[#allocation13 + $0x588] sm:$0xff]
    %v8030 = vld [vmem:[#allocation13 + $0x590] sm:$0xff]
    %v8031 = vld [vmem:[#allocation13 + $0x598] sm:$0xff]
    %v8032 = vld [vmem:[#allocation13 + $0x5a0] sm:$0xff]
    %v8033 = vld [vmem:[#allocation13 + $0x5a8] sm:$0xff]
    %v8034 = vld [vmem:[#allocation13 + $0x5b0] sm:$0xff]
    %v8035 = vld [vmem:[#allocation13 + $0x5b8] sm:$0xff]
    %v8036 = vld [vmem:[#allocation13 + $0x5c0] sm:$0xff]
    %v8037 = vld [vmem:[#allocation13 + $0x5c8] sm:$0xff]
    %v8038 = vld [vmem:[#allocation13 + $0x5d0] sm:$0xff]
    %v8039 = vld [vmem:[#allocation13 + $0x5d8] sm:$0xff]
    %v8040 = vld [vmem:[#allocation13 + $0x5e0] sm:$0xff]
    %v8041 = vld [vmem:[#allocation13 + $0x5e8] sm:$0xff]
    %v8042 = vld [vmem:[#allocation13 + $0x5f0] sm:$0xff]
    %v8043 = vld [vmem:[#allocation13 + $0x5f8] sm:$0xff]
    %v8044 = vld [vmem:[#allocation13 + $0x600] sm:$0xff]
    %v8045 = vld [vmem:[#allocation13 + $0x608] sm:$0xff]
    %v8046 = vld [vmem:[#allocation13 + $0x610] sm:$0xff]
    %v8047 = vld [vmem:[#allocation13 + $0x618] sm:$0xff]
    %v8048 = vld [vmem:[#allocation13 + $0x620] sm:$0xff]
    %v8049 = vld [vmem:[#allocation13 + $0x628] sm:$0xff]
    %v8050 = vld [vmem:[#allocation13 + $0x630] sm:$0xff]
    %v8051 = vld [vmem:[#allocation13 + $0x638] sm:$0xff]
    %v8052 = vld [vmem:[#allocation13 + $0x640] sm:$0xff]
    %v8053 = vld [vmem:[#allocation13 + $0x648] sm:$0xff]
    %v8054 = vld [vmem:[#allocation13 + $0x650] sm:$0xff]
    %v8055 = vld [vmem:[#allocation13 + $0x658] sm:$0xff]
    %v8056 = vld [vmem:[#allocation13 + $0x660] sm:$0xff]
    %v8057 = vld [vmem:[#allocation13 + $0x668] sm:$0xff]
    %v8058 = vld [vmem:[#allocation13 + $0x670] sm:$0xff]
    %v8059 = vld [vmem:[#allocation13 + $0x678] sm:$0xff]
    %v8060 = vld [vmem:[#allocation13 + $0x680] sm:$0xff]
    %v8061 = vld [vmem:[#allocation13 + $0x688] sm:$0xff]
    %v8062 = vld [vmem:[#allocation13 + $0x690] sm:$0xff]
    %v8063 = vld [vmem:[#allocation13 + $0x698] sm:$0xff]
    %v8064 = vld [vmem:[#allocation13 + $0x6a0] sm:$0xff]
    %v8065 = vld [vmem:[#allocation13 + $0x6a8] sm:$0xff]
    %v8066 = vld [vmem:[#allocation13 + $0x6b0] sm:$0xff]
    %v8067 = vld [vmem:[#allocation13 + $0x6b8] sm:$0xff]
    %v8068 = vld [vmem:[#allocation13 + $0x6c0] sm:$0xff]
    %v8069 = vld [vmem:[#allocation13 + $0x6c8] sm:$0xff]
    %v8070 = vld [vmem:[#allocation13 + $0x6d0] sm:$0xff]
    %v8071 = vld [vmem:[#allocation13 + $0x6d8] sm:$0xff]
    %v8072 = vld [vmem:[#allocation13 + $0x6e0] sm:$0xff]
    %v8073 = vld [vmem:[#allocation13 + $0x6e8] sm:$0xff]
    %v8074 = vld [vmem:[#allocation13 + $0x6f0] sm:$0xff]
    %v8075 = vld [vmem:[#allocation13 + $0x6f8] sm:$0xff]
    %v8076 = vld [vmem:[#allocation13 + $0x700] sm:$0xff]
    %v8077 = vld [vmem:[#allocation13 + $0x708] sm:$0xff]
    %v8078 = vld [vmem:[#allocation13 + $0x710] sm:$0xff]
    %v8079 = vld [vmem:[#allocation13 + $0x718] sm:$0xff]
    %v8080 = vld [vmem:[#allocation13 + $0x720] sm:$0xff]
    %v8081 = vld [vmem:[#allocation13 + $0x728] sm:$0xff]
    %v8082 = vld [vmem:[#allocation13 + $0x730] sm:$0xff]
    %v8083 = vld [vmem:[#allocation13 + $0x738] sm:$0xff]
    %v8084 = vld [vmem:[#allocation13 + $0x740] sm:$0xff]
    %v8085 = vld [vmem:[#allocation13 + $0x748] sm:$0xff]
    %v8086 = vld [vmem:[#allocation13 + $0x750] sm:$0xff]
    %v8087 = vld [vmem:[#allocation13 + $0x758] sm:$0xff]
    %v8088 = vld [vmem:[#allocation13 + $0x760] sm:$0xff]
    %v8089 = vld [vmem:[#allocation13 + $0x768] sm:$0xff]
    %v8090 = vld [vmem:[#allocation13 + $0x770] sm:$0xff]
    %v8091 = vld [vmem:[#allocation13 + $0x778] sm:$0xff]
    %v8092 = vld [vmem:[#allocation13 + $0x780] sm:$0xff]
    %v8093 = vld [vmem:[#allocation13 + $0x788] sm:$0xff]
    %v8094 = vld [vmem:[#allocation13 + $0x790] sm:$0xff]
    %v8095 = vld [vmem:[#allocation13 + $0x798] sm:$0xff]
    %v8096 = vld [vmem:[#allocation13 + $0x7a0] sm:$0xff]
    %v8097 = vld [vmem:[#allocation13 + $0x7a8] sm:$0xff]
    %v8098 = vld [vmem:[#allocation13 + $0x7b0] sm:$0xff]
    %v8099 = vld [vmem:[#allocation13 + $0x7b8] sm:$0xff]
    %v8100 = vld [vmem:[#allocation13 + $0x7c0] sm:$0xff]
    %v8101 = vld [vmem:[#allocation13 + $0x7c8] sm:$0xff]
    %v8102 = vld [vmem:[#allocation13 + $0x7d0] sm:$0xff]
    %v8103 = vld [vmem:[#allocation13 + $0x7d8] sm:$0xff]
    %v8104 = vld [vmem:[#allocation13 + $0x7e0] sm:$0xff]
    %v8105 = vld [vmem:[#allocation13 + $0x7e8] sm:$0xff]
    %v8106 = vld [vmem:[#allocation13 + $0x7f0] sm:$0xff]
    %v8107 = vld [vmem:[#allocation13 + $0x7f8] sm:$0xff]
    %v8108 = vld [vmem:[#allocation13 + $0x800] sm:$0xff]
    %v8109 = vld [vmem:[#allocation13 + $0x808] sm:$0xff]
    %v8110 = vld [vmem:[#allocation13 + $0x810] sm:$0xff]
    %v8111 = vld [vmem:[#allocation13 + $0x818] sm:$0xff]
    %v8112 = vld [vmem:[#allocation13 + $0x820] sm:$0xff]
    %v8113 = vld [vmem:[#allocation13 + $0x828] sm:$0xff]
    %v8114 = vld [vmem:[#allocation13 + $0x830] sm:$0xff]
    %v8115 = vld [vmem:[#allocation13 + $0x838] sm:$0xff]
    %v8116 = vld [vmem:[#allocation13 + $0x840] sm:$0xff]
    %v8117 = vld [vmem:[#allocation13 + $0x848] sm:$0xff]
    %v8118 = vld [vmem:[#allocation13 + $0x850] sm:$0xff]
    %v8119 = vld [vmem:[#allocation13 + $0x858] sm:$0xff]
    %v8120 = vld [vmem:[#allocation13 + $0x860] sm:$0xff]
    %v8121 = vld [vmem:[#allocation13 + $0x868] sm:$0xff]
    %v8122 = vld [vmem:[#allocation13 + $0x870] sm:$0xff]
    %v8123 = vld [vmem:[#allocation13 + $0x878] sm:$0xff]
    %v8124 = vld [vmem:[#allocation13 + $0x880] sm:$0xff]
    %v8125 = vld [vmem:[#allocation13 + $0x888] sm:$0xff]
    %v8126 = vld [vmem:[#allocation13 + $0x890] sm:$0xff]
    %v8127 = vld [vmem:[#allocation13 + $0x898] sm:$0xff]
    %v8128 = vld [vmem:[#allocation13 + $0x8a0] sm:$0xff]
    %v8129 = vld [vmem:[#allocation13 + $0x8a8] sm:$0xff]
    %v8130 = vld [vmem:[#allocation13 + $0x8b0] sm:$0xff]
    %v8131 = vld [vmem:[#allocation13 + $0x8b8] sm:$0xff]
    %v8132 = vld [vmem:[#allocation13 + $0x8c0] sm:$0xff]
    %v8133 = vld [vmem:[#allocation13 + $0x8c8] sm:$0xff]
    %v8134 = vld [vmem:[#allocation13 + $0x8d0] sm:$0xff]
    %v8135 = vld [vmem:[#allocation13 + $0x8d8] sm:$0xff]
    %v8136 = vld [vmem:[#allocation13 + $0x8e0] sm:$0xff]
    %v8137 = vld [vmem:[#allocation13 + $0x8e8] sm:$0xff]
    %v8138 = vld [vmem:[#allocation13 + $0x8f0] sm:$0xff]
    %v8139 = vld [vmem:[#allocation13 + $0x8f8] sm:$0xff]
    %v8140 = vld [vmem:[#allocation13 + $0x900] sm:$0xff]
    %v8141 = vld [vmem:[#allocation13 + $0x908] sm:$0xff]
    %v8142 = vld [vmem:[#allocation13 + $0x910] sm:$0xff]
    %v8143 = vld [vmem:[#allocation13 + $0x918] sm:$0xff]
    %v8144 = vld [vmem:[#allocation13 + $0x920] sm:$0xff]
    %v8145 = vld [vmem:[#allocation13 + $0x928] sm:$0xff]
    %v8146 = vld [vmem:[#allocation13 + $0x930] sm:$0xff]
    %v8147 = vld [vmem:[#allocation13 + $0x938] sm:$0xff]
    %v8148 = vld [vmem:[#allocation13 + $0x940] sm:$0xff]
    %v8149 = vld [vmem:[#allocation13 + $0x948] sm:$0xff]
    %v8150 = vld [vmem:[#allocation13 + $0x950] sm:$0xff]
    %v8151 = vld [vmem:[#allocation13 + $0x958] sm:$0xff]
    %v8152 = vld [vmem:[#allocation13 + $0x960] sm:$0xff]
    %v8153 = vld [vmem:[#allocation13 + $0x968] sm:$0xff]
    %v8154 = vld [vmem:[#allocation13 + $0x970] sm:$0xff]
    %v8155 = vld [vmem:[#allocation13 + $0x978] sm:$0xff]
    %v8156 = vld [vmem:[#allocation13 + $0x980] sm:$0xff]
    %v8157 = vld [vmem:[#allocation13 + $0x988] sm:$0xff]
    %v8158 = vld [vmem:[#allocation13 + $0x990] sm:$0xff]
    %v8159 = vld [vmem:[#allocation13 + $0x998] sm:$0xff]
    %v8160 = vld [vmem:[#allocation13 + $0x9a0] sm:$0xff]
    %v8161 = vld [vmem:[#allocation13 + $0x9a8] sm:$0xff]
    %v8162 = vld [vmem:[#allocation13 + $0x9b0] sm:$0xff]
    %v8163 = vld [vmem:[#allocation13 + $0x9b8] sm:$0xff]
    %v8164 = vld [vmem:[#allocation13 + $0x9c0] sm:$0xff]
    %v8165 = vld [vmem:[#allocation13 + $0x9c8] sm:$0xff]
    %v8166 = vld [vmem:[#allocation13 + $0x9d0] sm:$0xff]
    %v8167 = vld [vmem:[#allocation13 + $0x9d8] sm:$0xff]
    %v8168 = vld [vmem:[#allocation13 + $0x9e0] sm:$0xff]
    %v8169 = vld [vmem:[#allocation13 + $0x9e8] sm:$0xff]
    %v8170 = vld [vmem:[#allocation13 + $0x9f0] sm:$0xff]
    %v8171 = vld [vmem:[#allocation13 + $0x9f8] sm:$0xff]
    %v8172 = vld [vmem:[#allocation13 + $0xa00] sm:$0xff]
    %v8173 = vld [vmem:[#allocation13 + $0xa08] sm:$0xff]
    %v8174 = vld [vmem:[#allocation13 + $0xa10] sm:$0xff]
    %v8175 = vld [vmem:[#allocation13 + $0xa18] sm:$0xff]
    %v8176 = vld [vmem:[#allocation13 + $0xa20] sm:$0xff]
    %v8177 = vld [vmem:[#allocation13 + $0xa28] sm:$0xff]
    %v8178 = vld [vmem:[#allocation13 + $0xa30] sm:$0xff]
    %v8179 = vld [vmem:[#allocation13 + $0xa38] sm:$0xff]
    %v8180 = vld [vmem:[#allocation13 + $0xa40] sm:$0xff]
    %v8181 = vld [vmem:[#allocation13 + $0xa48] sm:$0xff]
    %v8182 = vld [vmem:[#allocation13 + $0xa50] sm:$0xff]
    %v8183 = vld [vmem:[#allocation13 + $0xa58] sm:$0xff]
    %v8184 = vld [vmem:[#allocation13 + $0xa60] sm:$0xff]
    %v8185 = vld [vmem:[#allocation13 + $0xa68] sm:$0xff]
    %v8186 = vld [vmem:[#allocation13 + $0xa70] sm:$0xff]
    %v8187 = vld [vmem:[#allocation13 + $0xa78] sm:$0xff]
    %v8188 = vld [vmem:[#allocation13 + $0xa80] sm:$0xff]
    %v8189 = vld [vmem:[#allocation13 + $0xa88] sm:$0xff]
    %v8190 = vld [vmem:[#allocation13 + $0xa90] sm:$0xff]
    %v8191 = vld [vmem:[#allocation13 + $0xa98] sm:$0xff]
    %v8192 = vld [vmem:[#allocation13 + $0xaa0] sm:$0xff]
    %v8193 = vld [vmem:[#allocation13 + $0xaa8] sm:$0xff]
    %v8194 = vld [vmem:[#allocation13 + $0xab0] sm:$0xff]
    %v8195 = vld [vmem:[#allocation13 + $0xab8] sm:$0xff]
    %v8196 = vld [vmem:[#allocation13 + $0xac0] sm:$0xff]
    %v8197 = vld [vmem:[#allocation13 + $0xac8] sm:$0xff]
    %v8198 = vld [vmem:[#allocation13 + $0xad0] sm:$0xff]
    %v8199 = vld [vmem:[#allocation13 + $0xad8] sm:$0xff]
    %v8200 = vld [vmem:[#allocation13 + $0xae0] sm:$0xff]
    %v8201 = vld [vmem:[#allocation13 + $0xae8] sm:$0xff]
    %v8202 = vld [vmem:[#allocation13 + $0xaf0] sm:$0xff]
    %v8203 = vld [vmem:[#allocation13 + $0xaf8] sm:$0xff]
    %v8204 = vld [vmem:[#allocation13 + $0xb00] sm:$0xff]
    %v8205 = vld [vmem:[#allocation13 + $0xb08] sm:$0xff]
    %v8206 = vld [vmem:[#allocation13 + $0xb10] sm:$0xff]
    %v8207 = vld [vmem:[#allocation13 + $0xb18] sm:$0xff]
    %v8208 = vld [vmem:[#allocation13 + $0xb20] sm:$0xff]
    %v8209 = vld [vmem:[#allocation13 + $0xb28] sm:$0xff]
    %v8210 = vld [vmem:[#allocation13 + $0xb30] sm:$0xff]
    %v8211 = vld [vmem:[#allocation13 + $0xb38] sm:$0xff]
    %v8212 = vld [vmem:[#allocation13 + $0xb40] sm:$0xff]
    %v8213 = vld [vmem:[#allocation13 + $0xb48] sm:$0xff]
    %v8214 = vld [vmem:[#allocation13 + $0xb50] sm:$0xff]
    %v8215 = vld [vmem:[#allocation13 + $0xb58] sm:$0xff]
    %v8216 = vld [vmem:[#allocation13 + $0xb60] sm:$0xff]
    %v8217 = vld [vmem:[#allocation13 + $0xb68] sm:$0xff]
    %v8218 = vld [vmem:[#allocation13 + $0xb70] sm:$0xff]
    %v8219 = vld [vmem:[#allocation13 + $0xb78] sm:$0xff]
    %v8220 = vld [vmem:[#allocation13 + $0xb80] sm:$0xff]
    %v8221 = vld [vmem:[#allocation13 + $0xb88] sm:$0xff]
    %v8222 = vld [vmem:[#allocation13 + $0xb90] sm:$0xff]
    %v8223 = vld [vmem:[#allocation13 + $0xb98] sm:$0xff]
    %v8224 = vld [vmem:[#allocation13 + $0xba0] sm:$0xff]
    %v8225 = vld [vmem:[#allocation13 + $0xba8] sm:$0xff]
    %v8226 = vld [vmem:[#allocation13 + $0xbb0] sm:$0xff]
    %v8227 = vld [vmem:[#allocation13 + $0xbb8] sm:$0xff]
    %v8228 = vld [vmem:[#allocation13 + $0xbc0] sm:$0xff]
    %v8229 = vld [vmem:[#allocation13 + $0xbc8] sm:$0xff]
    %v8230 = vld [vmem:[#allocation13 + $0xbd0] sm:$0xff]
    %v8231 = vld [vmem:[#allocation13 + $0xbd8] sm:$0xff]
    %v8232 = vld [vmem:[#allocation13 + $0xbe0] sm:$0xff]
    %v8233 = vld [vmem:[#allocation13 + $0xbe8] sm:$0xff]
    %v8234 = vld [vmem:[#allocation13 + $0xbf0] sm:$0xff]
    %v8235 = vld [vmem:[#allocation13 + $0xbf8] sm:$0xff]
    %v8236 = vld [vmem:[#allocation13 + $0xc00] sm:$0xff]
    %v8237 = vld [vmem:[#allocation13 + $0xc08] sm:$0xff]
    %v8238 = vld [vmem:[#allocation13 + $0xc10] sm:$0xff]
    %v8239 = vld [vmem:[#allocation13 + $0xc18] sm:$0xff]
    %v8240 = vld [vmem:[#allocation13 + $0xc20] sm:$0xff]
    %v8241 = vld [vmem:[#allocation13 + $0xc28] sm:$0xff]
    %v8242 = vld [vmem:[#allocation13 + $0xc30] sm:$0xff]
    %v8243 = vld [vmem:[#allocation13 + $0xc38] sm:$0xff]
    %v8244 = vld [vmem:[#allocation13 + $0xc40] sm:$0xff]
    %v8245 = vld [vmem:[#allocation13 + $0xc48] sm:$0xff]
    %v8246 = vld [vmem:[#allocation13 + $0xc50] sm:$0xff]
    %v8247 = vld [vmem:[#allocation13 + $0xc58] sm:$0xff]
    %v8248 = vld [vmem:[#allocation13 + $0xc60] sm:$0xff]
    %v8249 = vld [vmem:[#allocation13 + $0xc68] sm:$0xff]
    %v8250 = vld [vmem:[#allocation13 + $0xc70] sm:$0xff]
    %v8251 = vld [vmem:[#allocation13 + $0xc78] sm:$0xff]
    %v8252 = vld [vmem:[#allocation13 + $0xc80] sm:$0xff]
    %v8253 = vld [vmem:[#allocation13 + $0xc88] sm:$0xff]
    %v8254 = vld [vmem:[#allocation13 + $0xc90] sm:$0xff]
    %v8255 = vld [vmem:[#allocation13 + $0xc98] sm:$0xff]
    %v8256 = vld [vmem:[#allocation13 + $0xca0] sm:$0xff]
    %v8257 = vld [vmem:[#allocation13 + $0xca8] sm:$0xff]
    %v8258 = vld [vmem:[#allocation13 + $0xcb0] sm:$0xff]
    %v8259 = vld [vmem:[#allocation13 + $0xcb8] sm:$0xff]
    %v8260 = vld [vmem:[#allocation13 + $0xcc0] sm:$0xff]
    %v8261 = vld [vmem:[#allocation13 + $0xcc8] sm:$0xff]
    %v8262 = vld [vmem:[#allocation13 + $0xcd0] sm:$0xff]
    %v8263 = vld [vmem:[#allocation13 + $0xcd8] sm:$0xff]
    %v8264 = vld [vmem:[#allocation13 + $0xce0] sm:$0xff]
    %v8265 = vld [vmem:[#allocation13 + $0xce8] sm:$0xff]
    %v8266 = vld [vmem:[#allocation13 + $0xcf0] sm:$0xff]
    %v8267 = vld [vmem:[#allocation13 + $0xcf8] sm:$0xff]
    %v8268 = vld [vmem:[#allocation13 + $0xd00] sm:$0xff]
    %v8269 = vld [vmem:[#allocation13 + $0xd08] sm:$0xff]
    %v8270 = vld [vmem:[#allocation13 + $0xd10] sm:$0xff]
    %v8271 = vld [vmem:[#allocation13 + $0xd18] sm:$0xff]
    %v8272 = vld [vmem:[#allocation13 + $0xd20] sm:$0xff]
    %v8273 = vld [vmem:[#allocation13 + $0xd28] sm:$0xff]
    %v8274 = vld [vmem:[#allocation13 + $0xd30] sm:$0xff]
    %v8275 = vld [vmem:[#allocation13 + $0xd38] sm:$0xff]
    %v8276 = vld [vmem:[#allocation13 + $0xd40] sm:$0xff]
    %v8277 = vld [vmem:[#allocation13 + $0xd48] sm:$0xff]
    %v8278 = vld [vmem:[#allocation13 + $0xd50] sm:$0xff]
    %v8279 = vld [vmem:[#allocation13 + $0xd58] sm:$0xff]
    %v8280 = vld [vmem:[#allocation13 + $0xd60] sm:$0xff]
    %v8281 = vld [vmem:[#allocation13 + $0xd68] sm:$0xff]
    %v8282 = vld [vmem:[#allocation13 + $0xd70] sm:$0xff]
    %v8283 = vld [vmem:[#allocation13 + $0xd78] sm:$0xff]
    %v8284 = vld [vmem:[#allocation13 + $0xd80] sm:$0xff]
    %v8285 = vld [vmem:[#allocation13 + $0xd88] sm:$0xff]
    %v8286 = vld [vmem:[#allocation13 + $0xd90] sm:$0xff]
    %v8287 = vld [vmem:[#allocation13 + $0xd98] sm:$0xff]
    %v8288 = vld [vmem:[#allocation13 + $0xda0] sm:$0xff]
    %v8289 = vld [vmem:[#allocation13 + $0xda8] sm:$0xff]
    %v8290 = vld [vmem:[#allocation13 + $0xdb0] sm:$0xff]
    %v8291 = vld [vmem:[#allocation13 + $0xdb8] sm:$0xff]
    %v8292 = vld [vmem:[#allocation13 + $0xdc0] sm:$0xff]
    %v8293 = vld [vmem:[#allocation13 + $0xdc8] sm:$0xff]
    %v8294 = vld [vmem:[#allocation13 + $0xdd0] sm:$0xff]
    %v8295 = vld [vmem:[#allocation13 + $0xdd8] sm:$0xff]
    %v8296 = vld [vmem:[#allocation13 + $0xde0] sm:$0xff]
    %v8297 = vld [vmem:[#allocation13 + $0xde8] sm:$0xff]
    %v8298 = vld [vmem:[#allocation13 + $0xdf0] sm:$0xff]
    %v8299 = vld [vmem:[#allocation13 + $0xdf8] sm:$0xff]
    %v8300 = vld [vmem:[#allocation13 + $0xe00] sm:$0xff]
    %v8301 = vld [vmem:[#allocation13 + $0xe08] sm:$0xff]
    %v8302 = vld [vmem:[#allocation13 + $0xe10] sm:$0xff]
    %v8303 = vld [vmem:[#allocation13 + $0xe18] sm:$0xff]
    %v8304 = vld [vmem:[#allocation13 + $0xe20] sm:$0xff]
    %v8305 = vld [vmem:[#allocation13 + $0xe28] sm:$0xff]
    %v8306 = vld [vmem:[#allocation13 + $0xe30] sm:$0xff]
    %v8307 = vld [vmem:[#allocation13 + $0xe38] sm:$0xff]
    %v8308 = vld [vmem:[#allocation13 + $0xe40] sm:$0xff]
    %v8309 = vld [vmem:[#allocation13 + $0xe48] sm:$0xff]
    %v8310 = vld [vmem:[#allocation13 + $0xe50] sm:$0xff]
    %v8311 = vld [vmem:[#allocation13 + $0xe58] sm:$0xff]
    %v8312 = vld [vmem:[#allocation13 + $0xe60] sm:$0xff]
    %v8313 = vld [vmem:[#allocation13 + $0xe68] sm:$0xff]
    %v8314 = vld [vmem:[#allocation13 + $0xe70] sm:$0xff]
    %v8315 = vld [vmem:[#allocation13 + $0xe78] sm:$0xff]
    %v8316 = vld [vmem:[#allocation13 + $0xe80] sm:$0xff]
    %v8317 = vld [vmem:[#allocation13 + $0xe88] sm:$0xff]
    %v8318 = vld [vmem:[#allocation13 + $0xe90] sm:$0xff]
    %v8319 = vld [vmem:[#allocation13 + $0xe98] sm:$0xff]
    %v8320 = vld [vmem:[#allocation13 + $0xea0] sm:$0xff]
    %v8321 = vld [vmem:[#allocation13 + $0xea8] sm:$0xff]
    %v8322 = vld [vmem:[#allocation13 + $0xeb0] sm:$0xff]
    %v8323 = vld [vmem:[#allocation13 + $0xeb8] sm:$0xff]
    %v8324 = vld [vmem:[#allocation13 + $0xec0] sm:$0xff]
    %v8325 = vld [vmem:[#allocation13 + $0xec8] sm:$0xff]
    %v8326 = vld [vmem:[#allocation13 + $0xed0] sm:$0xff]
    %v8327 = vld [vmem:[#allocation13 + $0xed8] sm:$0xff]
    %v8328 = vld [vmem:[#allocation13 + $0xee0] sm:$0xff]
    %v8329 = vld [vmem:[#allocation13 + $0xee8] sm:$0xff]
    %v8330 = vld [vmem:[#allocation13 + $0xef0] sm:$0xff]
    %v8331 = vld [vmem:[#allocation13 + $0xef8] sm:$0xff]
    %v8332 = vld [vmem:[#allocation13 + $0xf00] sm:$0xff]
    %v8333 = vld [vmem:[#allocation13 + $0xf08] sm:$0xff]
    %v8334 = vld [vmem:[#allocation13 + $0xf10] sm:$0xff]
    %v8335 = vld [vmem:[#allocation13 + $0xf18] sm:$0xff]
    %v8336 = vld [vmem:[#allocation13 + $0xf20] sm:$0xff]
    %v8337 = vld [vmem:[#allocation13 + $0xf28] sm:$0xff]
    %v8338 = vld [vmem:[#allocation13 + $0xf30] sm:$0xff]
    %v8339 = vld [vmem:[#allocation13 + $0xf38] sm:$0xff]
    %v8340 = vld [vmem:[#allocation13 + $0xf40] sm:$0xff]
    %v8341 = vld [vmem:[#allocation13 + $0xf48] sm:$0xff]
    %v8342 = vld [vmem:[#allocation13 + $0xf50] sm:$0xff]
    %v8343 = vld [vmem:[#allocation13 + $0xf58] sm:$0xff]
    %v8344 = vld [vmem:[#allocation13 + $0xf60] sm:$0xff]
    %v8345 = vld [vmem:[#allocation13 + $0xf68] sm:$0xff]
    %v8346 = vld [vmem:[#allocation13 + $0xf70] sm:$0xff]
    %v8347 = vld [vmem:[#allocation13 + $0xf78] sm:$0xff]
    %v8348 = vld [vmem:[#allocation13 + $0xf80] sm:$0xff]
    %v8349 = vld [vmem:[#allocation13 + $0xf88] sm:$0xff]
    %v8350 = vld [vmem:[#allocation13 + $0xf90] sm:$0xff]
    %v8351 = vld [vmem:[#allocation13 + $0xf98] sm:$0xff]
    %v8352 = vld [vmem:[#allocation13 + $0xfa0] sm:$0xff]
    %v8353 = vld [vmem:[#allocation13 + $0xfa8] sm:$0xff]
    %v8354 = vld [vmem:[#allocation13 + $0xfb0] sm:$0xff]
    %v8355 = vld [vmem:[#allocation13 + $0xfb8] sm:$0xff]
    %v8356 = vld [vmem:[#allocation13 + $0xfc0] sm:$0xff]
    %v8357 = vld [vmem:[#allocation13 + $0xfc8] sm:$0xff]
    %v8358 = vld [vmem:[#allocation13 + $0xfd0] sm:$0xff]
    %v8359 = vld [vmem:[#allocation13 + $0xfd8] sm:$0xff]
    %v8360 = vld [vmem:[#allocation13 + $0xfe0] sm:$0xff]
    %v8361 = vld [vmem:[#allocation13 + $0xfe8] sm:$0xff]
    %v8362 = vld [vmem:[#allocation13 + $0xff0] sm:$0xff]
    %v8363 = vld [vmem:[#allocation13 + $0xff8] sm:$0xff]
    %s8364 = scalar_lea.vmem [#allocation17], 5
    %v8365 = vld [vmem:[%s8364] ss:$8 sm:$0xf]
    %v8367 = vlaneseq
    %v8368 = vshrl.u32 %v8367, 7
    %v8369 = vsub.s32 0, %v8368
    %v8370 = vrot.slane %v8365, %v8369
    %v8371 = vlaneseq
    %v8372 = vshrl.u32 %v8371, 7
    %v8373 = vsub.s32 1, %v8372
    %v8374 = vrot.slane %v8365, %v8373
    %v8375 = vlaneseq
    %v8376 = vshrl.u32 %v8375, 7
    %v8377 = vsub.s32 2, %v8376
    %v8378 = vrot.slane %v8365, %v8377
    %v8379 = vlaneseq
    %v8380 = vshrl.u32 %v8379, 7
    %v8381 = vsub.s32 3, %v8380
    %v8382 = vrot.slane %v8365, %v8381
    %v8899 = vunpack.c.l.b16 %v7852
    %v8900 = vunpack.c.h.b16 %v7852
    %v8901 = vunpack.c.l.b16 %v7853
    %v8902 = vunpack.c.h.b16 %v7853
    %v8903 = vunpack.c.l.b16 %v7854
    %v8904 = vunpack.c.h.b16 %v7854
    %v8905 = vunpack.c.l.b16 %v7855
    %v8906 = vunpack.c.h.b16 %v7855
    %v8907 = vunpack.c.l.b16 %v7856
    %v8908 = vunpack.c.h.b16 %v7856
    %v8909 = vunpack.c.l.b16 %v7857
    %v8910 = vunpack.c.h.b16 %v7857
    %v8911 = vunpack.c.l.b16 %v7858
    %v8912 = vunpack.c.h.b16 %v7858
    %v8913 = vunpack.c.l.b16 %v7859
    %v8914 = vunpack.c.h.b16 %v7859
    %v8915 = vunpack.c.l.b16 %v7860
    %v8916 = vunpack.c.h.b16 %v7860
    %v8917 = vunpack.c.l.b16 %v7861
    %v8918 = vunpack.c.h.b16 %v7861
    %v8919 = vunpack.c.l.b16 %v7862
    %v8920 = vunpack.c.h.b16 %v7862
    %v8921 = vunpack.c.l.b16 %v7863
    %v8922 = vunpack.c.h.b16 %v7863
    %v8923 = vunpack.c.l.b16 %v7864
    %v8924 = vunpack.c.h.b16 %v7864
    %v8925 = vunpack.c.l.b16 %v7865
    %v8926 = vunpack.c.h.b16 %v7865
    %v8927 = vunpack.c.l.b16 %v7866
    %v8928 = vunpack.c.h.b16 %v7866
    %v8929 = vunpack.c.l.b16 %v7867
    %v8930 = vunpack.c.h.b16 %v7867
    %v8931 = vunpack.c.l.b16 %v7868
    %v8932 = vunpack.c.h.b16 %v7868
    %v8933 = vunpack.c.l.b16 %v7869
    %v8934 = vunpack.c.h.b16 %v7869
    %v8935 = vunpack.c.l.b16 %v7870
    %v8936 = vunpack.c.h.b16 %v7870
    %v8937 = vunpack.c.l.b16 %v7871
    %v8938 = vunpack.c.h.b16 %v7871
    %v8939 = vunpack.c.l.b16 %v7872
    %v8940 = vunpack.c.h.b16 %v7872
    %v8941 = vunpack.c.l.b16 %v7873
    %v8942 = vunpack.c.h.b16 %v7873
    %v8943 = vunpack.c.l.b16 %v7874
    %v8944 = vunpack.c.h.b16 %v7874
    %v8945 = vunpack.c.l.b16 %v7875
    %v8946 = vunpack.c.h.b16 %v7875
    %v8947 = vunpack.c.l.b16 %v7876
    %v8948 = vunpack.c.h.b16 %v7876
    %v8949 = vunpack.c.l.b16 %v7877
    %v8950 = vunpack.c.h.b16 %v7877
    %v8951 = vunpack.c.l.b16 %v7878
    %v8952 = vunpack.c.h.b16 %v7878
    %v8953 = vunpack.c.l.b16 %v7879
    %v8954 = vunpack.c.h.b16 %v7879
    %v8955 = vunpack.c.l.b16 %v7880
    %v8956 = vunpack.c.h.b16 %v7880
    %v8957 = vunpack.c.l.b16 %v7881
    %v8958 = vunpack.c.h.b16 %v7881
    %v8959 = vunpack.c.l.b16 %v7882
    %v8960 = vunpack.c.h.b16 %v7882
    %v8961 = vunpack.c.l.b16 %v7883
    %v8962 = vunpack.c.h.b16 %v7883
    %v8963 = vunpack.c.l.b16 %v7884
    %v8964 = vunpack.c.h.b16 %v7884
    %v8965 = vunpack.c.l.b16 %v7885
    %v8966 = vunpack.c.h.b16 %v7885
    %v8967 = vunpack.c.l.b16 %v7886
    %v8968 = vunpack.c.h.b16 %v7886
    %v8969 = vunpack.c.l.b16 %v7887
    %v8970 = vunpack.c.h.b16 %v7887
    %v8971 = vunpack.c.l.b16 %v7888
    %v8972 = vunpack.c.h.b16 %v7888
    %v8973 = vunpack.c.l.b16 %v7889
    %v8974 = vunpack.c.h.b16 %v7889
    %v8975 = vunpack.c.l.b16 %v7890
    %v8976 = vunpack.c.h.b16 %v7890
    %v8977 = vunpack.c.l.b16 %v7891
    %v8978 = vunpack.c.h.b16 %v7891
    %v8979 = vunpack.c.l.b16 %v7892
    %v8980 = vunpack.c.h.b16 %v7892
    %v8981 = vunpack.c.l.b16 %v7893
    %v8982 = vunpack.c.h.b16 %v7893
    %v8983 = vunpack.c.l.b16 %v7894
    %v8984 = vunpack.c.h.b16 %v7894
    %v8985 = vunpack.c.l.b16 %v7895
    %v8986 = vunpack.c.h.b16 %v7895
    %v8987 = vunpack.c.l.b16 %v7896
    %v8988 = vunpack.c.h.b16 %v7896
    %v8989 = vunpack.c.l.b16 %v7897
    %v8990 = vunpack.c.h.b16 %v7897
    %v8991 = vunpack.c.l.b16 %v7898
    %v8992 = vunpack.c.h.b16 %v7898
    %v8993 = vunpack.c.l.b16 %v7899
    %v8994 = vunpack.c.h.b16 %v7899
    %v8995 = vunpack.c.l.b16 %v7900
    %v8996 = vunpack.c.h.b16 %v7900
    %v8997 = vunpack.c.l.b16 %v7901
    %v8998 = vunpack.c.h.b16 %v7901
    %v8999 = vunpack.c.l.b16 %v7902
    %v9000 = vunpack.c.h.b16 %v7902
    %v9001 = vunpack.c.l.b16 %v7903
    %v9002 = vunpack.c.h.b16 %v7903
    %v9003 = vunpack.c.l.b16 %v7904
    %v9004 = vunpack.c.h.b16 %v7904
    %v9005 = vunpack.c.l.b16 %v7905
    %v9006 = vunpack.c.h.b16 %v7905
    %v9007 = vunpack.c.l.b16 %v7906
    %v9008 = vunpack.c.h.b16 %v7906
    %v9009 = vunpack.c.l.b16 %v7907
    %v9010 = vunpack.c.h.b16 %v7907
    %v9011 = vunpack.c.l.b16 %v7908
    %v9012 = vunpack.c.h.b16 %v7908
    %v9013 = vunpack.c.l.b16 %v7909
    %v9014 = vunpack.c.h.b16 %v7909
    %v9015 = vunpack.c.l.b16 %v7910
    %v9016 = vunpack.c.h.b16 %v7910
    %v9017 = vunpack.c.l.b16 %v7911
    %v9018 = vunpack.c.h.b16 %v7911
    %v9019 = vunpack.c.l.b16 %v7912
    %v9020 = vunpack.c.h.b16 %v7912
    %v9021 = vunpack.c.l.b16 %v7913
    %v9022 = vunpack.c.h.b16 %v7913
    %v9023 = vunpack.c.l.b16 %v7914
    %v9024 = vunpack.c.h.b16 %v7914
    %v9025 = vunpack.c.l.b16 %v7915
    %v9026 = vunpack.c.h.b16 %v7915
    %v9027 = vunpack.c.l.b16 %v7916
    %v9028 = vunpack.c.h.b16 %v7916
    %v9029 = vunpack.c.l.b16 %v7917
    %v9030 = vunpack.c.h.b16 %v7917
    %v9031 = vunpack.c.l.b16 %v7918
    %v9032 = vunpack.c.h.b16 %v7918
    %v9033 = vunpack.c.l.b16 %v7919
    %v9034 = vunpack.c.h.b16 %v7919
    %v9035 = vunpack.c.l.b16 %v7920
    %v9036 = vunpack.c.h.b16 %v7920
    %v9037 = vunpack.c.l.b16 %v7921
    %v9038 = vunpack.c.h.b16 %v7921
    %v9039 = vunpack.c.l.b16 %v7922
    %v9040 = vunpack.c.h.b16 %v7922
    %v9041 = vunpack.c.l.b16 %v7923
    %v9042 = vunpack.c.h.b16 %v7923
    %v9043 = vunpack.c.l.b16 %v7924
    %v9044 = vunpack.c.h.b16 %v7924
    %v9045 = vunpack.c.l.b16 %v7925
    %v9046 = vunpack.c.h.b16 %v7925
    %v9047 = vunpack.c.l.b16 %v7926
    %v9048 = vunpack.c.h.b16 %v7926
    %v9049 = vunpack.c.l.b16 %v7927
    %v9050 = vunpack.c.h.b16 %v7927
    %v9051 = vunpack.c.l.b16 %v7928
    %v9052 = vunpack.c.h.b16 %v7928
    %v9053 = vunpack.c.l.b16 %v7929
    %v9054 = vunpack.c.h.b16 %v7929
    %v9055 = vunpack.c.l.b16 %v7930
    %v9056 = vunpack.c.h.b16 %v7930
    %v9057 = vunpack.c.l.b16 %v7931
    %v9058 = vunpack.c.h.b16 %v7931
    %v9059 = vunpack.c.l.b16 %v7932
    %v9060 = vunpack.c.h.b16 %v7932
    %v9061 = vunpack.c.l.b16 %v7933
    %v9062 = vunpack.c.h.b16 %v7933
    %v9063 = vunpack.c.l.b16 %v7934
    %v9064 = vunpack.c.h.b16 %v7934
    %v9065 = vunpack.c.l.b16 %v7935
    %v9066 = vunpack.c.h.b16 %v7935
    %v9067 = vunpack.c.l.b16 %v7936
    %v9068 = vunpack.c.h.b16 %v7936
    %v9069 = vunpack.c.l.b16 %v7937
    %v9070 = vunpack.c.h.b16 %v7937
    %v9071 = vunpack.c.l.b16 %v7938
    %v9072 = vunpack.c.h.b16 %v7938
    %v9073 = vunpack.c.l.b16 %v7939
    %v9074 = vunpack.c.h.b16 %v7939
    %v9075 = vunpack.c.l.b16 %v7940
    %v9076 = vunpack.c.h.b16 %v7940
    %v9077 = vunpack.c.l.b16 %v7941
    %v9078 = vunpack.c.h.b16 %v7941
    %v9079 = vunpack.c.l.b16 %v7942
    %v9080 = vunpack.c.h.b16 %v7942
    %v9081 = vunpack.c.l.b16 %v7943
    %v9082 = vunpack.c.h.b16 %v7943
    %v9083 = vunpack.c.l.b16 %v7944
    %v9084 = vunpack.c.h.b16 %v7944
    %v9085 = vunpack.c.l.b16 %v7945
    %v9086 = vunpack.c.h.b16 %v7945
    %v9087 = vunpack.c.l.b16 %v7946
    %v9088 = vunpack.c.h.b16 %v7946
    %v9089 = vunpack.c.l.b16 %v7947
    %v9090 = vunpack.c.h.b16 %v7947
    %v9091 = vunpack.c.l.b16 %v7948
    %v9092 = vunpack.c.h.b16 %v7948
    %v9093 = vunpack.c.l.b16 %v7949
    %v9094 = vunpack.c.h.b16 %v7949
    %v9095 = vunpack.c.l.b16 %v7950
    %v9096 = vunpack.c.h.b16 %v7950
    %v9097 = vunpack.c.l.b16 %v7951
    %v9098 = vunpack.c.h.b16 %v7951
    %v9099 = vunpack.c.l.b16 %v7952
    %v9100 = vunpack.c.h.b16 %v7952
    %v9101 = vunpack.c.l.b16 %v7953
    %v9102 = vunpack.c.h.b16 %v7953
    %v9103 = vunpack.c.l.b16 %v7954
    %v9104 = vunpack.c.h.b16 %v7954
    %v9105 = vunpack.c.l.b16 %v7955
    %v9106 = vunpack.c.h.b16 %v7955
    %v9107 = vunpack.c.l.b16 %v7956
    %v9108 = vunpack.c.h.b16 %v7956
    %v9109 = vunpack.c.l.b16 %v7957
    %v9110 = vunpack.c.h.b16 %v7957
    %v9111 = vunpack.c.l.b16 %v7958
    %v9112 = vunpack.c.h.b16 %v7958
    %v9113 = vunpack.c.l.b16 %v7959
    %v9114 = vunpack.c.h.b16 %v7959
    %v9115 = vunpack.c.l.b16 %v7960
    %v9116 = vunpack.c.h.b16 %v7960
    %v9117 = vunpack.c.l.b16 %v7961
    %v9118 = vunpack.c.h.b16 %v7961
    %v9119 = vunpack.c.l.b16 %v7962
    %v9120 = vunpack.c.h.b16 %v7962
    %v9121 = vunpack.c.l.b16 %v7963
    %v9122 = vunpack.c.h.b16 %v7963
    %v9123 = vunpack.c.l.b16 %v7964
    %v9124 = vunpack.c.h.b16 %v7964
    %v9125 = vunpack.c.l.b16 %v7965
    %v9126 = vunpack.c.h.b16 %v7965
    %v9127 = vunpack.c.l.b16 %v7966
    %v9128 = vunpack.c.h.b16 %v7966
    %v9129 = vunpack.c.l.b16 %v7967
    %v9130 = vunpack.c.h.b16 %v7967
    %v9131 = vunpack.c.l.b16 %v7968
    %v9132 = vunpack.c.h.b16 %v7968
    %v9133 = vunpack.c.l.b16 %v7969
    %v9134 = vunpack.c.h.b16 %v7969
    %v9135 = vunpack.c.l.b16 %v7970
    %v9136 = vunpack.c.h.b16 %v7970
    %v9137 = vunpack.c.l.b16 %v7971
    %v9138 = vunpack.c.h.b16 %v7971
    %v9139 = vunpack.c.l.b16 %v7972
    %v9140 = vunpack.c.h.b16 %v7972
    %v9141 = vunpack.c.l.b16 %v7973
    %v9142 = vunpack.c.h.b16 %v7973
    %v9143 = vunpack.c.l.b16 %v7974
    %v9144 = vunpack.c.h.b16 %v7974
    %v9145 = vunpack.c.l.b16 %v7975
    %v9146 = vunpack.c.h.b16 %v7975
    %v9147 = vunpack.c.l.b16 %v7976
    %v9148 = vunpack.c.h.b16 %v7976
    %v9149 = vunpack.c.l.b16 %v7977
    %v9150 = vunpack.c.h.b16 %v7977
    %v9151 = vunpack.c.l.b16 %v7978
    %v9152 = vunpack.c.h.b16 %v7978
    %v9153 = vunpack.c.l.b16 %v7979
    %v9154 = vunpack.c.h.b16 %v7979
    %v9155 = vunpack.c.l.b16 %v7980
    %v9156 = vunpack.c.h.b16 %v7980
    %v9157 = vunpack.c.l.b16 %v7981
    %v9158 = vunpack.c.h.b16 %v7981
    %v9159 = vunpack.c.l.b16 %v7982
    %v9160 = vunpack.c.h.b16 %v7982
    %v9161 = vunpack.c.l.b16 %v7983
    %v9162 = vunpack.c.h.b16 %v7983
    %v9163 = vunpack.c.l.b16 %v7984
    %v9164 = vunpack.c.h.b16 %v7984
    %v9165 = vunpack.c.l.b16 %v7985
    %v9166 = vunpack.c.h.b16 %v7985
    %v9167 = vunpack.c.l.b16 %v7986
    %v9168 = vunpack.c.h.b16 %v7986
    %v9169 = vunpack.c.l.b16 %v7987
    %v9170 = vunpack.c.h.b16 %v7987
    %v9171 = vunpack.c.l.b16 %v7988
    %v9172 = vunpack.c.h.b16 %v7988
    %v9173 = vunpack.c.l.b16 %v7989
    %v9174 = vunpack.c.h.b16 %v7989
    %v9175 = vunpack.c.l.b16 %v7990
    %v9176 = vunpack.c.h.b16 %v7990
    %v9177 = vunpack.c.l.b16 %v7991
    %v9178 = vunpack.c.h.b16 %v7991
    %v9179 = vunpack.c.l.b16 %v7992
    %v9180 = vunpack.c.h.b16 %v7992
    %v9181 = vunpack.c.l.b16 %v7993
    %v9182 = vunpack.c.h.b16 %v7993
    %v9183 = vunpack.c.l.b16 %v7994
    %v9184 = vunpack.c.h.b16 %v7994
    %v9185 = vunpack.c.l.b16 %v7995
    %v9186 = vunpack.c.h.b16 %v7995
    %v9187 = vunpack.c.l.b16 %v7996
    %v9188 = vunpack.c.h.b16 %v7996
    %v9189 = vunpack.c.l.b16 %v7997
    %v9190 = vunpack.c.h.b16 %v7997
    %v9191 = vunpack.c.l.b16 %v7998
    %v9192 = vunpack.c.h.b16 %v7998
    %v9193 = vunpack.c.l.b16 %v7999
    %v9194 = vunpack.c.h.b16 %v7999
    %v9195 = vunpack.c.l.b16 %v8000
    %v9196 = vunpack.c.h.b16 %v8000
    %v9197 = vunpack.c.l.b16 %v8001
    %v9198 = vunpack.c.h.b16 %v8001
    %v9199 = vunpack.c.l.b16 %v8002
    %v9200 = vunpack.c.h.b16 %v8002
    %v9201 = vunpack.c.l.b16 %v8003
    %v9202 = vunpack.c.h.b16 %v8003
    %v9203 = vunpack.c.l.b16 %v8004
    %v9204 = vunpack.c.h.b16 %v8004
    %v9205 = vunpack.c.l.b16 %v8005
    %v9206 = vunpack.c.h.b16 %v8005
    %v9207 = vunpack.c.l.b16 %v8006
    %v9208 = vunpack.c.h.b16 %v8006
    %v9209 = vunpack.c.l.b16 %v8007
    %v9210 = vunpack.c.h.b16 %v8007
    %v9211 = vunpack.c.l.b16 %v8008
    %v9212 = vunpack.c.h.b16 %v8008
    %v9213 = vunpack.c.l.b16 %v8009
    %v9214 = vunpack.c.h.b16 %v8009
    %v9215 = vunpack.c.l.b16 %v8010
    %v9216 = vunpack.c.h.b16 %v8010
    %v9217 = vunpack.c.l.b16 %v8011
    %v9218 = vunpack.c.h.b16 %v8011
    %v9219 = vunpack.c.l.b16 %v8012
    %v9220 = vunpack.c.h.b16 %v8012
    %v9221 = vunpack.c.l.b16 %v8013
    %v9222 = vunpack.c.h.b16 %v8013
    %v9223 = vunpack.c.l.b16 %v8014
    %v9224 = vunpack.c.h.b16 %v8014
    %v9225 = vunpack.c.l.b16 %v8015
    %v9226 = vunpack.c.h.b16 %v8015
    %v9227 = vunpack.c.l.b16 %v8016
    %v9228 = vunpack.c.h.b16 %v8016
    %v9229 = vunpack.c.l.b16 %v8017
    %v9230 = vunpack.c.h.b16 %v8017
    %v9231 = vunpack.c.l.b16 %v8018
    %v9232 = vunpack.c.h.b16 %v8018
    %v9233 = vunpack.c.l.b16 %v8019
    %v9234 = vunpack.c.h.b16 %v8019
    %v9235 = vunpack.c.l.b16 %v8020
    %v9236 = vunpack.c.h.b16 %v8020
    %v9237 = vunpack.c.l.b16 %v8021
    %v9238 = vunpack.c.h.b16 %v8021
    %v9239 = vunpack.c.l.b16 %v8022
    %v9240 = vunpack.c.h.b16 %v8022
    %v9241 = vunpack.c.l.b16 %v8023
    %v9242 = vunpack.c.h.b16 %v8023
    %v9243 = vunpack.c.l.b16 %v8024
    %v9244 = vunpack.c.h.b16 %v8024
    %v9245 = vunpack.c.l.b16 %v8025
    %v9246 = vunpack.c.h.b16 %v8025
    %v9247 = vunpack.c.l.b16 %v8026
    %v9248 = vunpack.c.h.b16 %v8026
    %v9249 = vunpack.c.l.b16 %v8027
    %v9250 = vunpack.c.h.b16 %v8027
    %v9251 = vunpack.c.l.b16 %v8028
    %v9252 = vunpack.c.h.b16 %v8028
    %v9253 = vunpack.c.l.b16 %v8029
    %v9254 = vunpack.c.h.b16 %v8029
    %v9255 = vunpack.c.l.b16 %v8030
    %v9256 = vunpack.c.h.b16 %v8030
    %v9257 = vunpack.c.l.b16 %v8031
    %v9258 = vunpack.c.h.b16 %v8031
    %v9259 = vunpack.c.l.b16 %v8032
    %v9260 = vunpack.c.h.b16 %v8032
    %v9261 = vunpack.c.l.b16 %v8033
    %v9262 = vunpack.c.h.b16 %v8033
    %v9263 = vunpack.c.l.b16 %v8034
    %v9264 = vunpack.c.h.b16 %v8034
    %v9265 = vunpack.c.l.b16 %v8035
    %v9266 = vunpack.c.h.b16 %v8035
    %v9267 = vunpack.c.l.b16 %v8036
    %v9268 = vunpack.c.h.b16 %v8036
    %v9269 = vunpack.c.l.b16 %v8037
    %v9270 = vunpack.c.h.b16 %v8037
    %v9271 = vunpack.c.l.b16 %v8038
    %v9272 = vunpack.c.h.b16 %v8038
    %v9273 = vunpack.c.l.b16 %v8039
    %v9274 = vunpack.c.h.b16 %v8039
    %v9275 = vunpack.c.l.b16 %v8040
    %v9276 = vunpack.c.h.b16 %v8040
    %v9277 = vunpack.c.l.b16 %v8041
    %v9278 = vunpack.c.h.b16 %v8041
    %v9279 = vunpack.c.l.b16 %v8042
    %v9280 = vunpack.c.h.b16 %v8042
    %v9281 = vunpack.c.l.b16 %v8043
    %v9282 = vunpack.c.h.b16 %v8043
    %v9283 = vunpack.c.l.b16 %v8044
    %v9284 = vunpack.c.h.b16 %v8044
    %v9285 = vunpack.c.l.b16 %v8045
    %v9286 = vunpack.c.h.b16 %v8045
    %v9287 = vunpack.c.l.b16 %v8046
    %v9288 = vunpack.c.h.b16 %v8046
    %v9289 = vunpack.c.l.b16 %v8047
    %v9290 = vunpack.c.h.b16 %v8047
    %v9291 = vunpack.c.l.b16 %v8048
    %v9292 = vunpack.c.h.b16 %v8048
    %v9293 = vunpack.c.l.b16 %v8049
    %v9294 = vunpack.c.h.b16 %v8049
    %v9295 = vunpack.c.l.b16 %v8050
    %v9296 = vunpack.c.h.b16 %v8050
    %v9297 = vunpack.c.l.b16 %v8051
    %v9298 = vunpack.c.h.b16 %v8051
    %v9299 = vunpack.c.l.b16 %v8052
    %v9300 = vunpack.c.h.b16 %v8052
    %v9301 = vunpack.c.l.b16 %v8053
    %v9302 = vunpack.c.h.b16 %v8053
    %v9303 = vunpack.c.l.b16 %v8054
    %v9304 = vunpack.c.h.b16 %v8054
    %v9305 = vunpack.c.l.b16 %v8055
    %v9306 = vunpack.c.h.b16 %v8055
    %v9307 = vunpack.c.l.b16 %v8056
    %v9308 = vunpack.c.h.b16 %v8056
    %v9309 = vunpack.c.l.b16 %v8057
    %v9310 = vunpack.c.h.b16 %v8057
    %v9311 = vunpack.c.l.b16 %v8058
    %v9312 = vunpack.c.h.b16 %v8058
    %v9313 = vunpack.c.l.b16 %v8059
    %v9314 = vunpack.c.h.b16 %v8059
    %v9315 = vunpack.c.l.b16 %v8060
    %v9316 = vunpack.c.h.b16 %v8060
    %v9317 = vunpack.c.l.b16 %v8061
    %v9318 = vunpack.c.h.b16 %v8061
    %v9319 = vunpack.c.l.b16 %v8062
    %v9320 = vunpack.c.h.b16 %v8062
    %v9321 = vunpack.c.l.b16 %v8063
    %v9322 = vunpack.c.h.b16 %v8063
    %v9323 = vunpack.c.l.b16 %v8064
    %v9324 = vunpack.c.h.b16 %v8064
    %v9325 = vunpack.c.l.b16 %v8065
    %v9326 = vunpack.c.h.b16 %v8065
    %v9327 = vunpack.c.l.b16 %v8066
    %v9328 = vunpack.c.h.b16 %v8066
    %v9329 = vunpack.c.l.b16 %v8067
    %v9330 = vunpack.c.h.b16 %v8067
    %v9331 = vunpack.c.l.b16 %v8068
    %v9332 = vunpack.c.h.b16 %v8068
    %v9333 = vunpack.c.l.b16 %v8069
    %v9334 = vunpack.c.h.b16 %v8069
    %v9335 = vunpack.c.l.b16 %v8070
    %v9336 = vunpack.c.h.b16 %v8070
    %v9337 = vunpack.c.l.b16 %v8071
    %v9338 = vunpack.c.h.b16 %v8071
    %v9339 = vunpack.c.l.b16 %v8072
    %v9340 = vunpack.c.h.b16 %v8072
    %v9341 = vunpack.c.l.b16 %v8073
    %v9342 = vunpack.c.h.b16 %v8073
    %v9343 = vunpack.c.l.b16 %v8074
    %v9344 = vunpack.c.h.b16 %v8074
    %v9345 = vunpack.c.l.b16 %v8075
    %v9346 = vunpack.c.h.b16 %v8075
    %v9347 = vunpack.c.l.b16 %v8076
    %v9348 = vunpack.c.h.b16 %v8076
    %v9349 = vunpack.c.l.b16 %v8077
    %v9350 = vunpack.c.h.b16 %v8077
    %v9351 = vunpack.c.l.b16 %v8078
    %v9352 = vunpack.c.h.b16 %v8078
    %v9353 = vunpack.c.l.b16 %v8079
    %v9354 = vunpack.c.h.b16 %v8079
    %v9355 = vunpack.c.l.b16 %v8080
    %v9356 = vunpack.c.h.b16 %v8080
    %v9357 = vunpack.c.l.b16 %v8081
    %v9358 = vunpack.c.h.b16 %v8081
    %v9359 = vunpack.c.l.b16 %v8082
    %v9360 = vunpack.c.h.b16 %v8082
    %v9361 = vunpack.c.l.b16 %v8083
    %v9362 = vunpack.c.h.b16 %v8083
    %v9363 = vunpack.c.l.b16 %v8084
    %v9364 = vunpack.c.h.b16 %v8084
    %v9365 = vunpack.c.l.b16 %v8085
    %v9366 = vunpack.c.h.b16 %v8085
    %v9367 = vunpack.c.l.b16 %v8086
    %v9368 = vunpack.c.h.b16 %v8086
    %v9369 = vunpack.c.l.b16 %v8087
    %v9370 = vunpack.c.h.b16 %v8087
    %v9371 = vunpack.c.l.b16 %v8088
    %v9372 = vunpack.c.h.b16 %v8088
    %v9373 = vunpack.c.l.b16 %v8089
    %v9374 = vunpack.c.h.b16 %v8089
    %v9375 = vunpack.c.l.b16 %v8090
    %v9376 = vunpack.c.h.b16 %v8090
    %v9377 = vunpack.c.l.b16 %v8091
    %v9378 = vunpack.c.h.b16 %v8091
    %v9379 = vunpack.c.l.b16 %v8092
    %v9380 = vunpack.c.h.b16 %v8092
    %v9381 = vunpack.c.l.b16 %v8093
    %v9382 = vunpack.c.h.b16 %v8093
    %v9383 = vunpack.c.l.b16 %v8094
    %v9384 = vunpack.c.h.b16 %v8094
    %v9385 = vunpack.c.l.b16 %v8095
    %v9386 = vunpack.c.h.b16 %v8095
    %v9387 = vunpack.c.l.b16 %v8096
    %v9388 = vunpack.c.h.b16 %v8096
    %v9389 = vunpack.c.l.b16 %v8097
    %v9390 = vunpack.c.h.b16 %v8097
    %v9391 = vunpack.c.l.b16 %v8098
    %v9392 = vunpack.c.h.b16 %v8098
    %v9393 = vunpack.c.l.b16 %v8099
    %v9394 = vunpack.c.h.b16 %v8099
    %v9395 = vunpack.c.l.b16 %v8100
    %v9396 = vunpack.c.h.b16 %v8100
    %v9397 = vunpack.c.l.b16 %v8101
    %v9398 = vunpack.c.h.b16 %v8101
    %v9399 = vunpack.c.l.b16 %v8102
    %v9400 = vunpack.c.h.b16 %v8102
    %v9401 = vunpack.c.l.b16 %v8103
    %v9402 = vunpack.c.h.b16 %v8103
    %v9403 = vunpack.c.l.b16 %v8104
    %v9404 = vunpack.c.h.b16 %v8104
    %v9405 = vunpack.c.l.b16 %v8105
    %v9406 = vunpack.c.h.b16 %v8105
    %v9407 = vunpack.c.l.b16 %v8106
    %v9408 = vunpack.c.h.b16 %v8106
    %v9409 = vunpack.c.l.b16 %v8107
    %v9410 = vunpack.c.h.b16 %v8107
    %v9411 = vunpack.c.l.b16 %v8108
    %v9412 = vunpack.c.h.b16 %v8108
    %v9413 = vunpack.c.l.b16 %v8109
    %v9414 = vunpack.c.h.b16 %v8109
    %v9415 = vunpack.c.l.b16 %v8110
    %v9416 = vunpack.c.h.b16 %v8110
    %v9417 = vunpack.c.l.b16 %v8111
    %v9418 = vunpack.c.h.b16 %v8111
    %v9419 = vunpack.c.l.b16 %v8112
    %v9420 = vunpack.c.h.b16 %v8112
    %v9421 = vunpack.c.l.b16 %v8113
    %v9422 = vunpack.c.h.b16 %v8113
    %v9423 = vunpack.c.l.b16 %v8114
    %v9424 = vunpack.c.h.b16 %v8114
    %v9425 = vunpack.c.l.b16 %v8115
    %v9426 = vunpack.c.h.b16 %v8115
    %v9427 = vunpack.c.l.b16 %v8116
    %v9428 = vunpack.c.h.b16 %v8116
    %v9429 = vunpack.c.l.b16 %v8117
    %v9430 = vunpack.c.h.b16 %v8117
    %v9431 = vunpack.c.l.b16 %v8118
    %v9432 = vunpack.c.h.b16 %v8118
    %v9433 = vunpack.c.l.b16 %v8119
    %v9434 = vunpack.c.h.b16 %v8119
    %v9435 = vunpack.c.l.b16 %v8120
    %v9436 = vunpack.c.h.b16 %v8120
    %v9437 = vunpack.c.l.b16 %v8121
    %v9438 = vunpack.c.h.b16 %v8121
    %v9439 = vunpack.c.l.b16 %v8122
    %v9440 = vunpack.c.h.b16 %v8122
    %v9441 = vunpack.c.l.b16 %v8123
    %v9442 = vunpack.c.h.b16 %v8123
    %v9443 = vunpack.c.l.b16 %v8124
    %v9444 = vunpack.c.h.b16 %v8124
    %v9445 = vunpack.c.l.b16 %v8125
    %v9446 = vunpack.c.h.b16 %v8125
    %v9447 = vunpack.c.l.b16 %v8126
    %v9448 = vunpack.c.h.b16 %v8126
    %v9449 = vunpack.c.l.b16 %v8127
    %v9450 = vunpack.c.h.b16 %v8127
    %v9451 = vunpack.c.l.b16 %v8128
    %v9452 = vunpack.c.h.b16 %v8128
    %v9453 = vunpack.c.l.b16 %v8129
    %v9454 = vunpack.c.h.b16 %v8129
    %v9455 = vunpack.c.l.b16 %v8130
    %v9456 = vunpack.c.h.b16 %v8130
    %v9457 = vunpack.c.l.b16 %v8131
    %v9458 = vunpack.c.h.b16 %v8131
    %v9459 = vunpack.c.l.b16 %v8132
    %v9460 = vunpack.c.h.b16 %v8132
    %v9461 = vunpack.c.l.b16 %v8133
    %v9462 = vunpack.c.h.b16 %v8133
    %v9463 = vunpack.c.l.b16 %v8134
    %v9464 = vunpack.c.h.b16 %v8134
    %v9465 = vunpack.c.l.b16 %v8135
    %v9466 = vunpack.c.h.b16 %v8135
    %v9467 = vunpack.c.l.b16 %v8136
    %v9468 = vunpack.c.h.b16 %v8136
    %v9469 = vunpack.c.l.b16 %v8137
    %v9470 = vunpack.c.h.b16 %v8137
    %v9471 = vunpack.c.l.b16 %v8138
    %v9472 = vunpack.c.h.b16 %v8138
    %v9473 = vunpack.c.l.b16 %v8139
    %v9474 = vunpack.c.h.b16 %v8139
    %v9475 = vunpack.c.l.b16 %v8140
    %v9476 = vunpack.c.h.b16 %v8140
    %v9477 = vunpack.c.l.b16 %v8141
    %v9478 = vunpack.c.h.b16 %v8141
    %v9479 = vunpack.c.l.b16 %v8142
    %v9480 = vunpack.c.h.b16 %v8142
    %v9481 = vunpack.c.l.b16 %v8143
    %v9482 = vunpack.c.h.b16 %v8143
    %v9483 = vunpack.c.l.b16 %v8144
    %v9484 = vunpack.c.h.b16 %v8144
    %v9485 = vunpack.c.l.b16 %v8145
    %v9486 = vunpack.c.h.b16 %v8145
    %v9487 = vunpack.c.l.b16 %v8146
    %v9488 = vunpack.c.h.b16 %v8146
    %v9489 = vunpack.c.l.b16 %v8147
    %v9490 = vunpack.c.h.b16 %v8147
    %v9491 = vunpack.c.l.b16 %v8148
    %v9492 = vunpack.c.h.b16 %v8148
    %v9493 = vunpack.c.l.b16 %v8149
    %v9494 = vunpack.c.h.b16 %v8149
    %v9495 = vunpack.c.l.b16 %v8150
    %v9496 = vunpack.c.h.b16 %v8150
    %v9497 = vunpack.c.l.b16 %v8151
    %v9498 = vunpack.c.h.b16 %v8151
    %v9499 = vunpack.c.l.b16 %v8152
    %v9500 = vunpack.c.h.b16 %v8152
    %v9501 = vunpack.c.l.b16 %v8153
    %v9502 = vunpack.c.h.b16 %v8153
    %v9503 = vunpack.c.l.b16 %v8154
    %v9504 = vunpack.c.h.b16 %v8154
    %v9505 = vunpack.c.l.b16 %v8155
    %v9506 = vunpack.c.h.b16 %v8155
    %v9507 = vunpack.c.l.b16 %v8156
    %v9508 = vunpack.c.h.b16 %v8156
    %v9509 = vunpack.c.l.b16 %v8157
    %v9510 = vunpack.c.h.b16 %v8157
    %v9511 = vunpack.c.l.b16 %v8158
    %v9512 = vunpack.c.h.b16 %v8158
    %v9513 = vunpack.c.l.b16 %v8159
    %v9514 = vunpack.c.h.b16 %v8159
    %v9515 = vunpack.c.l.b16 %v8160
    %v9516 = vunpack.c.h.b16 %v8160
    %v9517 = vunpack.c.l.b16 %v8161
    %v9518 = vunpack.c.h.b16 %v8161
    %v9519 = vunpack.c.l.b16 %v8162
    %v9520 = vunpack.c.h.b16 %v8162
    %v9521 = vunpack.c.l.b16 %v8163
    %v9522 = vunpack.c.h.b16 %v8163
    %v9523 = vunpack.c.l.b16 %v8164
    %v9524 = vunpack.c.h.b16 %v8164
    %v9525 = vunpack.c.l.b16 %v8165
    %v9526 = vunpack.c.h.b16 %v8165
    %v9527 = vunpack.c.l.b16 %v8166
    %v9528 = vunpack.c.h.b16 %v8166
    %v9529 = vunpack.c.l.b16 %v8167
    %v9530 = vunpack.c.h.b16 %v8167
    %v9531 = vunpack.c.l.b16 %v8168
    %v9532 = vunpack.c.h.b16 %v8168
    %v9533 = vunpack.c.l.b16 %v8169
    %v9534 = vunpack.c.h.b16 %v8169
    %v9535 = vunpack.c.l.b16 %v8170
    %v9536 = vunpack.c.h.b16 %v8170
    %v9537 = vunpack.c.l.b16 %v8171
    %v9538 = vunpack.c.h.b16 %v8171
    %v9539 = vunpack.c.l.b16 %v8172
    %v9540 = vunpack.c.h.b16 %v8172
    %v9541 = vunpack.c.l.b16 %v8173
    %v9542 = vunpack.c.h.b16 %v8173
    %v9543 = vunpack.c.l.b16 %v8174
    %v9544 = vunpack.c.h.b16 %v8174
    %v9545 = vunpack.c.l.b16 %v8175
    %v9546 = vunpack.c.h.b16 %v8175
    %v9547 = vunpack.c.l.b16 %v8176
    %v9548 = vunpack.c.h.b16 %v8176
    %v9549 = vunpack.c.l.b16 %v8177
    %v9550 = vunpack.c.h.b16 %v8177
    %v9551 = vunpack.c.l.b16 %v8178
    %v9552 = vunpack.c.h.b16 %v8178
    %v9553 = vunpack.c.l.b16 %v8179
    %v9554 = vunpack.c.h.b16 %v8179
    %v9555 = vunpack.c.l.b16 %v8180
    %v9556 = vunpack.c.h.b16 %v8180
    %v9557 = vunpack.c.l.b16 %v8181
    %v9558 = vunpack.c.h.b16 %v8181
    %v9559 = vunpack.c.l.b16 %v8182
    %v9560 = vunpack.c.h.b16 %v8182
    %v9561 = vunpack.c.l.b16 %v8183
    %v9562 = vunpack.c.h.b16 %v8183
    %v9563 = vunpack.c.l.b16 %v8184
    %v9564 = vunpack.c.h.b16 %v8184
    %v9565 = vunpack.c.l.b16 %v8185
    %v9566 = vunpack.c.h.b16 %v8185
    %v9567 = vunpack.c.l.b16 %v8186
    %v9568 = vunpack.c.h.b16 %v8186
    %v9569 = vunpack.c.l.b16 %v8187
    %v9570 = vunpack.c.h.b16 %v8187
    %v9571 = vunpack.c.l.b16 %v8188
    %v9572 = vunpack.c.h.b16 %v8188
    %v9573 = vunpack.c.l.b16 %v8189
    %v9574 = vunpack.c.h.b16 %v8189
    %v9575 = vunpack.c.l.b16 %v8190
    %v9576 = vunpack.c.h.b16 %v8190
    %v9577 = vunpack.c.l.b16 %v8191
    %v9578 = vunpack.c.h.b16 %v8191
    %v9579 = vunpack.c.l.b16 %v8192
    %v9580 = vunpack.c.h.b16 %v8192
    %v9581 = vunpack.c.l.b16 %v8193
    %v9582 = vunpack.c.h.b16 %v8193
    %v9583 = vunpack.c.l.b16 %v8194
    %v9584 = vunpack.c.h.b16 %v8194
    %v9585 = vunpack.c.l.b16 %v8195
    %v9586 = vunpack.c.h.b16 %v8195
    %v9587 = vunpack.c.l.b16 %v8196
    %v9588 = vunpack.c.h.b16 %v8196
    %v9589 = vunpack.c.l.b16 %v8197
    %v9590 = vunpack.c.h.b16 %v8197
    %v9591 = vunpack.c.l.b16 %v8198
    %v9592 = vunpack.c.h.b16 %v8198
    %v9593 = vunpack.c.l.b16 %v8199
    %v9594 = vunpack.c.h.b16 %v8199
    %v9595 = vunpack.c.l.b16 %v8200
    %v9596 = vunpack.c.h.b16 %v8200
    %v9597 = vunpack.c.l.b16 %v8201
    %v9598 = vunpack.c.h.b16 %v8201
    %v9599 = vunpack.c.l.b16 %v8202
    %v9600 = vunpack.c.h.b16 %v8202
    %v9601 = vunpack.c.l.b16 %v8203
    %v9602 = vunpack.c.h.b16 %v8203
    %v9603 = vunpack.c.l.b16 %v8204
    %v9604 = vunpack.c.h.b16 %v8204
    %v9605 = vunpack.c.l.b16 %v8205
    %v9606 = vunpack.c.h.b16 %v8205
    %v9607 = vunpack.c.l.b16 %v8206
    %v9608 = vunpack.c.h.b16 %v8206
    %v9609 = vunpack.c.l.b16 %v8207
    %v9610 = vunpack.c.h.b16 %v8207
    %v9611 = vunpack.c.l.b16 %v8208
    %v9612 = vunpack.c.h.b16 %v8208
    %v9613 = vunpack.c.l.b16 %v8209
    %v9614 = vunpack.c.h.b16 %v8209
    %v9615 = vunpack.c.l.b16 %v8210
    %v9616 = vunpack.c.h.b16 %v8210
    %v9617 = vunpack.c.l.b16 %v8211
    %v9618 = vunpack.c.h.b16 %v8211
    %v9619 = vunpack.c.l.b16 %v8212
    %v9620 = vunpack.c.h.b16 %v8212
    %v9621 = vunpack.c.l.b16 %v8213
    %v9622 = vunpack.c.h.b16 %v8213
    %v9623 = vunpack.c.l.b16 %v8214
    %v9624 = vunpack.c.h.b16 %v8214
    %v9625 = vunpack.c.l.b16 %v8215
    %v9626 = vunpack.c.h.b16 %v8215
    %v9627 = vunpack.c.l.b16 %v8216
    %v9628 = vunpack.c.h.b16 %v8216
    %v9629 = vunpack.c.l.b16 %v8217
    %v9630 = vunpack.c.h.b16 %v8217
    %v9631 = vunpack.c.l.b16 %v8218
    %v9632 = vunpack.c.h.b16 %v8218
    %v9633 = vunpack.c.l.b16 %v8219
    %v9634 = vunpack.c.h.b16 %v8219
    %v9635 = vunpack.c.l.b16 %v8220
    %v9636 = vunpack.c.h.b16 %v8220
    %v9637 = vunpack.c.l.b16 %v8221
    %v9638 = vunpack.c.h.b16 %v8221
    %v9639 = vunpack.c.l.b16 %v8222
    %v9640 = vunpack.c.h.b16 %v8222
    %v9641 = vunpack.c.l.b16 %v8223
    %v9642 = vunpack.c.h.b16 %v8223
    %v9643 = vunpack.c.l.b16 %v8224
    %v9644 = vunpack.c.h.b16 %v8224
    %v9645 = vunpack.c.l.b16 %v8225
    %v9646 = vunpack.c.h.b16 %v8225
    %v9647 = vunpack.c.l.b16 %v8226
    %v9648 = vunpack.c.h.b16 %v8226
    %v9649 = vunpack.c.l.b16 %v8227
    %v9650 = vunpack.c.h.b16 %v8227
    %v9651 = vunpack.c.l.b16 %v8228
    %v9652 = vunpack.c.h.b16 %v8228
    %v9653 = vunpack.c.l.b16 %v8229
    %v9654 = vunpack.c.h.b16 %v8229
    %v9655 = vunpack.c.l.b16 %v8230
    %v9656 = vunpack.c.h.b16 %v8230
    %v9657 = vunpack.c.l.b16 %v8231
    %v9658 = vunpack.c.h.b16 %v8231
    %v9659 = vunpack.c.l.b16 %v8232
    %v9660 = vunpack.c.h.b16 %v8232
    %v9661 = vunpack.c.l.b16 %v8233
    %v9662 = vunpack.c.h.b16 %v8233
    %v9663 = vunpack.c.l.b16 %v8234
    %v9664 = vunpack.c.h.b16 %v8234
    %v9665 = vunpack.c.l.b16 %v8235
    %v9666 = vunpack.c.h.b16 %v8235
    %v9667 = vunpack.c.l.b16 %v8236
    %v9668 = vunpack.c.h.b16 %v8236
    %v9669 = vunpack.c.l.b16 %v8237
    %v9670 = vunpack.c.h.b16 %v8237
    %v9671 = vunpack.c.l.b16 %v8238
    %v9672 = vunpack.c.h.b16 %v8238
    %v9673 = vunpack.c.l.b16 %v8239
    %v9674 = vunpack.c.h.b16 %v8239
    %v9675 = vunpack.c.l.b16 %v8240
    %v9676 = vunpack.c.h.b16 %v8240
    %v9677 = vunpack.c.l.b16 %v8241
    %v9678 = vunpack.c.h.b16 %v8241
    %v9679 = vunpack.c.l.b16 %v8242
    %v9680 = vunpack.c.h.b16 %v8242
    %v9681 = vunpack.c.l.b16 %v8243
    %v9682 = vunpack.c.h.b16 %v8243
    %v9683 = vunpack.c.l.b16 %v8244
    %v9684 = vunpack.c.h.b16 %v8244
    %v9685 = vunpack.c.l.b16 %v8245
    %v9686 = vunpack.c.h.b16 %v8245
    %v9687 = vunpack.c.l.b16 %v8246
    %v9688 = vunpack.c.h.b16 %v8246
    %v9689 = vunpack.c.l.b16 %v8247
    %v9690 = vunpack.c.h.b16 %v8247
    %v9691 = vunpack.c.l.b16 %v8248
    %v9692 = vunpack.c.h.b16 %v8248
    %v9693 = vunpack.c.l.b16 %v8249
    %v9694 = vunpack.c.h.b16 %v8249
    %v9695 = vunpack.c.l.b16 %v8250
    %v9696 = vunpack.c.h.b16 %v8250
    %v9697 = vunpack.c.l.b16 %v8251
    %v9698 = vunpack.c.h.b16 %v8251
    %v9699 = vunpack.c.l.b16 %v8252
    %v9700 = vunpack.c.h.b16 %v8252
    %v9701 = vunpack.c.l.b16 %v8253
    %v9702 = vunpack.c.h.b16 %v8253
    %v9703 = vunpack.c.l.b16 %v8254
    %v9704 = vunpack.c.h.b16 %v8254
    %v9705 = vunpack.c.l.b16 %v8255
    %v9706 = vunpack.c.h.b16 %v8255
    %v9707 = vunpack.c.l.b16 %v8256
    %v9708 = vunpack.c.h.b16 %v8256
    %v9709 = vunpack.c.l.b16 %v8257
    %v9710 = vunpack.c.h.b16 %v8257
    %v9711 = vunpack.c.l.b16 %v8258
    %v9712 = vunpack.c.h.b16 %v8258
    %v9713 = vunpack.c.l.b16 %v8259
    %v9714 = vunpack.c.h.b16 %v8259
    %v9715 = vunpack.c.l.b16 %v8260
    %v9716 = vunpack.c.h.b16 %v8260
    %v9717 = vunpack.c.l.b16 %v8261
    %v9718 = vunpack.c.h.b16 %v8261
    %v9719 = vunpack.c.l.b16 %v8262
    %v9720 = vunpack.c.h.b16 %v8262
    %v9721 = vunpack.c.l.b16 %v8263
    %v9722 = vunpack.c.h.b16 %v8263
    %v9723 = vunpack.c.l.b16 %v8264
    %v9724 = vunpack.c.h.b16 %v8264
    %v9725 = vunpack.c.l.b16 %v8265
    %v9726 = vunpack.c.h.b16 %v8265
    %v9727 = vunpack.c.l.b16 %v8266
    %v9728 = vunpack.c.h.b16 %v8266
    %v9729 = vunpack.c.l.b16 %v8267
    %v9730 = vunpack.c.h.b16 %v8267
    %v9731 = vunpack.c.l.b16 %v8268
    %v9732 = vunpack.c.h.b16 %v8268
    %v9733 = vunpack.c.l.b16 %v8269
    %v9734 = vunpack.c.h.b16 %v8269
    %v9735 = vunpack.c.l.b16 %v8270
    %v9736 = vunpack.c.h.b16 %v8270
    %v9737 = vunpack.c.l.b16 %v8271
    %v9738 = vunpack.c.h.b16 %v8271
    %v9739 = vunpack.c.l.b16 %v8272
    %v9740 = vunpack.c.h.b16 %v8272
    %v9741 = vunpack.c.l.b16 %v8273
    %v9742 = vunpack.c.h.b16 %v8273
    %v9743 = vunpack.c.l.b16 %v8274
    %v9744 = vunpack.c.h.b16 %v8274
    %v9745 = vunpack.c.l.b16 %v8275
    %v9746 = vunpack.c.h.b16 %v8275
    %v9747 = vunpack.c.l.b16 %v8276
    %v9748 = vunpack.c.h.b16 %v8276
    %v9749 = vunpack.c.l.b16 %v8277
    %v9750 = vunpack.c.h.b16 %v8277
    %v9751 = vunpack.c.l.b16 %v8278
    %v9752 = vunpack.c.h.b16 %v8278
    %v9753 = vunpack.c.l.b16 %v8279
    %v9754 = vunpack.c.h.b16 %v8279
    %v9755 = vunpack.c.l.b16 %v8280
    %v9756 = vunpack.c.h.b16 %v8280
    %v9757 = vunpack.c.l.b16 %v8281
    %v9758 = vunpack.c.h.b16 %v8281
    %v9759 = vunpack.c.l.b16 %v8282
    %v9760 = vunpack.c.h.b16 %v8282
    %v9761 = vunpack.c.l.b16 %v8283
    %v9762 = vunpack.c.h.b16 %v8283
    %v9763 = vunpack.c.l.b16 %v8284
    %v9764 = vunpack.c.h.b16 %v8284
    %v9765 = vunpack.c.l.b16 %v8285
    %v9766 = vunpack.c.h.b16 %v8285
    %v9767 = vunpack.c.l.b16 %v8286
    %v9768 = vunpack.c.h.b16 %v8286
    %v9769 = vunpack.c.l.b16 %v8287
    %v9770 = vunpack.c.h.b16 %v8287
    %v9771 = vunpack.c.l.b16 %v8288
    %v9772 = vunpack.c.h.b16 %v8288
    %v9773 = vunpack.c.l.b16 %v8289
    %v9774 = vunpack.c.h.b16 %v8289
    %v9775 = vunpack.c.l.b16 %v8290
    %v9776 = vunpack.c.h.b16 %v8290
    %v9777 = vunpack.c.l.b16 %v8291
    %v9778 = vunpack.c.h.b16 %v8291
    %v9779 = vunpack.c.l.b16 %v8292
    %v9780 = vunpack.c.h.b16 %v8292
    %v9781 = vunpack.c.l.b16 %v8293
    %v9782 = vunpack.c.h.b16 %v8293
    %v9783 = vunpack.c.l.b16 %v8294
    %v9784 = vunpack.c.h.b16 %v8294
    %v9785 = vunpack.c.l.b16 %v8295
    %v9786 = vunpack.c.h.b16 %v8295
    %v9787 = vunpack.c.l.b16 %v8296
    %v9788 = vunpack.c.h.b16 %v8296
    %v9789 = vunpack.c.l.b16 %v8297
    %v9790 = vunpack.c.h.b16 %v8297
    %v9791 = vunpack.c.l.b16 %v8298
    %v9792 = vunpack.c.h.b16 %v8298
    %v9793 = vunpack.c.l.b16 %v8299
    %v9794 = vunpack.c.h.b16 %v8299
    %v9795 = vunpack.c.l.b16 %v8300
    %v9796 = vunpack.c.h.b16 %v8300
    %v9797 = vunpack.c.l.b16 %v8301
    %v9798 = vunpack.c.h.b16 %v8301
    %v9799 = vunpack.c.l.b16 %v8302
    %v9800 = vunpack.c.h.b16 %v8302
    %v9801 = vunpack.c.l.b16 %v8303
    %v9802 = vunpack.c.h.b16 %v8303
    %v9803 = vunpack.c.l.b16 %v8304
    %v9804 = vunpack.c.h.b16 %v8304
    %v9805 = vunpack.c.l.b16 %v8305
    %v9806 = vunpack.c.h.b16 %v8305
    %v9807 = vunpack.c.l.b16 %v8306
    %v9808 = vunpack.c.h.b16 %v8306
    %v9809 = vunpack.c.l.b16 %v8307
    %v9810 = vunpack.c.h.b16 %v8307
    %v9811 = vunpack.c.l.b16 %v8308
    %v9812 = vunpack.c.h.b16 %v8308
    %v9813 = vunpack.c.l.b16 %v8309
    %v9814 = vunpack.c.h.b16 %v8309
    %v9815 = vunpack.c.l.b16 %v8310
    %v9816 = vunpack.c.h.b16 %v8310
    %v9817 = vunpack.c.l.b16 %v8311
    %v9818 = vunpack.c.h.b16 %v8311
    %v9819 = vunpack.c.l.b16 %v8312
    %v9820 = vunpack.c.h.b16 %v8312
    %v9821 = vunpack.c.l.b16 %v8313
    %v9822 = vunpack.c.h.b16 %v8313
    %v9823 = vunpack.c.l.b16 %v8314
    %v9824 = vunpack.c.h.b16 %v8314
    %v9825 = vunpack.c.l.b16 %v8315
    %v9826 = vunpack.c.h.b16 %v8315
    %v9827 = vunpack.c.l.b16 %v8316
    %v9828 = vunpack.c.h.b16 %v8316
    %v9829 = vunpack.c.l.b16 %v8317
    %v9830 = vunpack.c.h.b16 %v8317
    %v9831 = vunpack.c.l.b16 %v8318
    %v9832 = vunpack.c.h.b16 %v8318
    %v9833 = vunpack.c.l.b16 %v8319
    %v9834 = vunpack.c.h.b16 %v8319
    %v9835 = vunpack.c.l.b16 %v8320
    %v9836 = vunpack.c.h.b16 %v8320
    %v9837 = vunpack.c.l.b16 %v8321
    %v9838 = vunpack.c.h.b16 %v8321
    %v9839 = vunpack.c.l.b16 %v8322
    %v9840 = vunpack.c.h.b16 %v8322
    %v9841 = vunpack.c.l.b16 %v8323
    %v9842 = vunpack.c.h.b16 %v8323
    %v9843 = vunpack.c.l.b16 %v8324
    %v9844 = vunpack.c.h.b16 %v8324
    %v9845 = vunpack.c.l.b16 %v8325
    %v9846 = vunpack.c.h.b16 %v8325
    %v9847 = vunpack.c.l.b16 %v8326
    %v9848 = vunpack.c.h.b16 %v8326
    %v9849 = vunpack.c.l.b16 %v8327
    %v9850 = vunpack.c.h.b16 %v8327
    %v9851 = vunpack.c.l.b16 %v8328
    %v9852 = vunpack.c.h.b16 %v8328
    %v9853 = vunpack.c.l.b16 %v8329
    %v9854 = vunpack.c.h.b16 %v8329
    %v9855 = vunpack.c.l.b16 %v8330
    %v9856 = vunpack.c.h.b16 %v8330
    %v9857 = vunpack.c.l.b16 %v8331
    %v9858 = vunpack.c.h.b16 %v8331
    %v9859 = vunpack.c.l.b16 %v8332
    %v9860 = vunpack.c.h.b16 %v8332
    %v9861 = vunpack.c.l.b16 %v8333
    %v9862 = vunpack.c.h.b16 %v8333
    %v9863 = vunpack.c.l.b16 %v8334
    %v9864 = vunpack.c.h.b16 %v8334
    %v9865 = vunpack.c.l.b16 %v8335
    %v9866 = vunpack.c.h.b16 %v8335
    %v9867 = vunpack.c.l.b16 %v8336
    %v9868 = vunpack.c.h.b16 %v8336
    %v9869 = vunpack.c.l.b16 %v8337
    %v9870 = vunpack.c.h.b16 %v8337
    %v9871 = vunpack.c.l.b16 %v8338
    %v9872 = vunpack.c.h.b16 %v8338
    %v9873 = vunpack.c.l.b16 %v8339
    %v9874 = vunpack.c.h.b16 %v8339
    %v9875 = vunpack.c.l.b16 %v8340
    %v9876 = vunpack.c.h.b16 %v8340
    %v9877 = vunpack.c.l.b16 %v8341
    %v9878 = vunpack.c.h.b16 %v8341
    %v9879 = vunpack.c.l.b16 %v8342
    %v9880 = vunpack.c.h.b16 %v8342
    %v9881 = vunpack.c.l.b16 %v8343
    %v9882 = vunpack.c.h.b16 %v8343
    %v9883 = vunpack.c.l.b16 %v8344
    %v9884 = vunpack.c.h.b16 %v8344
    %v9885 = vunpack.c.l.b16 %v8345
    %v9886 = vunpack.c.h.b16 %v8345
    %v9887 = vunpack.c.l.b16 %v8346
    %v9888 = vunpack.c.h.b16 %v8346
    %v9889 = vunpack.c.l.b16 %v8347
    %v9890 = vunpack.c.h.b16 %v8347
    %v9891 = vunpack.c.l.b16 %v8348
    %v9892 = vunpack.c.h.b16 %v8348
    %v9893 = vunpack.c.l.b16 %v8349
    %v9894 = vunpack.c.h.b16 %v8349
    %v9895 = vunpack.c.l.b16 %v8350
    %v9896 = vunpack.c.h.b16 %v8350
    %v9897 = vunpack.c.l.b16 %v8351
    %v9898 = vunpack.c.h.b16 %v8351
    %v9899 = vunpack.c.l.b16 %v8352
    %v9900 = vunpack.c.h.b16 %v8352
    %v9901 = vunpack.c.l.b16 %v8353
    %v9902 = vunpack.c.h.b16 %v8353
    %v9903 = vunpack.c.l.b16 %v8354
    %v9904 = vunpack.c.h.b16 %v8354
    %v9905 = vunpack.c.l.b16 %v8355
    %v9906 = vunpack.c.h.b16 %v8355
    %v9907 = vunpack.c.l.b16 %v8356
    %v9908 = vunpack.c.h.b16 %v8356
    %v9909 = vunpack.c.l.b16 %v8357
    %v9910 = vunpack.c.h.b16 %v8357
    %v9911 = vunpack.c.l.b16 %v8358
    %v9912 = vunpack.c.h.b16 %v8358
    %v9913 = vunpack.c.l.b16 %v8359
    %v9914 = vunpack.c.h.b16 %v8359
    %v9915 = vunpack.c.l.b16 %v8360
    %v9916 = vunpack.c.h.b16 %v8360
    %v9917 = vunpack.c.l.b16 %v8361
    %v9918 = vunpack.c.h.b16 %v8361
    %v9919 = vunpack.c.l.b16 %v8362
    %v9920 = vunpack.c.h.b16 %v8362
    %v9921 = vunpack.c.l.b16 %v8363
    %v9922 = vunpack.c.h.b16 %v8363
    %v9923 = vpack.c.b16 %v8903, %v8899
    %v9924 = vpack.c.b16 %v8904, %v8900
    %v9925 = vpack.c.b16 %v8905, %v8901
    %v9926 = vpack.c.b16 %v8906, %v8902
    %v9927 = vpack.c.b16 %v8911, %v8907
    %v9928 = vpack.c.b16 %v8912, %v8908
    %v9929 = vpack.c.b16 %v8913, %v8909
    %v9930 = vpack.c.b16 %v8914, %v8910
    %v9931 = vpack.c.b16 %v8919, %v8915
    %v9932 = vpack.c.b16 %v8920, %v8916
    %v9933 = vpack.c.b16 %v8921, %v8917
    %v9934 = vpack.c.b16 %v8922, %v8918
    %v9935 = vpack.c.b16 %v8927, %v8923
    %v9936 = vpack.c.b16 %v8928, %v8924
    %v9937 = vpack.c.b16 %v8929, %v8925
    %v9938 = vpack.c.b16 %v8930, %v8926
    %v9939 = vpack.c.b16 %v8935, %v8931
    %v9940 = vpack.c.b16 %v8936, %v8932
    %v9941 = vpack.c.b16 %v8937, %v8933
    %v9942 = vpack.c.b16 %v8938, %v8934
    %v9943 = vpack.c.b16 %v8943, %v8939
    %v9944 = vpack.c.b16 %v8944, %v8940
    %v9945 = vpack.c.b16 %v8945, %v8941
    %v9946 = vpack.c.b16 %v8946, %v8942
    %v9947 = vpack.c.b16 %v8951, %v8947
    %v9948 = vpack.c.b16 %v8952, %v8948
    %v9949 = vpack.c.b16 %v8953, %v8949
    %v9950 = vpack.c.b16 %v8954, %v8950
    %v9951 = vpack.c.b16 %v8959, %v8955
    %v9952 = vpack.c.b16 %v8960, %v8956
    %v9953 = vpack.c.b16 %v8961, %v8957
    %v9954 = vpack.c.b16 %v8962, %v8958
    %v9955 = vpack.c.b16 %v8967, %v8963
    %v9956 = vpack.c.b16 %v8968, %v8964
    %v9957 = vpack.c.b16 %v8969, %v8965
    %v9958 = vpack.c.b16 %v8970, %v8966
    %v9959 = vpack.c.b16 %v8975, %v8971
    %v9960 = vpack.c.b16 %v8976, %v8972
    %v9961 = vpack.c.b16 %v8977, %v8973
    %v9962 = vpack.c.b16 %v8978, %v8974
    %v9963 = vpack.c.b16 %v8983, %v8979
    %v9964 = vpack.c.b16 %v8984, %v8980
    %v9965 = vpack.c.b16 %v8985, %v8981
    %v9966 = vpack.c.b16 %v8986, %v8982
    %v9967 = vpack.c.b16 %v8991, %v8987
    %v9968 = vpack.c.b16 %v8992, %v8988
    %v9969 = vpack.c.b16 %v8993, %v8989
    %v9970 = vpack.c.b16 %v8994, %v8990
    %v9971 = vpack.c.b16 %v8999, %v8995
    %v9972 = vpack.c.b16 %v9000, %v8996
    %v9973 = vpack.c.b16 %v9001, %v8997
    %v9974 = vpack.c.b16 %v9002, %v8998
    %v9975 = vpack.c.b16 %v9007, %v9003
    %v9976 = vpack.c.b16 %v9008, %v9004
    %v9977 = vpack.c.b16 %v9009, %v9005
    %v9978 = vpack.c.b16 %v9010, %v9006
    %v9979 = vpack.c.b16 %v9015, %v9011
    %v9980 = vpack.c.b16 %v9016, %v9012
    %v9981 = vpack.c.b16 %v9017, %v9013
    %v9982 = vpack.c.b16 %v9018, %v9014
    %v9983 = vpack.c.b16 %v9023, %v9019
    %v9984 = vpack.c.b16 %v9024, %v9020
    %v9985 = vpack.c.b16 %v9025, %v9021
    %v9986 = vpack.c.b16 %v9026, %v9022
    %v9987 = vpack.c.b16 %v9031, %v9027
    %v9988 = vpack.c.b16 %v9032, %v9028
    %v9989 = vpack.c.b16 %v9033, %v9029
    %v9990 = vpack.c.b16 %v9034, %v9030
    %v9991 = vpack.c.b16 %v9039, %v9035
    %v9992 = vpack.c.b16 %v9040, %v9036
    %v9993 = vpack.c.b16 %v9041, %v9037
    %v9994 = vpack.c.b16 %v9042, %v9038
    %v9995 = vpack.c.b16 %v9047, %v9043
    %v9996 = vpack.c.b16 %v9048, %v9044
    %v9997 = vpack.c.b16 %v9049, %v9045
    %v9998 = vpack.c.b16 %v9050, %v9046
    %v9999 = vpack.c.b16 %v9055, %v9051
    %v10000 = vpack.c.b16 %v9056, %v9052
    %v10001 = vpack.c.b16 %v9057, %v9053
    %v10002 = vpack.c.b16 %v9058, %v9054
    %v10003 = vpack.c.b16 %v9063, %v9059
    %v10004 = vpack.c.b16 %v9064, %v9060
    %v10005 = vpack.c.b16 %v9065, %v9061
    %v10006 = vpack.c.b16 %v9066, %v9062
    %v10007 = vpack.c.b16 %v9071, %v9067
    %v10008 = vpack.c.b16 %v9072, %v9068
    %v10009 = vpack.c.b16 %v9073, %v9069
    %v10010 = vpack.c.b16 %v9074, %v9070
    %v10011 = vpack.c.b16 %v9079, %v9075
    %v10012 = vpack.c.b16 %v9080, %v9076
    %v10013 = vpack.c.b16 %v9081, %v9077
    %v10014 = vpack.c.b16 %v9082, %v9078
    %v10015 = vpack.c.b16 %v9087, %v9083
    %v10016 = vpack.c.b16 %v9088, %v9084
    %v10017 = vpack.c.b16 %v9089, %v9085
    %v10018 = vpack.c.b16 %v9090, %v9086
    %v10019 = vpack.c.b16 %v9095, %v9091
    %v10020 = vpack.c.b16 %v9096, %v9092
    %v10021 = vpack.c.b16 %v9097, %v9093
    %v10022 = vpack.c.b16 %v9098, %v9094
    %v10023 = vpack.c.b16 %v9103, %v9099
    %v10024 = vpack.c.b16 %v9104, %v9100
    %v10025 = vpack.c.b16 %v9105, %v9101
    %v10026 = vpack.c.b16 %v9106, %v9102
    %v10027 = vpack.c.b16 %v9111, %v9107
    %v10028 = vpack.c.b16 %v9112, %v9108
    %v10029 = vpack.c.b16 %v9113, %v9109
    %v10030 = vpack.c.b16 %v9114, %v9110
    %v10031 = vpack.c.b16 %v9119, %v9115
    %v10032 = vpack.c.b16 %v9120, %v9116
    %v10033 = vpack.c.b16 %v9121, %v9117
    %v10034 = vpack.c.b16 %v9122, %v9118
    %v10035 = vpack.c.b16 %v9127, %v9123
    %v10036 = vpack.c.b16 %v9128, %v9124
    %v10037 = vpack.c.b16 %v9129, %v9125
    %v10038 = vpack.c.b16 %v9130, %v9126
    %v10039 = vpack.c.b16 %v9135, %v9131
    %v10040 = vpack.c.b16 %v9136, %v9132
    %v10041 = vpack.c.b16 %v9137, %v9133
    %v10042 = vpack.c.b16 %v9138, %v9134
    %v10043 = vpack.c.b16 %v9143, %v9139
    %v10044 = vpack.c.b16 %v9144, %v9140
    %v10045 = vpack.c.b16 %v9145, %v9141
    %v10046 = vpack.c.b16 %v9146, %v9142
    %v10047 = vpack.c.b16 %v9151, %v9147
    %v10048 = vpack.c.b16 %v9152, %v9148
    %v10049 = vpack.c.b16 %v9153, %v9149
    %v10050 = vpack.c.b16 %v9154, %v9150
    %v10051 = vpack.c.b16 %v9159, %v9155
    %v10052 = vpack.c.b16 %v9160, %v9156
    %v10053 = vpack.c.b16 %v9161, %v9157
    %v10054 = vpack.c.b16 %v9162, %v9158
    %v10055 = vpack.c.b16 %v9167, %v9163
    %v10056 = vpack.c.b16 %v9168, %v9164
    %v10057 = vpack.c.b16 %v9169, %v9165
    %v10058 = vpack.c.b16 %v9170, %v9166
    %v10059 = vpack.c.b16 %v9175, %v9171
    %v10060 = vpack.c.b16 %v9176, %v9172
    %v10061 = vpack.c.b16 %v9177, %v9173
    %v10062 = vpack.c.b16 %v9178, %v9174
    %v10063 = vpack.c.b16 %v9183, %v9179
    %v10064 = vpack.c.b16 %v9184, %v9180
    %v10065 = vpack.c.b16 %v9185, %v9181
    %v10066 = vpack.c.b16 %v9186, %v9182
    %v10067 = vpack.c.b16 %v9191, %v9187
    %v10068 = vpack.c.b16 %v9192, %v9188
    %v10069 = vpack.c.b16 %v9193, %v9189
    %v10070 = vpack.c.b16 %v9194, %v9190
    %v10071 = vpack.c.b16 %v9199, %v9195
    %v10072 = vpack.c.b16 %v9200, %v9196
    %v10073 = vpack.c.b16 %v9201, %v9197
    %v10074 = vpack.c.b16 %v9202, %v9198
    %v10075 = vpack.c.b16 %v9207, %v9203
    %v10076 = vpack.c.b16 %v9208, %v9204
    %v10077 = vpack.c.b16 %v9209, %v9205
    %v10078 = vpack.c.b16 %v9210, %v9206
    %v10079 = vpack.c.b16 %v9215, %v9211
    %v10080 = vpack.c.b16 %v9216, %v9212
    %v10081 = vpack.c.b16 %v9217, %v9213
    %v10082 = vpack.c.b16 %v9218, %v9214
    %v10083 = vpack.c.b16 %v9223, %v9219
    %v10084 = vpack.c.b16 %v9224, %v9220
    %v10085 = vpack.c.b16 %v9225, %v9221
    %v10086 = vpack.c.b16 %v9226, %v9222
    %v10087 = vpack.c.b16 %v9231, %v9227
    %v10088 = vpack.c.b16 %v9232, %v9228
    %v10089 = vpack.c.b16 %v9233, %v9229
    %v10090 = vpack.c.b16 %v9234, %v9230
    %v10091 = vpack.c.b16 %v9239, %v9235
    %v10092 = vpack.c.b16 %v9240, %v9236
    %v10093 = vpack.c.b16 %v9241, %v9237
    %v10094 = vpack.c.b16 %v9242, %v9238
    %v10095 = vpack.c.b16 %v9247, %v9243
    %v10096 = vpack.c.b16 %v9248, %v9244
    %v10097 = vpack.c.b16 %v9249, %v9245
    %v10098 = vpack.c.b16 %v9250, %v9246
    %v10099 = vpack.c.b16 %v9255, %v9251
    %v10100 = vpack.c.b16 %v9256, %v9252
    %v10101 = vpack.c.b16 %v9257, %v9253
    %v10102 = vpack.c.b16 %v9258, %v9254
    %v10103 = vpack.c.b16 %v9263, %v9259
    %v10104 = vpack.c.b16 %v9264, %v9260
    %v10105 = vpack.c.b16 %v9265, %v9261
    %v10106 = vpack.c.b16 %v9266, %v9262
    %v10107 = vpack.c.b16 %v9271, %v9267
    %v10108 = vpack.c.b16 %v9272, %v9268
    %v10109 = vpack.c.b16 %v9273, %v9269
    %v10110 = vpack.c.b16 %v9274, %v9270
    %v10111 = vpack.c.b16 %v9279, %v9275
    %v10112 = vpack.c.b16 %v9280, %v9276
    %v10113 = vpack.c.b16 %v9281, %v9277
    %v10114 = vpack.c.b16 %v9282, %v9278
    %v10115 = vpack.c.b16 %v9287, %v9283
    %v10116 = vpack.c.b16 %v9288, %v9284
    %v10117 = vpack.c.b16 %v9289, %v9285
    %v10118 = vpack.c.b16 %v9290, %v9286
    %v10119 = vpack.c.b16 %v9295, %v9291
    %v10120 = vpack.c.b16 %v9296, %v9292
    %v10121 = vpack.c.b16 %v9297, %v9293
    %v10122 = vpack.c.b16 %v9298, %v9294
    %v10123 = vpack.c.b16 %v9303, %v9299
    %v10124 = vpack.c.b16 %v9304, %v9300
    %v10125 = vpack.c.b16 %v9305, %v9301
    %v10126 = vpack.c.b16 %v9306, %v9302
    %v10127 = vpack.c.b16 %v9311, %v9307
    %v10128 = vpack.c.b16 %v9312, %v9308
    %v10129 = vpack.c.b16 %v9313, %v9309
    %v10130 = vpack.c.b16 %v9314, %v9310
    %v10131 = vpack.c.b16 %v9319, %v9315
    %v10132 = vpack.c.b16 %v9320, %v9316
    %v10133 = vpack.c.b16 %v9321, %v9317
    %v10134 = vpack.c.b16 %v9322, %v9318
    %v10135 = vpack.c.b16 %v9327, %v9323
    %v10136 = vpack.c.b16 %v9328, %v9324
    %v10137 = vpack.c.b16 %v9329, %v9325
    %v10138 = vpack.c.b16 %v9330, %v9326
    %v10139 = vpack.c.b16 %v9335, %v9331
    %v10140 = vpack.c.b16 %v9336, %v9332
    %v10141 = vpack.c.b16 %v9337, %v9333
    %v10142 = vpack.c.b16 %v9338, %v9334
    %v10143 = vpack.c.b16 %v9343, %v9339
    %v10144 = vpack.c.b16 %v9344, %v9340
    %v10145 = vpack.c.b16 %v9345, %v9341
    %v10146 = vpack.c.b16 %v9346, %v9342
    %v10147 = vpack.c.b16 %v9351, %v9347
    %v10148 = vpack.c.b16 %v9352, %v9348
    %v10149 = vpack.c.b16 %v9353, %v9349
    %v10150 = vpack.c.b16 %v9354, %v9350
    %v10151 = vpack.c.b16 %v9359, %v9355
    %v10152 = vpack.c.b16 %v9360, %v9356
    %v10153 = vpack.c.b16 %v9361, %v9357
    %v10154 = vpack.c.b16 %v9362, %v9358
    %v10155 = vpack.c.b16 %v9367, %v9363
    %v10156 = vpack.c.b16 %v9368, %v9364
    %v10157 = vpack.c.b16 %v9369, %v9365
    %v10158 = vpack.c.b16 %v9370, %v9366
    %v10159 = vpack.c.b16 %v9375, %v9371
    %v10160 = vpack.c.b16 %v9376, %v9372
    %v10161 = vpack.c.b16 %v9377, %v9373
    %v10162 = vpack.c.b16 %v9378, %v9374
    %v10163 = vpack.c.b16 %v9383, %v9379
    %v10164 = vpack.c.b16 %v9384, %v9380
    %v10165 = vpack.c.b16 %v9385, %v9381
    %v10166 = vpack.c.b16 %v9386, %v9382
    %v10167 = vpack.c.b16 %v9391, %v9387
    %v10168 = vpack.c.b16 %v9392, %v9388
    %v10169 = vpack.c.b16 %v9393, %v9389
    %v10170 = vpack.c.b16 %v9394, %v9390
    %v10171 = vpack.c.b16 %v9399, %v9395
    %v10172 = vpack.c.b16 %v9400, %v9396
    %v10173 = vpack.c.b16 %v9401, %v9397
    %v10174 = vpack.c.b16 %v9402, %v9398
    %v10175 = vpack.c.b16 %v9407, %v9403
    %v10176 = vpack.c.b16 %v9408, %v9404
    %v10177 = vpack.c.b16 %v9409, %v9405
    %v10178 = vpack.c.b16 %v9410, %v9406
    %v10179 = vpack.c.b16 %v9415, %v9411
    %v10180 = vpack.c.b16 %v9416, %v9412
    %v10181 = vpack.c.b16 %v9417, %v9413
    %v10182 = vpack.c.b16 %v9418, %v9414
    %v10183 = vpack.c.b16 %v9423, %v9419
    %v10184 = vpack.c.b16 %v9424, %v9420
    %v10185 = vpack.c.b16 %v9425, %v9421
    %v10186 = vpack.c.b16 %v9426, %v9422
    %v10187 = vpack.c.b16 %v9431, %v9427
    %v10188 = vpack.c.b16 %v9432, %v9428
    %v10189 = vpack.c.b16 %v9433, %v9429
    %v10190 = vpack.c.b16 %v9434, %v9430
    %v10191 = vpack.c.b16 %v9439, %v9435
    %v10192 = vpack.c.b16 %v9440, %v9436
    %v10193 = vpack.c.b16 %v9441, %v9437
    %v10194 = vpack.c.b16 %v9442, %v9438
    %v10195 = vpack.c.b16 %v9447, %v9443
    %v10196 = vpack.c.b16 %v9448, %v9444
    %v10197 = vpack.c.b16 %v9449, %v9445
    %v10198 = vpack.c.b16 %v9450, %v9446
    %v10199 = vpack.c.b16 %v9455, %v9451
    %v10200 = vpack.c.b16 %v9456, %v9452
    %v10201 = vpack.c.b16 %v9457, %v9453
    %v10202 = vpack.c.b16 %v9458, %v9454
    %v10203 = vpack.c.b16 %v9463, %v9459
    %v10204 = vpack.c.b16 %v9464, %v9460
    %v10205 = vpack.c.b16 %v9465, %v9461
    %v10206 = vpack.c.b16 %v9466, %v9462
    %v10207 = vpack.c.b16 %v9471, %v9467
    %v10208 = vpack.c.b16 %v9472, %v9468
    %v10209 = vpack.c.b16 %v9473, %v9469
    %v10210 = vpack.c.b16 %v9474, %v9470
    %v10211 = vpack.c.b16 %v9479, %v9475
    %v10212 = vpack.c.b16 %v9480, %v9476
    %v10213 = vpack.c.b16 %v9481, %v9477
    %v10214 = vpack.c.b16 %v9482, %v9478
    %v10215 = vpack.c.b16 %v9487, %v9483
    %v10216 = vpack.c.b16 %v9488, %v9484
    %v10217 = vpack.c.b16 %v9489, %v9485
    %v10218 = vpack.c.b16 %v9490, %v9486
    %v10219 = vpack.c.b16 %v9495, %v9491
    %v10220 = vpack.c.b16 %v9496, %v9492
    %v10221 = vpack.c.b16 %v9497, %v9493
    %v10222 = vpack.c.b16 %v9498, %v9494
    %v10223 = vpack.c.b16 %v9503, %v9499
    %v10224 = vpack.c.b16 %v9504, %v9500
    %v10225 = vpack.c.b16 %v9505, %v9501
    %v10226 = vpack.c.b16 %v9506, %v9502
    %v10227 = vpack.c.b16 %v9511, %v9507
    %v10228 = vpack.c.b16 %v9512, %v9508
    %v10229 = vpack.c.b16 %v9513, %v9509
    %v10230 = vpack.c.b16 %v9514, %v9510
    %v10231 = vpack.c.b16 %v9519, %v9515
    %v10232 = vpack.c.b16 %v9520, %v9516
    %v10233 = vpack.c.b16 %v9521, %v9517
    %v10234 = vpack.c.b16 %v9522, %v9518
    %v10235 = vpack.c.b16 %v9527, %v9523
    %v10236 = vpack.c.b16 %v9528, %v9524
    %v10237 = vpack.c.b16 %v9529, %v9525
    %v10238 = vpack.c.b16 %v9530, %v9526
    %v10239 = vpack.c.b16 %v9535, %v9531
    %v10240 = vpack.c.b16 %v9536, %v9532
    %v10241 = vpack.c.b16 %v9537, %v9533
    %v10242 = vpack.c.b16 %v9538, %v9534
    %v10243 = vpack.c.b16 %v9543, %v9539
    %v10244 = vpack.c.b16 %v9544, %v9540
    %v10245 = vpack.c.b16 %v9545, %v9541
    %v10246 = vpack.c.b16 %v9546, %v9542
    %v10247 = vpack.c.b16 %v9551, %v9547
    %v10248 = vpack.c.b16 %v9552, %v9548
    %v10249 = vpack.c.b16 %v9553, %v9549
    %v10250 = vpack.c.b16 %v9554, %v9550
    %v10251 = vpack.c.b16 %v9559, %v9555
    %v10252 = vpack.c.b16 %v9560, %v9556
    %v10253 = vpack.c.b16 %v9561, %v9557
    %v10254 = vpack.c.b16 %v9562, %v9558
    %v10255 = vpack.c.b16 %v9567, %v9563
    %v10256 = vpack.c.b16 %v9568, %v9564
    %v10257 = vpack.c.b16 %v9569, %v9565
    %v10258 = vpack.c.b16 %v9570, %v9566
    %v10259 = vpack.c.b16 %v9575, %v9571
    %v10260 = vpack.c.b16 %v9576, %v9572
    %v10261 = vpack.c.b16 %v9577, %v9573
    %v10262 = vpack.c.b16 %v9578, %v9574
    %v10263 = vpack.c.b16 %v9583, %v9579
    %v10264 = vpack.c.b16 %v9584, %v9580
    %v10265 = vpack.c.b16 %v9585, %v9581
    %v10266 = vpack.c.b16 %v9586, %v9582
    %v10267 = vpack.c.b16 %v9591, %v9587
    %v10268 = vpack.c.b16 %v9592, %v9588
    %v10269 = vpack.c.b16 %v9593, %v9589
    %v10270 = vpack.c.b16 %v9594, %v9590
    %v10271 = vpack.c.b16 %v9599, %v9595
    %v10272 = vpack.c.b16 %v9600, %v9596
    %v10273 = vpack.c.b16 %v9601, %v9597
    %v10274 = vpack.c.b16 %v9602, %v9598
    %v10275 = vpack.c.b16 %v9607, %v9603
    %v10276 = vpack.c.b16 %v9608, %v9604
    %v10277 = vpack.c.b16 %v9609, %v9605
    %v10278 = vpack.c.b16 %v9610, %v9606
    %v10279 = vpack.c.b16 %v9615, %v9611
    %v10280 = vpack.c.b16 %v9616, %v9612
    %v10281 = vpack.c.b16 %v9617, %v9613
    %v10282 = vpack.c.b16 %v9618, %v9614
    %v10283 = vpack.c.b16 %v9623, %v9619
    %v10284 = vpack.c.b16 %v9624, %v9620
    %v10285 = vpack.c.b16 %v9625, %v9621
    %v10286 = vpack.c.b16 %v9626, %v9622
    %v10287 = vpack.c.b16 %v9631, %v9627
    %v10288 = vpack.c.b16 %v9632, %v9628
    %v10289 = vpack.c.b16 %v9633, %v9629
    %v10290 = vpack.c.b16 %v9634, %v9630
    %v10291 = vpack.c.b16 %v9639, %v9635
    %v10292 = vpack.c.b16 %v9640, %v9636
    %v10293 = vpack.c.b16 %v9641, %v9637
    %v10294 = vpack.c.b16 %v9642, %v9638
    %v10295 = vpack.c.b16 %v9647, %v9643
    %v10296 = vpack.c.b16 %v9648, %v9644
    %v10297 = vpack.c.b16 %v9649, %v9645
    %v10298 = vpack.c.b16 %v9650, %v9646
    %v10299 = vpack.c.b16 %v9655, %v9651
    %v10300 = vpack.c.b16 %v9656, %v9652
    %v10301 = vpack.c.b16 %v9657, %v9653
    %v10302 = vpack.c.b16 %v9658, %v9654
    %v10303 = vpack.c.b16 %v9663, %v9659
    %v10304 = vpack.c.b16 %v9664, %v9660
    %v10305 = vpack.c.b16 %v9665, %v9661
    %v10306 = vpack.c.b16 %v9666, %v9662
    %v10307 = vpack.c.b16 %v9671, %v9667
    %v10308 = vpack.c.b16 %v9672, %v9668
    %v10309 = vpack.c.b16 %v9673, %v9669
    %v10310 = vpack.c.b16 %v9674, %v9670
    %v10311 = vpack.c.b16 %v9679, %v9675
    %v10312 = vpack.c.b16 %v9680, %v9676
    %v10313 = vpack.c.b16 %v9681, %v9677
    %v10314 = vpack.c.b16 %v9682, %v9678
    %v10315 = vpack.c.b16 %v9687, %v9683
    %v10316 = vpack.c.b16 %v9688, %v9684
    %v10317 = vpack.c.b16 %v9689, %v9685
    %v10318 = vpack.c.b16 %v9690, %v9686
    %v10319 = vpack.c.b16 %v9695, %v9691
    %v10320 = vpack.c.b16 %v9696, %v9692
    %v10321 = vpack.c.b16 %v9697, %v9693
    %v10322 = vpack.c.b16 %v9698, %v9694
    %v10323 = vpack.c.b16 %v9703, %v9699
    %v10324 = vpack.c.b16 %v9704, %v9700
    %v10325 = vpack.c.b16 %v9705, %v9701
    %v10326 = vpack.c.b16 %v9706, %v9702
    %v10327 = vpack.c.b16 %v9711, %v9707
    %v10328 = vpack.c.b16 %v9712, %v9708
    %v10329 = vpack.c.b16 %v9713, %v9709
    %v10330 = vpack.c.b16 %v9714, %v9710
    %v10331 = vpack.c.b16 %v9719, %v9715
    %v10332 = vpack.c.b16 %v9720, %v9716
    %v10333 = vpack.c.b16 %v9721, %v9717
    %v10334 = vpack.c.b16 %v9722, %v9718
    %v10335 = vpack.c.b16 %v9727, %v9723
    %v10336 = vpack.c.b16 %v9728, %v9724
    %v10337 = vpack.c.b16 %v9729, %v9725
    %v10338 = vpack.c.b16 %v9730, %v9726
    %v10339 = vpack.c.b16 %v9735, %v9731
    %v10340 = vpack.c.b16 %v9736, %v9732
    %v10341 = vpack.c.b16 %v9737, %v9733
    %v10342 = vpack.c.b16 %v9738, %v9734
    %v10343 = vpack.c.b16 %v9743, %v9739
    %v10344 = vpack.c.b16 %v9744, %v9740
    %v10345 = vpack.c.b16 %v9745, %v9741
    %v10346 = vpack.c.b16 %v9746, %v9742
    %v10347 = vpack.c.b16 %v9751, %v9747
    %v10348 = vpack.c.b16 %v9752, %v9748
    %v10349 = vpack.c.b16 %v9753, %v9749
    %v10350 = vpack.c.b16 %v9754, %v9750
    %v10351 = vpack.c.b16 %v9759, %v9755
    %v10352 = vpack.c.b16 %v9760, %v9756
    %v10353 = vpack.c.b16 %v9761, %v9757
    %v10354 = vpack.c.b16 %v9762, %v9758
    %v10355 = vpack.c.b16 %v9767, %v9763
    %v10356 = vpack.c.b16 %v9768, %v9764
    %v10357 = vpack.c.b16 %v9769, %v9765
    %v10358 = vpack.c.b16 %v9770, %v9766
    %v10359 = vpack.c.b16 %v9775, %v9771
    %v10360 = vpack.c.b16 %v9776, %v9772
    %v10361 = vpack.c.b16 %v9777, %v9773
    %v10362 = vpack.c.b16 %v9778, %v9774
    %v10363 = vpack.c.b16 %v9783, %v9779
    %v10364 = vpack.c.b16 %v9784, %v9780
    %v10365 = vpack.c.b16 %v9785, %v9781
    %v10366 = vpack.c.b16 %v9786, %v9782
    %v10367 = vpack.c.b16 %v9791, %v9787
    %v10368 = vpack.c.b16 %v9792, %v9788
    %v10369 = vpack.c.b16 %v9793, %v9789
    %v10370 = vpack.c.b16 %v9794, %v9790
    %v10371 = vpack.c.b16 %v9799, %v9795
    %v10372 = vpack.c.b16 %v9800, %v9796
    %v10373 = vpack.c.b16 %v9801, %v9797
    %v10374 = vpack.c.b16 %v9802, %v9798
    %v10375 = vpack.c.b16 %v9807, %v9803
    %v10376 = vpack.c.b16 %v9808, %v9804
    %v10377 = vpack.c.b16 %v9809, %v9805
    %v10378 = vpack.c.b16 %v9810, %v9806
    %v10379 = vpack.c.b16 %v9815, %v9811
    %v10380 = vpack.c.b16 %v9816, %v9812
    %v10381 = vpack.c.b16 %v9817, %v9813
    %v10382 = vpack.c.b16 %v9818, %v9814
    %v10383 = vpack.c.b16 %v9823, %v9819
    %v10384 = vpack.c.b16 %v9824, %v9820
    %v10385 = vpack.c.b16 %v9825, %v9821
    %v10386 = vpack.c.b16 %v9826, %v9822
    %v10387 = vpack.c.b16 %v9831, %v9827
    %v10388 = vpack.c.b16 %v9832, %v9828
    %v10389 = vpack.c.b16 %v9833, %v9829
    %v10390 = vpack.c.b16 %v9834, %v9830
    %v10391 = vpack.c.b16 %v9839, %v9835
    %v10392 = vpack.c.b16 %v9840, %v9836
    %v10393 = vpack.c.b16 %v9841, %v9837
    %v10394 = vpack.c.b16 %v9842, %v9838
    %v10395 = vpack.c.b16 %v9847, %v9843
    %v10396 = vpack.c.b16 %v9848, %v9844
    %v10397 = vpack.c.b16 %v9849, %v9845
    %v10398 = vpack.c.b16 %v9850, %v9846
    %v10399 = vpack.c.b16 %v9855, %v9851
    %v10400 = vpack.c.b16 %v9856, %v9852
    %v10401 = vpack.c.b16 %v9857, %v9853
    %v10402 = vpack.c.b16 %v9858, %v9854
    %v10403 = vpack.c.b16 %v9863, %v9859
    %v10404 = vpack.c.b16 %v9864, %v9860
    %v10405 = vpack.c.b16 %v9865, %v9861
    %v10406 = vpack.c.b16 %v9866, %v9862
    %v10407 = vpack.c.b16 %v9871, %v9867
    %v10408 = vpack.c.b16 %v9872, %v9868
    %v10409 = vpack.c.b16 %v9873, %v9869
    %v10410 = vpack.c.b16 %v9874, %v9870
    %v10411 = vpack.c.b16 %v9879, %v9875
    %v10412 = vpack.c.b16 %v9880, %v9876
    %v10413 = vpack.c.b16 %v9881, %v9877
    %v10414 = vpack.c.b16 %v9882, %v9878
    %v10415 = vpack.c.b16 %v9887, %v9883
    %v10416 = vpack.c.b16 %v9888, %v9884
    %v10417 = vpack.c.b16 %v9889, %v9885
    %v10418 = vpack.c.b16 %v9890, %v9886
    %v10419 = vpack.c.b16 %v9895, %v9891
    %v10420 = vpack.c.b16 %v9896, %v9892
    %v10421 = vpack.c.b16 %v9897, %v9893
    %v10422 = vpack.c.b16 %v9898, %v9894
    %v10423 = vpack.c.b16 %v9903, %v9899
    %v10424 = vpack.c.b16 %v9904, %v9900
    %v10425 = vpack.c.b16 %v9905, %v9901
    %v10426 = vpack.c.b16 %v9906, %v9902
    %v10427 = vpack.c.b16 %v9911, %v9907
    %v10428 = vpack.c.b16 %v9912, %v9908
    %v10429 = vpack.c.b16 %v9913, %v9909
    %v10430 = vpack.c.b16 %v9914, %v9910
    %v10431 = vpack.c.b16 %v9919, %v9915
    %v10432 = vpack.c.b16 %v9920, %v9916
    %v10433 = vpack.c.b16 %v9921, %v9917
    %v10434 = vpack.c.b16 %v9922, %v9918
    %10947 = vmatprep.subr.bf16.mxu0 %v9924
    %10948 = vmatpush1.bf16.msra.mxu0 %v9923
    %10949 = vmatprep.subr.bf16.mxu0 %v9928
    %10950 = vmatpush1.bf16.msra.mxu0 %v9927
    %10951 = vmatprep.subr.bf16.mxu0 %v9932
    %10952 = vmatpush1.bf16.msra.mxu0 %v9931
    %10953 = vmatprep.subr.bf16.mxu0 %v9936
    %10954 = vmatpush1.bf16.msra.mxu0 %v9935
    %10955 = vmatprep.subr.bf16.mxu0 %v9940
    %10956 = vmatpush1.bf16.msra.mxu0 %v9939
    %10957 = vmatprep.subr.bf16.mxu0 %v9944
    %10958 = vmatpush1.bf16.msra.mxu0 %v9943
    %10959 = vmatprep.subr.bf16.mxu0 %v9948
    %10960 = vmatpush1.bf16.msra.mxu0 %v9947
    %10961 = vmatprep.subr.bf16.mxu0 %v9952
    %10962 = vmatpush1.bf16.msra.mxu0 %v9951
    %10963 = vmatprep.subr.bf16.mxu0 %v9956
    %10964 = vmatpush1.bf16.msra.mxu0 %v9955
    %10965 = vmatprep.subr.bf16.mxu0 %v9960
    %10966 = vmatpush1.bf16.msra.mxu0 %v9959
    %10967 = vmatprep.subr.bf16.mxu0 %v9964
    %10968 = vmatpush1.bf16.msra.mxu0 %v9963
    %10969 = vmatprep.subr.bf16.mxu0 %v9968
    %10970 = vmatpush1.bf16.msra.mxu0 %v9967
    %10971 = vmatprep.subr.bf16.mxu0 %v9972
    %10972 = vmatpush1.bf16.msra.mxu0 %v9971
    %10973 = vmatprep.subr.bf16.mxu0 %v9976
    %10974 = vmatpush1.bf16.msra.mxu0 %v9975
    %10975 = vmatprep.subr.bf16.mxu0 %v9980
    %10976 = vmatpush1.bf16.msra.mxu0 %v9979
    %10977 = vmatprep.subr.bf16.mxu0 %v9984
    %10978 = vmatpush1.bf16.msra.mxu0 %v9983
    %10979 = vmatprep.mubr.bf16.mxu0 %v7837
    %10980 = vmatmul.mubr.bf16.gmra.mrb[0].mxu0 %v7836
    %v10981 = vpop.f32.mrb[0].mxu0
    %v10982 = vadd.f32 %v8370, %v10981
    %v10983 = vpop.f32.mrb[0].mxu0
    %v10984 = vadd.f32 %v8374, %v10983
    %v10985 = vpop.f32.mrb[0].mxu0
    %v10986 = vpop.f32.mrb[0].mxu0
    %10987 = vdwg.mxu0
    %10988 = vmatprep.subr.bf16.mxu0 %v9988
    %10989 = vmatpush1.bf16.msra.mxu0 %v9987
    %10990 = vmatprep.subr.bf16.mxu0 %v9992
    %10991 = vmatpush1.bf16.msra.mxu0 %v9991
    %10992 = vmatprep.subr.bf16.mxu0 %v9996
    %10993 = vmatpush1.bf16.msra.mxu0 %v9995
    %10994 = vmatprep.subr.bf16.mxu0 %v10000
    %10995 = vmatpush1.bf16.msra.mxu0 %v9999
    %10996 = vmatprep.subr.bf16.mxu0 %v10004
    %10997 = vmatpush1.bf16.msra.mxu0 %v10003
    %10998 = vmatprep.subr.bf16.mxu0 %v10008
    %10999 = vmatpush1.bf16.msra.mxu0 %v10007
    %11000 = vmatprep.subr.bf16.mxu0 %v10012
    %11001 = vmatpush1.bf16.msra.mxu0 %v10011
    %11002 = vmatprep.subr.bf16.mxu0 %v10016
    %11003 = vmatpush1.bf16.msra.mxu0 %v10015
    %11004 = vmatprep.subr.bf16.mxu0 %v10020
    %11005 = vmatpush1.bf16.msra.mxu0 %v10019
    %11006 = vmatprep.subr.bf16.mxu0 %v10024
    %11007 = vmatpush1.bf16.msra.mxu0 %v10023
    %11008 = vmatprep.subr.bf16.mxu0 %v10028
    %11009 = vmatpush1.bf16.msra.mxu0 %v10027
    %11010 = vmatprep.subr.bf16.mxu0 %v10032
    %11011 = vmatpush1.bf16.msra.mxu0 %v10031
    %11012 = vmatprep.subr.bf16.mxu0 %v10036
    %11013 = vmatpush1.bf16.msra.mxu0 %v10035
    %11014 = vmatprep.subr.bf16.mxu0 %v10040
    %11015 = vmatpush1.bf16.msra.mxu0 %v10039
    %11016 = vmatprep.subr.bf16.mxu0 %v10044
    %11017 = vmatpush1.bf16.msra.mxu0 %v10043
    %11018 = vmatprep.subr.bf16.mxu0 %v10048
    %11019 = vmatpush1.bf16.msra.mxu0 %v10047
    %11020 = vmatprep.mubr.bf16.mxu0 %v7839
    %11021 = vmatmul.mubr.bf16.gmra.mrb[0].mxu0 %v7838
    %v11022 = vpop.f32.mrb[0].mxu0
    %v11023 = vadd.f32 %v10982, %v11022
    %v11024 = vpop.f32.mrb[0].mxu0
    %v11025 = vadd.f32 %v10984, %v11024
    %v11026 = vpop.f32.mrb[0].mxu0
    %v11027 = vpop.f32.mrb[0].mxu0
    %11028 = vdwg.mxu0
    %11029 = vmatprep.subr.bf16.mxu0 %v10052
    %11030 = vmatpush1.bf16.msra.mxu0 %v10051
    %11031 = vmatprep.subr.bf16.mxu0 %v10056
    %11032 = vmatpush1.bf16.msra.mxu0 %v10055
    %11033 = vmatprep.subr.bf16.mxu0 %v10060
    %11034 = vmatpush1.bf16.msra.mxu0 %v10059
    %11035 = vmatprep.subr.bf16.mxu0 %v10064
    %11036 = vmatpush1.bf16.msra.mxu0 %v10063
    %11037 = vmatprep.subr.bf16.mxu0 %v10068
    %11038 = vmatpush1.bf16.msra.mxu0 %v10067
    %11039 = vmatprep.subr.bf16.mxu0 %v10072
    %11040 = vmatpush1.bf16.msra.mxu0 %v10071
    %11041 = vmatprep.subr.bf16.mxu0 %v10076
    %11042 = vmatpush1.bf16.msra.mxu0 %v10075
    %11043 = vmatprep.subr.bf16.mxu0 %v10080
    %11044 = vmatpush1.bf16.msra.mxu0 %v10079
    %11045 = vmatprep.subr.bf16.mxu0 %v10084
    %11046 = vmatpush1.bf16.msra.mxu0 %v10083
    %11047 = vmatprep.subr.bf16.mxu0 %v10088
    %11048 = vmatpush1.bf16.msra.mxu0 %v10087
    %11049 = vmatprep.subr.bf16.mxu0 %v10092
    %11050 = vmatpush1.bf16.msra.mxu0 %v10091
    %11051 = vmatprep.subr.bf16.mxu0 %v10096
    %11052 = vmatpush1.bf16.msra.mxu0 %v10095
    %11053 = vmatprep.subr.bf16.mxu0 %v10100
    %11054 = vmatpush1.bf16.msra.mxu0 %v10099
    %11055 = vmatprep.subr.bf16.mxu0 %v10104
    %11056 = vmatpush1.bf16.msra.mxu0 %v10103
    %11057 = vmatprep.subr.bf16.mxu0 %v10108
    %11058 = vmatpush1.bf16.msra.mxu0 %v10107
    %11059 = vmatprep.subr.bf16.mxu0 %v10112
    %11060 = vmatpush1.bf16.msra.mxu0 %v10111
    %11061 = vmatprep.mubr.bf16.mxu0 %v7841
    %11062 = vmatmul.mubr.bf16.gmra.mrb[0].mxu0 %v7840
    %v11063 = vpop.f32.mrb[0].mxu0
    %v11064 = vadd.f32 %v11023, %v11063
    %v11065 = vpop.f32.mrb[0].mxu0
    %v11066 = vadd.f32 %v11025, %v11065
    %v11067 = vpop.f32.mrb[0].mxu0
    %v11068 = vpop.f32.mrb[0].mxu0
    %11069 = vdwg.mxu0
    %11070 = vmatprep.subr.bf16.mxu0 %v10116
    %11071 = vmatpush1.bf16.msra.mxu0 %v10115
    %11072 = vmatprep.subr.bf16.mxu0 %v10120
    %11073 = vmatpush1.bf16.msra.mxu0 %v10119
    %11074 = vmatprep.subr.bf16.mxu0 %v10124
    %11075 = vmatpush1.bf16.msra.mxu0 %v10123
    %11076 = vmatprep.subr.bf16.mxu0 %v10128
    %11077 = vmatpush1.bf16.msra.mxu0 %v10127
    %11078 = vmatprep.subr.bf16.mxu0 %v10132
    %11079 = vmatpush1.bf16.msra.mxu0 %v10131
    %11080 = vmatprep.subr.bf16.mxu0 %v10136
    %11081 = vmatpush1.bf16.msra.mxu0 %v10135
    %11082 = vmatprep.subr.bf16.mxu0 %v10140
    %11083 = vmatpush1.bf16.msra.mxu0 %v10139
    %11084 = vmatprep.subr.bf16.mxu0 %v10144
    %11085 = vmatpush1.bf16.msra.mxu0 %v10143
    %11086 = vmatprep.subr.bf16.mxu0 %v10148
    %11087 = vmatpush1.bf16.msra.mxu0 %v10147
    %11088 = vmatprep.subr.bf16.mxu0 %v10152
    %11089 = vmatpush1.bf16.msra.mxu0 %v10151
    %11090 = vmatprep.subr.bf16.mxu0 %v10156
    %11091 = vmatpush1.bf16.msra.mxu0 %v10155
    %11092 = vmatprep.subr.bf16.mxu0 %v10160
    %11093 = vmatpush1.bf16.msra.mxu0 %v10159
    %11094 = vmatprep.subr.bf16.mxu0 %v10164
    %11095 = vmatpush1.bf16.msra.mxu0 %v10163
    %11096 = vmatprep.subr.bf16.mxu0 %v10168
    %11097 = vmatpush1.bf16.msra.mxu0 %v10167
    %11098 = vmatprep.subr.bf16.mxu0 %v10172
    %11099 = vmatpush1.bf16.msra.mxu0 %v10171
    %11100 = vmatprep.subr.bf16.mxu0 %v10176
    %11101 = vmatpush1.bf16.msra.mxu0 %v10175
    %11102 = vmatprep.mubr.bf16.mxu0 %v7843
    %11103 = vmatmul.mubr.bf16.gmra.mrb[0].mxu0 %v7842
    %v11104 = vpop.f32.mrb[0].mxu0
    %v11105 = vadd.f32 %v11064, %v11104
    %v11106 = vpop.f32.mrb[0].mxu0
    %v11107 = vadd.f32 %v11066, %v11106
    %v11108 = vpop.f32.mrb[0].mxu0
    %v11109 = vpop.f32.mrb[0].mxu0
    %11110 = vdwg.mxu0
    %11111 = vmatprep.subr.bf16.mxu0 %v10180
    %11112 = vmatpush1.bf16.msra.mxu0 %v10179
    %11113 = vmatprep.subr.bf16.mxu0 %v10184
    %11114 = vmatpush1.bf16.msra.mxu0 %v10183
    %11115 = vmatprep.subr.bf16.mxu0 %v10188
    %11116 = vmatpush1.bf16.msra.mxu0 %v10187
    %11117 = vmatprep.subr.bf16.mxu0 %v10192
    %11118 = vmatpush1.bf16.msra.mxu0 %v10191
    %11119 = vmatprep.subr.bf16.mxu0 %v10196
    %11120 = vmatpush1.bf16.msra.mxu0 %v10195
    %11121 = vmatprep.subr.bf16.mxu0 %v10200
    %11122 = vmatpush1.bf16.msra.mxu0 %v10199
    %11123 = vmatprep.subr.bf16.mxu0 %v10204
    %11124 = vmatpush1.bf16.msra.mxu0 %v10203
    %11125 = vmatprep.subr.bf16.mxu0 %v10208
    %11126 = vmatpush1.bf16.msra.mxu0 %v10207
    %11127 = vmatprep.subr.bf16.mxu0 %v10212
    %11128 = vmatpush1.bf16.msra.mxu0 %v10211
    %11129 = vmatprep.subr.bf16.mxu0 %v10216
    %11130 = vmatpush1.bf16.msra.mxu0 %v10215
    %11131 = vmatprep.subr.bf16.mxu0 %v10220
    %11132 = vmatpush1.bf16.msra.mxu0 %v10219
    %11133 = vmatprep.subr.bf16.mxu0 %v10224
    %11134 = vmatpush1.bf16.msra.mxu0 %v10223
    %11135 = vmatprep.subr.bf16.mxu0 %v10228
    %11136 = vmatpush1.bf16.msra.mxu0 %v10227
    %11137 = vmatprep.subr.bf16.mxu0 %v10232
    %11138 = vmatpush1.bf16.msra.mxu0 %v10231
    %11139 = vmatprep.subr.bf16.mxu0 %v10236
    %11140 = vmatpush1.bf16.msra.mxu0 %v10235
    %11141 = vmatprep.subr.bf16.mxu0 %v10240
    %11142 = vmatpush1.bf16.msra.mxu0 %v10239
    %11143 = vmatprep.mubr.bf16.mxu0 %v7845
    %11144 = vmatmul.mubr.bf16.gmra.mrb[0].mxu0 %v7844
    %v11145 = vpop.f32.mrb[0].mxu0
    %v11146 = vadd.f32 %v11105, %v11145
    %v11147 = vpop.f32.mrb[0].mxu0
    %v11148 = vadd.f32 %v11107, %v11147
    %v11149 = vpop.f32.mrb[0].mxu0
    %v11150 = vpop.f32.mrb[0].mxu0
    %11151 = vdwg.mxu0
    %11152 = vmatprep.subr.bf16.mxu0 %v10244
    %11153 = vmatpush1.bf16.msra.mxu0 %v10243
    %11154 = vmatprep.subr.bf16.mxu0 %v10248
    %11155 = vmatpush1.bf16.msra.mxu0 %v10247
    %11156 = vmatprep.subr.bf16.mxu0 %v10252
    %11157 = vmatpush1.bf16.msra.mxu0 %v10251
    %11158 = vmatprep.subr.bf16.mxu0 %v10256
    %11159 = vmatpush1.bf16.msra.mxu0 %v10255
    %11160 = vmatprep.subr.bf16.mxu0 %v10260
    %11161 = vmatpush1.bf16.msra.mxu0 %v10259
    %11162 = vmatprep.subr.bf16.mxu0 %v10264
    %11163 = vmatpush1.bf16.msra.mxu0 %v10263
    %11164 = vmatprep.subr.bf16.mxu0 %v10268
    %11165 = vmatpush1.bf16.msra.mxu0 %v10267
    %11166 = vmatprep.subr.bf16.mxu0 %v10272
    %11167 = vmatpush1.bf16.msra.mxu0 %v10271
    %11168 = vmatprep.subr.bf16.mxu0 %v10276
    %11169 = vmatpush1.bf16.msra.mxu0 %v10275
    %11170 = vmatprep.subr.bf16.mxu0 %v10280
    %11171 = vmatpush1.bf16.msra.mxu0 %v10279
    %11172 = vmatprep.subr.bf16.mxu0 %v10284
    %11173 = vmatpush1.bf16.msra.mxu0 %v10283
    %11174 = vmatprep.subr.bf16.mxu0 %v10288
    %11175 = vmatpush1.bf16.msra.mxu0 %v10287
    %11176 = vmatprep.subr.bf16.mxu0 %v10292
    %11177 = vmatpush1.bf16.msra.mxu0 %v10291
    %11178 = vmatprep.subr.bf16.mxu0 %v10296
    %11179 = vmatpush1.bf16.msra.mxu0 %v10295
    %11180 = vmatprep.subr.bf16.mxu0 %v10300
    %11181 = vmatpush1.bf16.msra.mxu0 %v10299
    %11182 = vmatprep.subr.bf16.mxu0 %v10304
    %11183 = vmatpush1.bf16.msra.mxu0 %v10303
    %11184 = vmatprep.mubr.bf16.mxu0 %v7847
    %11185 = vmatmul.mubr.bf16.gmra.mrb[0].mxu0 %v7846
    %v11186 = vpop.f32.mrb[0].mxu0
    %v11187 = vadd.f32 %v11146, %v11186
    %v11188 = vpop.f32.mrb[0].mxu0
    %v11189 = vadd.f32 %v11148, %v11188
    %v11190 = vpop.f32.mrb[0].mxu0
    %v11191 = vpop.f32.mrb[0].mxu0
    %11192 = vdwg.mxu0
    %11193 = vmatprep.subr.bf16.mxu0 %v10308
    %11194 = vmatpush1.bf16.msra.mxu0 %v10307
    %11195 = vmatprep.subr.bf16.mxu0 %v10312
    %11196 = vmatpush1.bf16.msra.mxu0 %v10311
    %11197 = vmatprep.subr.bf16.mxu0 %v10316
    %11198 = vmatpush1.bf16.msra.mxu0 %v10315
    %11199 = vmatprep.subr.bf16.mxu0 %v10320
    %11200 = vmatpush1.bf16.msra.mxu0 %v10319
    %11201 = vmatprep.subr.bf16.mxu0 %v10324
    %11202 = vmatpush1.bf16.msra.mxu0 %v10323
    %11203 = vmatprep.subr.bf16.mxu0 %v10328
    %11204 = vmatpush1.bf16.msra.mxu0 %v10327
    %11205 = vmatprep.subr.bf16.mxu0 %v10332
    %11206 = vmatpush1.bf16.msra.mxu0 %v10331
    %11207 = vmatprep.subr.bf16.mxu0 %v10336
    %11208 = vmatpush1.bf16.msra.mxu0 %v10335
    %11209 = vmatprep.subr.bf16.mxu0 %v10340
    %11210 = vmatpush1.bf16.msra.mxu0 %v10339
    %11211 = vmatprep.subr.bf16.mxu0 %v10344
    %11212 = vmatpush1.bf16.msra.mxu0 %v10343
    %11213 = vmatprep.subr.bf16.mxu0 %v10348
    %11214 = vmatpush1.bf16.msra.mxu0 %v10347
    %11215 = vmatprep.subr.bf16.mxu0 %v10352
    %11216 = vmatpush1.bf16.msra.mxu0 %v10351
    %11217 = vmatprep.subr.bf16.mxu0 %v10356
    %11218 = vmatpush1.bf16.msra.mxu0 %v10355
    %11219 = vmatprep.subr.bf16.mxu0 %v10360
    %11220 = vmatpush1.bf16.msra.mxu0 %v10359
    %11221 = vmatprep.subr.bf16.mxu0 %v10364
    %11222 = vmatpush1.bf16.msra.mxu0 %v10363
    %11223 = vmatprep.subr.bf16.mxu0 %v10368
    %11224 = vmatpush1.bf16.msra.mxu0 %v10367
    %11225 = vmatprep.mubr.bf16.mxu0 %v7849
    %11226 = vmatmul.mubr.bf16.gmra.mrb[0].mxu0 %v7848
    %v11227 = vpop.f32.mrb[0].mxu0
    %v11228 = vadd.f32 %v11187, %v11227
    %v11229 = vpop.f32.mrb[0].mxu0
    %v11230 = vadd.f32 %v11189, %v11229
    %v11231 = vpop.f32.mrb[0].mxu0
    %v11232 = vpop.f32.mrb[0].mxu0
    %11233 = vdwg.mxu0
    %11234 = vmatprep.subr.bf16.mxu0 %v10372
    %11235 = vmatpush1.bf16.msra.mxu0 %v10371
    %11236 = vmatprep.subr.bf16.mxu0 %v10376
    %11237 = vmatpush1.bf16.msra.mxu0 %v10375
    %11238 = vmatprep.subr.bf16.mxu0 %v10380
    %11239 = vmatpush1.bf16.msra.mxu0 %v10379
    %11240 = vmatprep.subr.bf16.mxu0 %v10384
    %11241 = vmatpush1.bf16.msra.mxu0 %v10383
    %11242 = vmatprep.subr.bf16.mxu0 %v10388
    %11243 = vmatpush1.bf16.msra.mxu0 %v10387
    %11244 = vmatprep.subr.bf16.mxu0 %v10392
    %11245 = vmatpush1.bf16.msra.mxu0 %v10391
    %11246 = vmatprep.subr.bf16.mxu0 %v10396
    %11247 = vmatpush1.bf16.msra.mxu0 %v10395
    %11248 = vmatprep.subr.bf16.mxu0 %v10400
    %11249 = vmatpush1.bf16.msra.mxu0 %v10399
    %11250 = vmatprep.subr.bf16.mxu0 %v10404
    %11251 = vmatpush1.bf16.msra.mxu0 %v10403
    %11252 = vmatprep.subr.bf16.mxu0 %v10408
    %11253 = vmatpush1.bf16.msra.mxu0 %v10407
    %11254 = vmatprep.subr.bf16.mxu0 %v10412
    %11255 = vmatpush1.bf16.msra.mxu0 %v10411
    %11256 = vmatprep.subr.bf16.mxu0 %v10416
    %11257 = vmatpush1.bf16.msra.mxu0 %v10415
    %11258 = vmatprep.subr.bf16.mxu0 %v10420
    %11259 = vmatpush1.bf16.msra.mxu0 %v10419
    %11260 = vmatprep.subr.bf16.mxu0 %v10424
    %11261 = vmatpush1.bf16.msra.mxu0 %v10423
    %11262 = vmatprep.subr.bf16.mxu0 %v10428
    %11263 = vmatpush1.bf16.msra.mxu0 %v10427
    %11264 = vmatprep.subr.bf16.mxu0 %v10432
    %11265 = vmatpush1.bf16.msra.mxu0 %v10431
    %11266 = vmatprep.mubr.bf16.mxu0 %v7851
    %11267 = vmatmul.mubr.bf16.gmra.mrb[0].mxu0 %v7850
    %v11268 = vpop.f32.mrb[0].mxu0
    %v11269 = vadd.f32 %v11228, %v11268
    %v11270 = vpop.f32.mrb[0].mxu0
    %v11271 = vadd.f32 %v11230, %v11270
    %v11272 = vpop.f32.mrb[0].mxu0
    %v11273 = vpop.f32.mrb[0].mxu0
    %11274 = vdwg.mxu0
    %11275 = vmatprep.subr.bf16.mxu0 %v9926
    %11276 = vmatpush1.bf16.msra.mxu0 %v9925
    %11277 = vmatprep.subr.bf16.mxu0 %v9930
    %11278 = vmatpush1.bf16.msra.mxu0 %v9929
    %11279 = vmatprep.subr.bf16.mxu0 %v9934
    %11280 = vmatpush1.bf16.msra.mxu0 %v9933
    %11281 = vmatprep.subr.bf16.mxu0 %v9938
    %11282 = vmatpush1.bf16.msra.mxu0 %v9937
    %11283 = vmatprep.subr.bf16.mxu0 %v9942
    %11284 = vmatpush1.bf16.msra.mxu0 %v9941
    %11285 = vmatprep.subr.bf16.mxu0 %v9946
    %11286 = vmatpush1.bf16.msra.mxu0 %v9945
    %11287 = vmatprep.subr.bf16.mxu0 %v9950
    %11288 = vmatpush1.bf16.msra.mxu0 %v9949
    %11289 = vmatprep.subr.bf16.mxu0 %v9954
    %11290 = vmatpush1.bf16.msra.mxu0 %v9953
    %11291 = vmatprep.subr.bf16.mxu0 %v9958
    %11292 = vmatpush1.bf16.msra.mxu0 %v9957
    %11293 = vmatprep.subr.bf16.mxu0 %v9962
    %11294 = vmatpush1.bf16.msra.mxu0 %v9961
    %11295 = vmatprep.subr.bf16.mxu0 %v9966
    %11296 = vmatpush1.bf16.msra.mxu0 %v9965
    %11297 = vmatprep.subr.bf16.mxu0 %v9970
    %11298 = vmatpush1.bf16.msra.mxu0 %v9969
    %11299 = vmatprep.subr.bf16.mxu0 %v9974
    %11300 = vmatpush1.bf16.msra.mxu0 %v9973
    %11301 = vmatprep.subr.bf16.mxu0 %v9978
    %11302 = vmatpush1.bf16.msra.mxu0 %v9977
    %11303 = vmatprep.subr.bf16.mxu0 %v9982
    %11304 = vmatpush1.bf16.msra.mxu0 %v9981
    %11305 = vmatprep.subr.bf16.mxu0 %v9986
    %11306 = vmatpush1.bf16.msra.mxu0 %v9985
    %11307 = vmatprep.mubr.bf16.mxu0 %v7837
    %11308 = vmatmul.mubr.bf16.gmra.mrb[0].mxu0 %v7836
    %v11309 = vpop.f32.mrb[0].mxu0
    %v11310 = vadd.f32 %v8378, %v11309
    %v11311 = vpop.f32.mrb[0].mxu0
    %v11312 = vadd.f32 %v8382, %v11311
    %v11313 = vpop.f32.mrb[0].mxu0
    %v11314 = vpop.f32.mrb[0].mxu0
    %11315 = vdwg.mxu0
    %11316 = vmatprep.subr.bf16.mxu0 %v9990
    %11317 = vmatpush1.bf16.msra.mxu0 %v9989
    %11318 = vmatprep.subr.bf16.mxu0 %v9994
    %11319 = vmatpush1.bf16.msra.mxu0 %v9993
    %11320 = vmatprep.subr.bf16.mxu0 %v9998
    %11321 = vmatpush1.bf16.msra.mxu0 %v9997
    %11322 = vmatprep.subr.bf16.mxu0 %v10002
    %11323 = vmatpush1.bf16.msra.mxu0 %v10001
    %11324 = vmatprep.subr.bf16.mxu0 %v10006
    %11325 = vmatpush1.bf16.msra.mxu0 %v10005
    %11326 = vmatprep.subr.bf16.mxu0 %v10010
    %11327 = vmatpush1.bf16.msra.mxu0 %v10009
    %11328 = vmatprep.subr.bf16.mxu0 %v10014
    %11329 = vmatpush1.bf16.msra.mxu0 %v10013
    %11330 = vmatprep.subr.bf16.mxu0 %v10018
    %11331 = vmatpush1.bf16.msra.mxu0 %v10017
    %11332 = vmatprep.subr.bf16.mxu0 %v10022
    %11333 = vmatpush1.bf16.msra.mxu0 %v10021
    %11334 = vmatprep.subr.bf16.mxu0 %v10026
    %11335 = vmatpush1.bf16.msra.mxu0 %v10025
    %11336 = vmatprep.subr.bf16.mxu0 %v10030
    %11337 = vmatpush1.bf16.msra.mxu0 %v10029
    %11338 = vmatprep.subr.bf16.mxu0 %v10034
    %11339 = vmatpush1.bf16.msra.mxu0 %v10033
    %11340 = vmatprep.subr.bf16.mxu0 %v10038
    %11341 = vmatpush1.bf16.msra.mxu0 %v10037
    %11342 = vmatprep.subr.bf16.mxu0 %v10042
    %11343 = vmatpush1.bf16.msra.mxu0 %v10041
    %11344 = vmatprep.subr.bf16.mxu0 %v10046
    %11345 = vmatpush1.bf16.msra.mxu0 %v10045
    %11346 = vmatprep.subr.bf16.mxu0 %v10050
    %11347 = vmatpush1.bf16.msra.mxu0 %v10049
    %11348 = vmatprep.mubr.bf16.mxu0 %v7839
    %11349 = vmatmul.mubr.bf16.gmra.mrb[0].mxu0 %v7838
    %v11350 = vpop.f32.mrb[0].mxu0
    %v11351 = vadd.f32 %v11310, %v11350
    %v11352 = vpop.f32.mrb[0].mxu0
    %v11353 = vadd.f32 %v11312, %v11352
    %v11354 = vpop.f32.mrb[0].mxu0
    %v11355 = vpop.f32.mrb[0].mxu0
    %11356 = vdwg.mxu0
    %11357 = vmatprep.subr.bf16.mxu0 %v10054
    %11358 = vmatpush1.bf16.msra.mxu0 %v10053
    %11359 = vmatprep.subr.bf16.mxu0 %v10058
    %11360 = vmatpush1.bf16.msra.mxu0 %v10057
    %11361 = vmatprep.subr.bf16.mxu0 %v10062
    %11362 = vmatpush1.bf16.msra.mxu0 %v10061
    %11363 = vmatprep.subr.bf16.mxu0 %v10066
    %11364 = vmatpush1.bf16.msra.mxu0 %v10065
    %11365 = vmatprep.subr.bf16.mxu0 %v10070
    %11366 = vmatpush1.bf16.msra.mxu0 %v10069
    %11367 = vmatprep.subr.bf16.mxu0 %v10074
    %11368 = vmatpush1.bf16.msra.mxu0 %v10073
    %11369 = vmatprep.subr.bf16.mxu0 %v10078
    %11370 = vmatpush1.bf16.msra.mxu0 %v10077
    %11371 = vmatprep.subr.bf16.mxu0 %v10082
    %11372 = vmatpush1.bf16.msra.mxu0 %v10081
    %11373 = vmatprep.subr.bf16.mxu0 %v10086
    %11374 = vmatpush1.bf16.msra.mxu0 %v10085
    %11375 = vmatprep.subr.bf16.mxu0 %v10090
    %11376 = vmatpush1.bf16.msra.mxu0 %v10089
    %11377 = vmatprep.subr.bf16.mxu0 %v10094
    %11378 = vmatpush1.bf16.msra.mxu0 %v10093
    %11379 = vmatprep.subr.bf16.mxu0 %v10098
    %11380 = vmatpush1.bf16.msra.mxu0 %v10097
    %11381 = vmatprep.subr.bf16.mxu0 %v10102
    %11382 = vmatpush1.bf16.msra.mxu0 %v10101
    %11383 = vmatprep.subr.bf16.mxu0 %v10106
    %11384 = vmatpush1.bf16.msra.mxu0 %v10105
    %11385 = vmatprep.subr.bf16.mxu0 %v10110
    %11386 = vmatpush1.bf16.msra.mxu0 %v10109
    %11387 = vmatprep.subr.bf16.mxu0 %v10114
    %11388 = vmatpush1.bf16.msra.mxu0 %v10113
    %11389 = vmatprep.mubr.bf16.mxu0 %v7841
    %11390 = vmatmul.mubr.bf16.gmra.mrb[0].mxu0 %v7840
    %v11391 = vpop.f32.mrb[0].mxu0
    %v11392 = vadd.f32 %v11351, %v11391
    %v11393 = vpop.f32.mrb[0].mxu0
    %v11394 = vadd.f32 %v11353, %v11393
    %v11395 = vpop.f32.mrb[0].mxu0
    %v11396 = vpop.f32.mrb[0].mxu0
    %11397 = vdwg.mxu0
    %11398 = vmatprep.subr.bf16.mxu0 %v10118
    %11399 = vmatpush1.bf16.msra.mxu0 %v10117
    %11400 = vmatprep.subr.bf16.mxu0 %v10122
    %11401 = vmatpush1.bf16.msra.mxu0 %v10121
    %11402 = vmatprep.subr.bf16.mxu0 %v10126
    %11403 = vmatpush1.bf16.msra.mxu0 %v10125
    %11404 = vmatprep.subr.bf16.mxu0 %v10130
    %11405 = vmatpush1.bf16.msra.mxu0 %v10129
    %11406 = vmatprep.subr.bf16.mxu0 %v10134
    %11407 = vmatpush1.bf16.msra.mxu0 %v10133
    %11408 = vmatprep.subr.bf16.mxu0 %v10138
    %11409 = vmatpush1.bf16.msra.mxu0 %v10137
    %11410 = vmatprep.subr.bf16.mxu0 %v10142
    %11411 = vmatpush1.bf16.msra.mxu0 %v10141
    %11412 = vmatprep.subr.bf16.mxu0 %v10146
    %11413 = vmatpush1.bf16.msra.mxu0 %v10145
    %11414 = vmatprep.subr.bf16.mxu0 %v10150
    %11415 = vmatpush1.bf16.msra.mxu0 %v10149
    %11416 = vmatprep.subr.bf16.mxu0 %v10154
    %11417 = vmatpush1.bf16.msra.mxu0 %v10153
    %11418 = vmatprep.subr.bf16.mxu0 %v10158
    %11419 = vmatpush1.bf16.msra.mxu0 %v10157
    %11420 = vmatprep.subr.bf16.mxu0 %v10162
    %11421 = vmatpush1.bf16.msra.mxu0 %v10161
    %11422 = vmatprep.subr.bf16.mxu0 %v10166
    %11423 = vmatpush1.bf16.msra.mxu0 %v10165
    %11424 = vmatprep.subr.bf16.mxu0 %v10170
    %11425 = vmatpush1.bf16.msra.mxu0 %v10169
    %11426 = vmatprep.subr.bf16.mxu0 %v10174
    %11427 = vmatpush1.bf16.msra.mxu0 %v10173
    %11428 = vmatprep.subr.bf16.mxu0 %v10178
    %11429 = vmatpush1.bf16.msra.mxu0 %v10177
    %11430 = vmatprep.mubr.bf16.mxu0 %v7843
    %11431 = vmatmul.mubr.bf16.gmra.mrb[0].mxu0 %v7842
    %v11432 = vpop.f32.mrb[0].mxu0
    %v11433 = vadd.f32 %v11392, %v11432
    %v11434 = vpop.f32.mrb[0].mxu0
    %v11435 = vadd.f32 %v11394, %v11434
    %v11436 = vpop.f32.mrb[0].mxu0
    %v11437 = vpop.f32.mrb[0].mxu0
    %11438 = vdwg.mxu0
    %11439 = vmatprep.subr.bf16.mxu0 %v10182
    %11440 = vmatpush1.bf16.msra.mxu0 %v10181
    %11441 = vmatprep.subr.bf16.mxu0 %v10186
    %11442 = vmatpush1.bf16.msra.mxu0 %v10185
    %11443 = vmatprep.subr.bf16.mxu0 %v10190
    %11444 = vmatpush1.bf16.msra.mxu0 %v10189
    %11445 = vmatprep.subr.bf16.mxu0 %v10194
    %11446 = vmatpush1.bf16.msra.mxu0 %v10193
    %11447 = vmatprep.subr.bf16.mxu0 %v10198
    %11448 = vmatpush1.bf16.msra.mxu0 %v10197
    %11449 = vmatprep.subr.bf16.mxu0 %v10202
    %11450 = vmatpush1.bf16.msra.mxu0 %v10201
    %11451 = vmatprep.subr.bf16.mxu0 %v10206
    %11452 = vmatpush1.bf16.msra.mxu0 %v10205
    %11453 = vmatprep.subr.bf16.mxu0 %v10210
    %11454 = vmatpush1.bf16.msra.mxu0 %v10209
    %11455 = vmatprep.subr.bf16.mxu0 %v10214
    %11456 = vmatpush1.bf16.msra.mxu0 %v10213
    %11457 = vmatprep.subr.bf16.mxu0 %v10218
    %11458 = vmatpush1.bf16.msra.mxu0 %v10217
    %11459 = vmatprep.subr.bf16.mxu0 %v10222
    %11460 = vmatpush1.bf16.msra.mxu0 %v10221
    %11461 = vmatprep.subr.bf16.mxu0 %v10226
    %11462 = vmatpush1.bf16.msra.mxu0 %v10225
    %11463 = vmatprep.subr.bf16.mxu0 %v10230
    %11464 = vmatpush1.bf16.msra.mxu0 %v10229
    %11465 = vmatprep.subr.bf16.mxu0 %v10234
    %11466 = vmatpush1.bf16.msra.mxu0 %v10233
    %11467 = vmatprep.subr.bf16.mxu0 %v10238
    %11468 = vmatpush1.bf16.msra.mxu0 %v10237
    %11469 = vmatprep.subr.bf16.mxu0 %v10242
    %11470 = vmatpush1.bf16.msra.mxu0 %v10241
    %11471 = vmatprep.mubr.bf16.mxu0 %v7845
    %11472 = vmatmul.mubr.bf16.gmra.mrb[0].mxu0 %v7844
    %v11473 = vpop.f32.mrb[0].mxu0
    %v11474 = vadd.f32 %v11433, %v11473
    %v11475 = vpop.f32.mrb[0].mxu0
    %v11476 = vadd.f32 %v11435, %v11475
    %v11477 = vpop.f32.mrb[0].mxu0
    %v11478 = vpop.f32.mrb[0].mxu0
    %11479 = vdwg.mxu0
    %11480 = vmatprep.subr.bf16.mxu0 %v10246
    %11481 = vmatpush1.bf16.msra.mxu0 %v10245
    %11482 = vmatprep.subr.bf16.mxu0 %v10250
    %11483 = vmatpush1.bf16.msra.mxu0 %v10249
    %11484 = vmatprep.subr.bf16.mxu0 %v10254
    %11485 = vmatpush1.bf16.msra.mxu0 %v10253
    %11486 = vmatprep.subr.bf16.mxu0 %v10258
    %11487 = vmatpush1.bf16.msra.mxu0 %v10257
    %11488 = vmatprep.subr.bf16.mxu0 %v10262
    %11489 = vmatpush1.bf16.msra.mxu0 %v10261
    %11490 = vmatprep.subr.bf16.mxu0 %v10266
    %11491 = vmatpush1.bf16.msra.mxu0 %v10265
    %11492 = vmatprep.subr.bf16.mxu0 %v10270
    %11493 = vmatpush1.bf16.msra.mxu0 %v10269
    %11494 = vmatprep.subr.bf16.mxu0 %v10274
    %11495 = vmatpush1.bf16.msra.mxu0 %v10273
    %11496 = vmatprep.subr.bf16.mxu0 %v10278
    %11497 = vmatpush1.bf16.msra.mxu0 %v10277
    %11498 = vmatprep.subr.bf16.mxu0 %v10282
    %11499 = vmatpush1.bf16.msra.mxu0 %v10281
    %11500 = vmatprep.subr.bf16.mxu0 %v10286
    %11501 = vmatpush1.bf16.msra.mxu0 %v10285
    %11502 = vmatprep.subr.bf16.mxu0 %v10290
    %11503 = vmatpush1.bf16.msra.mxu0 %v10289
    %11504 = vmatprep.subr.bf16.mxu0 %v10294
    %11505 = vmatpush1.bf16.msra.mxu0 %v10293
    %11506 = vmatprep.subr.bf16.mxu0 %v10298
    %11507 = vmatpush1.bf16.msra.mxu0 %v10297
    %11508 = vmatprep.subr.bf16.mxu0 %v10302
    %11509 = vmatpush1.bf16.msra.mxu0 %v10301
    %11510 = vmatprep.subr.bf16.mxu0 %v10306
    %11511 = vmatpush1.bf16.msra.mxu0 %v10305
    %11512 = vmatprep.mubr.bf16.mxu0 %v7847
    %11513 = vmatmul.mubr.bf16.gmra.mrb[0].mxu0 %v7846
    %v11514 = vpop.f32.mrb[0].mxu0
    %v11515 = vadd.f32 %v11474, %v11514
    %v11516 = vpop.f32.mrb[0].mxu0
    %v11517 = vadd.f32 %v11476, %v11516
    %v11518 = vpop.f32.mrb[0].mxu0
    %v11519 = vpop.f32.mrb[0].mxu0
    %11520 = vdwg.mxu0
    %11521 = vmatprep.subr.bf16.mxu0 %v10310
    %11522 = vmatpush1.bf16.msra.mxu0 %v10309
    %11523 = vmatprep.subr.bf16.mxu0 %v10314
    %11524 = vmatpush1.bf16.msra.mxu0 %v10313
    %11525 = vmatprep.subr.bf16.mxu0 %v10318
    %11526 = vmatpush1.bf16.msra.mxu0 %v10317
    %11527 = vmatprep.subr.bf16.mxu0 %v10322
    %11528 = vmatpush1.bf16.msra.mxu0 %v10321
    %11529 = vmatprep.subr.bf16.mxu0 %v10326
    %11530 = vmatpush1.bf16.msra.mxu0 %v10325
    %11531 = vmatprep.subr.bf16.mxu0 %v10330
    %11532 = vmatpush1.bf16.msra.mxu0 %v10329
    %11533 = vmatprep.subr.bf16.mxu0 %v10334
    %11534 = vmatpush1.bf16.msra.mxu0 %v10333
    %11535 = vmatprep.subr.bf16.mxu0 %v10338
    %11536 = vmatpush1.bf16.msra.mxu0 %v10337
    %11537 = vmatprep.subr.bf16.mxu0 %v10342
    %11538 = vmatpush1.bf16.msra.mxu0 %v10341
    %11539 = vmatprep.subr.bf16.mxu0 %v10346
    %11540 = vmatpush1.bf16.msra.mxu0 %v10345
    %11541 = vmatprep.subr.bf16.mxu0 %v10350
    %11542 = vmatpush1.bf16.msra.mxu0 %v10349
    %11543 = vmatprep.subr.bf16.mxu0 %v10354
    %11544 = vmatpush1.bf16.msra.mxu0 %v10353
    %11545 = vmatprep.subr.bf16.mxu0 %v10358
    %11546 = vmatpush1.bf16.msra.mxu0 %v10357
    %11547 = vmatprep.subr.bf16.mxu0 %v10362
    %11548 = vmatpush1.bf16.msra.mxu0 %v10361
    %11549 = vmatprep.subr.bf16.mxu0 %v10366
    %11550 = vmatpush1.bf16.msra.mxu0 %v10365
    %11551 = vmatprep.subr.bf16.mxu0 %v10370
    %11552 = vmatpush1.bf16.msra.mxu0 %v10369
    %11553 = vmatprep.mubr.bf16.mxu0 %v7849
    %11554 = vmatmul.mubr.bf16.gmra.mrb[0].mxu0 %v7848
    %v11555 = vpop.f32.mrb[0].mxu0
    %v11556 = vadd.f32 %v11515, %v11555
    %v11557 = vpop.f32.mrb[0].mxu0
    %v11558 = vadd.f32 %v11517, %v11557
    %v11559 = vpop.f32.mrb[0].mxu0
    %v11560 = vpop.f32.mrb[0].mxu0
    %11561 = vdwg.mxu0
    %11562 = vmatprep.subr.bf16.mxu0 %v10374
    %11563 = vmatpush1.bf16.msra.mxu0 %v10373
    %11564 = vmatprep.subr.bf16.mxu0 %v10378
    %11565 = vmatpush1.bf16.msra.mxu0 %v10377
    %11566 = vmatprep.subr.bf16.mxu0 %v10382
    %11567 = vmatpush1.bf16.msra.mxu0 %v10381
    %11568 = vmatprep.subr.bf16.mxu0 %v10386
    %11569 = vmatpush1.bf16.msra.mxu0 %v10385
    %11570 = vmatprep.subr.bf16.mxu0 %v10390
    %11571 = vmatpush1.bf16.msra.mxu0 %v10389
    %11572 = vmatprep.subr.bf16.mxu0 %v10394
    %11573 = vmatpush1.bf16.msra.mxu0 %v10393
    %11574 = vmatprep.subr.bf16.mxu0 %v10398
    %11575 = vmatpush1.bf16.msra.mxu0 %v10397
    %11576 = vmatprep.subr.bf16.mxu0 %v10402
    %11577 = vmatpush1.bf16.msra.mxu0 %v10401
    %11578 = vmatprep.subr.bf16.mxu0 %v10406
    %11579 = vmatpush1.bf16.msra.mxu0 %v10405
    %11580 = vmatprep.subr.bf16.mxu0 %v10410
    %11581 = vmatpush1.bf16.msra.mxu0 %v10409
    %11582 = vmatprep.subr.bf16.mxu0 %v10414
    %11583 = vmatpush1.bf16.msra.mxu0 %v10413
    %11584 = vmatprep.subr.bf16.mxu0 %v10418
    %11585 = vmatpush1.bf16.msra.mxu0 %v10417
    %11586 = vmatprep.subr.bf16.mxu0 %v10422
    %11587 = vmatpush1.bf16.msra.mxu0 %v10421
    %11588 = vmatprep.subr.bf16.mxu0 %v10426
    %11589 = vmatpush1.bf16.msra.mxu0 %v10425
    %11590 = vmatprep.subr.bf16.mxu0 %v10430
    %11591 = vmatpush1.bf16.msra.mxu0 %v10429
    %11592 = vmatprep.subr.bf16.mxu0 %v10434
    %11593 = vmatpush1.bf16.msra.mxu0 %v10433
    %11594 = vmatprep.mubr.bf16.mxu0 %v7851
    %11595 = vmatmul.mubr.bf16.gmra.mrb[0].mxu0 %v7850
    %v11596 = vpop.f32.mrb[0].mxu0
    %v11597 = vadd.f32 %v11556, %v11596
    %v11598 = vpop.f32.mrb[0].mxu0
    %v11599 = vadd.f32 %v11558, %v11598
    %v11600 = vpop.f32.mrb[0].mxu0
    %v11601 = vpop.f32.mrb[0].mxu0
    %11602 = vdwg.mxu0
    %v11603 = vmax.f32 %v11269, 0.0
    %v11604 = vmax.f32 %v11271, 0.0
    %v11605 = vmax.f32 %v11597, 0.0
    %v11606 = vmax.f32 %v11599, 0.0
    %v11607 = vpack.c.bf16 %v11603, %v11603
    %v11608 = vpack.c.bf16 %v11604, %v11604
    %v11609 = vpack.c.bf16 %v11605, %v11605
    %v11610 = vpack.c.bf16 %v11606, %v11606
    %v11611 = vld [vmem:[#allocation14] sm:$0xff]
    %v11612 = vld [vmem:[#allocation14 + $0x8] sm:$0xff]
    %v11613 = vld [vmem:[#allocation14 + $0x10] sm:$0xff]
    %v11614 = vld [vmem:[#allocation14 + $0x18] sm:$0xff]
    %v11615 = vld [vmem:[#allocation14 + $0x20] sm:$0xff]
    %v11616 = vld [vmem:[#allocation14 + $0x28] sm:$0xff]
    %v11617 = vld [vmem:[#allocation14 + $0x30] sm:$0xff]
    %v11618 = vld [vmem:[#allocation14 + $0x38] sm:$0xff]
    %v11619 = vld [vmem:[#allocation14 + $0x40] sm:$0xff]
    %v11620 = vld [vmem:[#allocation14 + $0x48] sm:$0xff]
    %v11621 = vld [vmem:[#allocation14 + $0x50] sm:$0xff]
    %v11622 = vld [vmem:[#allocation14 + $0x58] sm:$0xff]
    %v11623 = vld [vmem:[#allocation14 + $0x60] sm:$0xff]
    %v11624 = vld [vmem:[#allocation14 + $0x68] sm:$0xff]
    %v11625 = vld [vmem:[#allocation14 + $0x70] sm:$0xff]
    %v11626 = vld [vmem:[#allocation14 + $0x78] sm:$0xff]
    %v11627 = vld [vmem:[#allocation14 + $0x80] sm:$0xff]
    %v11628 = vld [vmem:[#allocation14 + $0x88] sm:$0xff]
    %v11629 = vld [vmem:[#allocation14 + $0x90] sm:$0xff]
    %v11630 = vld [vmem:[#allocation14 + $0x98] sm:$0xff]
    %v11631 = vld [vmem:[#allocation14 + $0xa0] sm:$0xff]
    %v11632 = vld [vmem:[#allocation14 + $0xa8] sm:$0xff]
    %v11633 = vld [vmem:[#allocation14 + $0xb0] sm:$0xff]
    %v11634 = vld [vmem:[#allocation14 + $0xb8] sm:$0xff]
    %v11635 = vld [vmem:[#allocation14 + $0xc0] sm:$0xff]
    %v11636 = vld [vmem:[#allocation14 + $0xc8] sm:$0xff]
    %v11637 = vld [vmem:[#allocation14 + $0xd0] sm:$0xff]
    %v11638 = vld [vmem:[#allocation14 + $0xd8] sm:$0xff]
    %v11639 = vld [vmem:[#allocation14 + $0xe0] sm:$0xff]
    %v11640 = vld [vmem:[#allocation14 + $0xe8] sm:$0xff]
    %v11641 = vld [vmem:[#allocation14 + $0xf0] sm:$0xff]
    %v11642 = vld [vmem:[#allocation14 + $0xf8] sm:$0xff]
    %v11643 = vld [vmem:[#allocation14 + $0x100] sm:$0xff]
    %v11644 = vld [vmem:[#allocation14 + $0x108] sm:$0xff]
    %v11645 = vld [vmem:[#allocation14 + $0x110] sm:$0xff]
    %v11646 = vld [vmem:[#allocation14 + $0x118] sm:$0xff]
    %v11647 = vld [vmem:[#allocation14 + $0x120] sm:$0xff]
    %v11648 = vld [vmem:[#allocation14 + $0x128] sm:$0xff]
    %v11649 = vld [vmem:[#allocation14 + $0x130] sm:$0xff]
    %v11650 = vld [vmem:[#allocation14 + $0x138] sm:$0xff]
    %v11651 = vld [vmem:[#allocation14 + $0x140] sm:$0xff]
    %v11652 = vld [vmem:[#allocation14 + $0x148] sm:$0xff]
    %v11653 = vld [vmem:[#allocation14 + $0x150] sm:$0xff]
    %v11654 = vld [vmem:[#allocation14 + $0x158] sm:$0xff]
    %v11655 = vld [vmem:[#allocation14 + $0x160] sm:$0xff]
    %v11656 = vld [vmem:[#allocation14 + $0x168] sm:$0xff]
    %v11657 = vld [vmem:[#allocation14 + $0x170] sm:$0xff]
    %v11658 = vld [vmem:[#allocation14 + $0x178] sm:$0xff]
    %v11659 = vld [vmem:[#allocation14 + $0x180] sm:$0xff]
    %v11660 = vld [vmem:[#allocation14 + $0x188] sm:$0xff]
    %v11661 = vld [vmem:[#allocation14 + $0x190] sm:$0xff]
    %v11662 = vld [vmem:[#allocation14 + $0x198] sm:$0xff]
    %v11663 = vld [vmem:[#allocation14 + $0x1a0] sm:$0xff]
    %v11664 = vld [vmem:[#allocation14 + $0x1a8] sm:$0xff]
    %v11665 = vld [vmem:[#allocation14 + $0x1b0] sm:$0xff]
    %v11666 = vld [vmem:[#allocation14 + $0x1b8] sm:$0xff]
    %v11667 = vld [vmem:[#allocation14 + $0x1c0] sm:$0xff]
    %v11668 = vld [vmem:[#allocation14 + $0x1c8] sm:$0xff]
    %v11669 = vld [vmem:[#allocation14 + $0x1d0] sm:$0xff]
    %v11670 = vld [vmem:[#allocation14 + $0x1d8] sm:$0xff]
    %v11671 = vld [vmem:[#allocation14 + $0x1e0] sm:$0xff]
    %v11672 = vld [vmem:[#allocation14 + $0x1e8] sm:$0xff]
    %v11673 = vld [vmem:[#allocation14 + $0x1f0] sm:$0xff]
    %v11674 = vld [vmem:[#allocation14 + $0x1f8] sm:$0xff]
    %v11675 = vld [vmem:[#allocation14 + $0x200] sm:$0xff]
    %v11676 = vld [vmem:[#allocation14 + $0x208] sm:$0xff]
    %v11677 = vld [vmem:[#allocation14 + $0x210] sm:$0xff]
    %v11678 = vld [vmem:[#allocation14 + $0x218] sm:$0xff]
    %v11679 = vld [vmem:[#allocation14 + $0x220] sm:$0xff]
    %v11680 = vld [vmem:[#allocation14 + $0x228] sm:$0xff]
    %v11681 = vld [vmem:[#allocation14 + $0x230] sm:$0xff]
    %v11682 = vld [vmem:[#allocation14 + $0x238] sm:$0xff]
    %v11683 = vld [vmem:[#allocation14 + $0x240] sm:$0xff]
    %v11684 = vld [vmem:[#allocation14 + $0x248] sm:$0xff]
    %v11685 = vld [vmem:[#allocation14 + $0x250] sm:$0xff]
    %v11686 = vld [vmem:[#allocation14 + $0x258] sm:$0xff]
    %v11687 = vld [vmem:[#allocation14 + $0x260] sm:$0xff]
    %v11688 = vld [vmem:[#allocation14 + $0x268] sm:$0xff]
    %v11689 = vld [vmem:[#allocation14 + $0x270] sm:$0xff]
    %v11690 = vld [vmem:[#allocation14 + $0x278] sm:$0xff]
    %v11691 = vld [vmem:[#allocation14 + $0x280] sm:$0xff]
    %v11692 = vld [vmem:[#allocation14 + $0x288] sm:$0xff]
    %v11693 = vld [vmem:[#allocation14 + $0x290] sm:$0xff]
    %v11694 = vld [vmem:[#allocation14 + $0x298] sm:$0xff]
    %v11695 = vld [vmem:[#allocation14 + $0x2a0] sm:$0xff]
    %v11696 = vld [vmem:[#allocation14 + $0x2a8] sm:$0xff]
    %v11697 = vld [vmem:[#allocation14 + $0x2b0] sm:$0xff]
    %v11698 = vld [vmem:[#allocation14 + $0x2b8] sm:$0xff]
    %v11699 = vld [vmem:[#allocation14 + $0x2c0] sm:$0xff]
    %v11700 = vld [vmem:[#allocation14 + $0x2c8] sm:$0xff]
    %v11701 = vld [vmem:[#allocation14 + $0x2d0] sm:$0xff]
    %v11702 = vld [vmem:[#allocation14 + $0x2d8] sm:$0xff]
    %v11703 = vld [vmem:[#allocation14 + $0x2e0] sm:$0xff]
    %v11704 = vld [vmem:[#allocation14 + $0x2e8] sm:$0xff]
    %v11705 = vld [vmem:[#allocation14 + $0x2f0] sm:$0xff]
    %v11706 = vld [vmem:[#allocation14 + $0x2f8] sm:$0xff]
    %v11707 = vld [vmem:[#allocation14 + $0x300] sm:$0xff]
    %v11708 = vld [vmem:[#allocation14 + $0x308] sm:$0xff]
    %v11709 = vld [vmem:[#allocation14 + $0x310] sm:$0xff]
    %v11710 = vld [vmem:[#allocation14 + $0x318] sm:$0xff]
    %v11711 = vld [vmem:[#allocation14 + $0x320] sm:$0xff]
    %v11712 = vld [vmem:[#allocation14 + $0x328] sm:$0xff]
    %v11713 = vld [vmem:[#allocation14 + $0x330] sm:$0xff]
    %v11714 = vld [vmem:[#allocation14 + $0x338] sm:$0xff]
    %v11715 = vld [vmem:[#allocation14 + $0x340] sm:$0xff]
    %v11716 = vld [vmem:[#allocation14 + $0x348] sm:$0xff]
    %v11717 = vld [vmem:[#allocation14 + $0x350] sm:$0xff]
    %v11718 = vld [vmem:[#allocation14 + $0x358] sm:$0xff]
    %v11719 = vld [vmem:[#allocation14 + $0x360] sm:$0xff]
    %v11720 = vld [vmem:[#allocation14 + $0x368] sm:$0xff]
    %v11721 = vld [vmem:[#allocation14 + $0x370] sm:$0xff]
    %v11722 = vld [vmem:[#allocation14 + $0x378] sm:$0xff]
    %v11723 = vld [vmem:[#allocation14 + $0x380] sm:$0xff]
    %v11724 = vld [vmem:[#allocation14 + $0x388] sm:$0xff]
    %v11725 = vld [vmem:[#allocation14 + $0x390] sm:$0xff]
    %v11726 = vld [vmem:[#allocation14 + $0x398] sm:$0xff]
    %v11727 = vld [vmem:[#allocation14 + $0x3a0] sm:$0xff]
    %v11728 = vld [vmem:[#allocation14 + $0x3a8] sm:$0xff]
    %v11729 = vld [vmem:[#allocation14 + $0x3b0] sm:$0xff]
    %v11730 = vld [vmem:[#allocation14 + $0x3b8] sm:$0xff]
    %v11731 = vld [vmem:[#allocation14 + $0x3c0] sm:$0xff]
    %v11732 = vld [vmem:[#allocation14 + $0x3c8] sm:$0xff]
    %v11733 = vld [vmem:[#allocation14 + $0x3d0] sm:$0xff]
    %v11734 = vld [vmem:[#allocation14 + $0x3d8] sm:$0xff]
    %v11735 = vld [vmem:[#allocation14 + $0x3e0] sm:$0xff]
    %v11736 = vld [vmem:[#allocation14 + $0x3e8] sm:$0xff]
    %v11737 = vld [vmem:[#allocation14 + $0x3f0] sm:$0xff]
    %v11738 = vld [vmem:[#allocation14 + $0x3f8] sm:$0xff]
    %s11739 = scalar_lea.vmem [#allocation17], 6
    %v11740 = vld [vmem:[%s11739] ss:$8 sm:$0xf]
    %v11742 = vlaneseq
    %v11743 = vshrl.u32 %v11742, 7
    %v11744 = vsub.s32 0, %v11743
    %v11745 = vrot.slane %v11740, %v11744
    %v11746 = vlaneseq
    %v11747 = vshrl.u32 %v11746, 7
    %v11748 = vsub.s32 1, %v11747
    %v11749 = vrot.slane %v11740, %v11748
    %v11750 = vlaneseq
    %v11751 = vshrl.u32 %v11750, 7
    %v11752 = vsub.s32 2, %v11751
    %v11753 = vrot.slane %v11740, %v11752
    %v11754 = vlaneseq
    %v11755 = vshrl.u32 %v11754, 7
    %v11756 = vsub.s32 3, %v11755
    %v11757 = vrot.slane %v11740, %v11756
    %v11890 = vunpack.c.l.b16 %v11611
    %v11891 = vunpack.c.h.b16 %v11611
    %v11892 = vunpack.c.l.b16 %v11612
    %v11893 = vunpack.c.h.b16 %v11612
    %v11894 = vunpack.c.l.b16 %v11613
    %v11895 = vunpack.c.h.b16 %v11613
    %v11896 = vunpack.c.l.b16 %v11614
    %v11897 = vunpack.c.h.b16 %v11614
    %v11898 = vunpack.c.l.b16 %v11615
    %v11899 = vunpack.c.h.b16 %v11615
    %v11900 = vunpack.c.l.b16 %v11616
    %v11901 = vunpack.c.h.b16 %v11616
    %v11902 = vunpack.c.l.b16 %v11617
    %v11903 = vunpack.c.h.b16 %v11617
    %v11904 = vunpack.c.l.b16 %v11618
    %v11905 = vunpack.c.h.b16 %v11618
    %v11906 = vunpack.c.l.b16 %v11619
    %v11907 = vunpack.c.h.b16 %v11619
    %v11908 = vunpack.c.l.b16 %v11620
    %v11909 = vunpack.c.h.b16 %v11620
    %v11910 = vunpack.c.l.b16 %v11621
    %v11911 = vunpack.c.h.b16 %v11621
    %v11912 = vunpack.c.l.b16 %v11622
    %v11913 = vunpack.c.h.b16 %v11622
    %v11914 = vunpack.c.l.b16 %v11623
    %v11915 = vunpack.c.h.b16 %v11623
    %v11916 = vunpack.c.l.b16 %v11624
    %v11917 = vunpack.c.h.b16 %v11624
    %v11918 = vunpack.c.l.b16 %v11625
    %v11919 = vunpack.c.h.b16 %v11625
    %v11920 = vunpack.c.l.b16 %v11626
    %v11921 = vunpack.c.h.b16 %v11626
    %v11922 = vunpack.c.l.b16 %v11627
    %v11923 = vunpack.c.h.b16 %v11627
    %v11924 = vunpack.c.l.b16 %v11628
    %v11925 = vunpack.c.h.b16 %v11628
    %v11926 = vunpack.c.l.b16 %v11629
    %v11927 = vunpack.c.h.b16 %v11629
    %v11928 = vunpack.c.l.b16 %v11630
    %v11929 = vunpack.c.h.b16 %v11630
    %v11930 = vunpack.c.l.b16 %v11631
    %v11931 = vunpack.c.h.b16 %v11631
    %v11932 = vunpack.c.l.b16 %v11632
    %v11933 = vunpack.c.h.b16 %v11632
    %v11934 = vunpack.c.l.b16 %v11633
    %v11935 = vunpack.c.h.b16 %v11633
    %v11936 = vunpack.c.l.b16 %v11634
    %v11937 = vunpack.c.h.b16 %v11634
    %v11938 = vunpack.c.l.b16 %v11635
    %v11939 = vunpack.c.h.b16 %v11635
    %v11940 = vunpack.c.l.b16 %v11636
    %v11941 = vunpack.c.h.b16 %v11636
    %v11942 = vunpack.c.l.b16 %v11637
    %v11943 = vunpack.c.h.b16 %v11637
    %v11944 = vunpack.c.l.b16 %v11638
    %v11945 = vunpack.c.h.b16 %v11638
    %v11946 = vunpack.c.l.b16 %v11639
    %v11947 = vunpack.c.h.b16 %v11639
    %v11948 = vunpack.c.l.b16 %v11640
    %v11949 = vunpack.c.h.b16 %v11640
    %v11950 = vunpack.c.l.b16 %v11641
    %v11951 = vunpack.c.h.b16 %v11641
    %v11952 = vunpack.c.l.b16 %v11642
    %v11953 = vunpack.c.h.b16 %v11642
    %v11954 = vunpack.c.l.b16 %v11643
    %v11955 = vunpack.c.h.b16 %v11643
    %v11956 = vunpack.c.l.b16 %v11644
    %v11957 = vunpack.c.h.b16 %v11644
    %v11958 = vunpack.c.l.b16 %v11645
    %v11959 = vunpack.c.h.b16 %v11645
    %v11960 = vunpack.c.l.b16 %v11646
    %v11961 = vunpack.c.h.b16 %v11646
    %v11962 = vunpack.c.l.b16 %v11647
    %v11963 = vunpack.c.h.b16 %v11647
    %v11964 = vunpack.c.l.b16 %v11648
    %v11965 = vunpack.c.h.b16 %v11648
    %v11966 = vunpack.c.l.b16 %v11649
    %v11967 = vunpack.c.h.b16 %v11649
    %v11968 = vunpack.c.l.b16 %v11650
    %v11969 = vunpack.c.h.b16 %v11650
    %v11970 = vunpack.c.l.b16 %v11651
    %v11971 = vunpack.c.h.b16 %v11651
    %v11972 = vunpack.c.l.b16 %v11652
    %v11973 = vunpack.c.h.b16 %v11652
    %v11974 = vunpack.c.l.b16 %v11653
    %v11975 = vunpack.c.h.b16 %v11653
    %v11976 = vunpack.c.l.b16 %v11654
    %v11977 = vunpack.c.h.b16 %v11654
    %v11978 = vunpack.c.l.b16 %v11655
    %v11979 = vunpack.c.h.b16 %v11655
    %v11980 = vunpack.c.l.b16 %v11656
    %v11981 = vunpack.c.h.b16 %v11656
    %v11982 = vunpack.c.l.b16 %v11657
    %v11983 = vunpack.c.h.b16 %v11657
    %v11984 = vunpack.c.l.b16 %v11658
    %v11985 = vunpack.c.h.b16 %v11658
    %v11986 = vunpack.c.l.b16 %v11659
    %v11987 = vunpack.c.h.b16 %v11659
    %v11988 = vunpack.c.l.b16 %v11660
    %v11989 = vunpack.c.h.b16 %v11660
    %v11990 = vunpack.c.l.b16 %v11661
    %v11991 = vunpack.c.h.b16 %v11661
    %v11992 = vunpack.c.l.b16 %v11662
    %v11993 = vunpack.c.h.b16 %v11662
    %v11994 = vunpack.c.l.b16 %v11663
    %v11995 = vunpack.c.h.b16 %v11663
    %v11996 = vunpack.c.l.b16 %v11664
    %v11997 = vunpack.c.h.b16 %v11664
    %v11998 = vunpack.c.l.b16 %v11665
    %v11999 = vunpack.c.h.b16 %v11665
    %v12000 = vunpack.c.l.b16 %v11666
    %v12001 = vunpack.c.h.b16 %v11666
    %v12002 = vunpack.c.l.b16 %v11667
    %v12003 = vunpack.c.h.b16 %v11667
    %v12004 = vunpack.c.l.b16 %v11668
    %v12005 = vunpack.c.h.b16 %v11668
    %v12006 = vunpack.c.l.b16 %v11669
    %v12007 = vunpack.c.h.b16 %v11669
    %v12008 = vunpack.c.l.b16 %v11670
    %v12009 = vunpack.c.h.b16 %v11670
    %v12010 = vunpack.c.l.b16 %v11671
    %v12011 = vunpack.c.h.b16 %v11671
    %v12012 = vunpack.c.l.b16 %v11672
    %v12013 = vunpack.c.h.b16 %v11672
    %v12014 = vunpack.c.l.b16 %v11673
    %v12015 = vunpack.c.h.b16 %v11673
    %v12016 = vunpack.c.l.b16 %v11674
    %v12017 = vunpack.c.h.b16 %v11674
    %v12018 = vunpack.c.l.b16 %v11675
    %v12019 = vunpack.c.h.b16 %v11675
    %v12020 = vunpack.c.l.b16 %v11676
    %v12021 = vunpack.c.h.b16 %v11676
    %v12022 = vunpack.c.l.b16 %v11677
    %v12023 = vunpack.c.h.b16 %v11677
    %v12024 = vunpack.c.l.b16 %v11678
    %v12025 = vunpack.c.h.b16 %v11678
    %v12026 = vunpack.c.l.b16 %v11679
    %v12027 = vunpack.c.h.b16 %v11679
    %v12028 = vunpack.c.l.b16 %v11680
    %v12029 = vunpack.c.h.b16 %v11680
    %v12030 = vunpack.c.l.b16 %v11681
    %v12031 = vunpack.c.h.b16 %v11681
    %v12032 = vunpack.c.l.b16 %v11682
    %v12033 = vunpack.c.h.b16 %v11682
    %v12034 = vunpack.c.l.b16 %v11683
    %v12035 = vunpack.c.h.b16 %v11683
    %v12036 = vunpack.c.l.b16 %v11684
    %v12037 = vunpack.c.h.b16 %v11684
    %v12038 = vunpack.c.l.b16 %v11685
    %v12039 = vunpack.c.h.b16 %v11685
    %v12040 = vunpack.c.l.b16 %v11686
    %v12041 = vunpack.c.h.b16 %v11686
    %v12042 = vunpack.c.l.b16 %v11687
    %v12043 = vunpack.c.h.b16 %v11687
    %v12044 = vunpack.c.l.b16 %v11688
    %v12045 = vunpack.c.h.b16 %v11688
    %v12046 = vunpack.c.l.b16 %v11689
    %v12047 = vunpack.c.h.b16 %v11689
    %v12048 = vunpack.c.l.b16 %v11690
    %v12049 = vunpack.c.h.b16 %v11690
    %v12050 = vunpack.c.l.b16 %v11691
    %v12051 = vunpack.c.h.b16 %v11691
    %v12052 = vunpack.c.l.b16 %v11692
    %v12053 = vunpack.c.h.b16 %v11692
    %v12054 = vunpack.c.l.b16 %v11693
    %v12055 = vunpack.c.h.b16 %v11693
    %v12056 = vunpack.c.l.b16 %v11694
    %v12057 = vunpack.c.h.b16 %v11694
    %v12058 = vunpack.c.l.b16 %v11695
    %v12059 = vunpack.c.h.b16 %v11695
    %v12060 = vunpack.c.l.b16 %v11696
    %v12061 = vunpack.c.h.b16 %v11696
    %v12062 = vunpack.c.l.b16 %v11697
    %v12063 = vunpack.c.h.b16 %v11697
    %v12064 = vunpack.c.l.b16 %v11698
    %v12065 = vunpack.c.h.b16 %v11698
    %v12066 = vunpack.c.l.b16 %v11699
    %v12067 = vunpack.c.h.b16 %v11699
    %v12068 = vunpack.c.l.b16 %v11700
    %v12069 = vunpack.c.h.b16 %v11700
    %v12070 = vunpack.c.l.b16 %v11701
    %v12071 = vunpack.c.h.b16 %v11701
    %v12072 = vunpack.c.l.b16 %v11702
    %v12073 = vunpack.c.h.b16 %v11702
    %v12074 = vunpack.c.l.b16 %v11703
    %v12075 = vunpack.c.h.b16 %v11703
    %v12076 = vunpack.c.l.b16 %v11704
    %v12077 = vunpack.c.h.b16 %v11704
    %v12078 = vunpack.c.l.b16 %v11705
    %v12079 = vunpack.c.h.b16 %v11705
    %v12080 = vunpack.c.l.b16 %v11706
    %v12081 = vunpack.c.h.b16 %v11706
    %v12082 = vunpack.c.l.b16 %v11707
    %v12083 = vunpack.c.h.b16 %v11707
    %v12084 = vunpack.c.l.b16 %v11708
    %v12085 = vunpack.c.h.b16 %v11708
    %v12086 = vunpack.c.l.b16 %v11709
    %v12087 = vunpack.c.h.b16 %v11709
    %v12088 = vunpack.c.l.b16 %v11710
    %v12089 = vunpack.c.h.b16 %v11710
    %v12090 = vunpack.c.l.b16 %v11711
    %v12091 = vunpack.c.h.b16 %v11711
    %v12092 = vunpack.c.l.b16 %v11712
    %v12093 = vunpack.c.h.b16 %v11712
    %v12094 = vunpack.c.l.b16 %v11713
    %v12095 = vunpack.c.h.b16 %v11713
    %v12096 = vunpack.c.l.b16 %v11714
    %v12097 = vunpack.c.h.b16 %v11714
    %v12098 = vunpack.c.l.b16 %v11715
    %v12099 = vunpack.c.h.b16 %v11715
    %v12100 = vunpack.c.l.b16 %v11716
    %v12101 = vunpack.c.h.b16 %v11716
    %v12102 = vunpack.c.l.b16 %v11717
    %v12103 = vunpack.c.h.b16 %v11717
    %v12104 = vunpack.c.l.b16 %v11718
    %v12105 = vunpack.c.h.b16 %v11718
    %v12106 = vunpack.c.l.b16 %v11719
    %v12107 = vunpack.c.h.b16 %v11719
    %v12108 = vunpack.c.l.b16 %v11720
    %v12109 = vunpack.c.h.b16 %v11720
    %v12110 = vunpack.c.l.b16 %v11721
    %v12111 = vunpack.c.h.b16 %v11721
    %v12112 = vunpack.c.l.b16 %v11722
    %v12113 = vunpack.c.h.b16 %v11722
    %v12114 = vunpack.c.l.b16 %v11723
    %v12115 = vunpack.c.h.b16 %v11723
    %v12116 = vunpack.c.l.b16 %v11724
    %v12117 = vunpack.c.h.b16 %v11724
    %v12118 = vunpack.c.l.b16 %v11725
    %v12119 = vunpack.c.h.b16 %v11725
    %v12120 = vunpack.c.l.b16 %v11726
    %v12121 = vunpack.c.h.b16 %v11726
    %v12122 = vunpack.c.l.b16 %v11727
    %v12123 = vunpack.c.h.b16 %v11727
    %v12124 = vunpack.c.l.b16 %v11728
    %v12125 = vunpack.c.h.b16 %v11728
    %v12126 = vunpack.c.l.b16 %v11729
    %v12127 = vunpack.c.h.b16 %v11729
    %v12128 = vunpack.c.l.b16 %v11730
    %v12129 = vunpack.c.h.b16 %v11730
    %v12130 = vunpack.c.l.b16 %v11731
    %v12131 = vunpack.c.h.b16 %v11731
    %v12132 = vunpack.c.l.b16 %v11732
    %v12133 = vunpack.c.h.b16 %v11732
    %v12134 = vunpack.c.l.b16 %v11733
    %v12135 = vunpack.c.h.b16 %v11733
    %v12136 = vunpack.c.l.b16 %v11734
    %v12137 = vunpack.c.h.b16 %v11734
    %v12138 = vunpack.c.l.b16 %v11735
    %v12139 = vunpack.c.h.b16 %v11735
    %v12140 = vunpack.c.l.b16 %v11736
    %v12141 = vunpack.c.h.b16 %v11736
    %v12142 = vunpack.c.l.b16 %v11737
    %v12143 = vunpack.c.h.b16 %v11737
    %v12144 = vunpack.c.l.b16 %v11738
    %v12145 = vunpack.c.h.b16 %v11738
    %v12146 = vpack.c.b16 %v11894, %v11890
    %v12147 = vpack.c.b16 %v11895, %v11891
    %v12148 = vpack.c.b16 %v11896, %v11892
    %v12149 = vpack.c.b16 %v11897, %v11893
    %v12150 = vpack.c.b16 %v11902, %v11898
    %v12151 = vpack.c.b16 %v11903, %v11899
    %v12152 = vpack.c.b16 %v11904, %v11900
    %v12153 = vpack.c.b16 %v11905, %v11901
    %v12154 = vpack.c.b16 %v11910, %v11906
    %v12155 = vpack.c.b16 %v11911, %v11907
    %v12156 = vpack.c.b16 %v11912, %v11908
    %v12157 = vpack.c.b16 %v11913, %v11909
    %v12158 = vpack.c.b16 %v11918, %v11914
    %v12159 = vpack.c.b16 %v11919, %v11915
    %v12160 = vpack.c.b16 %v11920, %v11916
    %v12161 = vpack.c.b16 %v11921, %v11917
    %v12162 = vpack.c.b16 %v11926, %v11922
    %v12163 = vpack.c.b16 %v11927, %v11923
    %v12164 = vpack.c.b16 %v11928, %v11924
    %v12165 = vpack.c.b16 %v11929, %v11925
    %v12166 = vpack.c.b16 %v11934, %v11930
    %v12167 = vpack.c.b16 %v11935, %v11931
    %v12168 = vpack.c.b16 %v11936, %v11932
    %v12169 = vpack.c.b16 %v11937, %v11933
    %v12170 = vpack.c.b16 %v11942, %v11938
    %v12171 = vpack.c.b16 %v11943, %v11939
    %v12172 = vpack.c.b16 %v11944, %v11940
    %v12173 = vpack.c.b16 %v11945, %v11941
    %v12174 = vpack.c.b16 %v11950, %v11946
    %v12175 = vpack.c.b16 %v11951, %v11947
    %v12176 = vpack.c.b16 %v11952, %v11948
    %v12177 = vpack.c.b16 %v11953, %v11949
    %v12178 = vpack.c.b16 %v11958, %v11954
    %v12179 = vpack.c.b16 %v11959, %v11955
    %v12180 = vpack.c.b16 %v11960, %v11956
    %v12181 = vpack.c.b16 %v11961, %v11957
    %v12182 = vpack.c.b16 %v11966, %v11962
    %v12183 = vpack.c.b16 %v11967, %v11963
    %v12184 = vpack.c.b16 %v11968, %v11964
    %v12185 = vpack.c.b16 %v11969, %v11965
    %v12186 = vpack.c.b16 %v11974, %v11970
    %v12187 = vpack.c.b16 %v11975, %v11971
    %v12188 = vpack.c.b16 %v11976, %v11972
    %v12189 = vpack.c.b16 %v11977, %v11973
    %v12190 = vpack.c.b16 %v11982, %v11978
    %v12191 = vpack.c.b16 %v11983, %v11979
    %v12192 = vpack.c.b16 %v11984, %v11980
    %v12193 = vpack.c.b16 %v11985, %v11981
    %v12194 = vpack.c.b16 %v11990, %v11986
    %v12195 = vpack.c.b16 %v11991, %v11987
    %v12196 = vpack.c.b16 %v11992, %v11988
    %v12197 = vpack.c.b16 %v11993, %v11989
    %v12198 = vpack.c.b16 %v11998, %v11994
    %v12199 = vpack.c.b16 %v11999, %v11995
    %v12200 = vpack.c.b16 %v12000, %v11996
    %v12201 = vpack.c.b16 %v12001, %v11997
    %v12202 = vpack.c.b16 %v12006, %v12002
    %v12203 = vpack.c.b16 %v12007, %v12003
    %v12204 = vpack.c.b16 %v12008, %v12004
    %v12205 = vpack.c.b16 %v12009, %v12005
    %v12206 = vpack.c.b16 %v12014, %v12010
    %v12207 = vpack.c.b16 %v12015, %v12011
    %v12208 = vpack.c.b16 %v12016, %v12012
    %v12209 = vpack.c.b16 %v12017, %v12013
    %v12210 = vpack.c.b16 %v12022, %v12018
    %v12211 = vpack.c.b16 %v12023, %v12019
    %v12212 = vpack.c.b16 %v12024, %v12020
    %v12213 = vpack.c.b16 %v12025, %v12021
    %v12214 = vpack.c.b16 %v12030, %v12026
    %v12215 = vpack.c.b16 %v12031, %v12027
    %v12216 = vpack.c.b16 %v12032, %v12028
    %v12217 = vpack.c.b16 %v12033, %v12029
    %v12218 = vpack.c.b16 %v12038, %v12034
    %v12219 = vpack.c.b16 %v12039, %v12035
    %v12220 = vpack.c.b16 %v12040, %v12036
    %v12221 = vpack.c.b16 %v12041, %v12037
    %v12222 = vpack.c.b16 %v12046, %v12042
    %v12223 = vpack.c.b16 %v12047, %v12043
    %v12224 = vpack.c.b16 %v12048, %v12044
    %v12225 = vpack.c.b16 %v12049, %v12045
    %v12226 = vpack.c.b16 %v12054, %v12050
    %v12227 = vpack.c.b16 %v12055, %v12051
    %v12228 = vpack.c.b16 %v12056, %v12052
    %v12229 = vpack.c.b16 %v12057, %v12053
    %v12230 = vpack.c.b16 %v12062, %v12058
    %v12231 = vpack.c.b16 %v12063, %v12059
    %v12232 = vpack.c.b16 %v12064, %v12060
    %v12233 = vpack.c.b16 %v12065, %v12061
    %v12234 = vpack.c.b16 %v12070, %v12066
    %v12235 = vpack.c.b16 %v12071, %v12067
    %v12236 = vpack.c.b16 %v12072, %v12068
    %v12237 = vpack.c.b16 %v12073, %v12069
    %v12238 = vpack.c.b16 %v12078, %v12074
    %v12239 = vpack.c.b16 %v12079, %v12075
    %v12240 = vpack.c.b16 %v12080, %v12076
    %v12241 = vpack.c.b16 %v12081, %v12077
    %v12242 = vpack.c.b16 %v12086, %v12082
    %v12243 = vpack.c.b16 %v12087, %v12083
    %v12244 = vpack.c.b16 %v12088, %v12084
    %v12245 = vpack.c.b16 %v12089, %v12085
    %v12246 = vpack.c.b16 %v12094, %v12090
    %v12247 = vpack.c.b16 %v12095, %v12091
    %v12248 = vpack.c.b16 %v12096, %v12092
    %v12249 = vpack.c.b16 %v12097, %v12093
    %v12250 = vpack.c.b16 %v12102, %v12098
    %v12251 = vpack.c.b16 %v12103, %v12099
    %v12252 = vpack.c.b16 %v12104, %v12100
    %v12253 = vpack.c.b16 %v12105, %v12101
    %v12254 = vpack.c.b16 %v12110, %v12106
    %v12255 = vpack.c.b16 %v12111, %v12107
    %v12256 = vpack.c.b16 %v12112, %v12108
    %v12257 = vpack.c.b16 %v12113, %v12109
    %v12258 = vpack.c.b16 %v12118, %v12114
    %v12259 = vpack.c.b16 %v12119, %v12115
    %v12260 = vpack.c.b16 %v12120, %v12116
    %v12261 = vpack.c.b16 %v12121, %v12117
    %v12262 = vpack.c.b16 %v12126, %v12122
    %v12263 = vpack.c.b16 %v12127, %v12123
    %v12264 = vpack.c.b16 %v12128, %v12124
    %v12265 = vpack.c.b16 %v12129, %v12125
    %v12266 = vpack.c.b16 %v12134, %v12130
    %v12267 = vpack.c.b16 %v12135, %v12131
    %v12268 = vpack.c.b16 %v12136, %v12132
    %v12269 = vpack.c.b16 %v12137, %v12133
    %v12270 = vpack.c.b16 %v12142, %v12138
    %v12271 = vpack.c.b16 %v12143, %v12139
    %v12272 = vpack.c.b16 %v12144, %v12140
    %v12273 = vpack.c.b16 %v12145, %v12141
    %12402 = vmatprep.subr.bf16.mxu0 %v12147
    %12403 = vmatpush1.bf16.msra.mxu0 %v12146
    %12404 = vmatprep.subr.bf16.mxu0 %v12151
    %12405 = vmatpush1.bf16.msra.mxu0 %v12150
    %12406 = vmatprep.subr.bf16.mxu0 %v12155
    %12407 = vmatpush1.bf16.msra.mxu0 %v12154
    %12408 = vmatprep.subr.bf16.mxu0 %v12159
    %12409 = vmatpush1.bf16.msra.mxu0 %v12158
    %12410 = vmatprep.subr.bf16.mxu0 %v12163
    %12411 = vmatpush1.bf16.msra.mxu0 %v12162
    %12412 = vmatprep.subr.bf16.mxu0 %v12167
    %12413 = vmatpush1.bf16.msra.mxu0 %v12166
    %12414 = vmatprep.subr.bf16.mxu0 %v12171
    %12415 = vmatpush1.bf16.msra.mxu0 %v12170
    %12416 = vmatprep.subr.bf16.mxu0 %v12175
    %12417 = vmatpush1.bf16.msra.mxu0 %v12174
    %12418 = vmatprep.subr.bf16.mxu0 %v12179
    %12419 = vmatpush1.bf16.msra.mxu0 %v12178
    %12420 = vmatprep.subr.bf16.mxu0 %v12183
    %12421 = vmatpush1.bf16.msra.mxu0 %v12182
    %12422 = vmatprep.subr.bf16.mxu0 %v12187
    %12423 = vmatpush1.bf16.msra.mxu0 %v12186
    %12424 = vmatprep.subr.bf16.mxu0 %v12191
    %12425 = vmatpush1.bf16.msra.mxu0 %v12190
    %12426 = vmatprep.subr.bf16.mxu0 %v12195
    %12427 = vmatpush1.bf16.msra.mxu0 %v12194
    %12428 = vmatprep.subr.bf16.mxu0 %v12199
    %12429 = vmatpush1.bf16.msra.mxu0 %v12198
    %12430 = vmatprep.subr.bf16.mxu0 %v12203
    %12431 = vmatpush1.bf16.msra.mxu0 %v12202
    %12432 = vmatprep.subr.bf16.mxu0 %v12207
    %12433 = vmatpush1.bf16.msra.mxu0 %v12206
    %12434 = vmatprep.mubr.bf16.mxu0 %v11608
    %12435 = vmatmul.mubr.bf16.gmra.mrb[0].mxu0 %v11607
    %v12436 = vpop.f32.mrb[0].mxu0
    %v12437 = vadd.f32 %v11745, %v12436
    %v12438 = vpop.f32.mrb[0].mxu0
    %v12439 = vadd.f32 %v11749, %v12438
    %v12440 = vpop.f32.mrb[0].mxu0
    %v12441 = vpop.f32.mrb[0].mxu0
    %12442 = vdwg.mxu0
    %12443 = vmatprep.subr.bf16.mxu0 %v12211
    %12444 = vmatpush1.bf16.msra.mxu0 %v12210
    %12445 = vmatprep.subr.bf16.mxu0 %v12215
    %12446 = vmatpush1.bf16.msra.mxu0 %v12214
    %12447 = vmatprep.subr.bf16.mxu0 %v12219
    %12448 = vmatpush1.bf16.msra.mxu0 %v12218
    %12449 = vmatprep.subr.bf16.mxu0 %v12223
    %12450 = vmatpush1.bf16.msra.mxu0 %v12222
    %12451 = vmatprep.subr.bf16.mxu0 %v12227
    %12452 = vmatpush1.bf16.msra.mxu0 %v12226
    %12453 = vmatprep.subr.bf16.mxu0 %v12231
    %12454 = vmatpush1.bf16.msra.mxu0 %v12230
    %12455 = vmatprep.subr.bf16.mxu0 %v12235
    %12456 = vmatpush1.bf16.msra.mxu0 %v12234
    %12457 = vmatprep.subr.bf16.mxu0 %v12239
    %12458 = vmatpush1.bf16.msra.mxu0 %v12238
    %12459 = vmatprep.subr.bf16.mxu0 %v12243
    %12460 = vmatpush1.bf16.msra.mxu0 %v12242
    %12461 = vmatprep.subr.bf16.mxu0 %v12247
    %12462 = vmatpush1.bf16.msra.mxu0 %v12246
    %12463 = vmatprep.subr.bf16.mxu0 %v12251
    %12464 = vmatpush1.bf16.msra.mxu0 %v12250
    %12465 = vmatprep.subr.bf16.mxu0 %v12255
    %12466 = vmatpush1.bf16.msra.mxu0 %v12254
    %12467 = vmatprep.subr.bf16.mxu0 %v12259
    %12468 = vmatpush1.bf16.msra.mxu0 %v12258
    %12469 = vmatprep.subr.bf16.mxu0 %v12263
    %12470 = vmatpush1.bf16.msra.mxu0 %v12262
    %12471 = vmatprep.subr.bf16.mxu0 %v12267
    %12472 = vmatpush1.bf16.msra.mxu0 %v12266
    %12473 = vmatprep.subr.bf16.mxu0 %v12271
    %12474 = vmatpush1.bf16.msra.mxu0 %v12270
    %12475 = vmatprep.mubr.bf16.mxu0 %v11610
    %12476 = vmatmul.mubr.bf16.gmra.mrb[0].mxu0 %v11609
    %v12477 = vpop.f32.mrb[0].mxu0
    %v12478 = vadd.f32 %v12437, %v12477
    %v12479 = vpop.f32.mrb[0].mxu0
    %v12480 = vadd.f32 %v12439, %v12479
    %v12481 = vpop.f32.mrb[0].mxu0
    %v12482 = vpop.f32.mrb[0].mxu0
    %12483 = vdwg.mxu0
    %12484 = vmatprep.subr.bf16.mxu0 %v12149
    %12485 = vmatpush1.bf16.msra.mxu0 %v12148
    %12486 = vmatprep.subr.bf16.mxu0 %v12153
    %12487 = vmatpush1.bf16.msra.mxu0 %v12152
    %12488 = vmatprep.subr.bf16.mxu0 %v12157
    %12489 = vmatpush1.bf16.msra.mxu0 %v12156
    %12490 = vmatprep.subr.bf16.mxu0 %v12161
    %12491 = vmatpush1.bf16.msra.mxu0 %v12160
    %12492 = vmatprep.subr.bf16.mxu0 %v12165
    %12493 = vmatpush1.bf16.msra.mxu0 %v12164
    %12494 = vmatprep.subr.bf16.mxu0 %v12169
    %12495 = vmatpush1.bf16.msra.mxu0 %v12168
    %12496 = vmatprep.subr.bf16.mxu0 %v12173
    %12497 = vmatpush1.bf16.msra.mxu0 %v12172
    %12498 = vmatprep.subr.bf16.mxu0 %v12177
    %12499 = vmatpush1.bf16.msra.mxu0 %v12176
    %12500 = vmatprep.subr.bf16.mxu0 %v12181
    %12501 = vmatpush1.bf16.msra.mxu0 %v12180
    %12502 = vmatprep.subr.bf16.mxu0 %v12185
    %12503 = vmatpush1.bf16.msra.mxu0 %v12184
    %12504 = vmatprep.subr.bf16.mxu0 %v12189
    %12505 = vmatpush1.bf16.msra.mxu0 %v12188
    %12506 = vmatprep.subr.bf16.mxu0 %v12193
    %12507 = vmatpush1.bf16.msra.mxu0 %v12192
    %12508 = vmatprep.subr.bf16.mxu0 %v12197
    %12509 = vmatpush1.bf16.msra.mxu0 %v12196
    %12510 = vmatprep.subr.bf16.mxu0 %v12201
    %12511 = vmatpush1.bf16.msra.mxu0 %v12200
    %12512 = vmatprep.subr.bf16.mxu0 %v12205
    %12513 = vmatpush1.bf16.msra.mxu0 %v12204
    %12514 = vmatprep.subr.bf16.mxu0 %v12209
    %12515 = vmatpush1.bf16.msra.mxu0 %v12208
    %12516 = vmatprep.mubr.bf16.mxu0 %v11608
    %12517 = vmatmul.mubr.bf16.gmra.mrb[0].mxu0 %v11607
    %v12518 = vpop.f32.mrb[0].mxu0
    %v12519 = vadd.f32 %v11753, %v12518
    %v12520 = vpop.f32.mrb[0].mxu0
    %v12521 = vadd.f32 %v11757, %v12520
    %v12522 = vpop.f32.mrb[0].mxu0
    %v12523 = vpop.f32.mrb[0].mxu0
    %12524 = vdwg.mxu0
    %12525 = vmatprep.subr.bf16.mxu0 %v12213
    %12526 = vmatpush1.bf16.msra.mxu0 %v12212
    %12527 = vmatprep.subr.bf16.mxu0 %v12217
    %12528 = vmatpush1.bf16.msra.mxu0 %v12216
    %12529 = vmatprep.subr.bf16.mxu0 %v12221
    %12530 = vmatpush1.bf16.msra.mxu0 %v12220
    %12531 = vmatprep.subr.bf16.mxu0 %v12225
    %12532 = vmatpush1.bf16.msra.mxu0 %v12224
    %12533 = vmatprep.subr.bf16.mxu0 %v12229
    %12534 = vmatpush1.bf16.msra.mxu0 %v12228
    %12535 = vmatprep.subr.bf16.mxu0 %v12233
    %12536 = vmatpush1.bf16.msra.mxu0 %v12232
    %12537 = vmatprep.subr.bf16.mxu0 %v12237
    %12538 = vmatpush1.bf16.msra.mxu0 %v12236
    %12539 = vmatprep.subr.bf16.mxu0 %v12241
    %12540 = vmatpush1.bf16.msra.mxu0 %v12240
    %12541 = vmatprep.subr.bf16.mxu0 %v12245
    %12542 = vmatpush1.bf16.msra.mxu0 %v12244
    %12543 = vmatprep.subr.bf16.mxu0 %v12249
    %12544 = vmatpush1.bf16.msra.mxu0 %v12248
    %12545 = vmatprep.subr.bf16.mxu0 %v12253
    %12546 = vmatpush1.bf16.msra.mxu0 %v12252
    %12547 = vmatprep.subr.bf16.mxu0 %v12257
    %12548 = vmatpush1.bf16.msra.mxu0 %v12256
    %12549 = vmatprep.subr.bf16.mxu0 %v12261
    %12550 = vmatpush1.bf16.msra.mxu0 %v12260
    %12551 = vmatprep.subr.bf16.mxu0 %v12265
    %12552 = vmatpush1.bf16.msra.mxu0 %v12264
    %12553 = vmatprep.subr.bf16.mxu0 %v12269
    %12554 = vmatpush1.bf16.msra.mxu0 %v12268
    %12555 = vmatprep.subr.bf16.mxu0 %v12273
    %12556 = vmatpush1.bf16.msra.mxu0 %v12272
    %12557 = vmatprep.mubr.bf16.mxu0 %v11610
    %12558 = vmatmul.mubr.bf16.gmra.mrb[0].mxu0 %v11609
    %v12559 = vpop.f32.mrb[0].mxu0
    %v12560 = vadd.f32 %v12519, %v12559
    %v12561 = vpop.f32.mrb[0].mxu0
    %v12562 = vadd.f32 %v12521, %v12561
    %v12563 = vpop.f32.mrb[0].mxu0
    %v12564 = vpop.f32.mrb[0].mxu0
    %12565 = vdwg.mxu0
    %v12566 = vmax.f32 %v12478, 0.0
    %v12567 = vmax.f32 %v12480, 0.0
    %v12568 = vmax.f32 %v12560, 0.0
    %v12569 = vmax.f32 %v12562, 0.0
    %v12570 = vpack.c.bf16 %v12566, %v12566
    %v12571 = vpack.c.bf16 %v12567, %v12567
    %v12572 = vpack.c.bf16 %v12568, %v12568
    %v12573 = vpack.c.bf16 %v12569, %v12569
    %v12574 = vld [vmem:[#allocation16] sm:$0xf]
    %v12575 = vld [vmem:[#allocation16 + $0x4] sm:$0xf]
    %v12576 = vld [vmem:[#allocation16 + $0x8] sm:$0xf]
    %v12577 = vld [vmem:[#allocation16 + $0xc] sm:$0xf]
    %v12578 = vld [vmem:[#allocation16 + $0x10] sm:$0xf]
    %v12579 = vld [vmem:[#allocation16 + $0x14] sm:$0xf]
    %v12580 = vld [vmem:[#allocation16 + $0x18] sm:$0xf]
    %v12581 = vld [vmem:[#allocation16 + $0x1c] sm:$0xf]
    %v12582 = vld [vmem:[#allocation16 + $0x20] sm:$0xf]
    %v12583 = vld [vmem:[#allocation16 + $0x24] sm:$0xf]
    %v12584 = vld [vmem:[#allocation16 + $0x28] sm:$0xf]
    %v12585 = vld [vmem:[#allocation16 + $0x2c] sm:$0xf]
    %v12586 = vld [vmem:[#allocation16 + $0x30] sm:$0xf]
    %v12587 = vld [vmem:[#allocation16 + $0x34] sm:$0xf]
    %v12588 = vld [vmem:[#allocation16 + $0x38] sm:$0xf]
    %v12589 = vld [vmem:[#allocation16 + $0x3c] sm:$0xf]
    %v12590 = vld [vmem:[#allocation16 + $0x40] sm:$0xf]
    %v12591 = vld [vmem:[#allocation16 + $0x44] sm:$0xf]
    %v12592 = vld [vmem:[#allocation16 + $0x48] sm:$0xf]
    %v12593 = vld [vmem:[#allocation16 + $0x4c] sm:$0xf]
    %v12594 = vld [vmem:[#allocation16 + $0x50] sm:$0xf]
    %v12595 = vld [vmem:[#allocation16 + $0x54] sm:$0xf]
    %v12596 = vld [vmem:[#allocation16 + $0x58] sm:$0xf]
    %v12597 = vld [vmem:[#allocation16 + $0x5c] sm:$0xf]
    %v12598 = vld [vmem:[#allocation16 + $0x60] sm:$0xf]
    %v12599 = vld [vmem:[#allocation16 + $0x64] sm:$0xf]
    %v12600 = vld [vmem:[#allocation16 + $0x68] sm:$0xf]
    %v12601 = vld [vmem:[#allocation16 + $0x6c] sm:$0xf]
    %v12602 = vld [vmem:[#allocation16 + $0x70] sm:$0xf]
    %v12603 = vld [vmem:[#allocation16 + $0x74] sm:$0xf]
    %v12604 = vld [vmem:[#allocation16 + $0x78] sm:$0xf]
    %v12605 = vld [vmem:[#allocation16 + $0x7c] sm:$0xf]
    %v12606 = vld [vmem:[#allocation16 + $0x80] sm:$0xf]
    %v12607 = vld [vmem:[#allocation16 + $0x84] sm:$0xf]
    %v12608 = vld [vmem:[#allocation16 + $0x88] sm:$0xf]
    %v12609 = vld [vmem:[#allocation16 + $0x8c] sm:$0xf]
    %v12610 = vld [vmem:[#allocation16 + $0x90] sm:$0xf]
    %v12611 = vld [vmem:[#allocation16 + $0x94] sm:$0xf]
    %v12612 = vld [vmem:[#allocation16 + $0x98] sm:$0xf]
    %v12613 = vld [vmem:[#allocation16 + $0x9c] sm:$0xf]
    %v12614 = vld [vmem:[#allocation16 + $0xa0] sm:$0xf]
    %v12615 = vld [vmem:[#allocation16 + $0xa4] sm:$0xf]
    %v12616 = vld [vmem:[#allocation16 + $0xa8] sm:$0xf]
    %v12617 = vld [vmem:[#allocation16 + $0xac] sm:$0xf]
    %v12618 = vld [vmem:[#allocation16 + $0xb0] sm:$0xf]
    %v12619 = vld [vmem:[#allocation16 + $0xb4] sm:$0xf]
    %v12620 = vld [vmem:[#allocation16 + $0xb8] sm:$0xf]
    %v12621 = vld [vmem:[#allocation16 + $0xbc] sm:$0xf]
    %v12622 = vld [vmem:[#allocation16 + $0xc0] sm:$0xf]
    %v12623 = vld [vmem:[#allocation16 + $0xc4] sm:$0xf]
    %v12624 = vld [vmem:[#allocation16 + $0xc8] sm:$0xf]
    %v12625 = vld [vmem:[#allocation16 + $0xcc] sm:$0xf]
    %v12626 = vld [vmem:[#allocation16 + $0xd0] sm:$0xf]
    %v12627 = vld [vmem:[#allocation16 + $0xd4] sm:$0xf]
    %v12628 = vld [vmem:[#allocation16 + $0xd8] sm:$0xf]
    %v12629 = vld [vmem:[#allocation16 + $0xdc] sm:$0xf]
    %v12630 = vld [vmem:[#allocation16 + $0xe0] sm:$0xf]
    %v12631 = vld [vmem:[#allocation16 + $0xe4] sm:$0xf]
    %v12632 = vld [vmem:[#allocation16 + $0xe8] sm:$0xf]
    %v12633 = vld [vmem:[#allocation16 + $0xec] sm:$0xf]
    %v12634 = vld [vmem:[#allocation16 + $0xf0] sm:$0xf]
    %v12635 = vld [vmem:[#allocation16 + $0xf4] sm:$0xf]
    %v12636 = vld [vmem:[#allocation16 + $0xf8] sm:$0xf]
    %v12637 = vld [vmem:[#allocation16 + $0xfc] sm:$0xf]
    %v12638 = vld [vmem:[#allocation17 + $0x7] ss:$0 sm:$0xff]
    %v12703 = vunpack.c.l.b16 %v12574
    %v12704 = vunpack.c.l.b16 %v12575
    %v12705 = vunpack.c.l.b16 %v12576
    %v12706 = vunpack.c.l.b16 %v12577
    %v12707 = vunpack.c.l.b16 %v12578
    %v12708 = vunpack.c.l.b16 %v12579
    %v12709 = vunpack.c.l.b16 %v12580
    %v12710 = vunpack.c.l.b16 %v12581
    %v12711 = vunpack.c.l.b16 %v12582
    %v12712 = vunpack.c.l.b16 %v12583
    %v12713 = vunpack.c.l.b16 %v12584
    %v12714 = vunpack.c.l.b16 %v12585
    %v12715 = vunpack.c.l.b16 %v12586
    %v12716 = vunpack.c.l.b16 %v12587
    %v12717 = vunpack.c.l.b16 %v12588
    %v12718 = vunpack.c.l.b16 %v12589
    %v12719 = vunpack.c.l.b16 %v12590
    %v12720 = vunpack.c.l.b16 %v12591
    %v12721 = vunpack.c.l.b16 %v12592
    %v12722 = vunpack.c.l.b16 %v12593
    %v12723 = vunpack.c.l.b16 %v12594
    %v12724 = vunpack.c.l.b16 %v12595
    %v12725 = vunpack.c.l.b16 %v12596
    %v12726 = vunpack.c.l.b16 %v12597
    %v12727 = vunpack.c.l.b16 %v12598
    %v12728 = vunpack.c.l.b16 %v12599
    %v12729 = vunpack.c.l.b16 %v12600
    %v12730 = vunpack.c.l.b16 %v12601
    %v12731 = vunpack.c.l.b16 %v12602
    %v12732 = vunpack.c.l.b16 %v12603
    %v12733 = vunpack.c.l.b16 %v12604
    %v12734 = vunpack.c.l.b16 %v12605
    %v12735 = vunpack.c.l.b16 %v12606
    %v12736 = vunpack.c.l.b16 %v12607
    %v12737 = vunpack.c.l.b16 %v12608
    %v12738 = vunpack.c.l.b16 %v12609
    %v12739 = vunpack.c.l.b16 %v12610
    %v12740 = vunpack.c.l.b16 %v12611
    %v12741 = vunpack.c.l.b16 %v12612
    %v12742 = vunpack.c.l.b16 %v12613
    %v12743 = vunpack.c.l.b16 %v12614
    %v12744 = vunpack.c.l.b16 %v12615
    %v12745 = vunpack.c.l.b16 %v12616
    %v12746 = vunpack.c.l.b16 %v12617
    %v12747 = vunpack.c.l.b16 %v12618
    %v12748 = vunpack.c.l.b16 %v12619
    %v12749 = vunpack.c.l.b16 %v12620
    %v12750 = vunpack.c.l.b16 %v12621
    %v12751 = vunpack.c.l.b16 %v12622
    %v12752 = vunpack.c.l.b16 %v12623
    %v12753 = vunpack.c.l.b16 %v12624
    %v12754 = vunpack.c.l.b16 %v12625
    %v12755 = vunpack.c.l.b16 %v12626
    %v12756 = vunpack.c.l.b16 %v12627
    %v12757 = vunpack.c.l.b16 %v12628
    %v12758 = vunpack.c.l.b16 %v12629
    %v12759 = vunpack.c.l.b16 %v12630
    %v12760 = vunpack.c.l.b16 %v12631
    %v12761 = vunpack.c.l.b16 %v12632
    %v12762 = vunpack.c.l.b16 %v12633
    %v12763 = vunpack.c.l.b16 %v12634
    %v12764 = vunpack.c.l.b16 %v12635
    %v12765 = vunpack.c.l.b16 %v12636
    %v12766 = vunpack.c.l.b16 %v12637
    %v12767 = vpack.c.b16 %v12704, %v12703
    %v12768 = vpack.c.b16 %v12706, %v12705
    %v12769 = vpack.c.b16 %v12708, %v12707
    %v12770 = vpack.c.b16 %v12710, %v12709
    %v12771 = vpack.c.b16 %v12712, %v12711
    %v12772 = vpack.c.b16 %v12714, %v12713
    %v12773 = vpack.c.b16 %v12716, %v12715
    %v12774 = vpack.c.b16 %v12718, %v12717
    %v12775 = vpack.c.b16 %v12720, %v12719
    %v12776 = vpack.c.b16 %v12722, %v12721
    %v12777 = vpack.c.b16 %v12724, %v12723
    %v12778 = vpack.c.b16 %v12726, %v12725
    %v12779 = vpack.c.b16 %v12728, %v12727
    %v12780 = vpack.c.b16 %v12730, %v12729
    %v12781 = vpack.c.b16 %v12732, %v12731
    %v12782 = vpack.c.b16 %v12734, %v12733
    %v12783 = vpack.c.b16 %v12736, %v12735
    %v12784 = vpack.c.b16 %v12738, %v12737
    %v12785 = vpack.c.b16 %v12740, %v12739
    %v12786 = vpack.c.b16 %v12742, %v12741
    %v12787 = vpack.c.b16 %v12744, %v12743
    %v12788 = vpack.c.b16 %v12746, %v12745
    %v12789 = vpack.c.b16 %v12748, %v12747
    %v12790 = vpack.c.b16 %v12750, %v12749
    %v12791 = vpack.c.b16 %v12752, %v12751
    %v12792 = vpack.c.b16 %v12754, %v12753
    %v12793 = vpack.c.b16 %v12756, %v12755
    %v12794 = vpack.c.b16 %v12758, %v12757
    %v12795 = vpack.c.b16 %v12760, %v12759
    %v12796 = vpack.c.b16 %v12762, %v12761
    %v12797 = vpack.c.b16 %v12764, %v12763
    %v12798 = vpack.c.b16 %v12766, %v12765
    %12831 = vmatprep.subr.bf16.mxu0 0
    %12832 = vmatpush1.bf16.msra.mxu0 %v12767
    %12833 = vmatprep.subr.bf16.mxu0 0
    %12834 = vmatpush1.bf16.msra.mxu0 %v12768
    %12835 = vmatprep.subr.bf16.mxu0 0
    %12836 = vmatpush1.bf16.msra.mxu0 %v12769
    %12837 = vmatprep.subr.bf16.mxu0 0
    %12838 = vmatpush1.bf16.msra.mxu0 %v12770
    %12839 = vmatprep.subr.bf16.mxu0 0
    %12840 = vmatpush1.bf16.msra.mxu0 %v12771
    %12841 = vmatprep.subr.bf16.mxu0 0
    %12842 = vmatpush1.bf16.msra.mxu0 %v12772
    %12843 = vmatprep.subr.bf16.mxu0 0
    %12844 = vmatpush1.bf16.msra.mxu0 %v12773
    %12845 = vmatprep.subr.bf16.mxu0 0
    %12846 = vmatpush1.bf16.msra.mxu0 %v12774
    %12847 = vmatprep.subr.bf16.mxu0 0
    %12848 = vmatpush1.bf16.msra.mxu0 %v12775
    %12849 = vmatprep.subr.bf16.mxu0 0
    %12850 = vmatpush1.bf16.msra.mxu0 %v12776
    %12851 = vmatprep.subr.bf16.mxu0 0
    %12852 = vmatpush1.bf16.msra.mxu0 %v12777
    %12853 = vmatprep.subr.bf16.mxu0 0
    %12854 = vmatpush1.bf16.msra.mxu0 %v12778
    %12855 = vmatprep.subr.bf16.mxu0 0
    %12856 = vmatpush1.bf16.msra.mxu0 %v12779
    %12857 = vmatprep.subr.bf16.mxu0 0
    %12858 = vmatpush1.bf16.msra.mxu0 %v12780
    %12859 = vmatprep.subr.bf16.mxu0 0
    %12860 = vmatpush1.bf16.msra.mxu0 %v12781
    %12861 = vmatprep.subr.bf16.mxu0 0
    %12862 = vmatpush1.bf16.msra.mxu0 %v12782
    %12863 = vmatprep.mubr.bf16.mxu0 %v12571
    %12864 = vmatmul.mubr.bf16.gmra.mrb[0].mxu0 %v12570
    %v12865 = vpop.f32.mrb[0].mxu0
    %v12866 = vadd.f32 %v12638, %v12865
    %v12867 = vpop.f32.mrb[0].mxu0
    %v12868 = vpop.f32.mrb[0].mxu0
    %v12869 = vpop.f32.mrb[0].mxu0
    %12870 = vdwg.mxu0
    %12871 = vmatprep.subr.bf16.mxu0 0
    %12872 = vmatpush1.bf16.msra.mxu0 %v12783
    %12873 = vmatprep.subr.bf16.mxu0 0
    %12874 = vmatpush1.bf16.msra.mxu0 %v12784
    %12875 = vmatprep.subr.bf16.mxu0 0
    %12876 = vmatpush1.bf16.msra.mxu0 %v12785
    %12877 = vmatprep.subr.bf16.mxu0 0
    %12878 = vmatpush1.bf16.msra.mxu0 %v12786
    %12879 = vmatprep.subr.bf16.mxu0 0
    %12880 = vmatpush1.bf16.msra.mxu0 %v12787
    %12881 = vmatprep.subr.bf16.mxu0 0
    %12882 = vmatpush1.bf16.msra.mxu0 %v12788
    %12883 = vmatprep.subr.bf16.mxu0 0
    %12884 = vmatpush1.bf16.msra.mxu0 %v12789
    %12885 = vmatprep.subr.bf16.mxu0 0
    %12886 = vmatpush1.bf16.msra.mxu0 %v12790
    %12887 = vmatprep.subr.bf16.mxu0 0
    %12888 = vmatpush1.bf16.msra.mxu0 %v12791
    %12889 = vmatprep.subr.bf16.mxu0 0
    %12890 = vmatpush1.bf16.msra.mxu0 %v12792
    %12891 = vmatprep.subr.bf16.mxu0 0
    %12892 = vmatpush1.bf16.msra.mxu0 %v12793
    %12893 = vmatprep.subr.bf16.mxu0 0
    %12894 = vmatpush1.bf16.msra.mxu0 %v12794
    %12895 = vmatprep.subr.bf16.mxu0 0
    %12896 = vmatpush1.bf16.msra.mxu0 %v12795
    %12897 = vmatprep.subr.bf16.mxu0 0
    %12898 = vmatpush1.bf16.msra.mxu0 %v12796
    %12899 = vmatprep.subr.bf16.mxu0 0
    %12900 = vmatpush1.bf16.msra.mxu0 %v12797
    %12901 = vmatprep.subr.bf16.mxu0 0
    %12902 = vmatpush1.bf16.msra.mxu0 %v12798
    %12903 = vmatprep.mubr.bf16.mxu0 %v12573
    %12904 = vmatmul.mubr.bf16.gmra.mrb[0].mxu0 %v12572
    %v12905 = vpop.f32.mrb[0].mxu0
    %v12906 = vadd.f32 %v12866, %v12905
    %v12907 = vpop.f32.mrb[0].mxu0
    %v12908 = vpop.f32.mrb[0].mxu0
    %v12909 = vpop.f32.mrb[0].mxu0
    %12910 = vdwg.mxu0
    %v12911 = vmax.f32 %v12906, 0.0
    %12912 = vst [vmem:[#allocation19] sm:$0xff] %v12911
    // Predicated region
    $region82: #{tpu_custom_call.1} parent=1 // pred_check
      _
    $region83: #{tpu_custom_call.1} parent=1 // pred_check_branch
      %12914 = sbr.rel (0) target = $region85
    $region84: #{tpu_custom_call.1} parent=1 // pred_region
      %s12916 = ssub.s32 128, 128
      %12917 = vsyncadd [#allocation4], %s12916
      %s12919 = sshll.u32 [#allocation19], 4
      %s12920 = int_to_ptr.vmem [resolvable:$true] %s12919
      %12922 = dma.vmem_to_hbm [thread:$0]  %s12920, 128, %s10, [#allocation4]
    $region85: #{tpu_custom_call.1} parent=1 // pred_fallthru
      _
    // Predicated region
    $region86: #{tpu_custom_call.1} parent=1 // pred_check
      _
    $region87: #{tpu_custom_call.1} parent=1 // pred_check_branch
      %12924 = sbr.rel (0) target = $region89
    $region88: #{tpu_custom_call.1} parent=1 // pred_region
      %12925 = dma.done [#allocation4], 128
    $region89: #{tpu_custom_call.1} parent=1 // pred_fallthru
      _
    %12926 = vsyncpa [#allocation3], 1
    %12927 = vsyncpa [#allocation6], 1
    %12928 = vsyncpa [#allocation9], 1
    %12929 = vsyncpa [#allocation12], 1
    %12930 = vsyncpa [#allocation15], 1
    %12931 = vsyncpa [#allocation18], 1
    %12932 = vsyncpa [#allocation4], 1

</llo_original>
